<compile_context>
chip_gen: v6e
topology: v6e:2x2x1
jax: 0.10.0
libtpu: 0.0.40
codegen_flags: <defaults>
</compile_context>

<pallas_src>
import math

import jax
import jax.numpy as jnp
from jax.experimental import pallas as pl
from jax.experimental.pallas import tpu as pltpu


def _round_up(x, m):
    return (x + m - 1) // m * m


_LIN1_K = 11760
_LIN1_KP = _round_up(_LIN1_K, 128)   # 11776 = 128 * 92 (minimal lane-aligned pad)
_LIN1_TK = 2944                      # 11776 / 4 -> 4 K steps, 2.9 MB bf16 blocks
_LIN1_TN = 512                       # 2 parallel N tiles (megacore on v7x)


# ----------------------------------------------------------------------------
# Kernel 1: single-shot conv GEMM with fused bias -> ReLU -> BN-affine epilogue
#   out = relu(x @ w + b) * scale + shift      (matches conv->relu->BatchNorm)
# Full-extent blocks (exempt from the (8,128) divisibility rule); grid = (1,).
# ----------------------------------------------------------------------------
def _conv_gemm_kernel(x_ref, w_ref, b_ref, s_ref, t_ref, o_ref):
    y = jnp.dot(x_ref[...], w_ref[...], preferred_element_type=jnp.float32)
    y = jnp.maximum(y + b_ref[...], 0.0)
    o_ref[...] = (y * s_ref[...] + t_ref[...]).astype(o_ref.dtype)


def conv_gemm(x, w, b, scale, shift):
    """x:(M,K) f32, w:(K,N) f32, b/scale/shift:(1,N) f32 -> (M,N) f32."""
    M, K = x.shape
    Kw, N = w.shape
    assert K == Kw
    Mp = _round_up(M, 8)
    if Mp != M:
        x = jnp.pad(x, ((0, Mp - M), (0, 0)))
    out = pl.pallas_call(
        _conv_gemm_kernel,
        out_shape=jax.ShapeDtypeStruct((Mp, N), jnp.float32),
        grid_spec=pltpu.PrefetchScalarGridSpec(
            num_scalar_prefetch=0,
            grid=(1,),
            in_specs=[
                pl.BlockSpec((Mp, K), lambda i: (0, 0)),
                pl.BlockSpec((K, N), lambda i: (0, 0)),
                pl.BlockSpec((1, N), lambda i: (0, 0)),
                pl.BlockSpec((1, N), lambda i: (0, 0)),
                pl.BlockSpec((1, N), lambda i: (0, 0)),
            ],
            out_specs=pl.BlockSpec((Mp, N), lambda i: (0, 0)),
        ),
        compiler_params=pltpu.CompilerParams(
            dimension_semantics=("arbitrary",)
        ),
    )(x, w, b, scale, shift)
    return out[:M]


# ----------------------------------------------------------------------------
# Kernel 2: K-tiled GEMM for linear1 (bf16 inputs, f32 accumulator scratch),
# fused bias + ReLU epilogue.
# ----------------------------------------------------------------------------
def _lin_gemm_kernel(x_ref, w_ref, b_ref, o_ref, acc_ref):
    @pl.when(pl.program_id(2) == 0)
    def _():
        acc_ref[...] = jnp.zeros_like(acc_ref)

    acc_ref[...] += jnp.dot(
        x_ref[...], w_ref[...], preferred_element_type=jnp.float32
    )

    @pl.when(pl.program_id(2) == pl.num_programs(2) - 1)
    def _():
        o_ref[...] = jnp.maximum(acc_ref[...] + b_ref[...], 0.0).astype(o_ref.dtype)


def lin1_gemm(x_bf16, w_bf16, b, *, tm=8, tn=_LIN1_TN, tk=_LIN1_TK):
    Mp, Kp = x_bf16.shape
    Kw, N = w_bf16.shape
    assert Kp == Kw and Mp % tm == 0 and Kp % tk == 0 and N % tn == 0
    grid = (Mp // tm, N // tn, Kp // tk)
    return pl.pallas_call(
        _lin_gemm_kernel,
        out_shape=jax.ShapeDtypeStruct((Mp, N), jnp.float32),
        grid_spec=pltpu.PrefetchScalarGridSpec(
            num_scalar_prefetch=0,
            grid=grid,
            in_specs=[
                pl.BlockSpec((tm, tk), lambda i, j, k: (i, k)),
                pl.BlockSpec((tk, tn), lambda i, j, k: (k, j)),
                pl.BlockSpec((1, tn), lambda i, j, k: (0, j)),
            ],
            out_specs=pl.BlockSpec((tm, tn), lambda i, j, k: (i, j)),
            scratch_shapes=[pltpu.VMEM((tm, tn), jnp.float32)],
        ),
        compiler_params=pltpu.CompilerParams(
            dimension_semantics=("parallel", "parallel", "arbitrary")
        ),
    )(x_bf16, w_bf16, b)


# ----------------------------------------------------------------------------
# Parameters: initialized like the module, then stored in GEMM-ready layout
# (pre-transposed, pre-padded, bf16 for lin1) so forward() never copies weights.
# ----------------------------------------------------------------------------
def _xavier_normal(key, shape, fan_in, fan_out):
    std = math.sqrt(2.0 / (fan_in + fan_out))
    return std * jax.random.normal(key, shape, jnp.float32)


def init_params(key):
    ks = jax.random.split(key, 10)
    eps = 1e-5
    p = {}

    w1 = _xavier_normal(ks[0], (30, 3, 11, 4), 3 * 11 * 4, 30 * 11 * 4)
    p["conv1_w"] = w1.reshape(30, -1).T                      # (132, 30)
    p["conv1_b"] = (0.01 * jax.random.normal(ks[1], (30,))).reshape(1, 30)

    w2 = _xavier_normal(ks[2], (30, 30, 11), 30 * 11, 30 * 11)
    p["conv2_w"] = w2.reshape(30, -1).T                      # (330, 30)
    p["conv2_b"] = (0.01 * jax.random.normal(ks[3], (30,))).reshape(1, 30)

    w3 = _xavier_normal(ks[4], (60, 60, 11), 60 * 11, 60 * 11)
    p["conv3_w"] = w3.reshape(60, -1).T                      # (660, 60)
    p["conv3_b"] = (0.01 * jax.random.normal(ks[5], (60,))).reshape(1, 60)

    wl1 = _xavier_normal(ks[6], (1024, _LIN1_K), _LIN1_K, 1024)
    wl1 = jnp.pad(wl1.T, ((0, _LIN1_KP - _LIN1_K), (0, 0)))  # (11776, 1024)
    p["lin1_w"] = wl1.astype(jnp.bfloat16)
    p["lin1_b"] = (0.01 * jax.random.normal(ks[7], (1024,))).reshape(1, 1024)

    wl2 = _xavier_normal(ks[8], (2, 1024), 1024, 2)
    p["lin2_w"] = wl2.T                                      # (1024, 2)
    p["lin2_b"] = 0.01 * jax.random.normal(ks[9], (2,))

    # BatchNorm (eval mode, fresh running stats: mean=0, var=1, gamma=1, beta=0)
    for name, c in (("bn1", 30), ("bn2", 30), ("bn3", 60)):
        gamma = jnp.ones((c,), jnp.float32)
        beta = jnp.zeros((c,), jnp.float32)
        mean = jnp.zeros((c,), jnp.float32)
        var = jnp.ones((c,), jnp.float32)
        scale = gamma / jnp.sqrt(var + eps)
        shift = beta - mean * scale
        p[name + "_scale"] = scale.reshape(1, c)
        p[name + "_shift"] = shift.reshape(1, c)
    return p


# ----------------------------------------------------------------------------
# im2col helpers (static slices — no gathers)
# ----------------------------------------------------------------------------
def _im2col_1d_same(x, k):
    # x: (B, C, L) -> patches (B*L, C*k), 'same' padding, stride 1
    B, C, L = x.shape
    pad_l = (k - 1) // 2
    pad_r = k - 1 - pad_l
    xp = jnp.pad(x, ((0, 0), (0, 0), (pad_l, pad_r)))
    cols = [xp[:, :, i:i + L] for i in range(k)]             # k x (B, C, L)
    patches = jnp.stack(cols, axis=-1)                       # (B, C, L, k)
    patches = jnp.transpose(patches, (0, 2, 1, 3))           # (B, L, C, k)
    return patches.reshape(B * L, C * k)


# ----------------------------------------------------------------------------
# Forward (eval-mode semantics of the PyTorch module)
# ----------------------------------------------------------------------------
def forward(params, x):
    B, d1, d2, d3 = x.shape                                  # (B, 206, 3, 4)
    # input.reshape(B, shape[2], shape[1], shape[3]) — raw buffer reinterpret
    x = x.reshape(B, d2, d1, d3)                             # (B, 3, 206, 4)
    H = d1 - 11 + 1                                          # 196

    # conv1: Conv2d(3->30, (11,4), valid) via im2col with static slices
    cols = [x[:, :, i:i + H, :] for i in range(11)]          # 11 x (B,3,H,4)
    p1 = jnp.stack(cols, axis=3)                             # (B,3,H,11,4)
    p1 = jnp.transpose(p1, (0, 2, 1, 3, 4)).reshape(B * H, 3 * 11 * 4)
    c1 = conv_gemm(p1, params["conv1_w"], params["conv1_b"],
                   params["bn1_scale"], params["bn1_shift"])  # (B*H, 30)
    c1 = jnp.transpose(c1.reshape(B, H, 30), (0, 2, 1))       # (B, 30, H)

    # conv2: Conv1d(30->30, k=11, 'same')
    p2 = _im2col_1d_same(c1, 11)                              # (B*H, 330)
    c2 = conv_gemm(p2, params["conv2_w"], params["conv2_b"],
                   params["bn2_scale"], params["bn2_shift"])
    c2 = jnp.transpose(c2.reshape(B, H, 30), (0, 2, 1))       # (B, 30, H)

    # concat channels -> conv3: Conv1d(60->60, k=11, 'same')
    cat = jnp.concatenate([c1, c2], axis=1)                   # (B, 60, H)
    p3 = _im2col_1d_same(cat, 11)                             # (B*H, 660)
    c3 = conv_gemm(p3, params["conv3_w"], params["conv3_b"],
                   params["bn3_scale"], params["bn3_shift"])
    c3 = jnp.transpose(c3.reshape(B, H, 60), (0, 2, 1))       # (B, 60, H)
    flat = c3.reshape(B, 60 * H)                              # (B, 11760)

    # linear1 + ReLU: bf16 streaming GEMM, tm=8 (M=B), f32 accumulate
    Mp = _round_up(B, 8)
    xlin = jnp.pad(flat.astype(jnp.bfloat16),
                   ((0, Mp - B), (0, _LIN1_KP - flat.shape[1])))
    l1 = lin1_gemm(xlin, params["lin1_w"], params["lin1_b"])[:B]  # (B, 1024)

    # linear2: tiny (B x 1024 x 2) — plain jnp.dot, cheaper than a kernel launch
    out = jnp.dot(l1, params["lin2_w"]) + params["lin2_b"]        # (B, 2)
    return out


if __name__ == "__main__":
    key = jax.random.PRNGKey(0)
    pkey, xkey = jax.random.split(key)
    params = init_params(pkey)
    # Shape forced by the module: flatten size 11760 = 60 * 196  =>  H = 206,
    # C = 3, W = 4 (original tensor before its internal reshape).
    x = jax.random.normal(xkey, (2, 206, 3, 4), jnp.float32)
    fwd = jax.jit(forward)
    out = jax.block_until_ready(fwd(params, x))
    assert out.shape == (2, 2) and out.dtype == jnp.float32
    print("KERNEL_OK")
</pallas_src>

<mosaic_0001>
module attributes {stable_mosaic.version = 11 : i64} {
  func.func @_conv_gemm_kernel(%arg0: i32, %arg1: memref<392x132xf32, #tpu.memory_space<vmem>>, %arg2: memref<132x30xf32, #tpu.memory_space<vmem>>, %arg3: memref<1x30xf32, #tpu.memory_space<vmem>>, %arg4: memref<1x30xf32, #tpu.memory_space<vmem>>, %arg5: memref<1x30xf32, #tpu.memory_space<vmem>>, %arg6: memref<392x30xf32, #tpu.memory_space<vmem>>) attributes {dimension_semantics = [#tpu.dimension_semantics<arbitrary>], iteration_bounds = array<i64: 1>, scalar_prefetch = 0 : i64, scratch_operands = 0 : i64, tpu.core_type = #tpu.core_type<tc>, window_params = [{pipeline_mode = #tpu.pipeline_mode<synchronous>, transform_indices = @transform_0, window_bounds = array<i64: 392, 132>}, {pipeline_mode = #tpu.pipeline_mode<synchronous>, transform_indices = @transform_1, window_bounds = array<i64: 132, 30>}, {pipeline_mode = #tpu.pipeline_mode<synchronous>, transform_indices = @transform_2, window_bounds = array<i64: 1, 30>}, {pipeline_mode = #tpu.pipeline_mode<synchronous>, transform_indices = @transform_3, window_bounds = array<i64: 1, 30>}, {pipeline_mode = #tpu.pipeline_mode<synchronous>, transform_indices = @transform_4, window_bounds = array<i64: 1, 30>}, {pipeline_mode = #tpu.pipeline_mode<synchronous>, transform_indices = @transform_5, window_bounds = array<i64: 392, 30>}]} {
    %c0 = arith.constant 0 : index
    %c0_0 = arith.constant 0 : index
    %0 = vector.load %arg1[%c0, %c0_0] : memref<392x132xf32, #tpu.memory_space<vmem>>, vector<392x132xf32>
    %c0_1 = arith.constant 0 : index
    %c0_2 = arith.constant 0 : index
    %1 = vector.load %arg2[%c0_1, %c0_2] : memref<132x30xf32, #tpu.memory_space<vmem>>, vector<132x30xf32>
    %cst = arith.constant dense<0.000000e+00> : vector<392x30xf32>
    %2 = tpu.matmul %0, %1, %cst {dimension_numbers = #tpu.dot_dimension_numbers<[1], [0], [0], [1], [0, 0, 1, 1], [], []>} : vector<392x132xf32>, vector<132x30xf32>, vector<392x30xf32> -> vector<392x30xf32>
    %c0_3 = arith.constant 0 : index
    %c0_4 = arith.constant 0 : index
    %3 = vector.load %arg3[%c0_3, %c0_4] : memref<1x30xf32, #tpu.memory_space<vmem>>, vector<1x30xf32>
    %4 = vector.broadcast %3 : vector<1x30xf32> to vector<392x30xf32>
    %5 = arith.addf %2, %4 : vector<392x30xf32>
    %cst_5 = arith.constant 0.000000e+00 : f32
    %6 = vector.broadcast %cst_5 : f32 to vector<392x30xf32>
    %7 = arith.maximumf %5, %6 : vector<392x30xf32>
    %c0_6 = arith.constant 0 : index
    %c0_7 = arith.constant 0 : index
    %8 = vector.load %arg4[%c0_6, %c0_7] : memref<1x30xf32, #tpu.memory_space<vmem>>, vector<1x30xf32>
    %9 = vector.broadcast %8 : vector<1x30xf32> to vector<392x30xf32>
    %10 = arith.mulf %7, %9 : vector<392x30xf32>
    %c0_8 = arith.constant 0 : index
    %c0_9 = arith.constant 0 : index
    %11 = vector.load %arg5[%c0_8, %c0_9] : memref<1x30xf32, #tpu.memory_space<vmem>>, vector<1x30xf32>
    %12 = vector.broadcast %11 : vector<1x30xf32> to vector<392x30xf32>
    %13 = arith.addf %10, %12 : vector<392x30xf32>
    %c0_10 = arith.constant 0 : index
    %c0_11 = arith.constant 0 : index
    %14 = vector.load %arg6[%c0_10, %c0_11] : memref<392x30xf32, #tpu.memory_space<vmem>>, vector<392x30xf32>
    tpu.vector_store %arg6[%c0_10, %c0_11], %13 {strides = array<i32>} : memref<392x30xf32, #tpu.memory_space<vmem>>, vector<392x30xf32>,
    return
  }
  func.func @transform_0(%arg0: i32) -> (i32, i32) {
    %c0_i32 = arith.constant 0 : i32
    %c0_i32_0 = arith.constant 0 : i32
    %c0_i32_1 = arith.constant 0 : i32
    return %c0_i32, %c0_i32_0 : i32, i32
  }
  func.func @transform_1(%arg0: i32) -> (i32, i32) {
    %c0_i32 = arith.constant 0 : i32
    %c0_i32_0 = arith.constant 0 : i32
    %c0_i32_1 = arith.constant 0 : i32
    return %c0_i32, %c0_i32_0 : i32, i32
  }
  func.func @transform_2(%arg0: i32) -> (i32, i32) {
    %c0_i32 = arith.constant 0 : i32
    %c0_i32_0 = arith.constant 0 : i32
    %c0_i32_1 = arith.constant 0 : i32
    return %c0_i32, %c0_i32_0 : i32, i32
  }
  func.func @transform_3(%arg0: i32) -> (i32, i32) {
    %c0_i32 = arith.constant 0 : i32
    %c0_i32_0 = arith.constant 0 : i32
    %c0_i32_1 = arith.constant 0 : i32
    return %c0_i32, %c0_i32_0 : i32, i32
  }
  func.func @transform_4(%arg0: i32) -> (i32, i32) {
    %c0_i32 = arith.constant 0 : i32
    %c0_i32_0 = arith.constant 0 : i32
    %c0_i32_1 = arith.constant 0 : i32
    return %c0_i32, %c0_i32_0 : i32, i32
  }
  func.func @transform_5(%arg0: i32) -> (i32, i32) {
    %c0_i32 = arith.constant 0 : i32
    %c0_i32_0 = arith.constant 0 : i32
    %c0_i32_1 = arith.constant 0 : i32
    return %c0_i32, %c0_i32_0 : i32, i32
  }
}

module attributes {stable_mosaic.version = 11 : i64} {
  func.func @_conv_gemm_kernel(%arg0: i32, %arg1: memref<392x330xf32, #tpu.memory_space<vmem>>, %arg2: memref<330x30xf32, #tpu.memory_space<vmem>>, %arg3: memref<1x30xf32, #tpu.memory_space<vmem>>, %arg4: memref<1x30xf32, #tpu.memory_space<vmem>>, %arg5: memref<1x30xf32, #tpu.memory_space<vmem>>, %arg6: memref<392x30xf32, #tpu.memory_space<vmem>>) attributes {dimension_semantics = [#tpu.dimension_semantics<arbitrary>], iteration_bounds = array<i64: 1>, scalar_prefetch = 0 : i64, scratch_operands = 0 : i64, tpu.core_type = #tpu.core_type<tc>, window_params = [{pipeline_mode = #tpu.pipeline_mode<synchronous>, transform_indices = @transform_0, window_bounds = array<i64: 392, 330>}, {pipeline_mode = #tpu.pipeline_mode<synchronous>, transform_indices = @transform_1, window_bounds = array<i64: 330, 30>}, {pipeline_mode = #tpu.pipeline_mode<synchronous>, transform_indices = @transform_2, window_bounds = array<i64: 1, 30>}, {pipeline_mode = #tpu.pipeline_mode<synchronous>, transform_indices = @transform_3, window_bounds = array<i64: 1, 30>}, {pipeline_mode = #tpu.pipeline_mode<synchronous>, transform_indices = @transform_4, window_bounds = array<i64: 1, 30>}, {pipeline_mode = #tpu.pipeline_mode<synchronous>, transform_indices = @transform_5, window_bounds = array<i64: 392, 30>}]} {
    %c0 = arith.constant 0 : index
    %c0_0 = arith.constant 0 : index
    %0 = vector.load %arg1[%c0, %c0_0] : memref<392x330xf32, #tpu.memory_space<vmem>>, vector<392x330xf32>
    %c0_1 = arith.constant 0 : index
    %c0_2 = arith.constant 0 : index
    %1 = vector.load %arg2[%c0_1, %c0_2] : memref<330x30xf32, #tpu.memory_space<vmem>>, vector<330x30xf32>
    %cst = arith.constant dense<0.000000e+00> : vector<392x30xf32>
    %2 = tpu.matmul %0, %1, %cst {dimension_numbers = #tpu.dot_dimension_numbers<[1], [0], [0], [1], [0, 0, 1, 1], [], []>} : vector<392x330xf32>, vector<330x30xf32>, vector<392x30xf32> -> vector<392x30xf32>
    %c0_3 = arith.constant 0 : index
    %c0_4 = arith.constant 0 : index
    %3 = vector.load %arg3[%c0_3, %c0_4] : memref<1x30xf32, #tpu.memory_space<vmem>>, vector<1x30xf32>
    %4 = vector.broadcast %3 : vector<1x30xf32> to vector<392x30xf32>
    %5 = arith.addf %2, %4 : vector<392x30xf32>
    %cst_5 = arith.constant 0.000000e+00 : f32
    %6 = vector.broadcast %cst_5 : f32 to vector<392x30xf32>
    %7 = arith.maximumf %5, %6 : vector<392x30xf32>
    %c0_6 = arith.constant 0 : index
    %c0_7 = arith.constant 0 : index
    %8 = vector.load %arg4[%c0_6, %c0_7] : memref<1x30xf32, #tpu.memory_space<vmem>>, vector<1x30xf32>
    %9 = vector.broadcast %8 : vector<1x30xf32> to vector<392x30xf32>
    %10 = arith.mulf %7, %9 : vector<392x30xf32>
    %c0_8 = arith.constant 0 : index
    %c0_9 = arith.constant 0 : index
    %11 = vector.load %arg5[%c0_8, %c0_9] : memref<1x30xf32, #tpu.memory_space<vmem>>, vector<1x30xf32>
    %12 = vector.broadcast %11 : vector<1x30xf32> to vector<392x30xf32>
    %13 = arith.addf %10, %12 : vector<392x30xf32>
    %c0_10 = arith.constant 0 : index
    %c0_11 = arith.constant 0 : index
    %14 = vector.load %arg6[%c0_10, %c0_11] : memref<392x30xf32, #tpu.memory_space<vmem>>, vector<392x30xf32>
    tpu.vector_store %arg6[%c0_10, %c0_11], %13 {strides = array<i32>} : memref<392x30xf32, #tpu.memory_space<vmem>>, vector<392x30xf32>,
    return
  }
  func.func @transform_0(%arg0: i32) -> (i32, i32) {
    %c0_i32 = arith.constant 0 : i32
    %c0_i32_0 = arith.constant 0 : i32
    %c0_i32_1 = arith.constant 0 : i32
    return %c0_i32, %c0_i32_0 : i32, i32
  }
  func.func @transform_1(%arg0: i32) -> (i32, i32) {
    %c0_i32 = arith.constant 0 : i32
    %c0_i32_0 = arith.constant 0 : i32
    %c0_i32_1 = arith.constant 0 : i32
    return %c0_i32, %c0_i32_0 : i32, i32
  }
  func.func @transform_2(%arg0: i32) -> (i32, i32) {
    %c0_i32 = arith.constant 0 : i32
    %c0_i32_0 = arith.constant 0 : i32
    %c0_i32_1 = arith.constant 0 : i32
    return %c0_i32, %c0_i32_0 : i32, i32
  }
  func.func @transform_3(%arg0: i32) -> (i32, i32) {
    %c0_i32 = arith.constant 0 : i32
    %c0_i32_0 = arith.constant 0 : i32
    %c0_i32_1 = arith.constant 0 : i32
    return %c0_i32, %c0_i32_0 : i32, i32
  }
  func.func @transform_4(%arg0: i32) -> (i32, i32) {
    %c0_i32 = arith.constant 0 : i32
    %c0_i32_0 = arith.constant 0 : i32
    %c0_i32_1 = arith.constant 0 : i32
    return %c0_i32, %c0_i32_0 : i32, i32
  }
  func.func @transform_5(%arg0: i32) -> (i32, i32) {
    %c0_i32 = arith.constant 0 : i32
    %c0_i32_0 = arith.constant 0 : i32
    %c0_i32_1 = arith.constant 0 : i32
    return %c0_i32, %c0_i32_0 : i32, i32
  }
}

module attributes {stable_mosaic.version = 11 : i64} {
  func.func @_conv_gemm_kernel(%arg0: i32, %arg1: memref<392x660xf32, #tpu.memory_space<vmem>>, %arg2: memref<660x60xf32, #tpu.memory_space<vmem>>, %arg3: memref<1x60xf32, #tpu.memory_space<vmem>>, %arg4: memref<1x60xf32, #tpu.memory_space<vmem>>, %arg5: memref<1x60xf32, #tpu.memory_space<vmem>>, %arg6: memref<392x60xf32, #tpu.memory_space<vmem>>) attributes {dimension_semantics = [#tpu.dimension_semantics<arbitrary>], iteration_bounds = array<i64: 1>, scalar_prefetch = 0 : i64, scratch_operands = 0 : i64, tpu.core_type = #tpu.core_type<tc>, window_params = [{pipeline_mode = #tpu.pipeline_mode<synchronous>, transform_indices = @transform_0, window_bounds = array<i64: 392, 660>}, {pipeline_mode = #tpu.pipeline_mode<synchronous>, transform_indices = @transform_1, window_bounds = array<i64: 660, 60>}, {pipeline_mode = #tpu.pipeline_mode<synchronous>, transform_indices = @transform_2, window_bounds = array<i64: 1, 60>}, {pipeline_mode = #tpu.pipeline_mode<synchronous>, transform_indices = @transform_3, window_bounds = array<i64: 1, 60>}, {pipeline_mode = #tpu.pipeline_mode<synchronous>, transform_indices = @transform_4, window_bounds = array<i64: 1, 60>}, {pipeline_mode = #tpu.pipeline_mode<synchronous>, transform_indices = @transform_5, window_bounds = array<i64: 392, 60>}]} {
    %c0 = arith.constant 0 : index
    %c0_0 = arith.constant 0 : index
    %0 = vector.load %arg1[%c0, %c0_0] : memref<392x660xf32, #tpu.memory_space<vmem>>, vector<392x660xf32>
    %c0_1 = arith.constant 0 : index
    %c0_2 = arith.constant 0 : index
    %1 = vector.load %arg2[%c0_1, %c0_2] : memref<660x60xf32, #tpu.memory_space<vmem>>, vector<660x60xf32>
    %cst = arith.constant dense<0.000000e+00> : vector<392x60xf32>
    %2 = tpu.matmul %0, %1, %cst {dimension_numbers = #tpu.dot_dimension_numbers<[1], [0], [0], [1], [0, 0, 1, 1], [], []>} : vector<392x660xf32>, vector<660x60xf32>, vector<392x60xf32> -> vector<392x60xf32>
    %c0_3 = arith.constant 0 : index
    %c0_4 = arith.constant 0 : index
    %3 = vector.load %arg3[%c0_3, %c0_4] : memref<1x60xf32, #tpu.memory_space<vmem>>, vector<1x60xf32>
    %4 = vector.broadcast %3 : vector<1x60xf32> to vector<392x60xf32>
    %5 = arith.addf %2, %4 : vector<392x60xf32>
    %cst_5 = arith.constant 0.000000e+00 : f32
    %6 = vector.broadcast %cst_5 : f32 to vector<392x60xf32>
    %7 = arith.maximumf %5, %6 : vector<392x60xf32>
    %c0_6 = arith.constant 0 : index
    %c0_7 = arith.constant 0 : index
    %8 = vector.load %arg4[%c0_6, %c0_7] : memref<1x60xf32, #tpu.memory_space<vmem>>, vector<1x60xf32>
    %9 = vector.broadcast %8 : vector<1x60xf32> to vector<392x60xf32>
    %10 = arith.mulf %7, %9 : vector<392x60xf32>
    %c0_8 = arith.constant 0 : index
    %c0_9 = arith.constant 0 : index
    %11 = vector.load %arg5[%c0_8, %c0_9] : memref<1x60xf32, #tpu.memory_space<vmem>>, vector<1x60xf32>
    %12 = vector.broadcast %11 : vector<1x60xf32> to vector<392x60xf32>
    %13 = arith.addf %10, %12 : vector<392x60xf32>
    %c0_10 = arith.constant 0 : index
    %c0_11 = arith.constant 0 : index
    %14 = vector.load %arg6[%c0_10, %c0_11] : memref<392x60xf32, #tpu.memory_space<vmem>>, vector<392x60xf32>
    tpu.vector_store %arg6[%c0_10, %c0_11], %13 {strides = array<i32>} : memref<392x60xf32, #tpu.memory_space<vmem>>, vector<392x60xf32>,
    return
  }
  func.func @transform_0(%arg0: i32) -> (i32, i32) {
    %c0_i32 = arith.constant 0 : i32
    %c0_i32_0 = arith.constant 0 : i32
    %c0_i32_1 = arith.constant 0 : i32
    return %c0_i32, %c0_i32_0 : i32, i32
  }
  func.func @transform_1(%arg0: i32) -> (i32, i32) {
    %c0_i32 = arith.constant 0 : i32
    %c0_i32_0 = arith.constant 0 : i32
    %c0_i32_1 = arith.constant 0 : i32
    return %c0_i32, %c0_i32_0 : i32, i32
  }
  func.func @transform_2(%arg0: i32) -> (i32, i32) {
    %c0_i32 = arith.constant 0 : i32
    %c0_i32_0 = arith.constant 0 : i32
    %c0_i32_1 = arith.constant 0 : i32
    return %c0_i32, %c0_i32_0 : i32, i32
  }
  func.func @transform_3(%arg0: i32) -> (i32, i32) {
    %c0_i32 = arith.constant 0 : i32
    %c0_i32_0 = arith.constant 0 : i32
    %c0_i32_1 = arith.constant 0 : i32
    return %c0_i32, %c0_i32_0 : i32, i32
  }
  func.func @transform_4(%arg0: i32) -> (i32, i32) {
    %c0_i32 = arith.constant 0 : i32
    %c0_i32_0 = arith.constant 0 : i32
    %c0_i32_1 = arith.constant 0 : i32
    return %c0_i32, %c0_i32_0 : i32, i32
  }
  func.func @transform_5(%arg0: i32) -> (i32, i32) {
    %c0_i32 = arith.constant 0 : i32
    %c0_i32_0 = arith.constant 0 : i32
    %c0_i32_1 = arith.constant 0 : i32
    return %c0_i32, %c0_i32_0 : i32, i32
  }
}

module attributes {stable_mosaic.version = 11 : i64} {
  func.func @_lin_gemm_kernel(%arg0: i32, %arg1: i32, %arg2: i32, %arg3: memref<8x2944xbf16, #tpu.memory_space<vmem>>, %arg4: memref<2944x512xbf16, #tpu.memory_space<vmem>>, %arg5: memref<1x512xf32, #tpu.memory_space<vmem>>, %arg6: memref<8x512xf32, #tpu.memory_space<vmem>>, %arg7: memref<8x512xf32, #tpu.memory_space<vmem>>) attributes {dimension_semantics = [#tpu.dimension_semantics<parallel>, #tpu.dimension_semantics<parallel>, #tpu.dimension_semantics<arbitrary>], iteration_bounds = array<i64: 1, 2, 4>, scalar_prefetch = 0 : i64, scratch_operands = 1 : i64, tpu.core_type = #tpu.core_type<tc>, window_params = [{transform_indices = @transform_0, window_bounds = array<i64: 8, 2944>}, {transform_indices = @transform_1, window_bounds = array<i64: 2944, 512>}, {transform_indices = @transform_2, window_bounds = array<i64: 1, 512>}, {transform_indices = @transform_3, window_bounds = array<i64: 8, 512>}]} {
    %c0_i32 = arith.constant 0 : i32
    %0 = arith.cmpi eq, %arg2, %c0_i32 : i32
    %1 = arith.extui %0 : i1 to i32
    %c0_i32_0 = arith.constant 0 : i32
    %2 = arith.cmpi ne, %1, %c0_i32_0 : i32
    scf.if %2 {
      %cst_9 = arith.constant 0.000000e+00 : f32
      %12 = vector.broadcast %cst_9 : f32 to vector<8x512xf32>
      %c0_10 = arith.constant 0 : index
      %c0_11 = arith.constant 0 : index
      %13 = vector.load %arg7[%c0_10, %c0_11] : memref<8x512xf32, #tpu.memory_space<vmem>>, vector<8x512xf32>
      tpu.vector_store %arg7[%c0_10, %c0_11], %12 {strides = array<i32>} : memref<8x512xf32, #tpu.memory_space<vmem>>, vector<8x512xf32>,
    } else {
    }
    %c0 = arith.constant 0 : index
    %c0_1 = arith.constant 0 : index
    %3 = vector.load %arg7[%c0, %c0_1] : memref<8x512xf32, #tpu.memory_space<vmem>>, vector<8x512xf32>
    %c0_2 = arith.constant 0 : index
    %c0_3 = arith.constant 0 : index
    %4 = vector.load %arg3[%c0_2, %c0_3] : memref<8x2944xbf16, #tpu.memory_space<vmem>>, vector<8x2944xbf16>
    %c0_4 = arith.constant 0 : index
    %c0_5 = arith.constant 0 : index
    %5 = vector.load %arg4[%c0_4, %c0_5] : memref<2944x512xbf16, #tpu.memory_space<vmem>>, vector<2944x512xbf16>
    %cst = arith.constant dense<0.000000e+00> : vector<8x512xf32>
    %6 = tpu.matmul %4, %5, %cst {dimension_numbers = #tpu.dot_dimension_numbers<[1], [0], [0], [1], [0, 0, 1, 1], [], []>} : vector<8x2944xbf16>, vector<2944x512xbf16>, vector<8x512xf32> -> vector<8x512xf32>
    %7 = arith.addf %3, %6 : vector<8x512xf32>
    %c0_6 = arith.constant 0 : index
    %c0_7 = arith.constant 0 : index
    %8 = vector.load %arg7[%c0_6, %c0_7] : memref<8x512xf32, #tpu.memory_space<vmem>>, vector<8x512xf32>
    tpu.vector_store %arg7[%c0_6, %c0_7], %7 {strides = array<i32>} : memref<8x512xf32, #tpu.memory_space<vmem>>, vector<8x512xf32>,
    %c3_i32 = arith.constant 3 : i32
    %9 = arith.cmpi eq, %arg2, %c3_i32 : i32
    %10 = arith.extui %9 : i1 to i32
    %c0_i32_8 = arith.constant 0 : i32
    %11 = arith.cmpi ne, %10, %c0_i32_8 : i32
    scf.if %11 {
      %c0_9 = arith.constant 0 : index
      %c0_10 = arith.constant 0 : index
      %12 = vector.load %arg7[%c0_9, %c0_10] : memref<8x512xf32, #tpu.memory_space<vmem>>, vector<8x512xf32>
      %c0_11 = arith.constant 0 : index
      %c0_12 = arith.constant 0 : index
      %13 = vector.load %arg5[%c0_11, %c0_12] : memref<1x512xf32, #tpu.memory_space<vmem>>, vector<1x512xf32>
      %14 = vector.broadcast %13 : vector<1x512xf32> to vector<8x512xf32>
      %15 = arith.addf %12, %14 : vector<8x512xf32>
      %cst_13 = arith.constant 0.000000e+00 : f32
      %16 = vector.broadcast %cst_13 : f32 to vector<8x512xf32>
      %17 = arith.maximumf %15, %16 : vector<8x512xf32>
      %c0_14 = arith.constant 0 : index
      %c0_15 = arith.constant 0 : index
      %18 = vector.load %arg6[%c0_14, %c0_15] : memref<8x512xf32, #tpu.memory_space<vmem>>, vector<8x512xf32>
      tpu.vector_store %arg6[%c0_14, %c0_15], %17 {strides = array<i32>} : memref<8x512xf32, #tpu.memory_space<vmem>>, vector<8x512xf32>,
    } else {
    }
    return
  }
  func.func @transform_0(%arg0: i32, %arg1: i32, %arg2: i32) -> (i32, i32) {
    %c0_i32 = arith.constant 0 : i32
    return %arg0, %arg2 : i32, i32
  }
  func.func @transform_1(%arg0: i32, %arg1: i32, %arg2: i32) -> (i32, i32) {
    %c0_i32 = arith.constant 0 : i32
    return %arg2, %arg1 : i32, i32
  }
  func.func @transform_2(%arg0: i32, %arg1: i32, %arg2: i32) -> (i32, i32) {
    %c0_i32 = arith.constant 0 : i32
    %c0_i32_0 = arith.constant 0 : i32
    return %c0_i32, %arg1 : i32, i32
  }
  func.func @transform_3(%arg0: i32, %arg1: i32, %arg2: i32) -> (i32, i32) {
    %c0_i32 = arith.constant 0 : i32
    return %arg0, %arg1 : i32, i32
  }
}

</mosaic_0001>

<llo_original>
// kernel: forward.4
$region0: #{forward.4}
  #allocation0 [shape = 'u32[]', space=smem, size = 0x4, offset = 0x4, fixed_abs, tag = 'smem constant byte address 0x4 - core index']
  #allocation1 [shape = 'u32[144,128]{1,0:T(1,128)}', space=vmem, size = 0x12000, scoped, tag = 'internal scratch']
  %s0 = inlined_call_operand.vmem [shape: f32[392,132], index: 0, kind: input, shape index: {}]
  %s1 = inlined_call_operand.vmem [shape: f32[132,30], index: 1, kind: input, shape index: {}]
  %s2 = inlined_call_operand.vmem [shape: f32[1,30], index: 2, kind: input, shape index: {}]
  %s3 = inlined_call_operand.vmem [shape: f32[1,30], index: 3, kind: input, shape index: {}]
  %s4 = inlined_call_operand.vmem [shape: f32[1,30], index: 4, kind: input, shape index: {}]
  %s5 = inlined_call_operand.vmem [shape: f32[392,30], index: 5, kind: output, shape index: {}]
  %s6 = sld [smem:[#allocation0]]
  $region30: #{forward.4} parent=0
    _
  %s8 = ssub.s32 1, %s6
  %s9 = scalar_select 0, %s8, %s6
  // Predicated region
  $region2: #{forward.4} parent=0 // pred_check
    _
  $region3: #{forward.4} parent=0 // pred_check_branch
    %11 = sbr.rel (0) target = $region5
  $region4: #{forward.4} parent=0 // pred_region
    _
  $region5: #{forward.4} parent=0 // pred_fallthru
    _
  // Predicated region
  $region6: #{forward.4} parent=0 // pred_check
    _
  $region7: #{forward.4} parent=0 // pred_check_branch
    %13 = sbr.rel (0) target = $region9
  $region8: #{forward.4} parent=0 // pred_region
    _
  $region9: #{forward.4} parent=0 // pred_fallthru
    _
  // Predicated region
  $region10: #{forward.4} parent=0 // pred_check
    _
  $region11: #{forward.4} parent=0 // pred_check_branch
    %15 = sbr.rel (0) target = $region13
  $region12: #{forward.4} parent=0 // pred_region
    _
  $region13: #{forward.4} parent=0 // pred_fallthru
    _
  // Predicated region
  $region14: #{forward.4} parent=0 // pred_check
    _
  $region15: #{forward.4} parent=0 // pred_check_branch
    %17 = sbr.rel (0) target = $region17
  $region16: #{forward.4} parent=0 // pred_region
    _
  $region17: #{forward.4} parent=0 // pred_fallthru
    _
  // Predicated region
  $region18: #{forward.4} parent=0 // pred_check
    _
  $region19: #{forward.4} parent=0 // pred_check_branch
    %19 = sbr.rel (0) target = $region21
  $region20: #{forward.4} parent=0 // pred_region
    _
  $region21: #{forward.4} parent=0 // pred_fallthru
    _
  %v20 = vld [vmem:[%s0] sm:$0xff]
  %v21 = vld [vmem:[%s0 + $0x8] sm:$0xff]
  %v22 = vld [vmem:[%s0 + $0x10] sm:$0xff]
  %v23 = vld [vmem:[%s0 + $0x18] sm:$0xff]
  %v24 = vld [vmem:[%s0 + $0x20] sm:$0xff]
  %v25 = vld [vmem:[%s0 + $0x28] sm:$0xff]
  %v26 = vld [vmem:[%s0 + $0x30] sm:$0xff]
  %v27 = vld [vmem:[%s0 + $0x38] sm:$0xff]
  %v28 = vld [vmem:[%s0 + $0x40] sm:$0xff]
  %v29 = vld [vmem:[%s0 + $0x48] sm:$0xff]
  %v30 = vld [vmem:[%s0 + $0x50] sm:$0xff]
  %v31 = vld [vmem:[%s0 + $0x58] sm:$0xff]
  %v32 = vld [vmem:[%s0 + $0x60] sm:$0xff]
  %v33 = vld [vmem:[%s0 + $0x68] sm:$0xff]
  %v34 = vld [vmem:[%s0 + $0x70] sm:$0xff]
  %v35 = vld [vmem:[%s0 + $0x78] sm:$0xff]
  %v36 = vld [vmem:[%s0 + $0x80] sm:$0xff]
  %v37 = vld [vmem:[%s0 + $0x88] sm:$0xff]
  %v38 = vld [vmem:[%s0 + $0x90] sm:$0xff]
  %v39 = vld [vmem:[%s0 + $0x98] sm:$0xff]
  %v40 = vld [vmem:[%s0 + $0xa0] sm:$0xff]
  %v41 = vld [vmem:[%s0 + $0xa8] sm:$0xff]
  %v42 = vld [vmem:[%s0 + $0xb0] sm:$0xff]
  %v43 = vld [vmem:[%s0 + $0xb8] sm:$0xff]
  %v44 = vld [vmem:[%s0 + $0xc0] sm:$0xff]
  %v45 = vld [vmem:[%s0 + $0xc8] sm:$0xff]
  %v46 = vld [vmem:[%s0 + $0xd0] sm:$0xff]
  %v47 = vld [vmem:[%s0 + $0xd8] sm:$0xff]
  %v48 = vld [vmem:[%s0 + $0xe0] sm:$0xff]
  %v49 = vld [vmem:[%s0 + $0xe8] sm:$0xff]
  %v50 = vld [vmem:[%s0 + $0xf0] sm:$0xff]
  %v51 = vld [vmem:[%s0 + $0xf8] sm:$0xff]
  %v52 = vld [vmem:[%s0 + $0x100] sm:$0xff]
  %v53 = vld [vmem:[%s0 + $0x108] sm:$0xff]
  %v54 = vld [vmem:[%s0 + $0x110] sm:$0xff]
  %v55 = vld [vmem:[%s0 + $0x118] sm:$0xff]
  %v56 = vld [vmem:[%s0 + $0x120] sm:$0xff]
  %v57 = vld [vmem:[%s0 + $0x128] sm:$0xff]
  %v58 = vld [vmem:[%s0 + $0x130] sm:$0xff]
  %v59 = vld [vmem:[%s0 + $0x138] sm:$0xff]
  %v60 = vld [vmem:[%s0 + $0x140] sm:$0xff]
  %v61 = vld [vmem:[%s0 + $0x148] sm:$0xff]
  %v62 = vld [vmem:[%s0 + $0x150] sm:$0xff]
  %v63 = vld [vmem:[%s0 + $0x158] sm:$0xff]
  %v64 = vld [vmem:[%s0 + $0x160] sm:$0xff]
  %v65 = vld [vmem:[%s0 + $0x168] sm:$0xff]
  %v66 = vld [vmem:[%s0 + $0x170] sm:$0xff]
  %v67 = vld [vmem:[%s0 + $0x178] sm:$0xff]
  %v68 = vld [vmem:[%s0 + $0x180] sm:$0xff]
  %v69 = vld [vmem:[%s0 + $0x188] sm:$0xff]
  %v70 = vld [vmem:[%s0 + $0x190] sm:$0xff]
  %v71 = vld [vmem:[%s0 + $0x198] sm:$0xff]
  %v72 = vld [vmem:[%s0 + $0x1a0] sm:$0xff]
  %v73 = vld [vmem:[%s0 + $0x1a8] sm:$0xff]
  %v74 = vld [vmem:[%s0 + $0x1b0] sm:$0xff]
  %v75 = vld [vmem:[%s0 + $0x1b8] sm:$0xff]
  %v76 = vld [vmem:[%s0 + $0x1c0] sm:$0xff]
  %v77 = vld [vmem:[%s0 + $0x1c8] sm:$0xff]
  %v78 = vld [vmem:[%s0 + $0x1d0] sm:$0xff]
  %v79 = vld [vmem:[%s0 + $0x1d8] sm:$0xff]
  %v80 = vld [vmem:[%s0 + $0x1e0] sm:$0xff]
  %v81 = vld [vmem:[%s0 + $0x1e8] sm:$0xff]
  %v82 = vld [vmem:[%s0 + $0x1f0] sm:$0xff]
  %v83 = vld [vmem:[%s0 + $0x1f8] sm:$0xff]
  %v84 = vld [vmem:[%s0 + $0x200] sm:$0xff]
  %v85 = vld [vmem:[%s0 + $0x208] sm:$0xff]
  %v86 = vld [vmem:[%s0 + $0x210] sm:$0xff]
  %v87 = vld [vmem:[%s0 + $0x218] sm:$0xff]
  %v88 = vld [vmem:[%s0 + $0x220] sm:$0xff]
  %v89 = vld [vmem:[%s0 + $0x228] sm:$0xff]
  %v90 = vld [vmem:[%s0 + $0x230] sm:$0xff]
  %v91 = vld [vmem:[%s0 + $0x238] sm:$0xff]
  %v92 = vld [vmem:[%s0 + $0x240] sm:$0xff]
  %v93 = vld [vmem:[%s0 + $0x248] sm:$0xff]
  %v94 = vld [vmem:[%s0 + $0x250] sm:$0xff]
  %v95 = vld [vmem:[%s0 + $0x258] sm:$0xff]
  %v96 = vld [vmem:[%s0 + $0x260] sm:$0xff]
  %v97 = vld [vmem:[%s0 + $0x268] sm:$0xff]
  %v98 = vld [vmem:[%s0 + $0x270] sm:$0xff]
  %v99 = vld [vmem:[%s0 + $0x278] sm:$0xff]
  %v100 = vld [vmem:[%s0 + $0x280] sm:$0xff]
  %v101 = vld [vmem:[%s0 + $0x288] sm:$0xff]
  %v102 = vld [vmem:[%s0 + $0x290] sm:$0xff]
  %v103 = vld [vmem:[%s0 + $0x298] sm:$0xff]
  %v104 = vld [vmem:[%s0 + $0x2a0] sm:$0xff]
  %v105 = vld [vmem:[%s0 + $0x2a8] sm:$0xff]
  %v106 = vld [vmem:[%s0 + $0x2b0] sm:$0xff]
  %v107 = vld [vmem:[%s0 + $0x2b8] sm:$0xff]
  %v108 = vld [vmem:[%s0 + $0x2c0] sm:$0xff]
  %v109 = vld [vmem:[%s0 + $0x2c8] sm:$0xff]
  %v110 = vld [vmem:[%s0 + $0x2d0] sm:$0xff]
  %v111 = vld [vmem:[%s0 + $0x2d8] sm:$0xff]
  %v112 = vld [vmem:[%s0 + $0x2e0] sm:$0xff]
  %v113 = vld [vmem:[%s0 + $0x2e8] sm:$0xff]
  %v114 = vld [vmem:[%s0 + $0x2f0] sm:$0xff]
  %v115 = vld [vmem:[%s0 + $0x2f8] sm:$0xff]
  %v116 = vld [vmem:[%s0 + $0x300] sm:$0xff]
  %v117 = vld [vmem:[%s0 + $0x308] sm:$0xff]
  %v118 = vld [vmem:[%s1] sm:$0xff]
  %v119 = vld [vmem:[%s1 + $0x8] sm:$0xff]
  %v120 = vld [vmem:[%s1 + $0x10] sm:$0xff]
  %v121 = vld [vmem:[%s1 + $0x18] sm:$0xff]
  %v122 = vld [vmem:[%s1 + $0x20] sm:$0xff]
  %v123 = vld [vmem:[%s1 + $0x28] sm:$0xff]
  %v124 = vld [vmem:[%s1 + $0x30] sm:$0xff]
  %v125 = vld [vmem:[%s1 + $0x38] sm:$0xff]
  %v126 = vld [vmem:[%s1 + $0x40] sm:$0xff]
  %v127 = vld [vmem:[%s1 + $0x48] sm:$0xff]
  %v128 = vld [vmem:[%s1 + $0x50] sm:$0xff]
  %v129 = vld [vmem:[%s1 + $0x58] sm:$0xff]
  %v130 = vld [vmem:[%s1 + $0x60] sm:$0xff]
  %v131 = vld [vmem:[%s1 + $0x68] sm:$0xff]
  %v132 = vld [vmem:[%s1 + $0x70] sm:$0xff]
  %v133 = vld [vmem:[%s1 + $0x78] sm:$0xff]
  %v134 = vld [vmem:[%s1 + $0x80] sm:$0xf]
  %v135 = vld [vmem:[%s2] sm:$0x1]
  %v137 = vlaneseq
  %v138 = vshrl.u32 %v137, 7
  %v139 = vsub.s32 0, %v138
  %v140 = vrot.slane %v135, %v139
  %vm142 = vcmask 31744
  %v144 = vsel %vm142, %v21, 0
  %v147 = vsel %vm142, %v23, 0
  %v150 = vsel %vm142, %v25, 0
  %v153 = vsel %vm142, %v27, 0
  %v156 = vsel %vm142, %v29, 0
  %v159 = vsel %vm142, %v31, 0
  %v162 = vsel %vm142, %v33, 0
  %v165 = vsel %vm142, %v35, 0
  %v168 = vsel %vm142, %v37, 0
  %v171 = vsel %vm142, %v39, 0
  %v174 = vsel %vm142, %v41, 0
  %v177 = vsel %vm142, %v43, 0
  %v180 = vsel %vm142, %v45, 0
  %v183 = vsel %vm142, %v47, 0
  %v186 = vsel %vm142, %v49, 0
  %v189 = vsel %vm142, %v51, 0
  %v192 = vsel %vm142, %v53, 0
  %v195 = vsel %vm142, %v55, 0
  %v198 = vsel %vm142, %v57, 0
  %v201 = vsel %vm142, %v59, 0
  %v204 = vsel %vm142, %v61, 0
  %v207 = vsel %vm142, %v63, 0
  %v210 = vsel %vm142, %v65, 0
  %v213 = vsel %vm142, %v67, 0
  %v216 = vsel %vm142, %v69, 0
  %v219 = vsel %vm142, %v71, 0
  %v222 = vsel %vm142, %v73, 0
  %v225 = vsel %vm142, %v75, 0
  %v228 = vsel %vm142, %v77, 0
  %v231 = vsel %vm142, %v79, 0
  %v234 = vsel %vm142, %v81, 0
  %v237 = vsel %vm142, %v83, 0
  %v240 = vsel %vm142, %v85, 0
  %v243 = vsel %vm142, %v87, 0
  %v246 = vsel %vm142, %v89, 0
  %v249 = vsel %vm142, %v91, 0
  %v252 = vsel %vm142, %v93, 0
  %v255 = vsel %vm142, %v95, 0
  %v258 = vsel %vm142, %v97, 0
  %v261 = vsel %vm142, %v99, 0
  %v264 = vsel %vm142, %v101, 0
  %v267 = vsel %vm142, %v103, 0
  %v270 = vsel %vm142, %v105, 0
  %v273 = vsel %vm142, %v107, 0
  %v276 = vsel %vm142, %v109, 0
  %v279 = vsel %vm142, %v111, 0
  %v282 = vsel %vm142, %v113, 0
  %v285 = vsel %vm142, %v115, 0
  %v288 = vsel %vm142, %v117, 0
  %vm290 = vcmask 1043456
  %v292 = vsel %vm290, %v134, 0
  %294 = vmatprep.subr.mxu0 0.0
  %295 = vmatpush1.msra.mxu0 %v133
  %296 = vmatprep.subr.mxu0 0.0
  %297 = vmatpush1.msra.mxu0 %v132
  %298 = vmatprep.subr.mxu0 0.0
  %299 = vmatpush1.msra.mxu0 %v131
  %300 = vmatprep.subr.mxu0 0.0
  %301 = vmatpush1.msra.mxu0 %v130
  %302 = vmatprep.subr.mxu0 0.0
  %303 = vmatpush1.msra.mxu0 %v129
  %304 = vmatprep.subr.mxu0 0.0
  %305 = vmatpush1.msra.mxu0 %v128
  %306 = vmatprep.subr.mxu0 0.0
  %307 = vmatpush1.msra.mxu0 %v127
  %308 = vmatprep.subr.mxu0 0.0
  %309 = vmatpush1.msra.mxu0 %v126
  %310 = vmatprep.subr.mxu0 0.0
  %311 = vmatpush1.msra.mxu0 %v125
  %312 = vmatprep.subr.mxu0 0.0
  %313 = vmatpush1.msra.mxu0 %v124
  %314 = vmatprep.subr.mxu0 0.0
  %315 = vmatpush1.msra.mxu0 %v123
  %316 = vmatprep.subr.mxu0 0.0
  %317 = vmatpush1.msra.mxu0 %v122
  %318 = vmatprep.subr.mxu0 0.0
  %319 = vmatpush1.msra.mxu0 %v121
  %320 = vmatprep.subr.mxu0 0.0
  %321 = vmatpush1.msra.mxu0 %v120
  %322 = vmatprep.subr.mxu0 0.0
  %323 = vmatpush1.msra.mxu0 %v119
  %324 = vmatprep.subr.mxu0 0.0
  %325 = vmatpush1.msra.mxu0 %v118
  %326 = vmatprep.subr.mxu0 0.0
  %327 = vmatpush2.msra.mxu0 0.0
  %328 = vmatprep.subr.mxu0 0.0
  %329 = vmatpush2.msra.mxu0 0.0
  %330 = vmatprep.subr.mxu0 0.0
  %331 = vmatpush2.msra.mxu0 0.0
  %332 = vmatprep.subr.mxu0 0.0
  %333 = vmatpush2.msra.mxu0 0.0
  %334 = vmatprep.subr.mxu0 0.0
  %335 = vmatpush2.msra.mxu0 0.0
  %336 = vmatprep.subr.mxu0 0.0
  %337 = vmatpush2.msra.mxu0 0.0
  %338 = vmatprep.subr.mxu0 0.0
  %339 = vmatpush2.msra.mxu0 0.0
  %340 = vmatprep.subr.mxu0 0.0
  %341 = vmatpush2.msra.mxu0 0.0
  %342 = vmatprep.subr.mxu0 0.0
  %343 = vmatpush2.msra.mxu0 0.0
  %344 = vmatprep.subr.mxu0 0.0
  %345 = vmatpush2.msra.mxu0 0.0
  %346 = vmatprep.subr.mxu0 0.0
  %347 = vmatpush2.msra.mxu0 0.0
  %348 = vmatprep.subr.mxu0 0.0
  %349 = vmatpush2.msra.mxu0 0.0
  %350 = vmatprep.subr.mxu0 0.0
  %351 = vmatpush2.msra.mxu0 0.0
  %352 = vmatprep.subr.mxu0 0.0
  %353 = vmatpush2.msra.mxu0 0.0
  %354 = vmatprep.subr.mxu0 0.0
  %355 = vmatpush2.msra.mxu0 0.0
  %356 = vmatprep.subr.mxu0 0.0
  %357 = vmatpush2.msra.mxu0 %v292
  %358 = vmatprep.mubr.f32.mxu0 %v144
  %359 = vmatmul.mubr.f32.gmra.mxu0 %v20
  %v360 = vpop.f32.mrf.mxu0
  %v361 = vadd.f32 %v140, %v360
  %v362 = vpop.f32.mrf.mxu0
  %363 = vmatprep.mubr.f32.mxu0 %v147
  %364 = vmatmul.mubr.f32.gmra.mxu0 %v22
  %v365 = vpop.f32.mrf.mxu0
  %v366 = vadd.f32 %v140, %v365
  %v367 = vpop.f32.mrf.mxu0
  %368 = vmatprep.mubr.f32.mxu0 %v150
  %369 = vmatmul.mubr.f32.gmra.mxu0 %v24
  %v370 = vpop.f32.mrf.mxu0
  %v371 = vadd.f32 %v140, %v370
  %v372 = vpop.f32.mrf.mxu0
  %373 = vmatprep.mubr.f32.mxu0 %v153
  %374 = vmatmul.mubr.f32.gmra.mxu0 %v26
  %v375 = vpop.f32.mrf.mxu0
  %v376 = vadd.f32 %v140, %v375
  %v377 = vpop.f32.mrf.mxu0
  %378 = vmatprep.mubr.f32.mxu0 %v156
  %379 = vmatmul.mubr.f32.gmra.mxu0 %v28
  %v380 = vpop.f32.mrf.mxu0
  %v381 = vadd.f32 %v140, %v380
  %v382 = vpop.f32.mrf.mxu0
  %383 = vmatprep.mubr.f32.mxu0 %v159
  %384 = vmatmul.mubr.f32.gmra.mxu0 %v30
  %v385 = vpop.f32.mrf.mxu0
  %v386 = vadd.f32 %v140, %v385
  %v387 = vpop.f32.mrf.mxu0
  %388 = vmatprep.mubr.f32.mxu0 %v162
  %389 = vmatmul.mubr.f32.gmra.mxu0 %v32
  %v390 = vpop.f32.mrf.mxu0
  %v391 = vadd.f32 %v140, %v390
  %v392 = vpop.f32.mrf.mxu0
  %393 = vmatprep.mubr.f32.mxu0 %v165
  %394 = vmatmul.mubr.f32.gmra.mxu0 %v34
  %v395 = vpop.f32.mrf.mxu0
  %v396 = vadd.f32 %v140, %v395
  %v397 = vpop.f32.mrf.mxu0
  %398 = vmatprep.mubr.f32.mxu0 %v168
  %399 = vmatmul.mubr.f32.gmra.mxu0 %v36
  %v400 = vpop.f32.mrf.mxu0
  %v401 = vadd.f32 %v140, %v400
  %v402 = vpop.f32.mrf.mxu0
  %403 = vmatprep.mubr.f32.mxu0 %v171
  %404 = vmatmul.mubr.f32.gmra.mxu0 %v38
  %v405 = vpop.f32.mrf.mxu0
  %v406 = vadd.f32 %v140, %v405
  %v407 = vpop.f32.mrf.mxu0
  %408 = vmatprep.mubr.f32.mxu0 %v174
  %409 = vmatmul.mubr.f32.gmra.mxu0 %v40
  %v410 = vpop.f32.mrf.mxu0
  %v411 = vadd.f32 %v140, %v410
  %v412 = vpop.f32.mrf.mxu0
  %413 = vmatprep.mubr.f32.mxu0 %v177
  %414 = vmatmul.mubr.f32.gmra.mxu0 %v42
  %v415 = vpop.f32.mrf.mxu0
  %v416 = vadd.f32 %v140, %v415
  %v417 = vpop.f32.mrf.mxu0
  %418 = vmatprep.mubr.f32.mxu0 %v180
  %419 = vmatmul.mubr.f32.gmra.mxu0 %v44
  %v420 = vpop.f32.mrf.mxu0
  %v421 = vadd.f32 %v140, %v420
  %v422 = vpop.f32.mrf.mxu0
  %423 = vmatprep.mubr.f32.mxu0 %v183
  %424 = vmatmul.mubr.f32.gmra.mxu0 %v46
  %v425 = vpop.f32.mrf.mxu0
  %v426 = vadd.f32 %v140, %v425
  %v427 = vpop.f32.mrf.mxu0
  %428 = vmatprep.mubr.f32.mxu0 %v186
  %429 = vmatmul.mubr.f32.gmra.mxu0 %v48
  %v430 = vpop.f32.mrf.mxu0
  %v431 = vadd.f32 %v140, %v430
  %v432 = vpop.f32.mrf.mxu0
  %433 = vmatprep.mubr.f32.mxu0 %v189
  %434 = vmatmul.mubr.f32.gmra.mxu0 %v50
  %v435 = vpop.f32.mrf.mxu0
  %v436 = vadd.f32 %v140, %v435
  %v437 = vpop.f32.mrf.mxu0
  %438 = vmatprep.mubr.f32.mxu0 %v192
  %439 = vmatmul.mubr.f32.gmra.mxu0 %v52
  %v440 = vpop.f32.mrf.mxu0
  %v441 = vadd.f32 %v140, %v440
  %v442 = vpop.f32.mrf.mxu0
  %443 = vmatprep.mubr.f32.mxu0 %v195
  %444 = vmatmul.mubr.f32.gmra.mxu0 %v54
  %v445 = vpop.f32.mrf.mxu0
  %v446 = vadd.f32 %v140, %v445
  %v447 = vpop.f32.mrf.mxu0
  %448 = vmatprep.mubr.f32.mxu0 %v198
  %449 = vmatmul.mubr.f32.gmra.mxu0 %v56
  %v450 = vpop.f32.mrf.mxu0
  %v451 = vadd.f32 %v140, %v450
  %v452 = vpop.f32.mrf.mxu0
  %453 = vmatprep.mubr.f32.mxu0 %v201
  %454 = vmatmul.mubr.f32.gmra.mxu0 %v58
  %v455 = vpop.f32.mrf.mxu0
  %v456 = vadd.f32 %v140, %v455
  %v457 = vpop.f32.mrf.mxu0
  %458 = vmatprep.mubr.f32.mxu0 %v204
  %459 = vmatmul.mubr.f32.gmra.mxu0 %v60
  %v460 = vpop.f32.mrf.mxu0
  %v461 = vadd.f32 %v140, %v460
  %v462 = vpop.f32.mrf.mxu0
  %463 = vmatprep.mubr.f32.mxu0 %v207
  %464 = vmatmul.mubr.f32.gmra.mxu0 %v62
  %v465 = vpop.f32.mrf.mxu0
  %v466 = vadd.f32 %v140, %v465
  %v467 = vpop.f32.mrf.mxu0
  %468 = vmatprep.mubr.f32.mxu0 %v210
  %469 = vmatmul.mubr.f32.gmra.mxu0 %v64
  %v470 = vpop.f32.mrf.mxu0
  %v471 = vadd.f32 %v140, %v470
  %v472 = vpop.f32.mrf.mxu0
  %473 = vmatprep.mubr.f32.mxu0 %v213
  %474 = vmatmul.mubr.f32.gmra.mxu0 %v66
  %v475 = vpop.f32.mrf.mxu0
  %v476 = vadd.f32 %v140, %v475
  %v477 = vpop.f32.mrf.mxu0
  %478 = vmatprep.mubr.f32.mxu0 %v216
  %479 = vmatmul.mubr.f32.gmra.mxu0 %v68
  %v480 = vpop.f32.mrf.mxu0
  %v481 = vadd.f32 %v140, %v480
  %v482 = vpop.f32.mrf.mxu0
  %483 = vmatprep.mubr.f32.mxu0 %v219
  %484 = vmatmul.mubr.f32.gmra.mxu0 %v70
  %v485 = vpop.f32.mrf.mxu0
  %v486 = vadd.f32 %v140, %v485
  %v487 = vpop.f32.mrf.mxu0
  %488 = vmatprep.mubr.f32.mxu0 %v222
  %489 = vmatmul.mubr.f32.gmra.mxu0 %v72
  %v490 = vpop.f32.mrf.mxu0
  %v491 = vadd.f32 %v140, %v490
  %v492 = vpop.f32.mrf.mxu0
  %493 = vmatprep.mubr.f32.mxu0 %v225
  %494 = vmatmul.mubr.f32.gmra.mxu0 %v74
  %v495 = vpop.f32.mrf.mxu0
  %v496 = vadd.f32 %v140, %v495
  %v497 = vpop.f32.mrf.mxu0
  %498 = vmatprep.mubr.f32.mxu0 %v228
  %499 = vmatmul.mubr.f32.gmra.mxu0 %v76
  %v500 = vpop.f32.mrf.mxu0
  %v501 = vadd.f32 %v140, %v500
  %v502 = vpop.f32.mrf.mxu0
  %503 = vmatprep.mubr.f32.mxu0 %v231
  %504 = vmatmul.mubr.f32.gmra.mxu0 %v78
  %v505 = vpop.f32.mrf.mxu0
  %v506 = vadd.f32 %v140, %v505
  %v507 = vpop.f32.mrf.mxu0
  %508 = vmatprep.mubr.f32.mxu0 %v234
  %509 = vmatmul.mubr.f32.gmra.mxu0 %v80
  %v510 = vpop.f32.mrf.mxu0
  %v511 = vadd.f32 %v140, %v510
  %v512 = vpop.f32.mrf.mxu0
  %513 = vmatprep.mubr.f32.mxu0 %v237
  %514 = vmatmul.mubr.f32.gmra.mxu0 %v82
  %v515 = vpop.f32.mrf.mxu0
  %v516 = vadd.f32 %v140, %v515
  %v517 = vpop.f32.mrf.mxu0
  %518 = vmatprep.mubr.f32.mxu0 %v240
  %519 = vmatmul.mubr.f32.gmra.mxu0 %v84
  %v520 = vpop.f32.mrf.mxu0
  %v521 = vadd.f32 %v140, %v520
  %v522 = vpop.f32.mrf.mxu0
  %523 = vmatprep.mubr.f32.mxu0 %v243
  %524 = vmatmul.mubr.f32.gmra.mxu0 %v86
  %v525 = vpop.f32.mrf.mxu0
  %v526 = vadd.f32 %v140, %v525
  %v527 = vpop.f32.mrf.mxu0
  %528 = vmatprep.mubr.f32.mxu0 %v246
  %529 = vmatmul.mubr.f32.gmra.mxu0 %v88
  %v530 = vpop.f32.mrf.mxu0
  %v531 = vadd.f32 %v140, %v530
  %v532 = vpop.f32.mrf.mxu0
  %533 = vmatprep.mubr.f32.mxu0 %v249
  %534 = vmatmul.mubr.f32.gmra.mxu0 %v90
  %v535 = vpop.f32.mrf.mxu0
  %v536 = vadd.f32 %v140, %v535
  %v537 = vpop.f32.mrf.mxu0
  %538 = vmatprep.mubr.f32.mxu0 %v252
  %539 = vmatmul.mubr.f32.gmra.mxu0 %v92
  %v540 = vpop.f32.mrf.mxu0
  %v541 = vadd.f32 %v140, %v540
  %v542 = vpop.f32.mrf.mxu0
  %543 = vmatprep.mubr.f32.mxu0 %v255
  %544 = vmatmul.mubr.f32.gmra.mxu0 %v94
  %v545 = vpop.f32.mrf.mxu0
  %v546 = vadd.f32 %v140, %v545
  %v547 = vpop.f32.mrf.mxu0
  %548 = vmatprep.mubr.f32.mxu0 %v258
  %549 = vmatmul.mubr.f32.gmra.mxu0 %v96
  %v550 = vpop.f32.mrf.mxu0
  %v551 = vadd.f32 %v140, %v550
  %v552 = vpop.f32.mrf.mxu0
  %553 = vmatprep.mubr.f32.mxu0 %v261
  %554 = vmatmul.mubr.f32.gmra.mxu0 %v98
  %v555 = vpop.f32.mrf.mxu0
  %v556 = vadd.f32 %v140, %v555
  %v557 = vpop.f32.mrf.mxu0
  %558 = vmatprep.mubr.f32.mxu0 %v264
  %559 = vmatmul.mubr.f32.gmra.mxu0 %v100
  %v560 = vpop.f32.mrf.mxu0
  %v561 = vadd.f32 %v140, %v560
  %v562 = vpop.f32.mrf.mxu0
  %563 = vmatprep.mubr.f32.mxu0 %v267
  %564 = vmatmul.mubr.f32.gmra.mxu0 %v102
  %v565 = vpop.f32.mrf.mxu0
  %v566 = vadd.f32 %v140, %v565
  %v567 = vpop.f32.mrf.mxu0
  %568 = vmatprep.mubr.f32.mxu0 %v270
  %569 = vmatmul.mubr.f32.gmra.mxu0 %v104
  %v570 = vpop.f32.mrf.mxu0
  %v571 = vadd.f32 %v140, %v570
  %v572 = vpop.f32.mrf.mxu0
  %573 = vmatprep.mubr.f32.mxu0 %v273
  %574 = vmatmul.mubr.f32.gmra.mxu0 %v106
  %v575 = vpop.f32.mrf.mxu0
  %v576 = vadd.f32 %v140, %v575
  %v577 = vpop.f32.mrf.mxu0
  %578 = vmatprep.mubr.f32.mxu0 %v276
  %579 = vmatmul.mubr.f32.gmra.mxu0 %v108
  %v580 = vpop.f32.mrf.mxu0
  %v581 = vadd.f32 %v140, %v580
  %v582 = vpop.f32.mrf.mxu0
  %583 = vmatprep.mubr.f32.mxu0 %v279
  %584 = vmatmul.mubr.f32.gmra.mxu0 %v110
  %v585 = vpop.f32.mrf.mxu0
  %v586 = vadd.f32 %v140, %v585
  %v587 = vpop.f32.mrf.mxu0
  %588 = vmatprep.mubr.f32.mxu0 %v282
  %589 = vmatmul.mubr.f32.gmra.mxu0 %v112
  %v590 = vpop.f32.mrf.mxu0
  %v591 = vadd.f32 %v140, %v590
  %v592 = vpop.f32.mrf.mxu0
  %593 = vmatprep.mubr.f32.mxu0 %v285
  %594 = vmatmul.mubr.f32.gmra.mxu0 %v114
  %v595 = vpop.f32.mrf.mxu0
  %v596 = vadd.f32 %v140, %v595
  %v597 = vpop.f32.mrf.mxu0
  %598 = vmatprep.mubr.f32.mxu0 %v288
  %599 = vmatmul.mubr.f32.gmra.mxu0 %v116
  %v600 = vpop.f32.mrf.mxu0
  %v601 = vadd.f32 %v140, %v600
  %v602 = vpop.f32.mrf.mxu0
  %603 = vdwg.mxu0
  %v604 = vmax.f32 %v361, 0.0
  %v605 = vmax.f32 %v366, 0.0
  %v606 = vmax.f32 %v371, 0.0
  %v607 = vmax.f32 %v376, 0.0
  %v608 = vmax.f32 %v381, 0.0
  %v609 = vmax.f32 %v386, 0.0
  %v610 = vmax.f32 %v391, 0.0
  %v611 = vmax.f32 %v396, 0.0
  %v612 = vmax.f32 %v401, 0.0
  %v613 = vmax.f32 %v406, 0.0
  %v614 = vmax.f32 %v411, 0.0
  %v615 = vmax.f32 %v416, 0.0
  %v616 = vmax.f32 %v421, 0.0
  %v617 = vmax.f32 %v426, 0.0
  %v618 = vmax.f32 %v431, 0.0
  %v619 = vmax.f32 %v436, 0.0
  %v620 = vmax.f32 %v441, 0.0
  %v621 = vmax.f32 %v446, 0.0
  %v622 = vmax.f32 %v451, 0.0
  %v623 = vmax.f32 %v456, 0.0
  %v624 = vmax.f32 %v461, 0.0
  %v625 = vmax.f32 %v466, 0.0
  %v626 = vmax.f32 %v471, 0.0
  %v627 = vmax.f32 %v476, 0.0
  %v628 = vmax.f32 %v481, 0.0
  %v629 = vmax.f32 %v486, 0.0
  %v630 = vmax.f32 %v491, 0.0
  %v631 = vmax.f32 %v496, 0.0
  %v632 = vmax.f32 %v501, 0.0
  %v633 = vmax.f32 %v506, 0.0
  %v634 = vmax.f32 %v511, 0.0
  %v635 = vmax.f32 %v516, 0.0
  %v636 = vmax.f32 %v521, 0.0
  %v637 = vmax.f32 %v526, 0.0
  %v638 = vmax.f32 %v531, 0.0
  %v639 = vmax.f32 %v536, 0.0
  %v640 = vmax.f32 %v541, 0.0
  %v641 = vmax.f32 %v546, 0.0
  %v642 = vmax.f32 %v551, 0.0
  %v643 = vmax.f32 %v556, 0.0
  %v644 = vmax.f32 %v561, 0.0
  %v645 = vmax.f32 %v566, 0.0
  %v646 = vmax.f32 %v571, 0.0
  %v647 = vmax.f32 %v576, 0.0
  %v648 = vmax.f32 %v581, 0.0
  %v649 = vmax.f32 %v586, 0.0
  %v650 = vmax.f32 %v591, 0.0
  %v651 = vmax.f32 %v596, 0.0
  %v652 = vmax.f32 %v601, 0.0
  %v653 = vld [vmem:[%s3] sm:$0x1]
  %v655 = vlaneseq
  %v656 = vshrl.u32 %v655, 7
  %v657 = vsub.s32 0, %v656
  %v658 = vrot.slane %v653, %v657
  %v660 = vmul.f32 %v604, %v658
  %v661 = vmul.f32 %v605, %v658
  %v662 = vmul.f32 %v606, %v658
  %v663 = vmul.f32 %v607, %v658
  %v664 = vmul.f32 %v608, %v658
  %v665 = vmul.f32 %v609, %v658
  %v666 = vmul.f32 %v610, %v658
  %v667 = vmul.f32 %v611, %v658
  %v668 = vmul.f32 %v612, %v658
  %v669 = vmul.f32 %v613, %v658
  %v670 = vmul.f32 %v614, %v658
  %v671 = vmul.f32 %v615, %v658
  %v672 = vmul.f32 %v616, %v658
  %v673 = vmul.f32 %v617, %v658
  %v674 = vmul.f32 %v618, %v658
  %v675 = vmul.f32 %v619, %v658
  %v676 = vmul.f32 %v620, %v658
  %v677 = vmul.f32 %v621, %v658
  %v678 = vmul.f32 %v622, %v658
  %v679 = vmul.f32 %v623, %v658
  %v680 = vmul.f32 %v624, %v658
  %v681 = vmul.f32 %v625, %v658
  %v682 = vmul.f32 %v626, %v658
  %v683 = vmul.f32 %v627, %v658
  %v684 = vmul.f32 %v628, %v658
  %v685 = vmul.f32 %v629, %v658
  %v686 = vmul.f32 %v630, %v658
  %v687 = vmul.f32 %v631, %v658
  %v688 = vmul.f32 %v632, %v658
  %v689 = vmul.f32 %v633, %v658
  %v690 = vmul.f32 %v634, %v658
  %v691 = vmul.f32 %v635, %v658
  %v692 = vmul.f32 %v636, %v658
  %v693 = vmul.f32 %v637, %v658
  %v694 = vmul.f32 %v638, %v658
  %v695 = vmul.f32 %v639, %v658
  %v696 = vmul.f32 %v640, %v658
  %v697 = vmul.f32 %v641, %v658
  %v698 = vmul.f32 %v642, %v658
  %v699 = vmul.f32 %v643, %v658
  %v700 = vmul.f32 %v644, %v658
  %v701 = vmul.f32 %v645, %v658
  %v702 = vmul.f32 %v646, %v658
  %v703 = vmul.f32 %v647, %v658
  %v704 = vmul.f32 %v648, %v658
  %v705 = vmul.f32 %v649, %v658
  %v706 = vmul.f32 %v650, %v658
  %v707 = vmul.f32 %v651, %v658
  %v708 = vmul.f32 %v652, %v658
  %v709 = vld [vmem:[%s4] sm:$0x1]
  %v711 = vlaneseq
  %v712 = vshrl.u32 %v711, 7
  %v713 = vsub.s32 0, %v712
  %v714 = vrot.slane %v709, %v713
  %v716 = vadd.f32 %v660, %v714
  %v717 = vadd.f32 %v661, %v714
  %v718 = vadd.f32 %v662, %v714
  %v719 = vadd.f32 %v663, %v714
  %v720 = vadd.f32 %v664, %v714
  %v721 = vadd.f32 %v665, %v714
  %v722 = vadd.f32 %v666, %v714
  %v723 = vadd.f32 %v667, %v714
  %v724 = vadd.f32 %v668, %v714
  %v725 = vadd.f32 %v669, %v714
  %v726 = vadd.f32 %v670, %v714
  %v727 = vadd.f32 %v671, %v714
  %v728 = vadd.f32 %v672, %v714
  %v729 = vadd.f32 %v673, %v714
  %v730 = vadd.f32 %v674, %v714
  %v731 = vadd.f32 %v675, %v714
  %v732 = vadd.f32 %v676, %v714
  %v733 = vadd.f32 %v677, %v714
  %v734 = vadd.f32 %v678, %v714
  %v735 = vadd.f32 %v679, %v714
  %v736 = vadd.f32 %v680, %v714
  %v737 = vadd.f32 %v681, %v714
  %v738 = vadd.f32 %v682, %v714
  %v739 = vadd.f32 %v683, %v714
  %v740 = vadd.f32 %v684, %v714
  %v741 = vadd.f32 %v685, %v714
  %v742 = vadd.f32 %v686, %v714
  %v743 = vadd.f32 %v687, %v714
  %v744 = vadd.f32 %v688, %v714
  %v745 = vadd.f32 %v689, %v714
  %v746 = vadd.f32 %v690, %v714
  %v747 = vadd.f32 %v691, %v714
  %v748 = vadd.f32 %v692, %v714
  %v749 = vadd.f32 %v693, %v714
  %v750 = vadd.f32 %v694, %v714
  %v751 = vadd.f32 %v695, %v714
  %v752 = vadd.f32 %v696, %v714
  %v753 = vadd.f32 %v697, %v714
  %v754 = vadd.f32 %v698, %v714
  %v755 = vadd.f32 %v699, %v714
  %v756 = vadd.f32 %v700, %v714
  %v757 = vadd.f32 %v701, %v714
  %v758 = vadd.f32 %v702, %v714
  %v759 = vadd.f32 %v703, %v714
  %v760 = vadd.f32 %v704, %v714
  %v761 = vadd.f32 %v705, %v714
  %v762 = vadd.f32 %v706, %v714
  %v763 = vadd.f32 %v707, %v714
  %v764 = vadd.f32 %v708, %v714
  %vm765 = vcmask 244736
  %766 = vst.msk [vmem:[%s5] sm:$0xff] %vm765, %v716
  %767 = vst.msk [vmem:[%s5 + $0x8] sm:$0xff] %vm765, %v717
  %768 = vst.msk [vmem:[%s5 + $0x10] sm:$0xff] %vm765, %v718
  %769 = vst.msk [vmem:[%s5 + $0x18] sm:$0xff] %vm765, %v719
  %770 = vst.msk [vmem:[%s5 + $0x20] sm:$0xff] %vm765, %v720
  %771 = vst.msk [vmem:[%s5 + $0x28] sm:$0xff] %vm765, %v721
  %772 = vst.msk [vmem:[%s5 + $0x30] sm:$0xff] %vm765, %v722
  %773 = vst.msk [vmem:[%s5 + $0x38] sm:$0xff] %vm765, %v723
  %774 = vst.msk [vmem:[%s5 + $0x40] sm:$0xff] %vm765, %v724
  %775 = vst.msk [vmem:[%s5 + $0x48] sm:$0xff] %vm765, %v725
  %776 = vst.msk [vmem:[%s5 + $0x50] sm:$0xff] %vm765, %v726
  %777 = vst.msk [vmem:[%s5 + $0x58] sm:$0xff] %vm765, %v727
  %778 = vst.msk [vmem:[%s5 + $0x60] sm:$0xff] %vm765, %v728
  %779 = vst.msk [vmem:[%s5 + $0x68] sm:$0xff] %vm765, %v729
  %780 = vst.msk [vmem:[%s5 + $0x70] sm:$0xff] %vm765, %v730
  %781 = vst.msk [vmem:[%s5 + $0x78] sm:$0xff] %vm765, %v731
  %782 = vst.msk [vmem:[%s5 + $0x80] sm:$0xff] %vm765, %v732
  %783 = vst.msk [vmem:[%s5 + $0x88] sm:$0xff] %vm765, %v733
  %784 = vst.msk [vmem:[%s5 + $0x90] sm:$0xff] %vm765, %v734
  %785 = vst.msk [vmem:[%s5 + $0x98] sm:$0xff] %vm765, %v735
  %786 = vst.msk [vmem:[%s5 + $0xa0] sm:$0xff] %vm765, %v736
  %787 = vst.msk [vmem:[%s5 + $0xa8] sm:$0xff] %vm765, %v737
  %788 = vst.msk [vmem:[%s5 + $0xb0] sm:$0xff] %vm765, %v738
  %789 = vst.msk [vmem:[%s5 + $0xb8] sm:$0xff] %vm765, %v739
  %790 = vst.msk [vmem:[%s5 + $0xc0] sm:$0xff] %vm765, %v740
  %791 = vst.msk [vmem:[%s5 + $0xc8] sm:$0xff] %vm765, %v741
  %792 = vst.msk [vmem:[%s5 + $0xd0] sm:$0xff] %vm765, %v742
  %793 = vst.msk [vmem:[%s5 + $0xd8] sm:$0xff] %vm765, %v743
  %794 = vst.msk [vmem:[%s5 + $0xe0] sm:$0xff] %vm765, %v744
  %795 = vst.msk [vmem:[%s5 + $0xe8] sm:$0xff] %vm765, %v745
  %796 = vst.msk [vmem:[%s5 + $0xf0] sm:$0xff] %vm765, %v746
  %797 = vst.msk [vmem:[%s5 + $0xf8] sm:$0xff] %vm765, %v747
  %798 = vst.msk [vmem:[%s5 + $0x100] sm:$0xff] %vm765, %v748
  %799 = vst.msk [vmem:[%s5 + $0x108] sm:$0xff] %vm765, %v749
  %800 = vst.msk [vmem:[%s5 + $0x110] sm:$0xff] %vm765, %v750
  %801 = vst.msk [vmem:[%s5 + $0x118] sm:$0xff] %vm765, %v751
  %802 = vst.msk [vmem:[%s5 + $0x120] sm:$0xff] %vm765, %v752
  %803 = vst.msk [vmem:[%s5 + $0x128] sm:$0xff] %vm765, %v753
  %804 = vst.msk [vmem:[%s5 + $0x130] sm:$0xff] %vm765, %v754
  %805 = vst.msk [vmem:[%s5 + $0x138] sm:$0xff] %vm765, %v755
  %806 = vst.msk [vmem:[%s5 + $0x140] sm:$0xff] %vm765, %v756
  %807 = vst.msk [vmem:[%s5 + $0x148] sm:$0xff] %vm765, %v757
  %808 = vst.msk [vmem:[%s5 + $0x150] sm:$0xff] %vm765, %v758
  %809 = vst.msk [vmem:[%s5 + $0x158] sm:$0xff] %vm765, %v759
  %810 = vst.msk [vmem:[%s5 + $0x160] sm:$0xff] %vm765, %v760
  %811 = vst.msk [vmem:[%s5 + $0x168] sm:$0xff] %vm765, %v761
  %812 = vst.msk [vmem:[%s5 + $0x170] sm:$0xff] %vm765, %v762
  %813 = vst.msk [vmem:[%s5 + $0x178] sm:$0xff] %vm765, %v763
  %814 = vst.msk [vmem:[%s5 + $0x180] sm:$0xff] %vm765, %v764
  // Predicated region
  $region22: #{forward.4} parent=0 // pred_check
    _
  $region23: #{forward.4} parent=0 // pred_check_branch
    %816 = sbr.rel (0) target = $region25
  $region24: #{forward.4} parent=0 // pred_region
    _
  $region25: #{forward.4} parent=0 // pred_fallthru
    _
  // Predicated region
  $region26: #{forward.4} parent=0 // pred_check
    _
  $region27: #{forward.4} parent=0 // pred_check_branch
    %818 = sbr.rel (0) target = $region29
  $region28: #{forward.4} parent=0 // pred_region
    _
  $region29: #{forward.4} parent=0 // pred_fallthru
    _

// kernel: forward.5
$region0: #{forward.5}
  #allocation0 [shape = 'u32[]', space=smem, size = 0x4, offset = 0x4, fixed_abs, tag = 'smem constant byte address 0x4 - core index']
  #allocation1 [shape = 'u32[144,128]{1,0:T(1,128)}', space=vmem, size = 0x12000, scoped, tag = 'internal scratch']
  %s0 = inlined_call_operand.vmem [shape: f32[392,330], index: 0, kind: input, shape index: {}]
  %s1 = inlined_call_operand.vmem [shape: f32[330,30], index: 1, kind: input, shape index: {}]
  %s2 = inlined_call_operand.vmem [shape: f32[1,30], index: 2, kind: input, shape index: {}]
  %s3 = inlined_call_operand.vmem [shape: f32[1,30], index: 3, kind: input, shape index: {}]
  %s4 = inlined_call_operand.vmem [shape: f32[1,30], index: 4, kind: input, shape index: {}]
  %s5 = inlined_call_operand.vmem [shape: f32[392,30], index: 5, kind: output, shape index: {}]
  %s6 = sld [smem:[#allocation0]]
  $region30: #{forward.5} parent=0
    _
  %s8 = ssub.s32 1, %s6
  %s9 = scalar_select 0, %s8, %s6
  // Predicated region
  $region2: #{forward.5} parent=0 // pred_check
    _
  $region3: #{forward.5} parent=0 // pred_check_branch
    %11 = sbr.rel (0) target = $region5
  $region4: #{forward.5} parent=0 // pred_region
    _
  $region5: #{forward.5} parent=0 // pred_fallthru
    _
  // Predicated region
  $region6: #{forward.5} parent=0 // pred_check
    _
  $region7: #{forward.5} parent=0 // pred_check_branch
    %13 = sbr.rel (0) target = $region9
  $region8: #{forward.5} parent=0 // pred_region
    _
  $region9: #{forward.5} parent=0 // pred_fallthru
    _
  // Predicated region
  $region10: #{forward.5} parent=0 // pred_check
    _
  $region11: #{forward.5} parent=0 // pred_check_branch
    %15 = sbr.rel (0) target = $region13
  $region12: #{forward.5} parent=0 // pred_region
    _
  $region13: #{forward.5} parent=0 // pred_fallthru
    _
  // Predicated region
  $region14: #{forward.5} parent=0 // pred_check
    _
  $region15: #{forward.5} parent=0 // pred_check_branch
    %17 = sbr.rel (0) target = $region17
  $region16: #{forward.5} parent=0 // pred_region
    _
  $region17: #{forward.5} parent=0 // pred_fallthru
    _
  // Predicated region
  $region18: #{forward.5} parent=0 // pred_check
    _
  $region19: #{forward.5} parent=0 // pred_check_branch
    %19 = sbr.rel (0) target = $region21
  $region20: #{forward.5} parent=0 // pred_region
    _
  $region21: #{forward.5} parent=0 // pred_fallthru
    _
  %v20 = vld [vmem:[%s0] sm:$0xff]
  %v21 = vld [vmem:[%s0 + $0x8] sm:$0xff]
  %v22 = vld [vmem:[%s0 + $0x10] sm:$0xff]
  %v23 = vld [vmem:[%s0 + $0x18] sm:$0xff]
  %v24 = vld [vmem:[%s0 + $0x20] sm:$0xff]
  %v25 = vld [vmem:[%s0 + $0x28] sm:$0xff]
  %v26 = vld [vmem:[%s0 + $0x30] sm:$0xff]
  %v27 = vld [vmem:[%s0 + $0x38] sm:$0xff]
  %v28 = vld [vmem:[%s0 + $0x40] sm:$0xff]
  %v29 = vld [vmem:[%s0 + $0x48] sm:$0xff]
  %v30 = vld [vmem:[%s0 + $0x50] sm:$0xff]
  %v31 = vld [vmem:[%s0 + $0x58] sm:$0xff]
  %v32 = vld [vmem:[%s0 + $0x60] sm:$0xff]
  %v33 = vld [vmem:[%s0 + $0x68] sm:$0xff]
  %v34 = vld [vmem:[%s0 + $0x70] sm:$0xff]
  %v35 = vld [vmem:[%s0 + $0x78] sm:$0xff]
  %v36 = vld [vmem:[%s0 + $0x80] sm:$0xff]
  %v37 = vld [vmem:[%s0 + $0x88] sm:$0xff]
  %v38 = vld [vmem:[%s0 + $0x90] sm:$0xff]
  %v39 = vld [vmem:[%s0 + $0x98] sm:$0xff]
  %v40 = vld [vmem:[%s0 + $0xa0] sm:$0xff]
  %v41 = vld [vmem:[%s0 + $0xa8] sm:$0xff]
  %v42 = vld [vmem:[%s0 + $0xb0] sm:$0xff]
  %v43 = vld [vmem:[%s0 + $0xb8] sm:$0xff]
  %v44 = vld [vmem:[%s0 + $0xc0] sm:$0xff]
  %v45 = vld [vmem:[%s0 + $0xc8] sm:$0xff]
  %v46 = vld [vmem:[%s0 + $0xd0] sm:$0xff]
  %v47 = vld [vmem:[%s0 + $0xd8] sm:$0xff]
  %v48 = vld [vmem:[%s0 + $0xe0] sm:$0xff]
  %v49 = vld [vmem:[%s0 + $0xe8] sm:$0xff]
  %v50 = vld [vmem:[%s0 + $0xf0] sm:$0xff]
  %v51 = vld [vmem:[%s0 + $0xf8] sm:$0xff]
  %v52 = vld [vmem:[%s0 + $0x100] sm:$0xff]
  %v53 = vld [vmem:[%s0 + $0x108] sm:$0xff]
  %v54 = vld [vmem:[%s0 + $0x110] sm:$0xff]
  %v55 = vld [vmem:[%s0 + $0x118] sm:$0xff]
  %v56 = vld [vmem:[%s0 + $0x120] sm:$0xff]
  %v57 = vld [vmem:[%s0 + $0x128] sm:$0xff]
  %v58 = vld [vmem:[%s0 + $0x130] sm:$0xff]
  %v59 = vld [vmem:[%s0 + $0x138] sm:$0xff]
  %v60 = vld [vmem:[%s0 + $0x140] sm:$0xff]
  %v61 = vld [vmem:[%s0 + $0x148] sm:$0xff]
  %v62 = vld [vmem:[%s0 + $0x150] sm:$0xff]
  %v63 = vld [vmem:[%s0 + $0x158] sm:$0xff]
  %v64 = vld [vmem:[%s0 + $0x160] sm:$0xff]
  %v65 = vld [vmem:[%s0 + $0x168] sm:$0xff]
  %v66 = vld [vmem:[%s0 + $0x170] sm:$0xff]
  %v67 = vld [vmem:[%s0 + $0x178] sm:$0xff]
  %v68 = vld [vmem:[%s0 + $0x180] sm:$0xff]
  %v69 = vld [vmem:[%s0 + $0x188] sm:$0xff]
  %v70 = vld [vmem:[%s0 + $0x190] sm:$0xff]
  %v71 = vld [vmem:[%s0 + $0x198] sm:$0xff]
  %v72 = vld [vmem:[%s0 + $0x1a0] sm:$0xff]
  %v73 = vld [vmem:[%s0 + $0x1a8] sm:$0xff]
  %v74 = vld [vmem:[%s0 + $0x1b0] sm:$0xff]
  %v75 = vld [vmem:[%s0 + $0x1b8] sm:$0xff]
  %v76 = vld [vmem:[%s0 + $0x1c0] sm:$0xff]
  %v77 = vld [vmem:[%s0 + $0x1c8] sm:$0xff]
  %v78 = vld [vmem:[%s0 + $0x1d0] sm:$0xff]
  %v79 = vld [vmem:[%s0 + $0x1d8] sm:$0xff]
  %v80 = vld [vmem:[%s0 + $0x1e0] sm:$0xff]
  %v81 = vld [vmem:[%s0 + $0x1e8] sm:$0xff]
  %v82 = vld [vmem:[%s0 + $0x1f0] sm:$0xff]
  %v83 = vld [vmem:[%s0 + $0x1f8] sm:$0xff]
  %v84 = vld [vmem:[%s0 + $0x200] sm:$0xff]
  %v85 = vld [vmem:[%s0 + $0x208] sm:$0xff]
  %v86 = vld [vmem:[%s0 + $0x210] sm:$0xff]
  %v87 = vld [vmem:[%s0 + $0x218] sm:$0xff]
  %v88 = vld [vmem:[%s0 + $0x220] sm:$0xff]
  %v89 = vld [vmem:[%s0 + $0x228] sm:$0xff]
  %v90 = vld [vmem:[%s0 + $0x230] sm:$0xff]
  %v91 = vld [vmem:[%s0 + $0x238] sm:$0xff]
  %v92 = vld [vmem:[%s0 + $0x240] sm:$0xff]
  %v93 = vld [vmem:[%s0 + $0x248] sm:$0xff]
  %v94 = vld [vmem:[%s0 + $0x250] sm:$0xff]
  %v95 = vld [vmem:[%s0 + $0x258] sm:$0xff]
  %v96 = vld [vmem:[%s0 + $0x260] sm:$0xff]
  %v97 = vld [vmem:[%s0 + $0x268] sm:$0xff]
  %v98 = vld [vmem:[%s0 + $0x270] sm:$0xff]
  %v99 = vld [vmem:[%s0 + $0x278] sm:$0xff]
  %v100 = vld [vmem:[%s0 + $0x280] sm:$0xff]
  %v101 = vld [vmem:[%s0 + $0x288] sm:$0xff]
  %v102 = vld [vmem:[%s0 + $0x290] sm:$0xff]
  %v103 = vld [vmem:[%s0 + $0x298] sm:$0xff]
  %v104 = vld [vmem:[%s0 + $0x2a0] sm:$0xff]
  %v105 = vld [vmem:[%s0 + $0x2a8] sm:$0xff]
  %v106 = vld [vmem:[%s0 + $0x2b0] sm:$0xff]
  %v107 = vld [vmem:[%s0 + $0x2b8] sm:$0xff]
  %v108 = vld [vmem:[%s0 + $0x2c0] sm:$0xff]
  %v109 = vld [vmem:[%s0 + $0x2c8] sm:$0xff]
  %v110 = vld [vmem:[%s0 + $0x2d0] sm:$0xff]
  %v111 = vld [vmem:[%s0 + $0x2d8] sm:$0xff]
  %v112 = vld [vmem:[%s0 + $0x2e0] sm:$0xff]
  %v113 = vld [vmem:[%s0 + $0x2e8] sm:$0xff]
  %v114 = vld [vmem:[%s0 + $0x2f0] sm:$0xff]
  %v115 = vld [vmem:[%s0 + $0x2f8] sm:$0xff]
  %v116 = vld [vmem:[%s0 + $0x300] sm:$0xff]
  %v117 = vld [vmem:[%s0 + $0x308] sm:$0xff]
  %v118 = vld [vmem:[%s0 + $0x310] sm:$0xff]
  %v119 = vld [vmem:[%s0 + $0x318] sm:$0xff]
  %v120 = vld [vmem:[%s0 + $0x320] sm:$0xff]
  %v121 = vld [vmem:[%s0 + $0x328] sm:$0xff]
  %v122 = vld [vmem:[%s0 + $0x330] sm:$0xff]
  %v123 = vld [vmem:[%s0 + $0x338] sm:$0xff]
  %v124 = vld [vmem:[%s0 + $0x340] sm:$0xff]
  %v125 = vld [vmem:[%s0 + $0x348] sm:$0xff]
  %v126 = vld [vmem:[%s0 + $0x350] sm:$0xff]
  %v127 = vld [vmem:[%s0 + $0x358] sm:$0xff]
  %v128 = vld [vmem:[%s0 + $0x360] sm:$0xff]
  %v129 = vld [vmem:[%s0 + $0x368] sm:$0xff]
  %v130 = vld [vmem:[%s0 + $0x370] sm:$0xff]
  %v131 = vld [vmem:[%s0 + $0x378] sm:$0xff]
  %v132 = vld [vmem:[%s0 + $0x380] sm:$0xff]
  %v133 = vld [vmem:[%s0 + $0x388] sm:$0xff]
  %v134 = vld [vmem:[%s0 + $0x390] sm:$0xff]
  %v135 = vld [vmem:[%s0 + $0x398] sm:$0xff]
  %v136 = vld [vmem:[%s0 + $0x3a0] sm:$0xff]
  %v137 = vld [vmem:[%s0 + $0x3a8] sm:$0xff]
  %v138 = vld [vmem:[%s0 + $0x3b0] sm:$0xff]
  %v139 = vld [vmem:[%s0 + $0x3b8] sm:$0xff]
  %v140 = vld [vmem:[%s0 + $0x3c0] sm:$0xff]
  %v141 = vld [vmem:[%s0 + $0x3c8] sm:$0xff]
  %v142 = vld [vmem:[%s0 + $0x3d0] sm:$0xff]
  %v143 = vld [vmem:[%s0 + $0x3d8] sm:$0xff]
  %v144 = vld [vmem:[%s0 + $0x3e0] sm:$0xff]
  %v145 = vld [vmem:[%s0 + $0x3e8] sm:$0xff]
  %v146 = vld [vmem:[%s0 + $0x3f0] sm:$0xff]
  %v147 = vld [vmem:[%s0 + $0x3f8] sm:$0xff]
  %v148 = vld [vmem:[%s0 + $0x400] sm:$0xff]
  %v149 = vld [vmem:[%s0 + $0x408] sm:$0xff]
  %v150 = vld [vmem:[%s0 + $0x410] sm:$0xff]
  %v151 = vld [vmem:[%s0 + $0x418] sm:$0xff]
  %v152 = vld [vmem:[%s0 + $0x420] sm:$0xff]
  %v153 = vld [vmem:[%s0 + $0x428] sm:$0xff]
  %v154 = vld [vmem:[%s0 + $0x430] sm:$0xff]
  %v155 = vld [vmem:[%s0 + $0x438] sm:$0xff]
  %v156 = vld [vmem:[%s0 + $0x440] sm:$0xff]
  %v157 = vld [vmem:[%s0 + $0x448] sm:$0xff]
  %v158 = vld [vmem:[%s0 + $0x450] sm:$0xff]
  %v159 = vld [vmem:[%s0 + $0x458] sm:$0xff]
  %v160 = vld [vmem:[%s0 + $0x460] sm:$0xff]
  %v161 = vld [vmem:[%s0 + $0x468] sm:$0xff]
  %v162 = vld [vmem:[%s0 + $0x470] sm:$0xff]
  %v163 = vld [vmem:[%s0 + $0x478] sm:$0xff]
  %v164 = vld [vmem:[%s0 + $0x480] sm:$0xff]
  %v165 = vld [vmem:[%s0 + $0x488] sm:$0xff]
  %v166 = vld [vmem:[%s0 + $0x490] sm:$0xff]
  %v167 = vld [vmem:[%s1] sm:$0xff]
  %v168 = vld [vmem:[%s1 + $0x8] sm:$0xff]
  %v169 = vld [vmem:[%s1 + $0x10] sm:$0xff]
  %v170 = vld [vmem:[%s1 + $0x18] sm:$0xff]
  %v171 = vld [vmem:[%s1 + $0x20] sm:$0xff]
  %v172 = vld [vmem:[%s1 + $0x28] sm:$0xff]
  %v173 = vld [vmem:[%s1 + $0x30] sm:$0xff]
  %v174 = vld [vmem:[%s1 + $0x38] sm:$0xff]
  %v175 = vld [vmem:[%s1 + $0x40] sm:$0xff]
  %v176 = vld [vmem:[%s1 + $0x48] sm:$0xff]
  %v177 = vld [vmem:[%s1 + $0x50] sm:$0xff]
  %v178 = vld [vmem:[%s1 + $0x58] sm:$0xff]
  %v179 = vld [vmem:[%s1 + $0x60] sm:$0xff]
  %v180 = vld [vmem:[%s1 + $0x68] sm:$0xff]
  %v181 = vld [vmem:[%s1 + $0x70] sm:$0xff]
  %v182 = vld [vmem:[%s1 + $0x78] sm:$0xff]
  %v183 = vld [vmem:[%s1 + $0x80] sm:$0xff]
  %v184 = vld [vmem:[%s1 + $0x88] sm:$0xff]
  %v185 = vld [vmem:[%s1 + $0x90] sm:$0xff]
  %v186 = vld [vmem:[%s1 + $0x98] sm:$0xff]
  %v187 = vld [vmem:[%s1 + $0xa0] sm:$0xff]
  %v188 = vld [vmem:[%s1 + $0xa8] sm:$0xff]
  %v189 = vld [vmem:[%s1 + $0xb0] sm:$0xff]
  %v190 = vld [vmem:[%s1 + $0xb8] sm:$0xff]
  %v191 = vld [vmem:[%s1 + $0xc0] sm:$0xff]
  %v192 = vld [vmem:[%s1 + $0xc8] sm:$0xff]
  %v193 = vld [vmem:[%s1 + $0xd0] sm:$0xff]
  %v194 = vld [vmem:[%s1 + $0xd8] sm:$0xff]
  %v195 = vld [vmem:[%s1 + $0xe0] sm:$0xff]
  %v196 = vld [vmem:[%s1 + $0xe8] sm:$0xff]
  %v197 = vld [vmem:[%s1 + $0xf0] sm:$0xff]
  %v198 = vld [vmem:[%s1 + $0xf8] sm:$0xff]
  %v199 = vld [vmem:[%s1 + $0x100] sm:$0xff]
  %v200 = vld [vmem:[%s1 + $0x108] sm:$0xff]
  %v201 = vld [vmem:[%s1 + $0x110] sm:$0xff]
  %v202 = vld [vmem:[%s1 + $0x118] sm:$0xff]
  %v203 = vld [vmem:[%s1 + $0x120] sm:$0xff]
  %v204 = vld [vmem:[%s1 + $0x128] sm:$0xff]
  %v205 = vld [vmem:[%s1 + $0x130] sm:$0xff]
  %v206 = vld [vmem:[%s1 + $0x138] sm:$0xff]
  %v207 = vld [vmem:[%s1 + $0x140] sm:$0xff]
  %v208 = vld [vmem:[%s1 + $0x148] sm:$0x3]
  %v209 = vld [vmem:[%s2] sm:$0x1]
  %v211 = vlaneseq
  %v212 = vshrl.u32 %v211, 7
  %v213 = vsub.s32 0, %v212
  %v214 = vrot.slane %v209, %v213
  %vm216 = vcmask 605184
  %v218 = vsel %vm216, %v22, 0
  %v221 = vsel %vm216, %v25, 0
  %v224 = vsel %vm216, %v28, 0
  %v227 = vsel %vm216, %v31, 0
  %v230 = vsel %vm216, %v34, 0
  %v233 = vsel %vm216, %v37, 0
  %v236 = vsel %vm216, %v40, 0
  %v239 = vsel %vm216, %v43, 0
  %v242 = vsel %vm216, %v46, 0
  %v245 = vsel %vm216, %v49, 0
  %v248 = vsel %vm216, %v52, 0
  %v251 = vsel %vm216, %v55, 0
  %v254 = vsel %vm216, %v58, 0
  %v257 = vsel %vm216, %v61, 0
  %v260 = vsel %vm216, %v64, 0
  %v263 = vsel %vm216, %v67, 0
  %v266 = vsel %vm216, %v70, 0
  %v269 = vsel %vm216, %v73, 0
  %v272 = vsel %vm216, %v76, 0
  %v275 = vsel %vm216, %v79, 0
  %v278 = vsel %vm216, %v82, 0
  %v281 = vsel %vm216, %v85, 0
  %v284 = vsel %vm216, %v88, 0
  %v287 = vsel %vm216, %v91, 0
  %v290 = vsel %vm216, %v94, 0
  %v293 = vsel %vm216, %v97, 0
  %v296 = vsel %vm216, %v100, 0
  %v299 = vsel %vm216, %v103, 0
  %v302 = vsel %vm216, %v106, 0
  %v305 = vsel %vm216, %v109, 0
  %v308 = vsel %vm216, %v112, 0
  %v311 = vsel %vm216, %v115, 0
  %v314 = vsel %vm216, %v118, 0
  %v317 = vsel %vm216, %v121, 0
  %v320 = vsel %vm216, %v124, 0
  %v323 = vsel %vm216, %v127, 0
  %v326 = vsel %vm216, %v130, 0
  %v329 = vsel %vm216, %v133, 0
  %v332 = vsel %vm216, %v136, 0
  %v335 = vsel %vm216, %v139, 0
  %v338 = vsel %vm216, %v142, 0
  %v341 = vsel %vm216, %v145, 0
  %v344 = vsel %vm216, %v148, 0
  %v347 = vsel %vm216, %v151, 0
  %v350 = vsel %vm216, %v154, 0
  %v353 = vsel %vm216, %v157, 0
  %v356 = vsel %vm216, %v160, 0
  %v359 = vsel %vm216, %v163, 0
  %v362 = vsel %vm216, %v166, 0
  %vm364 = vcmask 1041408
  %v366 = vsel %vm364, %v208, 0
  %368 = vmatprep.subr.mxu0 0.0
  %369 = vmatpush1.msra.mxu0 %v182
  %370 = vmatprep.subr.mxu0 0.0
  %371 = vmatpush1.msra.mxu0 %v181
  %372 = vmatprep.subr.mxu0 0.0
  %373 = vmatpush1.msra.mxu0 %v180
  %374 = vmatprep.subr.mxu0 0.0
  %375 = vmatpush1.msra.mxu0 %v179
  %376 = vmatprep.subr.mxu0 0.0
  %377 = vmatpush1.msra.mxu0 %v178
  %378 = vmatprep.subr.mxu0 0.0
  %379 = vmatpush1.msra.mxu0 %v177
  %380 = vmatprep.subr.mxu0 0.0
  %381 = vmatpush1.msra.mxu0 %v176
  %382 = vmatprep.subr.mxu0 0.0
  %383 = vmatpush1.msra.mxu0 %v175
  %384 = vmatprep.subr.mxu0 0.0
  %385 = vmatpush1.msra.mxu0 %v174
  %386 = vmatprep.subr.mxu0 0.0
  %387 = vmatpush1.msra.mxu0 %v173
  %388 = vmatprep.subr.mxu0 0.0
  %389 = vmatpush1.msra.mxu0 %v172
  %390 = vmatprep.subr.mxu0 0.0
  %391 = vmatpush1.msra.mxu0 %v171
  %392 = vmatprep.subr.mxu0 0.0
  %393 = vmatpush1.msra.mxu0 %v170
  %394 = vmatprep.subr.mxu0 0.0
  %395 = vmatpush1.msra.mxu0 %v169
  %396 = vmatprep.subr.mxu0 0.0
  %397 = vmatpush1.msra.mxu0 %v168
  %398 = vmatprep.subr.mxu0 0.0
  %399 = vmatpush1.msra.mxu0 %v167
  %400 = vmatprep.subr.mxu0 0.0
  %401 = vmatpush2.msra.mxu0 %v198
  %402 = vmatprep.subr.mxu0 0.0
  %403 = vmatpush2.msra.mxu0 %v197
  %404 = vmatprep.subr.mxu0 0.0
  %405 = vmatpush2.msra.mxu0 %v196
  %406 = vmatprep.subr.mxu0 0.0
  %407 = vmatpush2.msra.mxu0 %v195
  %408 = vmatprep.subr.mxu0 0.0
  %409 = vmatpush2.msra.mxu0 %v194
  %410 = vmatprep.subr.mxu0 0.0
  %411 = vmatpush2.msra.mxu0 %v193
  %412 = vmatprep.subr.mxu0 0.0
  %413 = vmatpush2.msra.mxu0 %v192
  %414 = vmatprep.subr.mxu0 0.0
  %415 = vmatpush2.msra.mxu0 %v191
  %416 = vmatprep.subr.mxu0 0.0
  %417 = vmatpush2.msra.mxu0 %v190
  %418 = vmatprep.subr.mxu0 0.0
  %419 = vmatpush2.msra.mxu0 %v189
  %420 = vmatprep.subr.mxu0 0.0
  %421 = vmatpush2.msra.mxu0 %v188
  %422 = vmatprep.subr.mxu0 0.0
  %423 = vmatpush2.msra.mxu0 %v187
  %424 = vmatprep.subr.mxu0 0.0
  %425 = vmatpush2.msra.mxu0 %v186
  %426 = vmatprep.subr.mxu0 0.0
  %427 = vmatpush2.msra.mxu0 %v185
  %428 = vmatprep.subr.mxu0 0.0
  %429 = vmatpush2.msra.mxu0 %v184
  %430 = vmatprep.subr.mxu0 0.0
  %431 = vmatpush2.msra.mxu0 %v183
  %432 = vmatprep.mubr.f32.mxu0 %v21
  %433 = vmatmul.mubr.f32.gmra.mxu0 %v20
  %v434 = vpop.f32.mrf.mxu0
  %v435 = vadd.f32 %v214, %v434
  %v436 = vpop.f32.mrf.mxu0
  %437 = vmatprep.mubr.f32.mxu0 %v24
  %438 = vmatmul.mubr.f32.gmra.mxu0 %v23
  %v439 = vpop.f32.mrf.mxu0
  %v440 = vadd.f32 %v214, %v439
  %v441 = vpop.f32.mrf.mxu0
  %442 = vmatprep.mubr.f32.mxu0 %v27
  %443 = vmatmul.mubr.f32.gmra.mxu0 %v26
  %v444 = vpop.f32.mrf.mxu0
  %v445 = vadd.f32 %v214, %v444
  %v446 = vpop.f32.mrf.mxu0
  %447 = vmatprep.mubr.f32.mxu0 %v30
  %448 = vmatmul.mubr.f32.gmra.mxu0 %v29
  %v449 = vpop.f32.mrf.mxu0
  %v450 = vadd.f32 %v214, %v449
  %v451 = vpop.f32.mrf.mxu0
  %452 = vmatprep.mubr.f32.mxu0 %v33
  %453 = vmatmul.mubr.f32.gmra.mxu0 %v32
  %v454 = vpop.f32.mrf.mxu0
  %v455 = vadd.f32 %v214, %v454
  %v456 = vpop.f32.mrf.mxu0
  %457 = vmatprep.mubr.f32.mxu0 %v36
  %458 = vmatmul.mubr.f32.gmra.mxu0 %v35
  %v459 = vpop.f32.mrf.mxu0
  %v460 = vadd.f32 %v214, %v459
  %v461 = vpop.f32.mrf.mxu0
  %462 = vmatprep.mubr.f32.mxu0 %v39
  %463 = vmatmul.mubr.f32.gmra.mxu0 %v38
  %v464 = vpop.f32.mrf.mxu0
  %v465 = vadd.f32 %v214, %v464
  %v466 = vpop.f32.mrf.mxu0
  %467 = vmatprep.mubr.f32.mxu0 %v42
  %468 = vmatmul.mubr.f32.gmra.mxu0 %v41
  %v469 = vpop.f32.mrf.mxu0
  %v470 = vadd.f32 %v214, %v469
  %v471 = vpop.f32.mrf.mxu0
  %472 = vmatprep.mubr.f32.mxu0 %v45
  %473 = vmatmul.mubr.f32.gmra.mxu0 %v44
  %v474 = vpop.f32.mrf.mxu0
  %v475 = vadd.f32 %v214, %v474
  %v476 = vpop.f32.mrf.mxu0
  %477 = vmatprep.mubr.f32.mxu0 %v48
  %478 = vmatmul.mubr.f32.gmra.mxu0 %v47
  %v479 = vpop.f32.mrf.mxu0
  %v480 = vadd.f32 %v214, %v479
  %v481 = vpop.f32.mrf.mxu0
  %482 = vmatprep.mubr.f32.mxu0 %v51
  %483 = vmatmul.mubr.f32.gmra.mxu0 %v50
  %v484 = vpop.f32.mrf.mxu0
  %v485 = vadd.f32 %v214, %v484
  %v486 = vpop.f32.mrf.mxu0
  %487 = vmatprep.mubr.f32.mxu0 %v54
  %488 = vmatmul.mubr.f32.gmra.mxu0 %v53
  %v489 = vpop.f32.mrf.mxu0
  %v490 = vadd.f32 %v214, %v489
  %v491 = vpop.f32.mrf.mxu0
  %492 = vmatprep.mubr.f32.mxu0 %v57
  %493 = vmatmul.mubr.f32.gmra.mxu0 %v56
  %v494 = vpop.f32.mrf.mxu0
  %v495 = vadd.f32 %v214, %v494
  %v496 = vpop.f32.mrf.mxu0
  %497 = vmatprep.mubr.f32.mxu0 %v60
  %498 = vmatmul.mubr.f32.gmra.mxu0 %v59
  %v499 = vpop.f32.mrf.mxu0
  %v500 = vadd.f32 %v214, %v499
  %v501 = vpop.f32.mrf.mxu0
  %502 = vmatprep.mubr.f32.mxu0 %v63
  %503 = vmatmul.mubr.f32.gmra.mxu0 %v62
  %v504 = vpop.f32.mrf.mxu0
  %v505 = vadd.f32 %v214, %v504
  %v506 = vpop.f32.mrf.mxu0
  %507 = vmatprep.mubr.f32.mxu0 %v66
  %508 = vmatmul.mubr.f32.gmra.mxu0 %v65
  %v509 = vpop.f32.mrf.mxu0
  %v510 = vadd.f32 %v214, %v509
  %v511 = vpop.f32.mrf.mxu0
  %512 = vmatprep.mubr.f32.mxu0 %v69
  %513 = vmatmul.mubr.f32.gmra.mxu0 %v68
  %v514 = vpop.f32.mrf.mxu0
  %v515 = vadd.f32 %v214, %v514
  %v516 = vpop.f32.mrf.mxu0
  %517 = vmatprep.mubr.f32.mxu0 %v72
  %518 = vmatmul.mubr.f32.gmra.mxu0 %v71
  %v519 = vpop.f32.mrf.mxu0
  %v520 = vadd.f32 %v214, %v519
  %v521 = vpop.f32.mrf.mxu0
  %522 = vmatprep.mubr.f32.mxu0 %v75
  %523 = vmatmul.mubr.f32.gmra.mxu0 %v74
  %v524 = vpop.f32.mrf.mxu0
  %v525 = vadd.f32 %v214, %v524
  %v526 = vpop.f32.mrf.mxu0
  %527 = vmatprep.mubr.f32.mxu0 %v78
  %528 = vmatmul.mubr.f32.gmra.mxu0 %v77
  %v529 = vpop.f32.mrf.mxu0
  %v530 = vadd.f32 %v214, %v529
  %v531 = vpop.f32.mrf.mxu0
  %532 = vmatprep.mubr.f32.mxu0 %v81
  %533 = vmatmul.mubr.f32.gmra.mxu0 %v80
  %v534 = vpop.f32.mrf.mxu0
  %v535 = vadd.f32 %v214, %v534
  %v536 = vpop.f32.mrf.mxu0
  %537 = vmatprep.mubr.f32.mxu0 %v84
  %538 = vmatmul.mubr.f32.gmra.mxu0 %v83
  %v539 = vpop.f32.mrf.mxu0
  %v540 = vadd.f32 %v214, %v539
  %v541 = vpop.f32.mrf.mxu0
  %542 = vmatprep.mubr.f32.mxu0 %v87
  %543 = vmatmul.mubr.f32.gmra.mxu0 %v86
  %v544 = vpop.f32.mrf.mxu0
  %v545 = vadd.f32 %v214, %v544
  %v546 = vpop.f32.mrf.mxu0
  %547 = vmatprep.mubr.f32.mxu0 %v90
  %548 = vmatmul.mubr.f32.gmra.mxu0 %v89
  %v549 = vpop.f32.mrf.mxu0
  %v550 = vadd.f32 %v214, %v549
  %v551 = vpop.f32.mrf.mxu0
  %552 = vmatprep.mubr.f32.mxu0 %v93
  %553 = vmatmul.mubr.f32.gmra.mxu0 %v92
  %v554 = vpop.f32.mrf.mxu0
  %v555 = vadd.f32 %v214, %v554
  %v556 = vpop.f32.mrf.mxu0
  %557 = vmatprep.mubr.f32.mxu0 %v96
  %558 = vmatmul.mubr.f32.gmra.mxu0 %v95
  %v559 = vpop.f32.mrf.mxu0
  %v560 = vadd.f32 %v214, %v559
  %v561 = vpop.f32.mrf.mxu0
  %562 = vmatprep.mubr.f32.mxu0 %v99
  %563 = vmatmul.mubr.f32.gmra.mxu0 %v98
  %v564 = vpop.f32.mrf.mxu0
  %v565 = vadd.f32 %v214, %v564
  %v566 = vpop.f32.mrf.mxu0
  %567 = vmatprep.mubr.f32.mxu0 %v102
  %568 = vmatmul.mubr.f32.gmra.mxu0 %v101
  %v569 = vpop.f32.mrf.mxu0
  %v570 = vadd.f32 %v214, %v569
  %v571 = vpop.f32.mrf.mxu0
  %572 = vmatprep.mubr.f32.mxu0 %v105
  %573 = vmatmul.mubr.f32.gmra.mxu0 %v104
  %v574 = vpop.f32.mrf.mxu0
  %v575 = vadd.f32 %v214, %v574
  %v576 = vpop.f32.mrf.mxu0
  %577 = vmatprep.mubr.f32.mxu0 %v108
  %578 = vmatmul.mubr.f32.gmra.mxu0 %v107
  %v579 = vpop.f32.mrf.mxu0
  %v580 = vadd.f32 %v214, %v579
  %v581 = vpop.f32.mrf.mxu0
  %582 = vmatprep.mubr.f32.mxu0 %v111
  %583 = vmatmul.mubr.f32.gmra.mxu0 %v110
  %v584 = vpop.f32.mrf.mxu0
  %v585 = vadd.f32 %v214, %v584
  %v586 = vpop.f32.mrf.mxu0
  %587 = vmatprep.mubr.f32.mxu0 %v114
  %588 = vmatmul.mubr.f32.gmra.mxu0 %v113
  %v589 = vpop.f32.mrf.mxu0
  %v590 = vadd.f32 %v214, %v589
  %v591 = vpop.f32.mrf.mxu0
  %592 = vmatprep.mubr.f32.mxu0 %v117
  %593 = vmatmul.mubr.f32.gmra.mxu0 %v116
  %v594 = vpop.f32.mrf.mxu0
  %v595 = vadd.f32 %v214, %v594
  %v596 = vpop.f32.mrf.mxu0
  %597 = vmatprep.mubr.f32.mxu0 %v120
  %598 = vmatmul.mubr.f32.gmra.mxu0 %v119
  %v599 = vpop.f32.mrf.mxu0
  %v600 = vadd.f32 %v214, %v599
  %v601 = vpop.f32.mrf.mxu0
  %602 = vmatprep.mubr.f32.mxu0 %v123
  %603 = vmatmul.mubr.f32.gmra.mxu0 %v122
  %v604 = vpop.f32.mrf.mxu0
  %v605 = vadd.f32 %v214, %v604
  %v606 = vpop.f32.mrf.mxu0
  %607 = vmatprep.mubr.f32.mxu0 %v126
  %608 = vmatmul.mubr.f32.gmra.mxu0 %v125
  %v609 = vpop.f32.mrf.mxu0
  %v610 = vadd.f32 %v214, %v609
  %v611 = vpop.f32.mrf.mxu0
  %612 = vmatprep.mubr.f32.mxu0 %v129
  %613 = vmatmul.mubr.f32.gmra.mxu0 %v128
  %v614 = vpop.f32.mrf.mxu0
  %v615 = vadd.f32 %v214, %v614
  %v616 = vpop.f32.mrf.mxu0
  %617 = vmatprep.mubr.f32.mxu0 %v132
  %618 = vmatmul.mubr.f32.gmra.mxu0 %v131
  %v619 = vpop.f32.mrf.mxu0
  %v620 = vadd.f32 %v214, %v619
  %v621 = vpop.f32.mrf.mxu0
  %622 = vmatprep.mubr.f32.mxu0 %v135
  %623 = vmatmul.mubr.f32.gmra.mxu0 %v134
  %v624 = vpop.f32.mrf.mxu0
  %v625 = vadd.f32 %v214, %v624
  %v626 = vpop.f32.mrf.mxu0
  %627 = vmatprep.mubr.f32.mxu0 %v138
  %628 = vmatmul.mubr.f32.gmra.mxu0 %v137
  %v629 = vpop.f32.mrf.mxu0
  %v630 = vadd.f32 %v214, %v629
  %v631 = vpop.f32.mrf.mxu0
  %632 = vmatprep.mubr.f32.mxu0 %v141
  %633 = vmatmul.mubr.f32.gmra.mxu0 %v140
  %v634 = vpop.f32.mrf.mxu0
  %v635 = vadd.f32 %v214, %v634
  %v636 = vpop.f32.mrf.mxu0
  %637 = vmatprep.mubr.f32.mxu0 %v144
  %638 = vmatmul.mubr.f32.gmra.mxu0 %v143
  %v639 = vpop.f32.mrf.mxu0
  %v640 = vadd.f32 %v214, %v639
  %v641 = vpop.f32.mrf.mxu0
  %642 = vmatprep.mubr.f32.mxu0 %v147
  %643 = vmatmul.mubr.f32.gmra.mxu0 %v146
  %v644 = vpop.f32.mrf.mxu0
  %v645 = vadd.f32 %v214, %v644
  %v646 = vpop.f32.mrf.mxu0
  %647 = vmatprep.mubr.f32.mxu0 %v150
  %648 = vmatmul.mubr.f32.gmra.mxu0 %v149
  %v649 = vpop.f32.mrf.mxu0
  %v650 = vadd.f32 %v214, %v649
  %v651 = vpop.f32.mrf.mxu0
  %652 = vmatprep.mubr.f32.mxu0 %v153
  %653 = vmatmul.mubr.f32.gmra.mxu0 %v152
  %v654 = vpop.f32.mrf.mxu0
  %v655 = vadd.f32 %v214, %v654
  %v656 = vpop.f32.mrf.mxu0
  %657 = vmatprep.mubr.f32.mxu0 %v156
  %658 = vmatmul.mubr.f32.gmra.mxu0 %v155
  %v659 = vpop.f32.mrf.mxu0
  %v660 = vadd.f32 %v214, %v659
  %v661 = vpop.f32.mrf.mxu0
  %662 = vmatprep.mubr.f32.mxu0 %v159
  %663 = vmatmul.mubr.f32.gmra.mxu0 %v158
  %v664 = vpop.f32.mrf.mxu0
  %v665 = vadd.f32 %v214, %v664
  %v666 = vpop.f32.mrf.mxu0
  %667 = vmatprep.mubr.f32.mxu0 %v162
  %668 = vmatmul.mubr.f32.gmra.mxu0 %v161
  %v669 = vpop.f32.mrf.mxu0
  %v670 = vadd.f32 %v214, %v669
  %v671 = vpop.f32.mrf.mxu0
  %672 = vmatprep.mubr.f32.mxu0 %v165
  %673 = vmatmul.mubr.f32.gmra.mxu0 %v164
  %v674 = vpop.f32.mrf.mxu0
  %v675 = vadd.f32 %v214, %v674
  %v676 = vpop.f32.mrf.mxu0
  %677 = vdwg.mxu0
  %678 = vmatprep.subr.mxu0 0.0
  %679 = vmatpush1.msra.mxu0 0.0
  %680 = vmatprep.subr.mxu0 0.0
  %681 = vmatpush1.msra.mxu0 0.0
  %682 = vmatprep.subr.mxu0 0.0
  %683 = vmatpush1.msra.mxu0 0.0
  %684 = vmatprep.subr.mxu0 0.0
  %685 = vmatpush1.msra.mxu0 0.0
  %686 = vmatprep.subr.mxu0 0.0
  %687 = vmatpush1.msra.mxu0 0.0
  %688 = vmatprep.subr.mxu0 0.0
  %689 = vmatpush1.msra.mxu0 0.0
  %690 = vmatprep.subr.mxu0 0.0
  %691 = vmatpush1.msra.mxu0 %v366
  %692 = vmatprep.subr.mxu0 0.0
  %693 = vmatpush1.msra.mxu0 %v207
  %694 = vmatprep.subr.mxu0 0.0
  %695 = vmatpush1.msra.mxu0 %v206
  %696 = vmatprep.subr.mxu0 0.0
  %697 = vmatpush1.msra.mxu0 %v205
  %698 = vmatprep.subr.mxu0 0.0
  %699 = vmatpush1.msra.mxu0 %v204
  %700 = vmatprep.subr.mxu0 0.0
  %701 = vmatpush1.msra.mxu0 %v203
  %702 = vmatprep.subr.mxu0 0.0
  %703 = vmatpush1.msra.mxu0 %v202
  %704 = vmatprep.subr.mxu0 0.0
  %705 = vmatpush1.msra.mxu0 %v201
  %706 = vmatprep.subr.mxu0 0.0
  %707 = vmatpush1.msra.mxu0 %v200
  %708 = vmatprep.subr.mxu0 0.0
  %709 = vmatpush1.msra.mxu0 %v199
  %710 = vmatprep.subr.mxu0 0.0
  %711 = vmatpush2.msra.mxu0 0.0
  %712 = vmatprep.subr.mxu0 0.0
  %713 = vmatpush2.msra.mxu0 0.0
  %714 = vmatprep.subr.mxu0 0.0
  %715 = vmatpush2.msra.mxu0 0.0
  %716 = vmatprep.subr.mxu0 0.0
  %717 = vmatpush2.msra.mxu0 0.0
  %718 = vmatprep.subr.mxu0 0.0
  %719 = vmatpush2.msra.mxu0 0.0
  %720 = vmatprep.subr.mxu0 0.0
  %721 = vmatpush2.msra.mxu0 0.0
  %722 = vmatprep.subr.mxu0 0.0
  %723 = vmatpush2.msra.mxu0 0.0
  %724 = vmatprep.subr.mxu0 0.0
  %725 = vmatpush2.msra.mxu0 0.0
  %726 = vmatprep.subr.mxu0 0.0
  %727 = vmatpush2.msra.mxu0 0.0
  %728 = vmatprep.subr.mxu0 0.0
  %729 = vmatpush2.msra.mxu0 0.0
  %730 = vmatprep.subr.mxu0 0.0
  %731 = vmatpush2.msra.mxu0 0.0
  %732 = vmatprep.subr.mxu0 0.0
  %733 = vmatpush2.msra.mxu0 0.0
  %734 = vmatprep.subr.mxu0 0.0
  %735 = vmatpush2.msra.mxu0 0.0
  %736 = vmatprep.subr.mxu0 0.0
  %737 = vmatpush2.msra.mxu0 0.0
  %738 = vmatprep.subr.mxu0 0.0
  %739 = vmatpush2.msra.mxu0 0.0
  %740 = vmatprep.subr.mxu0 0.0
  %741 = vmatpush2.msra.mxu0 0.0
  %742 = vmatprep.mubr.f32.mxu0 0.0
  %743 = vmatmul.mubr.f32.gmra.mxu0 %v218
  %v744 = vpop.f32.mrf.mxu0
  %v745 = vadd.f32 %v435, %v744
  %v746 = vpop.f32.mrf.mxu0
  %747 = vmatprep.mubr.f32.mxu0 0.0
  %748 = vmatmul.mubr.f32.gmra.mxu0 %v221
  %v749 = vpop.f32.mrf.mxu0
  %v750 = vadd.f32 %v440, %v749
  %v751 = vpop.f32.mrf.mxu0
  %752 = vmatprep.mubr.f32.mxu0 0.0
  %753 = vmatmul.mubr.f32.gmra.mxu0 %v224
  %v754 = vpop.f32.mrf.mxu0
  %v755 = vadd.f32 %v445, %v754
  %v756 = vpop.f32.mrf.mxu0
  %757 = vmatprep.mubr.f32.mxu0 0.0
  %758 = vmatmul.mubr.f32.gmra.mxu0 %v227
  %v759 = vpop.f32.mrf.mxu0
  %v760 = vadd.f32 %v450, %v759
  %v761 = vpop.f32.mrf.mxu0
  %762 = vmatprep.mubr.f32.mxu0 0.0
  %763 = vmatmul.mubr.f32.gmra.mxu0 %v230
  %v764 = vpop.f32.mrf.mxu0
  %v765 = vadd.f32 %v455, %v764
  %v766 = vpop.f32.mrf.mxu0
  %767 = vmatprep.mubr.f32.mxu0 0.0
  %768 = vmatmul.mubr.f32.gmra.mxu0 %v233
  %v769 = vpop.f32.mrf.mxu0
  %v770 = vadd.f32 %v460, %v769
  %v771 = vpop.f32.mrf.mxu0
  %772 = vmatprep.mubr.f32.mxu0 0.0
  %773 = vmatmul.mubr.f32.gmra.mxu0 %v236
  %v774 = vpop.f32.mrf.mxu0
  %v775 = vadd.f32 %v465, %v774
  %v776 = vpop.f32.mrf.mxu0
  %777 = vmatprep.mubr.f32.mxu0 0.0
  %778 = vmatmul.mubr.f32.gmra.mxu0 %v239
  %v779 = vpop.f32.mrf.mxu0
  %v780 = vadd.f32 %v470, %v779
  %v781 = vpop.f32.mrf.mxu0
  %782 = vmatprep.mubr.f32.mxu0 0.0
  %783 = vmatmul.mubr.f32.gmra.mxu0 %v242
  %v784 = vpop.f32.mrf.mxu0
  %v785 = vadd.f32 %v475, %v784
  %v786 = vpop.f32.mrf.mxu0
  %787 = vmatprep.mubr.f32.mxu0 0.0
  %788 = vmatmul.mubr.f32.gmra.mxu0 %v245
  %v789 = vpop.f32.mrf.mxu0
  %v790 = vadd.f32 %v480, %v789
  %v791 = vpop.f32.mrf.mxu0
  %792 = vmatprep.mubr.f32.mxu0 0.0
  %793 = vmatmul.mubr.f32.gmra.mxu0 %v248
  %v794 = vpop.f32.mrf.mxu0
  %v795 = vadd.f32 %v485, %v794
  %v796 = vpop.f32.mrf.mxu0
  %797 = vmatprep.mubr.f32.mxu0 0.0
  %798 = vmatmul.mubr.f32.gmra.mxu0 %v251
  %v799 = vpop.f32.mrf.mxu0
  %v800 = vadd.f32 %v490, %v799
  %v801 = vpop.f32.mrf.mxu0
  %802 = vmatprep.mubr.f32.mxu0 0.0
  %803 = vmatmul.mubr.f32.gmra.mxu0 %v254
  %v804 = vpop.f32.mrf.mxu0
  %v805 = vadd.f32 %v495, %v804
  %v806 = vpop.f32.mrf.mxu0
  %807 = vmatprep.mubr.f32.mxu0 0.0
  %808 = vmatmul.mubr.f32.gmra.mxu0 %v257
  %v809 = vpop.f32.mrf.mxu0
  %v810 = vadd.f32 %v500, %v809
  %v811 = vpop.f32.mrf.mxu0
  %812 = vmatprep.mubr.f32.mxu0 0.0
  %813 = vmatmul.mubr.f32.gmra.mxu0 %v260
  %v814 = vpop.f32.mrf.mxu0
  %v815 = vadd.f32 %v505, %v814
  %v816 = vpop.f32.mrf.mxu0
  %817 = vmatprep.mubr.f32.mxu0 0.0
  %818 = vmatmul.mubr.f32.gmra.mxu0 %v263
  %v819 = vpop.f32.mrf.mxu0
  %v820 = vadd.f32 %v510, %v819
  %v821 = vpop.f32.mrf.mxu0
  %822 = vmatprep.mubr.f32.mxu0 0.0
  %823 = vmatmul.mubr.f32.gmra.mxu0 %v266
  %v824 = vpop.f32.mrf.mxu0
  %v825 = vadd.f32 %v515, %v824
  %v826 = vpop.f32.mrf.mxu0
  %827 = vmatprep.mubr.f32.mxu0 0.0
  %828 = vmatmul.mubr.f32.gmra.mxu0 %v269
  %v829 = vpop.f32.mrf.mxu0
  %v830 = vadd.f32 %v520, %v829
  %v831 = vpop.f32.mrf.mxu0
  %832 = vmatprep.mubr.f32.mxu0 0.0
  %833 = vmatmul.mubr.f32.gmra.mxu0 %v272
  %v834 = vpop.f32.mrf.mxu0
  %v835 = vadd.f32 %v525, %v834
  %v836 = vpop.f32.mrf.mxu0
  %837 = vmatprep.mubr.f32.mxu0 0.0
  %838 = vmatmul.mubr.f32.gmra.mxu0 %v275
  %v839 = vpop.f32.mrf.mxu0
  %v840 = vadd.f32 %v530, %v839
  %v841 = vpop.f32.mrf.mxu0
  %842 = vmatprep.mubr.f32.mxu0 0.0
  %843 = vmatmul.mubr.f32.gmra.mxu0 %v278
  %v844 = vpop.f32.mrf.mxu0
  %v845 = vadd.f32 %v535, %v844
  %v846 = vpop.f32.mrf.mxu0
  %847 = vmatprep.mubr.f32.mxu0 0.0
  %848 = vmatmul.mubr.f32.gmra.mxu0 %v281
  %v849 = vpop.f32.mrf.mxu0
  %v850 = vadd.f32 %v540, %v849
  %v851 = vpop.f32.mrf.mxu0
  %852 = vmatprep.mubr.f32.mxu0 0.0
  %853 = vmatmul.mubr.f32.gmra.mxu0 %v284
  %v854 = vpop.f32.mrf.mxu0
  %v855 = vadd.f32 %v545, %v854
  %v856 = vpop.f32.mrf.mxu0
  %857 = vmatprep.mubr.f32.mxu0 0.0
  %858 = vmatmul.mubr.f32.gmra.mxu0 %v287
  %v859 = vpop.f32.mrf.mxu0
  %v860 = vadd.f32 %v550, %v859
  %v861 = vpop.f32.mrf.mxu0
  %862 = vmatprep.mubr.f32.mxu0 0.0
  %863 = vmatmul.mubr.f32.gmra.mxu0 %v290
  %v864 = vpop.f32.mrf.mxu0
  %v865 = vadd.f32 %v555, %v864
  %v866 = vpop.f32.mrf.mxu0
  %867 = vmatprep.mubr.f32.mxu0 0.0
  %868 = vmatmul.mubr.f32.gmra.mxu0 %v293
  %v869 = vpop.f32.mrf.mxu0
  %v870 = vadd.f32 %v560, %v869
  %v871 = vpop.f32.mrf.mxu0
  %872 = vmatprep.mubr.f32.mxu0 0.0
  %873 = vmatmul.mubr.f32.gmra.mxu0 %v296
  %v874 = vpop.f32.mrf.mxu0
  %v875 = vadd.f32 %v565, %v874
  %v876 = vpop.f32.mrf.mxu0
  %877 = vmatprep.mubr.f32.mxu0 0.0
  %878 = vmatmul.mubr.f32.gmra.mxu0 %v299
  %v879 = vpop.f32.mrf.mxu0
  %v880 = vadd.f32 %v570, %v879
  %v881 = vpop.f32.mrf.mxu0
  %882 = vmatprep.mubr.f32.mxu0 0.0
  %883 = vmatmul.mubr.f32.gmra.mxu0 %v302
  %v884 = vpop.f32.mrf.mxu0
  %v885 = vadd.f32 %v575, %v884
  %v886 = vpop.f32.mrf.mxu0
  %887 = vmatprep.mubr.f32.mxu0 0.0
  %888 = vmatmul.mubr.f32.gmra.mxu0 %v305
  %v889 = vpop.f32.mrf.mxu0
  %v890 = vadd.f32 %v580, %v889
  %v891 = vpop.f32.mrf.mxu0
  %892 = vmatprep.mubr.f32.mxu0 0.0
  %893 = vmatmul.mubr.f32.gmra.mxu0 %v308
  %v894 = vpop.f32.mrf.mxu0
  %v895 = vadd.f32 %v585, %v894
  %v896 = vpop.f32.mrf.mxu0
  %897 = vmatprep.mubr.f32.mxu0 0.0
  %898 = vmatmul.mubr.f32.gmra.mxu0 %v311
  %v899 = vpop.f32.mrf.mxu0
  %v900 = vadd.f32 %v590, %v899
  %v901 = vpop.f32.mrf.mxu0
  %902 = vmatprep.mubr.f32.mxu0 0.0
  %903 = vmatmul.mubr.f32.gmra.mxu0 %v314
  %v904 = vpop.f32.mrf.mxu0
  %v905 = vadd.f32 %v595, %v904
  %v906 = vpop.f32.mrf.mxu0
  %907 = vmatprep.mubr.f32.mxu0 0.0
  %908 = vmatmul.mubr.f32.gmra.mxu0 %v317
  %v909 = vpop.f32.mrf.mxu0
  %v910 = vadd.f32 %v600, %v909
  %v911 = vpop.f32.mrf.mxu0
  %912 = vmatprep.mubr.f32.mxu0 0.0
  %913 = vmatmul.mubr.f32.gmra.mxu0 %v320
  %v914 = vpop.f32.mrf.mxu0
  %v915 = vadd.f32 %v605, %v914
  %v916 = vpop.f32.mrf.mxu0
  %917 = vmatprep.mubr.f32.mxu0 0.0
  %918 = vmatmul.mubr.f32.gmra.mxu0 %v323
  %v919 = vpop.f32.mrf.mxu0
  %v920 = vadd.f32 %v610, %v919
  %v921 = vpop.f32.mrf.mxu0
  %922 = vmatprep.mubr.f32.mxu0 0.0
  %923 = vmatmul.mubr.f32.gmra.mxu0 %v326
  %v924 = vpop.f32.mrf.mxu0
  %v925 = vadd.f32 %v615, %v924
  %v926 = vpop.f32.mrf.mxu0
  %927 = vmatprep.mubr.f32.mxu0 0.0
  %928 = vmatmul.mubr.f32.gmra.mxu0 %v329
  %v929 = vpop.f32.mrf.mxu0
  %v930 = vadd.f32 %v620, %v929
  %v931 = vpop.f32.mrf.mxu0
  %932 = vmatprep.mubr.f32.mxu0 0.0
  %933 = vmatmul.mubr.f32.gmra.mxu0 %v332
  %v934 = vpop.f32.mrf.mxu0
  %v935 = vadd.f32 %v625, %v934
  %v936 = vpop.f32.mrf.mxu0
  %937 = vmatprep.mubr.f32.mxu0 0.0
  %938 = vmatmul.mubr.f32.gmra.mxu0 %v335
  %v939 = vpop.f32.mrf.mxu0
  %v940 = vadd.f32 %v630, %v939
  %v941 = vpop.f32.mrf.mxu0
  %942 = vmatprep.mubr.f32.mxu0 0.0
  %943 = vmatmul.mubr.f32.gmra.mxu0 %v338
  %v944 = vpop.f32.mrf.mxu0
  %v945 = vadd.f32 %v635, %v944
  %v946 = vpop.f32.mrf.mxu0
  %947 = vmatprep.mubr.f32.mxu0 0.0
  %948 = vmatmul.mubr.f32.gmra.mxu0 %v341
  %v949 = vpop.f32.mrf.mxu0
  %v950 = vadd.f32 %v640, %v949
  %v951 = vpop.f32.mrf.mxu0
  %952 = vmatprep.mubr.f32.mxu0 0.0
  %953 = vmatmul.mubr.f32.gmra.mxu0 %v344
  %v954 = vpop.f32.mrf.mxu0
  %v955 = vadd.f32 %v645, %v954
  %v956 = vpop.f32.mrf.mxu0
  %957 = vmatprep.mubr.f32.mxu0 0.0
  %958 = vmatmul.mubr.f32.gmra.mxu0 %v347
  %v959 = vpop.f32.mrf.mxu0
  %v960 = vadd.f32 %v650, %v959
  %v961 = vpop.f32.mrf.mxu0
  %962 = vmatprep.mubr.f32.mxu0 0.0
  %963 = vmatmul.mubr.f32.gmra.mxu0 %v350
  %v964 = vpop.f32.mrf.mxu0
  %v965 = vadd.f32 %v655, %v964
  %v966 = vpop.f32.mrf.mxu0
  %967 = vmatprep.mubr.f32.mxu0 0.0
  %968 = vmatmul.mubr.f32.gmra.mxu0 %v353
  %v969 = vpop.f32.mrf.mxu0
  %v970 = vadd.f32 %v660, %v969
  %v971 = vpop.f32.mrf.mxu0
  %972 = vmatprep.mubr.f32.mxu0 0.0
  %973 = vmatmul.mubr.f32.gmra.mxu0 %v356
  %v974 = vpop.f32.mrf.mxu0
  %v975 = vadd.f32 %v665, %v974
  %v976 = vpop.f32.mrf.mxu0
  %977 = vmatprep.mubr.f32.mxu0 0.0
  %978 = vmatmul.mubr.f32.gmra.mxu0 %v359
  %v979 = vpop.f32.mrf.mxu0
  %v980 = vadd.f32 %v670, %v979
  %v981 = vpop.f32.mrf.mxu0
  %982 = vmatprep.mubr.f32.mxu0 0.0
  %983 = vmatmul.mubr.f32.gmra.mxu0 %v362
  %v984 = vpop.f32.mrf.mxu0
  %v985 = vadd.f32 %v675, %v984
  %v986 = vpop.f32.mrf.mxu0
  %987 = vdwg.mxu0
  %v988 = vmax.f32 %v745, 0.0
  %v989 = vmax.f32 %v750, 0.0
  %v990 = vmax.f32 %v755, 0.0
  %v991 = vmax.f32 %v760, 0.0
  %v992 = vmax.f32 %v765, 0.0
  %v993 = vmax.f32 %v770, 0.0
  %v994 = vmax.f32 %v775, 0.0
  %v995 = vmax.f32 %v780, 0.0
  %v996 = vmax.f32 %v785, 0.0
  %v997 = vmax.f32 %v790, 0.0
  %v998 = vmax.f32 %v795, 0.0
  %v999 = vmax.f32 %v800, 0.0
  %v1000 = vmax.f32 %v805, 0.0
  %v1001 = vmax.f32 %v810, 0.0
  %v1002 = vmax.f32 %v815, 0.0
  %v1003 = vmax.f32 %v820, 0.0
  %v1004 = vmax.f32 %v825, 0.0
  %v1005 = vmax.f32 %v830, 0.0
  %v1006 = vmax.f32 %v835, 0.0
  %v1007 = vmax.f32 %v840, 0.0
  %v1008 = vmax.f32 %v845, 0.0
  %v1009 = vmax.f32 %v850, 0.0
  %v1010 = vmax.f32 %v855, 0.0
  %v1011 = vmax.f32 %v860, 0.0
  %v1012 = vmax.f32 %v865, 0.0
  %v1013 = vmax.f32 %v870, 0.0
  %v1014 = vmax.f32 %v875, 0.0
  %v1015 = vmax.f32 %v880, 0.0
  %v1016 = vmax.f32 %v885, 0.0
  %v1017 = vmax.f32 %v890, 0.0
  %v1018 = vmax.f32 %v895, 0.0
  %v1019 = vmax.f32 %v900, 0.0
  %v1020 = vmax.f32 %v905, 0.0
  %v1021 = vmax.f32 %v910, 0.0
  %v1022 = vmax.f32 %v915, 0.0
  %v1023 = vmax.f32 %v920, 0.0
  %v1024 = vmax.f32 %v925, 0.0
  %v1025 = vmax.f32 %v930, 0.0
  %v1026 = vmax.f32 %v935, 0.0
  %v1027 = vmax.f32 %v940, 0.0
  %v1028 = vmax.f32 %v945, 0.0
  %v1029 = vmax.f32 %v950, 0.0
  %v1030 = vmax.f32 %v955, 0.0
  %v1031 = vmax.f32 %v960, 0.0
  %v1032 = vmax.f32 %v965, 0.0
  %v1033 = vmax.f32 %v970, 0.0
  %v1034 = vmax.f32 %v975, 0.0
  %v1035 = vmax.f32 %v980, 0.0
  %v1036 = vmax.f32 %v985, 0.0
  %v1037 = vld [vmem:[%s3] sm:$0x1]
  %v1039 = vlaneseq
  %v1040 = vshrl.u32 %v1039, 7
  %v1041 = vsub.s32 0, %v1040
  %v1042 = vrot.slane %v1037, %v1041
  %v1044 = vmul.f32 %v988, %v1042
  %v1045 = vmul.f32 %v989, %v1042
  %v1046 = vmul.f32 %v990, %v1042
  %v1047 = vmul.f32 %v991, %v1042
  %v1048 = vmul.f32 %v992, %v1042
  %v1049 = vmul.f32 %v993, %v1042
  %v1050 = vmul.f32 %v994, %v1042
  %v1051 = vmul.f32 %v995, %v1042
  %v1052 = vmul.f32 %v996, %v1042
  %v1053 = vmul.f32 %v997, %v1042
  %v1054 = vmul.f32 %v998, %v1042
  %v1055 = vmul.f32 %v999, %v1042
  %v1056 = vmul.f32 %v1000, %v1042
  %v1057 = vmul.f32 %v1001, %v1042
  %v1058 = vmul.f32 %v1002, %v1042
  %v1059 = vmul.f32 %v1003, %v1042
  %v1060 = vmul.f32 %v1004, %v1042
  %v1061 = vmul.f32 %v1005, %v1042
  %v1062 = vmul.f32 %v1006, %v1042
  %v1063 = vmul.f32 %v1007, %v1042
  %v1064 = vmul.f32 %v1008, %v1042
  %v1065 = vmul.f32 %v1009, %v1042
  %v1066 = vmul.f32 %v1010, %v1042
  %v1067 = vmul.f32 %v1011, %v1042
  %v1068 = vmul.f32 %v1012, %v1042
  %v1069 = vmul.f32 %v1013, %v1042
  %v1070 = vmul.f32 %v1014, %v1042
  %v1071 = vmul.f32 %v1015, %v1042
  %v1072 = vmul.f32 %v1016, %v1042
  %v1073 = vmul.f32 %v1017, %v1042
  %v1074 = vmul.f32 %v1018, %v1042
  %v1075 = vmul.f32 %v1019, %v1042
  %v1076 = vmul.f32 %v1020, %v1042
  %v1077 = vmul.f32 %v1021, %v1042
  %v1078 = vmul.f32 %v1022, %v1042
  %v1079 = vmul.f32 %v1023, %v1042
  %v1080 = vmul.f32 %v1024, %v1042
  %v1081 = vmul.f32 %v1025, %v1042
  %v1082 = vmul.f32 %v1026, %v1042
  %v1083 = vmul.f32 %v1027, %v1042
  %v1084 = vmul.f32 %v1028, %v1042
  %v1085 = vmul.f32 %v1029, %v1042
  %v1086 = vmul.f32 %v1030, %v1042
  %v1087 = vmul.f32 %v1031, %v1042
  %v1088 = vmul.f32 %v1032, %v1042
  %v1089 = vmul.f32 %v1033, %v1042
  %v1090 = vmul.f32 %v1034, %v1042
  %v1091 = vmul.f32 %v1035, %v1042
  %v1092 = vmul.f32 %v1036, %v1042
  %v1093 = vld [vmem:[%s4] sm:$0x1]
  %v1095 = vlaneseq
  %v1096 = vshrl.u32 %v1095, 7
  %v1097 = vsub.s32 0, %v1096
  %v1098 = vrot.slane %v1093, %v1097
  %v1100 = vadd.f32 %v1044, %v1098
  %v1101 = vadd.f32 %v1045, %v1098
  %v1102 = vadd.f32 %v1046, %v1098
  %v1103 = vadd.f32 %v1047, %v1098
  %v1104 = vadd.f32 %v1048, %v1098
  %v1105 = vadd.f32 %v1049, %v1098
  %v1106 = vadd.f32 %v1050, %v1098
  %v1107 = vadd.f32 %v1051, %v1098
  %v1108 = vadd.f32 %v1052, %v1098
  %v1109 = vadd.f32 %v1053, %v1098
  %v1110 = vadd.f32 %v1054, %v1098
  %v1111 = vadd.f32 %v1055, %v1098
  %v1112 = vadd.f32 %v1056, %v1098
  %v1113 = vadd.f32 %v1057, %v1098
  %v1114 = vadd.f32 %v1058, %v1098
  %v1115 = vadd.f32 %v1059, %v1098
  %v1116 = vadd.f32 %v1060, %v1098
  %v1117 = vadd.f32 %v1061, %v1098
  %v1118 = vadd.f32 %v1062, %v1098
  %v1119 = vadd.f32 %v1063, %v1098
  %v1120 = vadd.f32 %v1064, %v1098
  %v1121 = vadd.f32 %v1065, %v1098
  %v1122 = vadd.f32 %v1066, %v1098
  %v1123 = vadd.f32 %v1067, %v1098
  %v1124 = vadd.f32 %v1068, %v1098
  %v1125 = vadd.f32 %v1069, %v1098
  %v1126 = vadd.f32 %v1070, %v1098
  %v1127 = vadd.f32 %v1071, %v1098
  %v1128 = vadd.f32 %v1072, %v1098
  %v1129 = vadd.f32 %v1073, %v1098
  %v1130 = vadd.f32 %v1074, %v1098
  %v1131 = vadd.f32 %v1075, %v1098
  %v1132 = vadd.f32 %v1076, %v1098
  %v1133 = vadd.f32 %v1077, %v1098
  %v1134 = vadd.f32 %v1078, %v1098
  %v1135 = vadd.f32 %v1079, %v1098
  %v1136 = vadd.f32 %v1080, %v1098
  %v1137 = vadd.f32 %v1081, %v1098
  %v1138 = vadd.f32 %v1082, %v1098
  %v1139 = vadd.f32 %v1083, %v1098
  %v1140 = vadd.f32 %v1084, %v1098
  %v1141 = vadd.f32 %v1085, %v1098
  %v1142 = vadd.f32 %v1086, %v1098
  %v1143 = vadd.f32 %v1087, %v1098
  %v1144 = vadd.f32 %v1088, %v1098
  %v1145 = vadd.f32 %v1089, %v1098
  %v1146 = vadd.f32 %v1090, %v1098
  %v1147 = vadd.f32 %v1091, %v1098
  %v1148 = vadd.f32 %v1092, %v1098
  %vm1149 = vcmask 244736
  %1150 = vst.msk [vmem:[%s5] sm:$0xff] %vm1149, %v1100
  %1151 = vst.msk [vmem:[%s5 + $0x8] sm:$0xff] %vm1149, %v1101
  %1152 = vst.msk [vmem:[%s5 + $0x10] sm:$0xff] %vm1149, %v1102
  %1153 = vst.msk [vmem:[%s5 + $0x18] sm:$0xff] %vm1149, %v1103
  %1154 = vst.msk [vmem:[%s5 + $0x20] sm:$0xff] %vm1149, %v1104
  %1155 = vst.msk [vmem:[%s5 + $0x28] sm:$0xff] %vm1149, %v1105
  %1156 = vst.msk [vmem:[%s5 + $0x30] sm:$0xff] %vm1149, %v1106
  %1157 = vst.msk [vmem:[%s5 + $0x38] sm:$0xff] %vm1149, %v1107
  %1158 = vst.msk [vmem:[%s5 + $0x40] sm:$0xff] %vm1149, %v1108
  %1159 = vst.msk [vmem:[%s5 + $0x48] sm:$0xff] %vm1149, %v1109
  %1160 = vst.msk [vmem:[%s5 + $0x50] sm:$0xff] %vm1149, %v1110
  %1161 = vst.msk [vmem:[%s5 + $0x58] sm:$0xff] %vm1149, %v1111
  %1162 = vst.msk [vmem:[%s5 + $0x60] sm:$0xff] %vm1149, %v1112
  %1163 = vst.msk [vmem:[%s5 + $0x68] sm:$0xff] %vm1149, %v1113
  %1164 = vst.msk [vmem:[%s5 + $0x70] sm:$0xff] %vm1149, %v1114
  %1165 = vst.msk [vmem:[%s5 + $0x78] sm:$0xff] %vm1149, %v1115
  %1166 = vst.msk [vmem:[%s5 + $0x80] sm:$0xff] %vm1149, %v1116
  %1167 = vst.msk [vmem:[%s5 + $0x88] sm:$0xff] %vm1149, %v1117
  %1168 = vst.msk [vmem:[%s5 + $0x90] sm:$0xff] %vm1149, %v1118
  %1169 = vst.msk [vmem:[%s5 + $0x98] sm:$0xff] %vm1149, %v1119
  %1170 = vst.msk [vmem:[%s5 + $0xa0] sm:$0xff] %vm1149, %v1120
  %1171 = vst.msk [vmem:[%s5 + $0xa8] sm:$0xff] %vm1149, %v1121
  %1172 = vst.msk [vmem:[%s5 + $0xb0] sm:$0xff] %vm1149, %v1122
  %1173 = vst.msk [vmem:[%s5 + $0xb8] sm:$0xff] %vm1149, %v1123
  %1174 = vst.msk [vmem:[%s5 + $0xc0] sm:$0xff] %vm1149, %v1124
  %1175 = vst.msk [vmem:[%s5 + $0xc8] sm:$0xff] %vm1149, %v1125
  %1176 = vst.msk [vmem:[%s5 + $0xd0] sm:$0xff] %vm1149, %v1126
  %1177 = vst.msk [vmem:[%s5 + $0xd8] sm:$0xff] %vm1149, %v1127
  %1178 = vst.msk [vmem:[%s5 + $0xe0] sm:$0xff] %vm1149, %v1128
  %1179 = vst.msk [vmem:[%s5 + $0xe8] sm:$0xff] %vm1149, %v1129
  %1180 = vst.msk [vmem:[%s5 + $0xf0] sm:$0xff] %vm1149, %v1130
  %1181 = vst.msk [vmem:[%s5 + $0xf8] sm:$0xff] %vm1149, %v1131
  %1182 = vst.msk [vmem:[%s5 + $0x100] sm:$0xff] %vm1149, %v1132
  %1183 = vst.msk [vmem:[%s5 + $0x108] sm:$0xff] %vm1149, %v1133
  %1184 = vst.msk [vmem:[%s5 + $0x110] sm:$0xff] %vm1149, %v1134
  %1185 = vst.msk [vmem:[%s5 + $0x118] sm:$0xff] %vm1149, %v1135
  %1186 = vst.msk [vmem:[%s5 + $0x120] sm:$0xff] %vm1149, %v1136
  %1187 = vst.msk [vmem:[%s5 + $0x128] sm:$0xff] %vm1149, %v1137
  %1188 = vst.msk [vmem:[%s5 + $0x130] sm:$0xff] %vm1149, %v1138
  %1189 = vst.msk [vmem:[%s5 + $0x138] sm:$0xff] %vm1149, %v1139
  %1190 = vst.msk [vmem:[%s5 + $0x140] sm:$0xff] %vm1149, %v1140
  %1191 = vst.msk [vmem:[%s5 + $0x148] sm:$0xff] %vm1149, %v1141
  %1192 = vst.msk [vmem:[%s5 + $0x150] sm:$0xff] %vm1149, %v1142
  %1193 = vst.msk [vmem:[%s5 + $0x158] sm:$0xff] %vm1149, %v1143
  %1194 = vst.msk [vmem:[%s5 + $0x160] sm:$0xff] %vm1149, %v1144
  %1195 = vst.msk [vmem:[%s5 + $0x168] sm:$0xff] %vm1149, %v1145
  %1196 = vst.msk [vmem:[%s5 + $0x170] sm:$0xff] %vm1149, %v1146
  %1197 = vst.msk [vmem:[%s5 + $0x178] sm:$0xff] %vm1149, %v1147
  %1198 = vst.msk [vmem:[%s5 + $0x180] sm:$0xff] %vm1149, %v1148
  // Predicated region
  $region22: #{forward.5} parent=0 // pred_check
    _
  $region23: #{forward.5} parent=0 // pred_check_branch
    %1200 = sbr.rel (0) target = $region25
  $region24: #{forward.5} parent=0 // pred_region
    _
  $region25: #{forward.5} parent=0 // pred_fallthru
    _
  // Predicated region
  $region26: #{forward.5} parent=0 // pred_check
    _
  $region27: #{forward.5} parent=0 // pred_check_branch
    %1202 = sbr.rel (0) target = $region29
  $region28: #{forward.5} parent=0 // pred_region
    _
  $region29: #{forward.5} parent=0 // pred_fallthru
    _

// kernel: forward.6
$region0: #{forward.6}
  #allocation0 [shape = 'u32[]', space=smem, size = 0x4, offset = 0x4, fixed_abs, tag = 'smem constant byte address 0x4 - core index']
  #allocation1 [shape = 'u32[144,128]{1,0:T(1,128)}', space=vmem, size = 0x12000, scoped, tag = 'internal scratch']
  %s0 = inlined_call_operand.vmem [shape: f32[392,660], index: 0, kind: input, shape index: {}]
  %s1 = inlined_call_operand.vmem [shape: f32[660,60], index: 1, kind: input, shape index: {}]
  %s2 = inlined_call_operand.vmem [shape: f32[1,60], index: 2, kind: input, shape index: {}]
  %s3 = inlined_call_operand.vmem [shape: f32[1,60], index: 3, kind: input, shape index: {}]
  %s4 = inlined_call_operand.vmem [shape: f32[1,60], index: 4, kind: input, shape index: {}]
  %s5 = inlined_call_operand.vmem [shape: f32[392,60], index: 5, kind: output, shape index: {}]
  %s6 = sld [smem:[#allocation0]]
  $region30: #{forward.6} parent=0
    _
  %s8 = ssub.s32 1, %s6
  %s9 = scalar_select 0, %s8, %s6
  // Predicated region
  $region2: #{forward.6} parent=0 // pred_check
    _
  $region3: #{forward.6} parent=0 // pred_check_branch
    %11 = sbr.rel (0) target = $region5
  $region4: #{forward.6} parent=0 // pred_region
    _
  $region5: #{forward.6} parent=0 // pred_fallthru
    _
  // Predicated region
  $region6: #{forward.6} parent=0 // pred_check
    _
  $region7: #{forward.6} parent=0 // pred_check_branch
    %13 = sbr.rel (0) target = $region9
  $region8: #{forward.6} parent=0 // pred_region
    _
  $region9: #{forward.6} parent=0 // pred_fallthru
    _
  // Predicated region
  $region10: #{forward.6} parent=0 // pred_check
    _
  $region11: #{forward.6} parent=0 // pred_check_branch
    %15 = sbr.rel (0) target = $region13
  $region12: #{forward.6} parent=0 // pred_region
    _
  $region13: #{forward.6} parent=0 // pred_fallthru
    _
  // Predicated region
  $region14: #{forward.6} parent=0 // pred_check
    _
  $region15: #{forward.6} parent=0 // pred_check_branch
    %17 = sbr.rel (0) target = $region17
  $region16: #{forward.6} parent=0 // pred_region
    _
  $region17: #{forward.6} parent=0 // pred_fallthru
    _
  // Predicated region
  $region18: #{forward.6} parent=0 // pred_check
    _
  $region19: #{forward.6} parent=0 // pred_check_branch
    %19 = sbr.rel (0) target = $region21
  $region20: #{forward.6} parent=0 // pred_region
    _
  $region21: #{forward.6} parent=0 // pred_fallthru
    _
  %v20 = vld [vmem:[%s0] sm:$0xff]
  %v21 = vld [vmem:[%s0 + $0x8] sm:$0xff]
  %v22 = vld [vmem:[%s0 + $0x10] sm:$0xff]
  %v23 = vld [vmem:[%s0 + $0x18] sm:$0xff]
  %v24 = vld [vmem:[%s0 + $0x20] sm:$0xff]
  %v25 = vld [vmem:[%s0 + $0x28] sm:$0xff]
  %v26 = vld [vmem:[%s0 + $0x30] sm:$0xff]
  %v27 = vld [vmem:[%s0 + $0x38] sm:$0xff]
  %v28 = vld [vmem:[%s0 + $0x40] sm:$0xff]
  %v29 = vld [vmem:[%s0 + $0x48] sm:$0xff]
  %v30 = vld [vmem:[%s0 + $0x50] sm:$0xff]
  %v31 = vld [vmem:[%s0 + $0x58] sm:$0xff]
  %v32 = vld [vmem:[%s0 + $0x60] sm:$0xff]
  %v33 = vld [vmem:[%s0 + $0x68] sm:$0xff]
  %v34 = vld [vmem:[%s0 + $0x70] sm:$0xff]
  %v35 = vld [vmem:[%s0 + $0x78] sm:$0xff]
  %v36 = vld [vmem:[%s0 + $0x80] sm:$0xff]
  %v37 = vld [vmem:[%s0 + $0x88] sm:$0xff]
  %v38 = vld [vmem:[%s0 + $0x90] sm:$0xff]
  %v39 = vld [vmem:[%s0 + $0x98] sm:$0xff]
  %v40 = vld [vmem:[%s0 + $0xa0] sm:$0xff]
  %v41 = vld [vmem:[%s0 + $0xa8] sm:$0xff]
  %v42 = vld [vmem:[%s0 + $0xb0] sm:$0xff]
  %v43 = vld [vmem:[%s0 + $0xb8] sm:$0xff]
  %v44 = vld [vmem:[%s0 + $0xc0] sm:$0xff]
  %v45 = vld [vmem:[%s0 + $0xc8] sm:$0xff]
  %v46 = vld [vmem:[%s0 + $0xd0] sm:$0xff]
  %v47 = vld [vmem:[%s0 + $0xd8] sm:$0xff]
  %v48 = vld [vmem:[%s0 + $0xe0] sm:$0xff]
  %v49 = vld [vmem:[%s0 + $0xe8] sm:$0xff]
  %v50 = vld [vmem:[%s0 + $0xf0] sm:$0xff]
  %v51 = vld [vmem:[%s0 + $0xf8] sm:$0xff]
  %v52 = vld [vmem:[%s0 + $0x100] sm:$0xff]
  %v53 = vld [vmem:[%s0 + $0x108] sm:$0xff]
  %v54 = vld [vmem:[%s0 + $0x110] sm:$0xff]
  %v55 = vld [vmem:[%s0 + $0x118] sm:$0xff]
  %v56 = vld [vmem:[%s0 + $0x120] sm:$0xff]
  %v57 = vld [vmem:[%s0 + $0x128] sm:$0xff]
  %v58 = vld [vmem:[%s0 + $0x130] sm:$0xff]
  %v59 = vld [vmem:[%s0 + $0x138] sm:$0xff]
  %v60 = vld [vmem:[%s0 + $0x140] sm:$0xff]
  %v61 = vld [vmem:[%s0 + $0x148] sm:$0xff]
  %v62 = vld [vmem:[%s0 + $0x150] sm:$0xff]
  %v63 = vld [vmem:[%s0 + $0x158] sm:$0xff]
  %v64 = vld [vmem:[%s0 + $0x160] sm:$0xff]
  %v65 = vld [vmem:[%s0 + $0x168] sm:$0xff]
  %v66 = vld [vmem:[%s0 + $0x170] sm:$0xff]
  %v67 = vld [vmem:[%s0 + $0x178] sm:$0xff]
  %v68 = vld [vmem:[%s0 + $0x180] sm:$0xff]
  %v69 = vld [vmem:[%s0 + $0x188] sm:$0xff]
  %v70 = vld [vmem:[%s0 + $0x190] sm:$0xff]
  %v71 = vld [vmem:[%s0 + $0x198] sm:$0xff]
  %v72 = vld [vmem:[%s0 + $0x1a0] sm:$0xff]
  %v73 = vld [vmem:[%s0 + $0x1a8] sm:$0xff]
  %v74 = vld [vmem:[%s0 + $0x1b0] sm:$0xff]
  %v75 = vld [vmem:[%s0 + $0x1b8] sm:$0xff]
  %v76 = vld [vmem:[%s0 + $0x1c0] sm:$0xff]
  %v77 = vld [vmem:[%s0 + $0x1c8] sm:$0xff]
  %v78 = vld [vmem:[%s0 + $0x1d0] sm:$0xff]
  %v79 = vld [vmem:[%s0 + $0x1d8] sm:$0xff]
  %v80 = vld [vmem:[%s0 + $0x1e0] sm:$0xff]
  %v81 = vld [vmem:[%s0 + $0x1e8] sm:$0xff]
  %v82 = vld [vmem:[%s0 + $0x1f0] sm:$0xff]
  %v83 = vld [vmem:[%s0 + $0x1f8] sm:$0xff]
  %v84 = vld [vmem:[%s0 + $0x200] sm:$0xff]
  %v85 = vld [vmem:[%s0 + $0x208] sm:$0xff]
  %v86 = vld [vmem:[%s0 + $0x210] sm:$0xff]
  %v87 = vld [vmem:[%s0 + $0x218] sm:$0xff]
  %v88 = vld [vmem:[%s0 + $0x220] sm:$0xff]
  %v89 = vld [vmem:[%s0 + $0x228] sm:$0xff]
  %v90 = vld [vmem:[%s0 + $0x230] sm:$0xff]
  %v91 = vld [vmem:[%s0 + $0x238] sm:$0xff]
  %v92 = vld [vmem:[%s0 + $0x240] sm:$0xff]
  %v93 = vld [vmem:[%s0 + $0x248] sm:$0xff]
  %v94 = vld [vmem:[%s0 + $0x250] sm:$0xff]
  %v95 = vld [vmem:[%s0 + $0x258] sm:$0xff]
  %v96 = vld [vmem:[%s0 + $0x260] sm:$0xff]
  %v97 = vld [vmem:[%s0 + $0x268] sm:$0xff]
  %v98 = vld [vmem:[%s0 + $0x270] sm:$0xff]
  %v99 = vld [vmem:[%s0 + $0x278] sm:$0xff]
  %v100 = vld [vmem:[%s0 + $0x280] sm:$0xff]
  %v101 = vld [vmem:[%s0 + $0x288] sm:$0xff]
  %v102 = vld [vmem:[%s0 + $0x290] sm:$0xff]
  %v103 = vld [vmem:[%s0 + $0x298] sm:$0xff]
  %v104 = vld [vmem:[%s0 + $0x2a0] sm:$0xff]
  %v105 = vld [vmem:[%s0 + $0x2a8] sm:$0xff]
  %v106 = vld [vmem:[%s0 + $0x2b0] sm:$0xff]
  %v107 = vld [vmem:[%s0 + $0x2b8] sm:$0xff]
  %v108 = vld [vmem:[%s0 + $0x2c0] sm:$0xff]
  %v109 = vld [vmem:[%s0 + $0x2c8] sm:$0xff]
  %v110 = vld [vmem:[%s0 + $0x2d0] sm:$0xff]
  %v111 = vld [vmem:[%s0 + $0x2d8] sm:$0xff]
  %v112 = vld [vmem:[%s0 + $0x2e0] sm:$0xff]
  %v113 = vld [vmem:[%s0 + $0x2e8] sm:$0xff]
  %v114 = vld [vmem:[%s0 + $0x2f0] sm:$0xff]
  %v115 = vld [vmem:[%s0 + $0x2f8] sm:$0xff]
  %v116 = vld [vmem:[%s0 + $0x300] sm:$0xff]
  %v117 = vld [vmem:[%s0 + $0x308] sm:$0xff]
  %v118 = vld [vmem:[%s0 + $0x310] sm:$0xff]
  %v119 = vld [vmem:[%s0 + $0x318] sm:$0xff]
  %v120 = vld [vmem:[%s0 + $0x320] sm:$0xff]
  %v121 = vld [vmem:[%s0 + $0x328] sm:$0xff]
  %v122 = vld [vmem:[%s0 + $0x330] sm:$0xff]
  %v123 = vld [vmem:[%s0 + $0x338] sm:$0xff]
  %v124 = vld [vmem:[%s0 + $0x340] sm:$0xff]
  %v125 = vld [vmem:[%s0 + $0x348] sm:$0xff]
  %v126 = vld [vmem:[%s0 + $0x350] sm:$0xff]
  %v127 = vld [vmem:[%s0 + $0x358] sm:$0xff]
  %v128 = vld [vmem:[%s0 + $0x360] sm:$0xff]
  %v129 = vld [vmem:[%s0 + $0x368] sm:$0xff]
  %v130 = vld [vmem:[%s0 + $0x370] sm:$0xff]
  %v131 = vld [vmem:[%s0 + $0x378] sm:$0xff]
  %v132 = vld [vmem:[%s0 + $0x380] sm:$0xff]
  %v133 = vld [vmem:[%s0 + $0x388] sm:$0xff]
  %v134 = vld [vmem:[%s0 + $0x390] sm:$0xff]
  %v135 = vld [vmem:[%s0 + $0x398] sm:$0xff]
  %v136 = vld [vmem:[%s0 + $0x3a0] sm:$0xff]
  %v137 = vld [vmem:[%s0 + $0x3a8] sm:$0xff]
  %v138 = vld [vmem:[%s0 + $0x3b0] sm:$0xff]
  %v139 = vld [vmem:[%s0 + $0x3b8] sm:$0xff]
  %v140 = vld [vmem:[%s0 + $0x3c0] sm:$0xff]
  %v141 = vld [vmem:[%s0 + $0x3c8] sm:$0xff]
  %v142 = vld [vmem:[%s0 + $0x3d0] sm:$0xff]
  %v143 = vld [vmem:[%s0 + $0x3d8] sm:$0xff]
  %v144 = vld [vmem:[%s0 + $0x3e0] sm:$0xff]
  %v145 = vld [vmem:[%s0 + $0x3e8] sm:$0xff]
  %v146 = vld [vmem:[%s0 + $0x3f0] sm:$0xff]
  %v147 = vld [vmem:[%s0 + $0x3f8] sm:$0xff]
  %v148 = vld [vmem:[%s0 + $0x400] sm:$0xff]
  %v149 = vld [vmem:[%s0 + $0x408] sm:$0xff]
  %v150 = vld [vmem:[%s0 + $0x410] sm:$0xff]
  %v151 = vld [vmem:[%s0 + $0x418] sm:$0xff]
  %v152 = vld [vmem:[%s0 + $0x420] sm:$0xff]
  %v153 = vld [vmem:[%s0 + $0x428] sm:$0xff]
  %v154 = vld [vmem:[%s0 + $0x430] sm:$0xff]
  %v155 = vld [vmem:[%s0 + $0x438] sm:$0xff]
  %v156 = vld [vmem:[%s0 + $0x440] sm:$0xff]
  %v157 = vld [vmem:[%s0 + $0x448] sm:$0xff]
  %v158 = vld [vmem:[%s0 + $0x450] sm:$0xff]
  %v159 = vld [vmem:[%s0 + $0x458] sm:$0xff]
  %v160 = vld [vmem:[%s0 + $0x460] sm:$0xff]
  %v161 = vld [vmem:[%s0 + $0x468] sm:$0xff]
  %v162 = vld [vmem:[%s0 + $0x470] sm:$0xff]
  %v163 = vld [vmem:[%s0 + $0x478] sm:$0xff]
  %v164 = vld [vmem:[%s0 + $0x480] sm:$0xff]
  %v165 = vld [vmem:[%s0 + $0x488] sm:$0xff]
  %v166 = vld [vmem:[%s0 + $0x490] sm:$0xff]
  %v167 = vld [vmem:[%s0 + $0x498] sm:$0xff]
  %v168 = vld [vmem:[%s0 + $0x4a0] sm:$0xff]
  %v169 = vld [vmem:[%s0 + $0x4a8] sm:$0xff]
  %v170 = vld [vmem:[%s0 + $0x4b0] sm:$0xff]
  %v171 = vld [vmem:[%s0 + $0x4b8] sm:$0xff]
  %v172 = vld [vmem:[%s0 + $0x4c0] sm:$0xff]
  %v173 = vld [vmem:[%s0 + $0x4c8] sm:$0xff]
  %v174 = vld [vmem:[%s0 + $0x4d0] sm:$0xff]
  %v175 = vld [vmem:[%s0 + $0x4d8] sm:$0xff]
  %v176 = vld [vmem:[%s0 + $0x4e0] sm:$0xff]
  %v177 = vld [vmem:[%s0 + $0x4e8] sm:$0xff]
  %v178 = vld [vmem:[%s0 + $0x4f0] sm:$0xff]
  %v179 = vld [vmem:[%s0 + $0x4f8] sm:$0xff]
  %v180 = vld [vmem:[%s0 + $0x500] sm:$0xff]
  %v181 = vld [vmem:[%s0 + $0x508] sm:$0xff]
  %v182 = vld [vmem:[%s0 + $0x510] sm:$0xff]
  %v183 = vld [vmem:[%s0 + $0x518] sm:$0xff]
  %v184 = vld [vmem:[%s0 + $0x520] sm:$0xff]
  %v185 = vld [vmem:[%s0 + $0x528] sm:$0xff]
  %v186 = vld [vmem:[%s0 + $0x530] sm:$0xff]
  %v187 = vld [vmem:[%s0 + $0x538] sm:$0xff]
  %v188 = vld [vmem:[%s0 + $0x540] sm:$0xff]
  %v189 = vld [vmem:[%s0 + $0x548] sm:$0xff]
  %v190 = vld [vmem:[%s0 + $0x550] sm:$0xff]
  %v191 = vld [vmem:[%s0 + $0x558] sm:$0xff]
  %v192 = vld [vmem:[%s0 + $0x560] sm:$0xff]
  %v193 = vld [vmem:[%s0 + $0x568] sm:$0xff]
  %v194 = vld [vmem:[%s0 + $0x570] sm:$0xff]
  %v195 = vld [vmem:[%s0 + $0x578] sm:$0xff]
  %v196 = vld [vmem:[%s0 + $0x580] sm:$0xff]
  %v197 = vld [vmem:[%s0 + $0x588] sm:$0xff]
  %v198 = vld [vmem:[%s0 + $0x590] sm:$0xff]
  %v199 = vld [vmem:[%s0 + $0x598] sm:$0xff]
  %v200 = vld [vmem:[%s0 + $0x5a0] sm:$0xff]
  %v201 = vld [vmem:[%s0 + $0x5a8] sm:$0xff]
  %v202 = vld [vmem:[%s0 + $0x5b0] sm:$0xff]
  %v203 = vld [vmem:[%s0 + $0x5b8] sm:$0xff]
  %v204 = vld [vmem:[%s0 + $0x5c0] sm:$0xff]
  %v205 = vld [vmem:[%s0 + $0x5c8] sm:$0xff]
  %v206 = vld [vmem:[%s0 + $0x5d0] sm:$0xff]
  %v207 = vld [vmem:[%s0 + $0x5d8] sm:$0xff]
  %v208 = vld [vmem:[%s0 + $0x5e0] sm:$0xff]
  %v209 = vld [vmem:[%s0 + $0x5e8] sm:$0xff]
  %v210 = vld [vmem:[%s0 + $0x5f0] sm:$0xff]
  %v211 = vld [vmem:[%s0 + $0x5f8] sm:$0xff]
  %v212 = vld [vmem:[%s0 + $0x600] sm:$0xff]
  %v213 = vld [vmem:[%s0 + $0x608] sm:$0xff]
  %v214 = vld [vmem:[%s0 + $0x610] sm:$0xff]
  %v215 = vld [vmem:[%s0 + $0x618] sm:$0xff]
  %v216 = vld [vmem:[%s0 + $0x620] sm:$0xff]
  %v217 = vld [vmem:[%s0 + $0x628] sm:$0xff]
  %v218 = vld [vmem:[%s0 + $0x630] sm:$0xff]
  %v219 = vld [vmem:[%s0 + $0x638] sm:$0xff]
  %v220 = vld [vmem:[%s0 + $0x640] sm:$0xff]
  %v221 = vld [vmem:[%s0 + $0x648] sm:$0xff]
  %v222 = vld [vmem:[%s0 + $0x650] sm:$0xff]
  %v223 = vld [vmem:[%s0 + $0x658] sm:$0xff]
  %v224 = vld [vmem:[%s0 + $0x660] sm:$0xff]
  %v225 = vld [vmem:[%s0 + $0x668] sm:$0xff]
  %v226 = vld [vmem:[%s0 + $0x670] sm:$0xff]
  %v227 = vld [vmem:[%s0 + $0x678] sm:$0xff]
  %v228 = vld [vmem:[%s0 + $0x680] sm:$0xff]
  %v229 = vld [vmem:[%s0 + $0x688] sm:$0xff]
  %v230 = vld [vmem:[%s0 + $0x690] sm:$0xff]
  %v231 = vld [vmem:[%s0 + $0x698] sm:$0xff]
  %v232 = vld [vmem:[%s0 + $0x6a0] sm:$0xff]
  %v233 = vld [vmem:[%s0 + $0x6a8] sm:$0xff]
  %v234 = vld [vmem:[%s0 + $0x6b0] sm:$0xff]
  %v235 = vld [vmem:[%s0 + $0x6b8] sm:$0xff]
  %v236 = vld [vmem:[%s0 + $0x6c0] sm:$0xff]
  %v237 = vld [vmem:[%s0 + $0x6c8] sm:$0xff]
  %v238 = vld [vmem:[%s0 + $0x6d0] sm:$0xff]
  %v239 = vld [vmem:[%s0 + $0x6d8] sm:$0xff]
  %v240 = vld [vmem:[%s0 + $0x6e0] sm:$0xff]
  %v241 = vld [vmem:[%s0 + $0x6e8] sm:$0xff]
  %v242 = vld [vmem:[%s0 + $0x6f0] sm:$0xff]
  %v243 = vld [vmem:[%s0 + $0x6f8] sm:$0xff]
  %v244 = vld [vmem:[%s0 + $0x700] sm:$0xff]
  %v245 = vld [vmem:[%s0 + $0x708] sm:$0xff]
  %v246 = vld [vmem:[%s0 + $0x710] sm:$0xff]
  %v247 = vld [vmem:[%s0 + $0x718] sm:$0xff]
  %v248 = vld [vmem:[%s0 + $0x720] sm:$0xff]
  %v249 = vld [vmem:[%s0 + $0x728] sm:$0xff]
  %v250 = vld [vmem:[%s0 + $0x730] sm:$0xff]
  %v251 = vld [vmem:[%s0 + $0x738] sm:$0xff]
  %v252 = vld [vmem:[%s0 + $0x740] sm:$0xff]
  %v253 = vld [vmem:[%s0 + $0x748] sm:$0xff]
  %v254 = vld [vmem:[%s0 + $0x750] sm:$0xff]
  %v255 = vld [vmem:[%s0 + $0x758] sm:$0xff]
  %v256 = vld [vmem:[%s0 + $0x760] sm:$0xff]
  %v257 = vld [vmem:[%s0 + $0x768] sm:$0xff]
  %v258 = vld [vmem:[%s0 + $0x770] sm:$0xff]
  %v259 = vld [vmem:[%s0 + $0x778] sm:$0xff]
  %v260 = vld [vmem:[%s0 + $0x780] sm:$0xff]
  %v261 = vld [vmem:[%s0 + $0x788] sm:$0xff]
  %v262 = vld [vmem:[%s0 + $0x790] sm:$0xff]
  %v263 = vld [vmem:[%s0 + $0x798] sm:$0xff]
  %v264 = vld [vmem:[%s0 + $0x7a0] sm:$0xff]
  %v265 = vld [vmem:[%s0 + $0x7a8] sm:$0xff]
  %v266 = vld [vmem:[%s0 + $0x7b0] sm:$0xff]
  %v267 = vld [vmem:[%s0 + $0x7b8] sm:$0xff]
  %v268 = vld [vmem:[%s0 + $0x7c0] sm:$0xff]
  %v269 = vld [vmem:[%s0 + $0x7c8] sm:$0xff]
  %v270 = vld [vmem:[%s0 + $0x7d0] sm:$0xff]
  %v271 = vld [vmem:[%s0 + $0x7d8] sm:$0xff]
  %v272 = vld [vmem:[%s0 + $0x7e0] sm:$0xff]
  %v273 = vld [vmem:[%s0 + $0x7e8] sm:$0xff]
  %v274 = vld [vmem:[%s0 + $0x7f0] sm:$0xff]
  %v275 = vld [vmem:[%s0 + $0x7f8] sm:$0xff]
  %v276 = vld [vmem:[%s0 + $0x800] sm:$0xff]
  %v277 = vld [vmem:[%s0 + $0x808] sm:$0xff]
  %v278 = vld [vmem:[%s0 + $0x810] sm:$0xff]
  %v279 = vld [vmem:[%s0 + $0x818] sm:$0xff]
  %v280 = vld [vmem:[%s0 + $0x820] sm:$0xff]
  %v281 = vld [vmem:[%s0 + $0x828] sm:$0xff]
  %v282 = vld [vmem:[%s0 + $0x830] sm:$0xff]
  %v283 = vld [vmem:[%s0 + $0x838] sm:$0xff]
  %v284 = vld [vmem:[%s0 + $0x840] sm:$0xff]
  %v285 = vld [vmem:[%s0 + $0x848] sm:$0xff]
  %v286 = vld [vmem:[%s0 + $0x850] sm:$0xff]
  %v287 = vld [vmem:[%s0 + $0x858] sm:$0xff]
  %v288 = vld [vmem:[%s0 + $0x860] sm:$0xff]
  %v289 = vld [vmem:[%s0 + $0x868] sm:$0xff]
  %v290 = vld [vmem:[%s0 + $0x870] sm:$0xff]
  %v291 = vld [vmem:[%s0 + $0x878] sm:$0xff]
  %v292 = vld [vmem:[%s0 + $0x880] sm:$0xff]
  %v293 = vld [vmem:[%s0 + $0x888] sm:$0xff]
  %v294 = vld [vmem:[%s0 + $0x890] sm:$0xff]
  %v295 = vld [vmem:[%s0 + $0x898] sm:$0xff]
  %v296 = vld [vmem:[%s0 + $0x8a0] sm:$0xff]
  %v297 = vld [vmem:[%s0 + $0x8a8] sm:$0xff]
  %v298 = vld [vmem:[%s0 + $0x8b0] sm:$0xff]
  %v299 = vld [vmem:[%s0 + $0x8b8] sm:$0xff]
  %v300 = vld [vmem:[%s0 + $0x8c0] sm:$0xff]
  %v301 = vld [vmem:[%s0 + $0x8c8] sm:$0xff]
  %v302 = vld [vmem:[%s0 + $0x8d0] sm:$0xff]
  %v303 = vld [vmem:[%s0 + $0x8d8] sm:$0xff]
  %v304 = vld [vmem:[%s0 + $0x8e0] sm:$0xff]
  %v305 = vld [vmem:[%s0 + $0x8e8] sm:$0xff]
  %v306 = vld [vmem:[%s0 + $0x8f0] sm:$0xff]
  %v307 = vld [vmem:[%s0 + $0x8f8] sm:$0xff]
  %v308 = vld [vmem:[%s0 + $0x900] sm:$0xff]
  %v309 = vld [vmem:[%s0 + $0x908] sm:$0xff]
  %v310 = vld [vmem:[%s0 + $0x910] sm:$0xff]
  %v311 = vld [vmem:[%s0 + $0x918] sm:$0xff]
  %v312 = vld [vmem:[%s0 + $0x920] sm:$0xff]
  %v313 = vld [vmem:[%s0 + $0x928] sm:$0xff]
  %v314 = vld [vmem:[%s1] sm:$0xff]
  %v315 = vld [vmem:[%s1 + $0x8] sm:$0xff]
  %v316 = vld [vmem:[%s1 + $0x10] sm:$0xff]
  %v317 = vld [vmem:[%s1 + $0x18] sm:$0xff]
  %v318 = vld [vmem:[%s1 + $0x20] sm:$0xff]
  %v319 = vld [vmem:[%s1 + $0x28] sm:$0xff]
  %v320 = vld [vmem:[%s1 + $0x30] sm:$0xff]
  %v321 = vld [vmem:[%s1 + $0x38] sm:$0xff]
  %v322 = vld [vmem:[%s1 + $0x40] sm:$0xff]
  %v323 = vld [vmem:[%s1 + $0x48] sm:$0xff]
  %v324 = vld [vmem:[%s1 + $0x50] sm:$0xff]
  %v325 = vld [vmem:[%s1 + $0x58] sm:$0xff]
  %v326 = vld [vmem:[%s1 + $0x60] sm:$0xff]
  %v327 = vld [vmem:[%s1 + $0x68] sm:$0xff]
  %v328 = vld [vmem:[%s1 + $0x70] sm:$0xff]
  %v329 = vld [vmem:[%s1 + $0x78] sm:$0xff]
  %v330 = vld [vmem:[%s1 + $0x80] sm:$0xff]
  %v331 = vld [vmem:[%s1 + $0x88] sm:$0xff]
  %v332 = vld [vmem:[%s1 + $0x90] sm:$0xff]
  %v333 = vld [vmem:[%s1 + $0x98] sm:$0xff]
  %v334 = vld [vmem:[%s1 + $0xa0] sm:$0xff]
  %v335 = vld [vmem:[%s1 + $0xa8] sm:$0xff]
  %v336 = vld [vmem:[%s1 + $0xb0] sm:$0xff]
  %v337 = vld [vmem:[%s1 + $0xb8] sm:$0xff]
  %v338 = vld [vmem:[%s1 + $0xc0] sm:$0xff]
  %v339 = vld [vmem:[%s1 + $0xc8] sm:$0xff]
  %v340 = vld [vmem:[%s1 + $0xd0] sm:$0xff]
  %v341 = vld [vmem:[%s1 + $0xd8] sm:$0xff]
  %v342 = vld [vmem:[%s1 + $0xe0] sm:$0xff]
  %v343 = vld [vmem:[%s1 + $0xe8] sm:$0xff]
  %v344 = vld [vmem:[%s1 + $0xf0] sm:$0xff]
  %v345 = vld [vmem:[%s1 + $0xf8] sm:$0xff]
  %v346 = vld [vmem:[%s1 + $0x100] sm:$0xff]
  %v347 = vld [vmem:[%s1 + $0x108] sm:$0xff]
  %v348 = vld [vmem:[%s1 + $0x110] sm:$0xff]
  %v349 = vld [vmem:[%s1 + $0x118] sm:$0xff]
  %v350 = vld [vmem:[%s1 + $0x120] sm:$0xff]
  %v351 = vld [vmem:[%s1 + $0x128] sm:$0xff]
  %v352 = vld [vmem:[%s1 + $0x130] sm:$0xff]
  %v353 = vld [vmem:[%s1 + $0x138] sm:$0xff]
  %v354 = vld [vmem:[%s1 + $0x140] sm:$0xff]
  %v355 = vld [vmem:[%s1 + $0x148] sm:$0xff]
  %v356 = vld [vmem:[%s1 + $0x150] sm:$0xff]
  %v357 = vld [vmem:[%s1 + $0x158] sm:$0xff]
  %v358 = vld [vmem:[%s1 + $0x160] sm:$0xff]
  %v359 = vld [vmem:[%s1 + $0x168] sm:$0xff]
  %v360 = vld [vmem:[%s1 + $0x170] sm:$0xff]
  %v361 = vld [vmem:[%s1 + $0x178] sm:$0xff]
  %v362 = vld [vmem:[%s1 + $0x180] sm:$0xff]
  %v363 = vld [vmem:[%s1 + $0x188] sm:$0xff]
  %v364 = vld [vmem:[%s1 + $0x190] sm:$0xff]
  %v365 = vld [vmem:[%s1 + $0x198] sm:$0xff]
  %v366 = vld [vmem:[%s1 + $0x1a0] sm:$0xff]
  %v367 = vld [vmem:[%s1 + $0x1a8] sm:$0xff]
  %v368 = vld [vmem:[%s1 + $0x1b0] sm:$0xff]
  %v369 = vld [vmem:[%s1 + $0x1b8] sm:$0xff]
  %v370 = vld [vmem:[%s1 + $0x1c0] sm:$0xff]
  %v371 = vld [vmem:[%s1 + $0x1c8] sm:$0xff]
  %v372 = vld [vmem:[%s1 + $0x1d0] sm:$0xff]
  %v373 = vld [vmem:[%s1 + $0x1d8] sm:$0xff]
  %v374 = vld [vmem:[%s1 + $0x1e0] sm:$0xff]
  %v375 = vld [vmem:[%s1 + $0x1e8] sm:$0xff]
  %v376 = vld [vmem:[%s1 + $0x1f0] sm:$0xff]
  %v377 = vld [vmem:[%s1 + $0x1f8] sm:$0xff]
  %v378 = vld [vmem:[%s1 + $0x200] sm:$0xff]
  %v379 = vld [vmem:[%s1 + $0x208] sm:$0xff]
  %v380 = vld [vmem:[%s1 + $0x210] sm:$0xff]
  %v381 = vld [vmem:[%s1 + $0x218] sm:$0xff]
  %v382 = vld [vmem:[%s1 + $0x220] sm:$0xff]
  %v383 = vld [vmem:[%s1 + $0x228] sm:$0xff]
  %v384 = vld [vmem:[%s1 + $0x230] sm:$0xff]
  %v385 = vld [vmem:[%s1 + $0x238] sm:$0xff]
  %v386 = vld [vmem:[%s1 + $0x240] sm:$0xff]
  %v387 = vld [vmem:[%s1 + $0x248] sm:$0xff]
  %v388 = vld [vmem:[%s1 + $0x250] sm:$0xff]
  %v389 = vld [vmem:[%s1 + $0x258] sm:$0xff]
  %v390 = vld [vmem:[%s1 + $0x260] sm:$0xff]
  %v391 = vld [vmem:[%s1 + $0x268] sm:$0xff]
  %v392 = vld [vmem:[%s1 + $0x270] sm:$0xff]
  %v393 = vld [vmem:[%s1 + $0x278] sm:$0xff]
  %v394 = vld [vmem:[%s1 + $0x280] sm:$0xff]
  %v395 = vld [vmem:[%s1 + $0x288] sm:$0xff]
  %v396 = vld [vmem:[%s1 + $0x290] sm:$0xf]
  %v397 = vld [vmem:[%s2] sm:$0x1]
  %v399 = vlaneseq
  %v400 = vshrl.u32 %v399, 7
  %v401 = vsub.s32 0, %v400
  %v402 = vrot.slane %v397, %v401
  %vm404 = vcmask 162816
  %v406 = vsel %vm404, %v25, 0
  %v409 = vsel %vm404, %v31, 0
  %v412 = vsel %vm404, %v37, 0
  %v415 = vsel %vm404, %v43, 0
  %v418 = vsel %vm404, %v49, 0
  %v421 = vsel %vm404, %v55, 0
  %v424 = vsel %vm404, %v61, 0
  %v427 = vsel %vm404, %v67, 0
  %v430 = vsel %vm404, %v73, 0
  %v433 = vsel %vm404, %v79, 0
  %v436 = vsel %vm404, %v85, 0
  %v439 = vsel %vm404, %v91, 0
  %v442 = vsel %vm404, %v97, 0
  %v445 = vsel %vm404, %v103, 0
  %v448 = vsel %vm404, %v109, 0
  %v451 = vsel %vm404, %v115, 0
  %v454 = vsel %vm404, %v121, 0
  %v457 = vsel %vm404, %v127, 0
  %v460 = vsel %vm404, %v133, 0
  %v463 = vsel %vm404, %v139, 0
  %v466 = vsel %vm404, %v145, 0
  %v469 = vsel %vm404, %v151, 0
  %v472 = vsel %vm404, %v157, 0
  %v475 = vsel %vm404, %v163, 0
  %v478 = vsel %vm404, %v169, 0
  %v481 = vsel %vm404, %v175, 0
  %v484 = vsel %vm404, %v181, 0
  %v487 = vsel %vm404, %v187, 0
  %v490 = vsel %vm404, %v193, 0
  %v493 = vsel %vm404, %v199, 0
  %v496 = vsel %vm404, %v205, 0
  %v499 = vsel %vm404, %v211, 0
  %v502 = vsel %vm404, %v217, 0
  %v505 = vsel %vm404, %v223, 0
  %v508 = vsel %vm404, %v229, 0
  %v511 = vsel %vm404, %v235, 0
  %v514 = vsel %vm404, %v241, 0
  %v517 = vsel %vm404, %v247, 0
  %v520 = vsel %vm404, %v253, 0
  %v523 = vsel %vm404, %v259, 0
  %v526 = vsel %vm404, %v265, 0
  %v529 = vsel %vm404, %v271, 0
  %v532 = vsel %vm404, %v277, 0
  %v535 = vsel %vm404, %v283, 0
  %v538 = vsel %vm404, %v289, 0
  %v541 = vsel %vm404, %v295, 0
  %v544 = vsel %vm404, %v301, 0
  %v547 = vsel %vm404, %v307, 0
  %v550 = vsel %vm404, %v313, 0
  %vm552 = vcmask 1043456
  %v554 = vsel %vm552, %v396, 0
  %556 = vmatprep.subr.mxu0 0.0
  %557 = vmatpush1.msra.mxu0 %v329
  %558 = vmatprep.subr.mxu0 0.0
  %559 = vmatpush1.msra.mxu0 %v328
  %560 = vmatprep.subr.mxu0 0.0
  %561 = vmatpush1.msra.mxu0 %v327
  %562 = vmatprep.subr.mxu0 0.0
  %563 = vmatpush1.msra.mxu0 %v326
  %564 = vmatprep.subr.mxu0 0.0
  %565 = vmatpush1.msra.mxu0 %v325
  %566 = vmatprep.subr.mxu0 0.0
  %567 = vmatpush1.msra.mxu0 %v324
  %568 = vmatprep.subr.mxu0 0.0
  %569 = vmatpush1.msra.mxu0 %v323
  %570 = vmatprep.subr.mxu0 0.0
  %571 = vmatpush1.msra.mxu0 %v322
  %572 = vmatprep.subr.mxu0 0.0
  %573 = vmatpush1.msra.mxu0 %v321
  %574 = vmatprep.subr.mxu0 0.0
  %575 = vmatpush1.msra.mxu0 %v320
  %576 = vmatprep.subr.mxu0 0.0
  %577 = vmatpush1.msra.mxu0 %v319
  %578 = vmatprep.subr.mxu0 0.0
  %579 = vmatpush1.msra.mxu0 %v318
  %580 = vmatprep.subr.mxu0 0.0
  %581 = vmatpush1.msra.mxu0 %v317
  %582 = vmatprep.subr.mxu0 0.0
  %583 = vmatpush1.msra.mxu0 %v316
  %584 = vmatprep.subr.mxu0 0.0
  %585 = vmatpush1.msra.mxu0 %v315
  %586 = vmatprep.subr.mxu0 0.0
  %587 = vmatpush1.msra.mxu0 %v314
  %588 = vmatprep.subr.mxu0 0.0
  %589 = vmatpush2.msra.mxu0 %v345
  %590 = vmatprep.subr.mxu0 0.0
  %591 = vmatpush2.msra.mxu0 %v344
  %592 = vmatprep.subr.mxu0 0.0
  %593 = vmatpush2.msra.mxu0 %v343
  %594 = vmatprep.subr.mxu0 0.0
  %595 = vmatpush2.msra.mxu0 %v342
  %596 = vmatprep.subr.mxu0 0.0
  %597 = vmatpush2.msra.mxu0 %v341
  %598 = vmatprep.subr.mxu0 0.0
  %599 = vmatpush2.msra.mxu0 %v340
  %600 = vmatprep.subr.mxu0 0.0
  %601 = vmatpush2.msra.mxu0 %v339
  %602 = vmatprep.subr.mxu0 0.0
  %603 = vmatpush2.msra.mxu0 %v338
  %604 = vmatprep.subr.mxu0 0.0
  %605 = vmatpush2.msra.mxu0 %v337
  %606 = vmatprep.subr.mxu0 0.0
  %607 = vmatpush2.msra.mxu0 %v336
  %608 = vmatprep.subr.mxu0 0.0
  %609 = vmatpush2.msra.mxu0 %v335
  %610 = vmatprep.subr.mxu0 0.0
  %611 = vmatpush2.msra.mxu0 %v334
  %612 = vmatprep.subr.mxu0 0.0
  %613 = vmatpush2.msra.mxu0 %v333
  %614 = vmatprep.subr.mxu0 0.0
  %615 = vmatpush2.msra.mxu0 %v332
  %616 = vmatprep.subr.mxu0 0.0
  %617 = vmatpush2.msra.mxu0 %v331
  %618 = vmatprep.subr.mxu0 0.0
  %619 = vmatpush2.msra.mxu0 %v330
  %620 = vmatprep.mubr.f32.mxu0 %v21
  %621 = vmatmul.mubr.f32.gmra.mxu0 %v20
  %v622 = vpop.f32.mrf.mxu0
  %v623 = vadd.f32 %v402, %v622
  %v624 = vpop.f32.mrf.mxu0
  %625 = vmatprep.mubr.f32.mxu0 %v27
  %626 = vmatmul.mubr.f32.gmra.mxu0 %v26
  %v627 = vpop.f32.mrf.mxu0
  %v628 = vadd.f32 %v402, %v627
  %v629 = vpop.f32.mrf.mxu0
  %630 = vmatprep.mubr.f32.mxu0 %v33
  %631 = vmatmul.mubr.f32.gmra.mxu0 %v32
  %v632 = vpop.f32.mrf.mxu0
  %v633 = vadd.f32 %v402, %v632
  %v634 = vpop.f32.mrf.mxu0
  %635 = vmatprep.mubr.f32.mxu0 %v39
  %636 = vmatmul.mubr.f32.gmra.mxu0 %v38
  %v637 = vpop.f32.mrf.mxu0
  %v638 = vadd.f32 %v402, %v637
  %v639 = vpop.f32.mrf.mxu0
  %640 = vmatprep.mubr.f32.mxu0 %v45
  %641 = vmatmul.mubr.f32.gmra.mxu0 %v44
  %v642 = vpop.f32.mrf.mxu0
  %v643 = vadd.f32 %v402, %v642
  %v644 = vpop.f32.mrf.mxu0
  %645 = vmatprep.mubr.f32.mxu0 %v51
  %646 = vmatmul.mubr.f32.gmra.mxu0 %v50
  %v647 = vpop.f32.mrf.mxu0
  %v648 = vadd.f32 %v402, %v647
  %v649 = vpop.f32.mrf.mxu0
  %650 = vmatprep.mubr.f32.mxu0 %v57
  %651 = vmatmul.mubr.f32.gmra.mxu0 %v56
  %v652 = vpop.f32.mrf.mxu0
  %v653 = vadd.f32 %v402, %v652
  %v654 = vpop.f32.mrf.mxu0
  %655 = vmatprep.mubr.f32.mxu0 %v63
  %656 = vmatmul.mubr.f32.gmra.mxu0 %v62
  %v657 = vpop.f32.mrf.mxu0
  %v658 = vadd.f32 %v402, %v657
  %v659 = vpop.f32.mrf.mxu0
  %660 = vmatprep.mubr.f32.mxu0 %v69
  %661 = vmatmul.mubr.f32.gmra.mxu0 %v68
  %v662 = vpop.f32.mrf.mxu0
  %v663 = vadd.f32 %v402, %v662
  %v664 = vpop.f32.mrf.mxu0
  %665 = vmatprep.mubr.f32.mxu0 %v75
  %666 = vmatmul.mubr.f32.gmra.mxu0 %v74
  %v667 = vpop.f32.mrf.mxu0
  %v668 = vadd.f32 %v402, %v667
  %v669 = vpop.f32.mrf.mxu0
  %670 = vmatprep.mubr.f32.mxu0 %v81
  %671 = vmatmul.mubr.f32.gmra.mxu0 %v80
  %v672 = vpop.f32.mrf.mxu0
  %v673 = vadd.f32 %v402, %v672
  %v674 = vpop.f32.mrf.mxu0
  %675 = vmatprep.mubr.f32.mxu0 %v87
  %676 = vmatmul.mubr.f32.gmra.mxu0 %v86
  %v677 = vpop.f32.mrf.mxu0
  %v678 = vadd.f32 %v402, %v677
  %v679 = vpop.f32.mrf.mxu0
  %680 = vmatprep.mubr.f32.mxu0 %v93
  %681 = vmatmul.mubr.f32.gmra.mxu0 %v92
  %v682 = vpop.f32.mrf.mxu0
  %v683 = vadd.f32 %v402, %v682
  %v684 = vpop.f32.mrf.mxu0
  %685 = vmatprep.mubr.f32.mxu0 %v99
  %686 = vmatmul.mubr.f32.gmra.mxu0 %v98
  %v687 = vpop.f32.mrf.mxu0
  %v688 = vadd.f32 %v402, %v687
  %v689 = vpop.f32.mrf.mxu0
  %690 = vmatprep.mubr.f32.mxu0 %v105
  %691 = vmatmul.mubr.f32.gmra.mxu0 %v104
  %v692 = vpop.f32.mrf.mxu0
  %v693 = vadd.f32 %v402, %v692
  %v694 = vpop.f32.mrf.mxu0
  %695 = vmatprep.mubr.f32.mxu0 %v111
  %696 = vmatmul.mubr.f32.gmra.mxu0 %v110
  %v697 = vpop.f32.mrf.mxu0
  %v698 = vadd.f32 %v402, %v697
  %v699 = vpop.f32.mrf.mxu0
  %700 = vmatprep.mubr.f32.mxu0 %v117
  %701 = vmatmul.mubr.f32.gmra.mxu0 %v116
  %v702 = vpop.f32.mrf.mxu0
  %v703 = vadd.f32 %v402, %v702
  %v704 = vpop.f32.mrf.mxu0
  %705 = vmatprep.mubr.f32.mxu0 %v123
  %706 = vmatmul.mubr.f32.gmra.mxu0 %v122
  %v707 = vpop.f32.mrf.mxu0
  %v708 = vadd.f32 %v402, %v707
  %v709 = vpop.f32.mrf.mxu0
  %710 = vmatprep.mubr.f32.mxu0 %v129
  %711 = vmatmul.mubr.f32.gmra.mxu0 %v128
  %v712 = vpop.f32.mrf.mxu0
  %v713 = vadd.f32 %v402, %v712
  %v714 = vpop.f32.mrf.mxu0
  %715 = vmatprep.mubr.f32.mxu0 %v135
  %716 = vmatmul.mubr.f32.gmra.mxu0 %v134
  %v717 = vpop.f32.mrf.mxu0
  %v718 = vadd.f32 %v402, %v717
  %v719 = vpop.f32.mrf.mxu0
  %720 = vmatprep.mubr.f32.mxu0 %v141
  %721 = vmatmul.mubr.f32.gmra.mxu0 %v140
  %v722 = vpop.f32.mrf.mxu0
  %v723 = vadd.f32 %v402, %v722
  %v724 = vpop.f32.mrf.mxu0
  %725 = vmatprep.mubr.f32.mxu0 %v147
  %726 = vmatmul.mubr.f32.gmra.mxu0 %v146
  %v727 = vpop.f32.mrf.mxu0
  %v728 = vadd.f32 %v402, %v727
  %v729 = vpop.f32.mrf.mxu0
  %730 = vmatprep.mubr.f32.mxu0 %v153
  %731 = vmatmul.mubr.f32.gmra.mxu0 %v152
  %v732 = vpop.f32.mrf.mxu0
  %v733 = vadd.f32 %v402, %v732
  %v734 = vpop.f32.mrf.mxu0
  %735 = vmatprep.mubr.f32.mxu0 %v159
  %736 = vmatmul.mubr.f32.gmra.mxu0 %v158
  %v737 = vpop.f32.mrf.mxu0
  %v738 = vadd.f32 %v402, %v737
  %v739 = vpop.f32.mrf.mxu0
  %740 = vmatprep.mubr.f32.mxu0 %v165
  %741 = vmatmul.mubr.f32.gmra.mxu0 %v164
  %v742 = vpop.f32.mrf.mxu0
  %v743 = vadd.f32 %v402, %v742
  %v744 = vpop.f32.mrf.mxu0
  %745 = vmatprep.mubr.f32.mxu0 %v171
  %746 = vmatmul.mubr.f32.gmra.mxu0 %v170
  %v747 = vpop.f32.mrf.mxu0
  %v748 = vadd.f32 %v402, %v747
  %v749 = vpop.f32.mrf.mxu0
  %750 = vmatprep.mubr.f32.mxu0 %v177
  %751 = vmatmul.mubr.f32.gmra.mxu0 %v176
  %v752 = vpop.f32.mrf.mxu0
  %v753 = vadd.f32 %v402, %v752
  %v754 = vpop.f32.mrf.mxu0
  %755 = vmatprep.mubr.f32.mxu0 %v183
  %756 = vmatmul.mubr.f32.gmra.mxu0 %v182
  %v757 = vpop.f32.mrf.mxu0
  %v758 = vadd.f32 %v402, %v757
  %v759 = vpop.f32.mrf.mxu0
  %760 = vmatprep.mubr.f32.mxu0 %v189
  %761 = vmatmul.mubr.f32.gmra.mxu0 %v188
  %v762 = vpop.f32.mrf.mxu0
  %v763 = vadd.f32 %v402, %v762
  %v764 = vpop.f32.mrf.mxu0
  %765 = vmatprep.mubr.f32.mxu0 %v195
  %766 = vmatmul.mubr.f32.gmra.mxu0 %v194
  %v767 = vpop.f32.mrf.mxu0
  %v768 = vadd.f32 %v402, %v767
  %v769 = vpop.f32.mrf.mxu0
  %770 = vmatprep.mubr.f32.mxu0 %v201
  %771 = vmatmul.mubr.f32.gmra.mxu0 %v200
  %v772 = vpop.f32.mrf.mxu0
  %v773 = vadd.f32 %v402, %v772
  %v774 = vpop.f32.mrf.mxu0
  %775 = vmatprep.mubr.f32.mxu0 %v207
  %776 = vmatmul.mubr.f32.gmra.mxu0 %v206
  %v777 = vpop.f32.mrf.mxu0
  %v778 = vadd.f32 %v402, %v777
  %v779 = vpop.f32.mrf.mxu0
  %780 = vmatprep.mubr.f32.mxu0 %v213
  %781 = vmatmul.mubr.f32.gmra.mxu0 %v212
  %v782 = vpop.f32.mrf.mxu0
  %v783 = vadd.f32 %v402, %v782
  %v784 = vpop.f32.mrf.mxu0
  %785 = vmatprep.mubr.f32.mxu0 %v219
  %786 = vmatmul.mubr.f32.gmra.mxu0 %v218
  %v787 = vpop.f32.mrf.mxu0
  %v788 = vadd.f32 %v402, %v787
  %v789 = vpop.f32.mrf.mxu0
  %790 = vmatprep.mubr.f32.mxu0 %v225
  %791 = vmatmul.mubr.f32.gmra.mxu0 %v224
  %v792 = vpop.f32.mrf.mxu0
  %v793 = vadd.f32 %v402, %v792
  %v794 = vpop.f32.mrf.mxu0
  %795 = vmatprep.mubr.f32.mxu0 %v231
  %796 = vmatmul.mubr.f32.gmra.mxu0 %v230
  %v797 = vpop.f32.mrf.mxu0
  %v798 = vadd.f32 %v402, %v797
  %v799 = vpop.f32.mrf.mxu0
  %800 = vmatprep.mubr.f32.mxu0 %v237
  %801 = vmatmul.mubr.f32.gmra.mxu0 %v236
  %v802 = vpop.f32.mrf.mxu0
  %v803 = vadd.f32 %v402, %v802
  %v804 = vpop.f32.mrf.mxu0
  %805 = vmatprep.mubr.f32.mxu0 %v243
  %806 = vmatmul.mubr.f32.gmra.mxu0 %v242
  %v807 = vpop.f32.mrf.mxu0
  %v808 = vadd.f32 %v402, %v807
  %v809 = vpop.f32.mrf.mxu0
  %810 = vmatprep.mubr.f32.mxu0 %v249
  %811 = vmatmul.mubr.f32.gmra.mxu0 %v248
  %v812 = vpop.f32.mrf.mxu0
  %v813 = vadd.f32 %v402, %v812
  %v814 = vpop.f32.mrf.mxu0
  %815 = vmatprep.mubr.f32.mxu0 %v255
  %816 = vmatmul.mubr.f32.gmra.mxu0 %v254
  %v817 = vpop.f32.mrf.mxu0
  %v818 = vadd.f32 %v402, %v817
  %v819 = vpop.f32.mrf.mxu0
  %820 = vmatprep.mubr.f32.mxu0 %v261
  %821 = vmatmul.mubr.f32.gmra.mxu0 %v260
  %v822 = vpop.f32.mrf.mxu0
  %v823 = vadd.f32 %v402, %v822
  %v824 = vpop.f32.mrf.mxu0
  %825 = vmatprep.mubr.f32.mxu0 %v267
  %826 = vmatmul.mubr.f32.gmra.mxu0 %v266
  %v827 = vpop.f32.mrf.mxu0
  %v828 = vadd.f32 %v402, %v827
  %v829 = vpop.f32.mrf.mxu0
  %830 = vmatprep.mubr.f32.mxu0 %v273
  %831 = vmatmul.mubr.f32.gmra.mxu0 %v272
  %v832 = vpop.f32.mrf.mxu0
  %v833 = vadd.f32 %v402, %v832
  %v834 = vpop.f32.mrf.mxu0
  %835 = vmatprep.mubr.f32.mxu0 %v279
  %836 = vmatmul.mubr.f32.gmra.mxu0 %v278
  %v837 = vpop.f32.mrf.mxu0
  %v838 = vadd.f32 %v402, %v837
  %v839 = vpop.f32.mrf.mxu0
  %840 = vmatprep.mubr.f32.mxu0 %v285
  %841 = vmatmul.mubr.f32.gmra.mxu0 %v284
  %v842 = vpop.f32.mrf.mxu0
  %v843 = vadd.f32 %v402, %v842
  %v844 = vpop.f32.mrf.mxu0
  %845 = vmatprep.mubr.f32.mxu0 %v291
  %846 = vmatmul.mubr.f32.gmra.mxu0 %v290
  %v847 = vpop.f32.mrf.mxu0
  %v848 = vadd.f32 %v402, %v847
  %v849 = vpop.f32.mrf.mxu0
  %850 = vmatprep.mubr.f32.mxu0 %v297
  %851 = vmatmul.mubr.f32.gmra.mxu0 %v296
  %v852 = vpop.f32.mrf.mxu0
  %v853 = vadd.f32 %v402, %v852
  %v854 = vpop.f32.mrf.mxu0
  %855 = vmatprep.mubr.f32.mxu0 %v303
  %856 = vmatmul.mubr.f32.gmra.mxu0 %v302
  %v857 = vpop.f32.mrf.mxu0
  %v858 = vadd.f32 %v402, %v857
  %v859 = vpop.f32.mrf.mxu0
  %860 = vmatprep.mubr.f32.mxu0 %v309
  %861 = vmatmul.mubr.f32.gmra.mxu0 %v308
  %v862 = vpop.f32.mrf.mxu0
  %v863 = vadd.f32 %v402, %v862
  %v864 = vpop.f32.mrf.mxu0
  %865 = vdwg.mxu0
  %866 = vmatprep.subr.mxu0 0.0
  %867 = vmatpush1.msra.mxu0 %v361
  %868 = vmatprep.subr.mxu0 0.0
  %869 = vmatpush1.msra.mxu0 %v360
  %870 = vmatprep.subr.mxu0 0.0
  %871 = vmatpush1.msra.mxu0 %v359
  %872 = vmatprep.subr.mxu0 0.0
  %873 = vmatpush1.msra.mxu0 %v358
  %874 = vmatprep.subr.mxu0 0.0
  %875 = vmatpush1.msra.mxu0 %v357
  %876 = vmatprep.subr.mxu0 0.0
  %877 = vmatpush1.msra.mxu0 %v356
  %878 = vmatprep.subr.mxu0 0.0
  %879 = vmatpush1.msra.mxu0 %v355
  %880 = vmatprep.subr.mxu0 0.0
  %881 = vmatpush1.msra.mxu0 %v354
  %882 = vmatprep.subr.mxu0 0.0
  %883 = vmatpush1.msra.mxu0 %v353
  %884 = vmatprep.subr.mxu0 0.0
  %885 = vmatpush1.msra.mxu0 %v352
  %886 = vmatprep.subr.mxu0 0.0
  %887 = vmatpush1.msra.mxu0 %v351
  %888 = vmatprep.subr.mxu0 0.0
  %889 = vmatpush1.msra.mxu0 %v350
  %890 = vmatprep.subr.mxu0 0.0
  %891 = vmatpush1.msra.mxu0 %v349
  %892 = vmatprep.subr.mxu0 0.0
  %893 = vmatpush1.msra.mxu0 %v348
  %894 = vmatprep.subr.mxu0 0.0
  %895 = vmatpush1.msra.mxu0 %v347
  %896 = vmatprep.subr.mxu0 0.0
  %897 = vmatpush1.msra.mxu0 %v346
  %898 = vmatprep.subr.mxu0 0.0
  %899 = vmatpush2.msra.mxu0 %v377
  %900 = vmatprep.subr.mxu0 0.0
  %901 = vmatpush2.msra.mxu0 %v376
  %902 = vmatprep.subr.mxu0 0.0
  %903 = vmatpush2.msra.mxu0 %v375
  %904 = vmatprep.subr.mxu0 0.0
  %905 = vmatpush2.msra.mxu0 %v374
  %906 = vmatprep.subr.mxu0 0.0
  %907 = vmatpush2.msra.mxu0 %v373
  %908 = vmatprep.subr.mxu0 0.0
  %909 = vmatpush2.msra.mxu0 %v372
  %910 = vmatprep.subr.mxu0 0.0
  %911 = vmatpush2.msra.mxu0 %v371
  %912 = vmatprep.subr.mxu0 0.0
  %913 = vmatpush2.msra.mxu0 %v370
  %914 = vmatprep.subr.mxu0 0.0
  %915 = vmatpush2.msra.mxu0 %v369
  %916 = vmatprep.subr.mxu0 0.0
  %917 = vmatpush2.msra.mxu0 %v368
  %918 = vmatprep.subr.mxu0 0.0
  %919 = vmatpush2.msra.mxu0 %v367
  %920 = vmatprep.subr.mxu0 0.0
  %921 = vmatpush2.msra.mxu0 %v366
  %922 = vmatprep.subr.mxu0 0.0
  %923 = vmatpush2.msra.mxu0 %v365
  %924 = vmatprep.subr.mxu0 0.0
  %925 = vmatpush2.msra.mxu0 %v364
  %926 = vmatprep.subr.mxu0 0.0
  %927 = vmatpush2.msra.mxu0 %v363
  %928 = vmatprep.subr.mxu0 0.0
  %929 = vmatpush2.msra.mxu0 %v362
  %930 = vmatprep.mubr.f32.mxu0 %v23
  %931 = vmatmul.mubr.f32.gmra.mxu0 %v22
  %v932 = vpop.f32.mrf.mxu0
  %v933 = vadd.f32 %v623, %v932
  %v934 = vpop.f32.mrf.mxu0
  %935 = vmatprep.mubr.f32.mxu0 %v29
  %936 = vmatmul.mubr.f32.gmra.mxu0 %v28
  %v937 = vpop.f32.mrf.mxu0
  %v938 = vadd.f32 %v628, %v937
  %v939 = vpop.f32.mrf.mxu0
  %940 = vmatprep.mubr.f32.mxu0 %v35
  %941 = vmatmul.mubr.f32.gmra.mxu0 %v34
  %v942 = vpop.f32.mrf.mxu0
  %v943 = vadd.f32 %v633, %v942
  %v944 = vpop.f32.mrf.mxu0
  %945 = vmatprep.mubr.f32.mxu0 %v41
  %946 = vmatmul.mubr.f32.gmra.mxu0 %v40
  %v947 = vpop.f32.mrf.mxu0
  %v948 = vadd.f32 %v638, %v947
  %v949 = vpop.f32.mrf.mxu0
  %950 = vmatprep.mubr.f32.mxu0 %v47
  %951 = vmatmul.mubr.f32.gmra.mxu0 %v46
  %v952 = vpop.f32.mrf.mxu0
  %v953 = vadd.f32 %v643, %v952
  %v954 = vpop.f32.mrf.mxu0
  %955 = vmatprep.mubr.f32.mxu0 %v53
  %956 = vmatmul.mubr.f32.gmra.mxu0 %v52
  %v957 = vpop.f32.mrf.mxu0
  %v958 = vadd.f32 %v648, %v957
  %v959 = vpop.f32.mrf.mxu0
  %960 = vmatprep.mubr.f32.mxu0 %v59
  %961 = vmatmul.mubr.f32.gmra.mxu0 %v58
  %v962 = vpop.f32.mrf.mxu0
  %v963 = vadd.f32 %v653, %v962
  %v964 = vpop.f32.mrf.mxu0
  %965 = vmatprep.mubr.f32.mxu0 %v65
  %966 = vmatmul.mubr.f32.gmra.mxu0 %v64
  %v967 = vpop.f32.mrf.mxu0
  %v968 = vadd.f32 %v658, %v967
  %v969 = vpop.f32.mrf.mxu0
  %970 = vmatprep.mubr.f32.mxu0 %v71
  %971 = vmatmul.mubr.f32.gmra.mxu0 %v70
  %v972 = vpop.f32.mrf.mxu0
  %v973 = vadd.f32 %v663, %v972
  %v974 = vpop.f32.mrf.mxu0
  %975 = vmatprep.mubr.f32.mxu0 %v77
  %976 = vmatmul.mubr.f32.gmra.mxu0 %v76
  %v977 = vpop.f32.mrf.mxu0
  %v978 = vadd.f32 %v668, %v977
  %v979 = vpop.f32.mrf.mxu0
  %980 = vmatprep.mubr.f32.mxu0 %v83
  %981 = vmatmul.mubr.f32.gmra.mxu0 %v82
  %v982 = vpop.f32.mrf.mxu0
  %v983 = vadd.f32 %v673, %v982
  %v984 = vpop.f32.mrf.mxu0
  %985 = vmatprep.mubr.f32.mxu0 %v89
  %986 = vmatmul.mubr.f32.gmra.mxu0 %v88
  %v987 = vpop.f32.mrf.mxu0
  %v988 = vadd.f32 %v678, %v987
  %v989 = vpop.f32.mrf.mxu0
  %990 = vmatprep.mubr.f32.mxu0 %v95
  %991 = vmatmul.mubr.f32.gmra.mxu0 %v94
  %v992 = vpop.f32.mrf.mxu0
  %v993 = vadd.f32 %v683, %v992
  %v994 = vpop.f32.mrf.mxu0
  %995 = vmatprep.mubr.f32.mxu0 %v101
  %996 = vmatmul.mubr.f32.gmra.mxu0 %v100
  %v997 = vpop.f32.mrf.mxu0
  %v998 = vadd.f32 %v688, %v997
  %v999 = vpop.f32.mrf.mxu0
  %1000 = vmatprep.mubr.f32.mxu0 %v107
  %1001 = vmatmul.mubr.f32.gmra.mxu0 %v106
  %v1002 = vpop.f32.mrf.mxu0
  %v1003 = vadd.f32 %v693, %v1002
  %v1004 = vpop.f32.mrf.mxu0
  %1005 = vmatprep.mubr.f32.mxu0 %v113
  %1006 = vmatmul.mubr.f32.gmra.mxu0 %v112
  %v1007 = vpop.f32.mrf.mxu0
  %v1008 = vadd.f32 %v698, %v1007
  %v1009 = vpop.f32.mrf.mxu0
  %1010 = vmatprep.mubr.f32.mxu0 %v119
  %1011 = vmatmul.mubr.f32.gmra.mxu0 %v118
  %v1012 = vpop.f32.mrf.mxu0
  %v1013 = vadd.f32 %v703, %v1012
  %v1014 = vpop.f32.mrf.mxu0
  %1015 = vmatprep.mubr.f32.mxu0 %v125
  %1016 = vmatmul.mubr.f32.gmra.mxu0 %v124
  %v1017 = vpop.f32.mrf.mxu0
  %v1018 = vadd.f32 %v708, %v1017
  %v1019 = vpop.f32.mrf.mxu0
  %1020 = vmatprep.mubr.f32.mxu0 %v131
  %1021 = vmatmul.mubr.f32.gmra.mxu0 %v130
  %v1022 = vpop.f32.mrf.mxu0
  %v1023 = vadd.f32 %v713, %v1022
  %v1024 = vpop.f32.mrf.mxu0
  %1025 = vmatprep.mubr.f32.mxu0 %v137
  %1026 = vmatmul.mubr.f32.gmra.mxu0 %v136
  %v1027 = vpop.f32.mrf.mxu0
  %v1028 = vadd.f32 %v718, %v1027
  %v1029 = vpop.f32.mrf.mxu0
  %1030 = vmatprep.mubr.f32.mxu0 %v143
  %1031 = vmatmul.mubr.f32.gmra.mxu0 %v142
  %v1032 = vpop.f32.mrf.mxu0
  %v1033 = vadd.f32 %v723, %v1032
  %v1034 = vpop.f32.mrf.mxu0
  %1035 = vmatprep.mubr.f32.mxu0 %v149
  %1036 = vmatmul.mubr.f32.gmra.mxu0 %v148
  %v1037 = vpop.f32.mrf.mxu0
  %v1038 = vadd.f32 %v728, %v1037
  %v1039 = vpop.f32.mrf.mxu0
  %1040 = vmatprep.mubr.f32.mxu0 %v155
  %1041 = vmatmul.mubr.f32.gmra.mxu0 %v154
  %v1042 = vpop.f32.mrf.mxu0
  %v1043 = vadd.f32 %v733, %v1042
  %v1044 = vpop.f32.mrf.mxu0
  %1045 = vmatprep.mubr.f32.mxu0 %v161
  %1046 = vmatmul.mubr.f32.gmra.mxu0 %v160
  %v1047 = vpop.f32.mrf.mxu0
  %v1048 = vadd.f32 %v738, %v1047
  %v1049 = vpop.f32.mrf.mxu0
  %1050 = vmatprep.mubr.f32.mxu0 %v167
  %1051 = vmatmul.mubr.f32.gmra.mxu0 %v166
  %v1052 = vpop.f32.mrf.mxu0
  %v1053 = vadd.f32 %v743, %v1052
  %v1054 = vpop.f32.mrf.mxu0
  %1055 = vmatprep.mubr.f32.mxu0 %v173
  %1056 = vmatmul.mubr.f32.gmra.mxu0 %v172
  %v1057 = vpop.f32.mrf.mxu0
  %v1058 = vadd.f32 %v748, %v1057
  %v1059 = vpop.f32.mrf.mxu0
  %1060 = vmatprep.mubr.f32.mxu0 %v179
  %1061 = vmatmul.mubr.f32.gmra.mxu0 %v178
  %v1062 = vpop.f32.mrf.mxu0
  %v1063 = vadd.f32 %v753, %v1062
  %v1064 = vpop.f32.mrf.mxu0
  %1065 = vmatprep.mubr.f32.mxu0 %v185
  %1066 = vmatmul.mubr.f32.gmra.mxu0 %v184
  %v1067 = vpop.f32.mrf.mxu0
  %v1068 = vadd.f32 %v758, %v1067
  %v1069 = vpop.f32.mrf.mxu0
  %1070 = vmatprep.mubr.f32.mxu0 %v191
  %1071 = vmatmul.mubr.f32.gmra.mxu0 %v190
  %v1072 = vpop.f32.mrf.mxu0
  %v1073 = vadd.f32 %v763, %v1072
  %v1074 = vpop.f32.mrf.mxu0
  %1075 = vmatprep.mubr.f32.mxu0 %v197
  %1076 = vmatmul.mubr.f32.gmra.mxu0 %v196
  %v1077 = vpop.f32.mrf.mxu0
  %v1078 = vadd.f32 %v768, %v1077
  %v1079 = vpop.f32.mrf.mxu0
  %1080 = vmatprep.mubr.f32.mxu0 %v203
  %1081 = vmatmul.mubr.f32.gmra.mxu0 %v202
  %v1082 = vpop.f32.mrf.mxu0
  %v1083 = vadd.f32 %v773, %v1082
  %v1084 = vpop.f32.mrf.mxu0
  %1085 = vmatprep.mubr.f32.mxu0 %v209
  %1086 = vmatmul.mubr.f32.gmra.mxu0 %v208
  %v1087 = vpop.f32.mrf.mxu0
  %v1088 = vadd.f32 %v778, %v1087
  %v1089 = vpop.f32.mrf.mxu0
  %1090 = vmatprep.mubr.f32.mxu0 %v215
  %1091 = vmatmul.mubr.f32.gmra.mxu0 %v214
  %v1092 = vpop.f32.mrf.mxu0
  %v1093 = vadd.f32 %v783, %v1092
  %v1094 = vpop.f32.mrf.mxu0
  %1095 = vmatprep.mubr.f32.mxu0 %v221
  %1096 = vmatmul.mubr.f32.gmra.mxu0 %v220
  %v1097 = vpop.f32.mrf.mxu0
  %v1098 = vadd.f32 %v788, %v1097
  %v1099 = vpop.f32.mrf.mxu0
  %1100 = vmatprep.mubr.f32.mxu0 %v227
  %1101 = vmatmul.mubr.f32.gmra.mxu0 %v226
  %v1102 = vpop.f32.mrf.mxu0
  %v1103 = vadd.f32 %v793, %v1102
  %v1104 = vpop.f32.mrf.mxu0
  %1105 = vmatprep.mubr.f32.mxu0 %v233
  %1106 = vmatmul.mubr.f32.gmra.mxu0 %v232
  %v1107 = vpop.f32.mrf.mxu0
  %v1108 = vadd.f32 %v798, %v1107
  %v1109 = vpop.f32.mrf.mxu0
  %1110 = vmatprep.mubr.f32.mxu0 %v239
  %1111 = vmatmul.mubr.f32.gmra.mxu0 %v238
  %v1112 = vpop.f32.mrf.mxu0
  %v1113 = vadd.f32 %v803, %v1112
  %v1114 = vpop.f32.mrf.mxu0
  %1115 = vmatprep.mubr.f32.mxu0 %v245
  %1116 = vmatmul.mubr.f32.gmra.mxu0 %v244
  %v1117 = vpop.f32.mrf.mxu0
  %v1118 = vadd.f32 %v808, %v1117
  %v1119 = vpop.f32.mrf.mxu0
  %1120 = vmatprep.mubr.f32.mxu0 %v251
  %1121 = vmatmul.mubr.f32.gmra.mxu0 %v250
  %v1122 = vpop.f32.mrf.mxu0
  %v1123 = vadd.f32 %v813, %v1122
  %v1124 = vpop.f32.mrf.mxu0
  %1125 = vmatprep.mubr.f32.mxu0 %v257
  %1126 = vmatmul.mubr.f32.gmra.mxu0 %v256
  %v1127 = vpop.f32.mrf.mxu0
  %v1128 = vadd.f32 %v818, %v1127
  %v1129 = vpop.f32.mrf.mxu0
  %1130 = vmatprep.mubr.f32.mxu0 %v263
  %1131 = vmatmul.mubr.f32.gmra.mxu0 %v262
  %v1132 = vpop.f32.mrf.mxu0
  %v1133 = vadd.f32 %v823, %v1132
  %v1134 = vpop.f32.mrf.mxu0
  %1135 = vmatprep.mubr.f32.mxu0 %v269
  %1136 = vmatmul.mubr.f32.gmra.mxu0 %v268
  %v1137 = vpop.f32.mrf.mxu0
  %v1138 = vadd.f32 %v828, %v1137
  %v1139 = vpop.f32.mrf.mxu0
  %1140 = vmatprep.mubr.f32.mxu0 %v275
  %1141 = vmatmul.mubr.f32.gmra.mxu0 %v274
  %v1142 = vpop.f32.mrf.mxu0
  %v1143 = vadd.f32 %v833, %v1142
  %v1144 = vpop.f32.mrf.mxu0
  %1145 = vmatprep.mubr.f32.mxu0 %v281
  %1146 = vmatmul.mubr.f32.gmra.mxu0 %v280
  %v1147 = vpop.f32.mrf.mxu0
  %v1148 = vadd.f32 %v838, %v1147
  %v1149 = vpop.f32.mrf.mxu0
  %1150 = vmatprep.mubr.f32.mxu0 %v287
  %1151 = vmatmul.mubr.f32.gmra.mxu0 %v286
  %v1152 = vpop.f32.mrf.mxu0
  %v1153 = vadd.f32 %v843, %v1152
  %v1154 = vpop.f32.mrf.mxu0
  %1155 = vmatprep.mubr.f32.mxu0 %v293
  %1156 = vmatmul.mubr.f32.gmra.mxu0 %v292
  %v1157 = vpop.f32.mrf.mxu0
  %v1158 = vadd.f32 %v848, %v1157
  %v1159 = vpop.f32.mrf.mxu0
  %1160 = vmatprep.mubr.f32.mxu0 %v299
  %1161 = vmatmul.mubr.f32.gmra.mxu0 %v298
  %v1162 = vpop.f32.mrf.mxu0
  %v1163 = vadd.f32 %v853, %v1162
  %v1164 = vpop.f32.mrf.mxu0
  %1165 = vmatprep.mubr.f32.mxu0 %v305
  %1166 = vmatmul.mubr.f32.gmra.mxu0 %v304
  %v1167 = vpop.f32.mrf.mxu0
  %v1168 = vadd.f32 %v858, %v1167
  %v1169 = vpop.f32.mrf.mxu0
  %1170 = vmatprep.mubr.f32.mxu0 %v311
  %1171 = vmatmul.mubr.f32.gmra.mxu0 %v310
  %v1172 = vpop.f32.mrf.mxu0
  %v1173 = vadd.f32 %v863, %v1172
  %v1174 = vpop.f32.mrf.mxu0
  %1175 = vdwg.mxu0
  %1176 = vmatprep.subr.mxu0 0.0
  %1177 = vmatpush1.msra.mxu0 %v393
  %1178 = vmatprep.subr.mxu0 0.0
  %1179 = vmatpush1.msra.mxu0 %v392
  %1180 = vmatprep.subr.mxu0 0.0
  %1181 = vmatpush1.msra.mxu0 %v391
  %1182 = vmatprep.subr.mxu0 0.0
  %1183 = vmatpush1.msra.mxu0 %v390
  %1184 = vmatprep.subr.mxu0 0.0
  %1185 = vmatpush1.msra.mxu0 %v389
  %1186 = vmatprep.subr.mxu0 0.0
  %1187 = vmatpush1.msra.mxu0 %v388
  %1188 = vmatprep.subr.mxu0 0.0
  %1189 = vmatpush1.msra.mxu0 %v387
  %1190 = vmatprep.subr.mxu0 0.0
  %1191 = vmatpush1.msra.mxu0 %v386
  %1192 = vmatprep.subr.mxu0 0.0
  %1193 = vmatpush1.msra.mxu0 %v385
  %1194 = vmatprep.subr.mxu0 0.0
  %1195 = vmatpush1.msra.mxu0 %v384
  %1196 = vmatprep.subr.mxu0 0.0
  %1197 = vmatpush1.msra.mxu0 %v383
  %1198 = vmatprep.subr.mxu0 0.0
  %1199 = vmatpush1.msra.mxu0 %v382
  %1200 = vmatprep.subr.mxu0 0.0
  %1201 = vmatpush1.msra.mxu0 %v381
  %1202 = vmatprep.subr.mxu0 0.0
  %1203 = vmatpush1.msra.mxu0 %v380
  %1204 = vmatprep.subr.mxu0 0.0
  %1205 = vmatpush1.msra.mxu0 %v379
  %1206 = vmatprep.subr.mxu0 0.0
  %1207 = vmatpush1.msra.mxu0 %v378
  %1208 = vmatprep.subr.mxu0 0.0
  %1209 = vmatpush2.msra.mxu0 0.0
  %1210 = vmatprep.subr.mxu0 0.0
  %1211 = vmatpush2.msra.mxu0 0.0
  %1212 = vmatprep.subr.mxu0 0.0
  %1213 = vmatpush2.msra.mxu0 0.0
  %1214 = vmatprep.subr.mxu0 0.0
  %1215 = vmatpush2.msra.mxu0 0.0
  %1216 = vmatprep.subr.mxu0 0.0
  %1217 = vmatpush2.msra.mxu0 0.0
  %1218 = vmatprep.subr.mxu0 0.0
  %1219 = vmatpush2.msra.mxu0 0.0
  %1220 = vmatprep.subr.mxu0 0.0
  %1221 = vmatpush2.msra.mxu0 0.0
  %1222 = vmatprep.subr.mxu0 0.0
  %1223 = vmatpush2.msra.mxu0 0.0
  %1224 = vmatprep.subr.mxu0 0.0
  %1225 = vmatpush2.msra.mxu0 0.0
  %1226 = vmatprep.subr.mxu0 0.0
  %1227 = vmatpush2.msra.mxu0 0.0
  %1228 = vmatprep.subr.mxu0 0.0
  %1229 = vmatpush2.msra.mxu0 0.0
  %1230 = vmatprep.subr.mxu0 0.0
  %1231 = vmatpush2.msra.mxu0 0.0
  %1232 = vmatprep.subr.mxu0 0.0
  %1233 = vmatpush2.msra.mxu0 0.0
  %1234 = vmatprep.subr.mxu0 0.0
  %1235 = vmatpush2.msra.mxu0 %v554
  %1236 = vmatprep.subr.mxu0 0.0
  %1237 = vmatpush2.msra.mxu0 %v395
  %1238 = vmatprep.subr.mxu0 0.0
  %1239 = vmatpush2.msra.mxu0 %v394
  %1240 = vmatprep.mubr.f32.mxu0 %v406
  %1241 = vmatmul.mubr.f32.gmra.mxu0 %v24
  %v1242 = vpop.f32.mrf.mxu0
  %v1243 = vadd.f32 %v933, %v1242
  %v1244 = vpop.f32.mrf.mxu0
  %1245 = vmatprep.mubr.f32.mxu0 %v409
  %1246 = vmatmul.mubr.f32.gmra.mxu0 %v30
  %v1247 = vpop.f32.mrf.mxu0
  %v1248 = vadd.f32 %v938, %v1247
  %v1249 = vpop.f32.mrf.mxu0
  %1250 = vmatprep.mubr.f32.mxu0 %v412
  %1251 = vmatmul.mubr.f32.gmra.mxu0 %v36
  %v1252 = vpop.f32.mrf.mxu0
  %v1253 = vadd.f32 %v943, %v1252
  %v1254 = vpop.f32.mrf.mxu0
  %1255 = vmatprep.mubr.f32.mxu0 %v415
  %1256 = vmatmul.mubr.f32.gmra.mxu0 %v42
  %v1257 = vpop.f32.mrf.mxu0
  %v1258 = vadd.f32 %v948, %v1257
  %v1259 = vpop.f32.mrf.mxu0
  %1260 = vmatprep.mubr.f32.mxu0 %v418
  %1261 = vmatmul.mubr.f32.gmra.mxu0 %v48
  %v1262 = vpop.f32.mrf.mxu0
  %v1263 = vadd.f32 %v953, %v1262
  %v1264 = vpop.f32.mrf.mxu0
  %1265 = vmatprep.mubr.f32.mxu0 %v421
  %1266 = vmatmul.mubr.f32.gmra.mxu0 %v54
  %v1267 = vpop.f32.mrf.mxu0
  %v1268 = vadd.f32 %v958, %v1267
  %v1269 = vpop.f32.mrf.mxu0
  %1270 = vmatprep.mubr.f32.mxu0 %v424
  %1271 = vmatmul.mubr.f32.gmra.mxu0 %v60
  %v1272 = vpop.f32.mrf.mxu0
  %v1273 = vadd.f32 %v963, %v1272
  %v1274 = vpop.f32.mrf.mxu0
  %1275 = vmatprep.mubr.f32.mxu0 %v427
  %1276 = vmatmul.mubr.f32.gmra.mxu0 %v66
  %v1277 = vpop.f32.mrf.mxu0
  %v1278 = vadd.f32 %v968, %v1277
  %v1279 = vpop.f32.mrf.mxu0
  %1280 = vmatprep.mubr.f32.mxu0 %v430
  %1281 = vmatmul.mubr.f32.gmra.mxu0 %v72
  %v1282 = vpop.f32.mrf.mxu0
  %v1283 = vadd.f32 %v973, %v1282
  %v1284 = vpop.f32.mrf.mxu0
  %1285 = vmatprep.mubr.f32.mxu0 %v433
  %1286 = vmatmul.mubr.f32.gmra.mxu0 %v78
  %v1287 = vpop.f32.mrf.mxu0
  %v1288 = vadd.f32 %v978, %v1287
  %v1289 = vpop.f32.mrf.mxu0
  %1290 = vmatprep.mubr.f32.mxu0 %v436
  %1291 = vmatmul.mubr.f32.gmra.mxu0 %v84
  %v1292 = vpop.f32.mrf.mxu0
  %v1293 = vadd.f32 %v983, %v1292
  %v1294 = vpop.f32.mrf.mxu0
  %1295 = vmatprep.mubr.f32.mxu0 %v439
  %1296 = vmatmul.mubr.f32.gmra.mxu0 %v90
  %v1297 = vpop.f32.mrf.mxu0
  %v1298 = vadd.f32 %v988, %v1297
  %v1299 = vpop.f32.mrf.mxu0
  %1300 = vmatprep.mubr.f32.mxu0 %v442
  %1301 = vmatmul.mubr.f32.gmra.mxu0 %v96
  %v1302 = vpop.f32.mrf.mxu0
  %v1303 = vadd.f32 %v993, %v1302
  %v1304 = vpop.f32.mrf.mxu0
  %1305 = vmatprep.mubr.f32.mxu0 %v445
  %1306 = vmatmul.mubr.f32.gmra.mxu0 %v102
  %v1307 = vpop.f32.mrf.mxu0
  %v1308 = vadd.f32 %v998, %v1307
  %v1309 = vpop.f32.mrf.mxu0
  %1310 = vmatprep.mubr.f32.mxu0 %v448
  %1311 = vmatmul.mubr.f32.gmra.mxu0 %v108
  %v1312 = vpop.f32.mrf.mxu0
  %v1313 = vadd.f32 %v1003, %v1312
  %v1314 = vpop.f32.mrf.mxu0
  %1315 = vmatprep.mubr.f32.mxu0 %v451
  %1316 = vmatmul.mubr.f32.gmra.mxu0 %v114
  %v1317 = vpop.f32.mrf.mxu0
  %v1318 = vadd.f32 %v1008, %v1317
  %v1319 = vpop.f32.mrf.mxu0
  %1320 = vmatprep.mubr.f32.mxu0 %v454
  %1321 = vmatmul.mubr.f32.gmra.mxu0 %v120
  %v1322 = vpop.f32.mrf.mxu0
  %v1323 = vadd.f32 %v1013, %v1322
  %v1324 = vpop.f32.mrf.mxu0
  %1325 = vmatprep.mubr.f32.mxu0 %v457
  %1326 = vmatmul.mubr.f32.gmra.mxu0 %v126
  %v1327 = vpop.f32.mrf.mxu0
  %v1328 = vadd.f32 %v1018, %v1327
  %v1329 = vpop.f32.mrf.mxu0
  %1330 = vmatprep.mubr.f32.mxu0 %v460
  %1331 = vmatmul.mubr.f32.gmra.mxu0 %v132
  %v1332 = vpop.f32.mrf.mxu0
  %v1333 = vadd.f32 %v1023, %v1332
  %v1334 = vpop.f32.mrf.mxu0
  %1335 = vmatprep.mubr.f32.mxu0 %v463
  %1336 = vmatmul.mubr.f32.gmra.mxu0 %v138
  %v1337 = vpop.f32.mrf.mxu0
  %v1338 = vadd.f32 %v1028, %v1337
  %v1339 = vpop.f32.mrf.mxu0
  %1340 = vmatprep.mubr.f32.mxu0 %v466
  %1341 = vmatmul.mubr.f32.gmra.mxu0 %v144
  %v1342 = vpop.f32.mrf.mxu0
  %v1343 = vadd.f32 %v1033, %v1342
  %v1344 = vpop.f32.mrf.mxu0
  %1345 = vmatprep.mubr.f32.mxu0 %v469
  %1346 = vmatmul.mubr.f32.gmra.mxu0 %v150
  %v1347 = vpop.f32.mrf.mxu0
  %v1348 = vadd.f32 %v1038, %v1347
  %v1349 = vpop.f32.mrf.mxu0
  %1350 = vmatprep.mubr.f32.mxu0 %v472
  %1351 = vmatmul.mubr.f32.gmra.mxu0 %v156
  %v1352 = vpop.f32.mrf.mxu0
  %v1353 = vadd.f32 %v1043, %v1352
  %v1354 = vpop.f32.mrf.mxu0
  %1355 = vmatprep.mubr.f32.mxu0 %v475
  %1356 = vmatmul.mubr.f32.gmra.mxu0 %v162
  %v1357 = vpop.f32.mrf.mxu0
  %v1358 = vadd.f32 %v1048, %v1357
  %v1359 = vpop.f32.mrf.mxu0
  %1360 = vmatprep.mubr.f32.mxu0 %v478
  %1361 = vmatmul.mubr.f32.gmra.mxu0 %v168
  %v1362 = vpop.f32.mrf.mxu0
  %v1363 = vadd.f32 %v1053, %v1362
  %v1364 = vpop.f32.mrf.mxu0
  %1365 = vmatprep.mubr.f32.mxu0 %v481
  %1366 = vmatmul.mubr.f32.gmra.mxu0 %v174
  %v1367 = vpop.f32.mrf.mxu0
  %v1368 = vadd.f32 %v1058, %v1367
  %v1369 = vpop.f32.mrf.mxu0
  %1370 = vmatprep.mubr.f32.mxu0 %v484
  %1371 = vmatmul.mubr.f32.gmra.mxu0 %v180
  %v1372 = vpop.f32.mrf.mxu0
  %v1373 = vadd.f32 %v1063, %v1372
  %v1374 = vpop.f32.mrf.mxu0
  %1375 = vmatprep.mubr.f32.mxu0 %v487
  %1376 = vmatmul.mubr.f32.gmra.mxu0 %v186
  %v1377 = vpop.f32.mrf.mxu0
  %v1378 = vadd.f32 %v1068, %v1377
  %v1379 = vpop.f32.mrf.mxu0
  %1380 = vmatprep.mubr.f32.mxu0 %v490
  %1381 = vmatmul.mubr.f32.gmra.mxu0 %v192
  %v1382 = vpop.f32.mrf.mxu0
  %v1383 = vadd.f32 %v1073, %v1382
  %v1384 = vpop.f32.mrf.mxu0
  %1385 = vmatprep.mubr.f32.mxu0 %v493
  %1386 = vmatmul.mubr.f32.gmra.mxu0 %v198
  %v1387 = vpop.f32.mrf.mxu0
  %v1388 = vadd.f32 %v1078, %v1387
  %v1389 = vpop.f32.mrf.mxu0
  %1390 = vmatprep.mubr.f32.mxu0 %v496
  %1391 = vmatmul.mubr.f32.gmra.mxu0 %v204
  %v1392 = vpop.f32.mrf.mxu0
  %v1393 = vadd.f32 %v1083, %v1392
  %v1394 = vpop.f32.mrf.mxu0
  %1395 = vmatprep.mubr.f32.mxu0 %v499
  %1396 = vmatmul.mubr.f32.gmra.mxu0 %v210
  %v1397 = vpop.f32.mrf.mxu0
  %v1398 = vadd.f32 %v1088, %v1397
  %v1399 = vpop.f32.mrf.mxu0
  %1400 = vmatprep.mubr.f32.mxu0 %v502
  %1401 = vmatmul.mubr.f32.gmra.mxu0 %v216
  %v1402 = vpop.f32.mrf.mxu0
  %v1403 = vadd.f32 %v1093, %v1402
  %v1404 = vpop.f32.mrf.mxu0
  %1405 = vmatprep.mubr.f32.mxu0 %v505
  %1406 = vmatmul.mubr.f32.gmra.mxu0 %v222
  %v1407 = vpop.f32.mrf.mxu0
  %v1408 = vadd.f32 %v1098, %v1407
  %v1409 = vpop.f32.mrf.mxu0
  %1410 = vmatprep.mubr.f32.mxu0 %v508
  %1411 = vmatmul.mubr.f32.gmra.mxu0 %v228
  %v1412 = vpop.f32.mrf.mxu0
  %v1413 = vadd.f32 %v1103, %v1412
  %v1414 = vpop.f32.mrf.mxu0
  %1415 = vmatprep.mubr.f32.mxu0 %v511
  %1416 = vmatmul.mubr.f32.gmra.mxu0 %v234
  %v1417 = vpop.f32.mrf.mxu0
  %v1418 = vadd.f32 %v1108, %v1417
  %v1419 = vpop.f32.mrf.mxu0
  %1420 = vmatprep.mubr.f32.mxu0 %v514
  %1421 = vmatmul.mubr.f32.gmra.mxu0 %v240
  %v1422 = vpop.f32.mrf.mxu0
  %v1423 = vadd.f32 %v1113, %v1422
  %v1424 = vpop.f32.mrf.mxu0
  %1425 = vmatprep.mubr.f32.mxu0 %v517
  %1426 = vmatmul.mubr.f32.gmra.mxu0 %v246
  %v1427 = vpop.f32.mrf.mxu0
  %v1428 = vadd.f32 %v1118, %v1427
  %v1429 = vpop.f32.mrf.mxu0
  %1430 = vmatprep.mubr.f32.mxu0 %v520
  %1431 = vmatmul.mubr.f32.gmra.mxu0 %v252
  %v1432 = vpop.f32.mrf.mxu0
  %v1433 = vadd.f32 %v1123, %v1432
  %v1434 = vpop.f32.mrf.mxu0
  %1435 = vmatprep.mubr.f32.mxu0 %v523
  %1436 = vmatmul.mubr.f32.gmra.mxu0 %v258
  %v1437 = vpop.f32.mrf.mxu0
  %v1438 = vadd.f32 %v1128, %v1437
  %v1439 = vpop.f32.mrf.mxu0
  %1440 = vmatprep.mubr.f32.mxu0 %v526
  %1441 = vmatmul.mubr.f32.gmra.mxu0 %v264
  %v1442 = vpop.f32.mrf.mxu0
  %v1443 = vadd.f32 %v1133, %v1442
  %v1444 = vpop.f32.mrf.mxu0
  %1445 = vmatprep.mubr.f32.mxu0 %v529
  %1446 = vmatmul.mubr.f32.gmra.mxu0 %v270
  %v1447 = vpop.f32.mrf.mxu0
  %v1448 = vadd.f32 %v1138, %v1447
  %v1449 = vpop.f32.mrf.mxu0
  %1450 = vmatprep.mubr.f32.mxu0 %v532
  %1451 = vmatmul.mubr.f32.gmra.mxu0 %v276
  %v1452 = vpop.f32.mrf.mxu0
  %v1453 = vadd.f32 %v1143, %v1452
  %v1454 = vpop.f32.mrf.mxu0
  %1455 = vmatprep.mubr.f32.mxu0 %v535
  %1456 = vmatmul.mubr.f32.gmra.mxu0 %v282
  %v1457 = vpop.f32.mrf.mxu0
  %v1458 = vadd.f32 %v1148, %v1457
  %v1459 = vpop.f32.mrf.mxu0
  %1460 = vmatprep.mubr.f32.mxu0 %v538
  %1461 = vmatmul.mubr.f32.gmra.mxu0 %v288
  %v1462 = vpop.f32.mrf.mxu0
  %v1463 = vadd.f32 %v1153, %v1462
  %v1464 = vpop.f32.mrf.mxu0
  %1465 = vmatprep.mubr.f32.mxu0 %v541
  %1466 = vmatmul.mubr.f32.gmra.mxu0 %v294
  %v1467 = vpop.f32.mrf.mxu0
  %v1468 = vadd.f32 %v1158, %v1467
  %v1469 = vpop.f32.mrf.mxu0
  %1470 = vmatprep.mubr.f32.mxu0 %v544
  %1471 = vmatmul.mubr.f32.gmra.mxu0 %v300
  %v1472 = vpop.f32.mrf.mxu0
  %v1473 = vadd.f32 %v1163, %v1472
  %v1474 = vpop.f32.mrf.mxu0
  %1475 = vmatprep.mubr.f32.mxu0 %v547
  %1476 = vmatmul.mubr.f32.gmra.mxu0 %v306
  %v1477 = vpop.f32.mrf.mxu0
  %v1478 = vadd.f32 %v1168, %v1477
  %v1479 = vpop.f32.mrf.mxu0
  %1480 = vmatprep.mubr.f32.mxu0 %v550
  %1481 = vmatmul.mubr.f32.gmra.mxu0 %v312
  %v1482 = vpop.f32.mrf.mxu0
  %v1483 = vadd.f32 %v1173, %v1482
  %v1484 = vpop.f32.mrf.mxu0
  %1485 = vdwg.mxu0
  %v1486 = vmax.f32 %v1243, 0.0
  %v1487 = vmax.f32 %v1248, 0.0
  %v1488 = vmax.f32 %v1253, 0.0
  %v1489 = vmax.f32 %v1258, 0.0
  %v1490 = vmax.f32 %v1263, 0.0
  %v1491 = vmax.f32 %v1268, 0.0
  %v1492 = vmax.f32 %v1273, 0.0
  %v1493 = vmax.f32 %v1278, 0.0
  %v1494 = vmax.f32 %v1283, 0.0
  %v1495 = vmax.f32 %v1288, 0.0
  %v1496 = vmax.f32 %v1293, 0.0
  %v1497 = vmax.f32 %v1298, 0.0
  %v1498 = vmax.f32 %v1303, 0.0
  %v1499 = vmax.f32 %v1308, 0.0
  %v1500 = vmax.f32 %v1313, 0.0
  %v1501 = vmax.f32 %v1318, 0.0
  %v1502 = vmax.f32 %v1323, 0.0
  %v1503 = vmax.f32 %v1328, 0.0
  %v1504 = vmax.f32 %v1333, 0.0
  %v1505 = vmax.f32 %v1338, 0.0
  %v1506 = vmax.f32 %v1343, 0.0
  %v1507 = vmax.f32 %v1348, 0.0
  %v1508 = vmax.f32 %v1353, 0.0
  %v1509 = vmax.f32 %v1358, 0.0
  %v1510 = vmax.f32 %v1363, 0.0
  %v1511 = vmax.f32 %v1368, 0.0
  %v1512 = vmax.f32 %v1373, 0.0
  %v1513 = vmax.f32 %v1378, 0.0
  %v1514 = vmax.f32 %v1383, 0.0
  %v1515 = vmax.f32 %v1388, 0.0
  %v1516 = vmax.f32 %v1393, 0.0
  %v1517 = vmax.f32 %v1398, 0.0
  %v1518 = vmax.f32 %v1403, 0.0
  %v1519 = vmax.f32 %v1408, 0.0
  %v1520 = vmax.f32 %v1413, 0.0
  %v1521 = vmax.f32 %v1418, 0.0
  %v1522 = vmax.f32 %v1423, 0.0
  %v1523 = vmax.f32 %v1428, 0.0
  %v1524 = vmax.f32 %v1433, 0.0
  %v1525 = vmax.f32 %v1438, 0.0
  %v1526 = vmax.f32 %v1443, 0.0
  %v1527 = vmax.f32 %v1448, 0.0
  %v1528 = vmax.f32 %v1453, 0.0
  %v1529 = vmax.f32 %v1458, 0.0
  %v1530 = vmax.f32 %v1463, 0.0
  %v1531 = vmax.f32 %v1468, 0.0
  %v1532 = vmax.f32 %v1473, 0.0
  %v1533 = vmax.f32 %v1478, 0.0
  %v1534 = vmax.f32 %v1483, 0.0
  %v1535 = vld [vmem:[%s3] sm:$0x1]
  %v1537 = vlaneseq
  %v1538 = vshrl.u32 %v1537, 7
  %v1539 = vsub.s32 0, %v1538
  %v1540 = vrot.slane %v1535, %v1539
  %v1542 = vmul.f32 %v1486, %v1540
  %v1543 = vmul.f32 %v1487, %v1540
  %v1544 = vmul.f32 %v1488, %v1540
  %v1545 = vmul.f32 %v1489, %v1540
  %v1546 = vmul.f32 %v1490, %v1540
  %v1547 = vmul.f32 %v1491, %v1540
  %v1548 = vmul.f32 %v1492, %v1540
  %v1549 = vmul.f32 %v1493, %v1540
  %v1550 = vmul.f32 %v1494, %v1540
  %v1551 = vmul.f32 %v1495, %v1540
  %v1552 = vmul.f32 %v1496, %v1540
  %v1553 = vmul.f32 %v1497, %v1540
  %v1554 = vmul.f32 %v1498, %v1540
  %v1555 = vmul.f32 %v1499, %v1540
  %v1556 = vmul.f32 %v1500, %v1540
  %v1557 = vmul.f32 %v1501, %v1540
  %v1558 = vmul.f32 %v1502, %v1540
  %v1559 = vmul.f32 %v1503, %v1540
  %v1560 = vmul.f32 %v1504, %v1540
  %v1561 = vmul.f32 %v1505, %v1540
  %v1562 = vmul.f32 %v1506, %v1540
  %v1563 = vmul.f32 %v1507, %v1540
  %v1564 = vmul.f32 %v1508, %v1540
  %v1565 = vmul.f32 %v1509, %v1540
  %v1566 = vmul.f32 %v1510, %v1540
  %v1567 = vmul.f32 %v1511, %v1540
  %v1568 = vmul.f32 %v1512, %v1540
  %v1569 = vmul.f32 %v1513, %v1540
  %v1570 = vmul.f32 %v1514, %v1540
  %v1571 = vmul.f32 %v1515, %v1540
  %v1572 = vmul.f32 %v1516, %v1540
  %v1573 = vmul.f32 %v1517, %v1540
  %v1574 = vmul.f32 %v1518, %v1540
  %v1575 = vmul.f32 %v1519, %v1540
  %v1576 = vmul.f32 %v1520, %v1540
  %v1577 = vmul.f32 %v1521, %v1540
  %v1578 = vmul.f32 %v1522, %v1540
  %v1579 = vmul.f32 %v1523, %v1540
  %v1580 = vmul.f32 %v1524, %v1540
  %v1581 = vmul.f32 %v1525, %v1540
  %v1582 = vmul.f32 %v1526, %v1540
  %v1583 = vmul.f32 %v1527, %v1540
  %v1584 = vmul.f32 %v1528, %v1540
  %v1585 = vmul.f32 %v1529, %v1540
  %v1586 = vmul.f32 %v1530, %v1540
  %v1587 = vmul.f32 %v1531, %v1540
  %v1588 = vmul.f32 %v1532, %v1540
  %v1589 = vmul.f32 %v1533, %v1540
  %v1590 = vmul.f32 %v1534, %v1540
  %v1591 = vld [vmem:[%s4] sm:$0x1]
  %v1593 = vlaneseq
  %v1594 = vshrl.u32 %v1593, 7
  %v1595 = vsub.s32 0, %v1594
  %v1596 = vrot.slane %v1591, %v1595
  %v1598 = vadd.f32 %v1542, %v1596
  %v1599 = vadd.f32 %v1543, %v1596
  %v1600 = vadd.f32 %v1544, %v1596
  %v1601 = vadd.f32 %v1545, %v1596
  %v1602 = vadd.f32 %v1546, %v1596
  %v1603 = vadd.f32 %v1547, %v1596
  %v1604 = vadd.f32 %v1548, %v1596
  %v1605 = vadd.f32 %v1549, %v1596
  %v1606 = vadd.f32 %v1550, %v1596
  %v1607 = vadd.f32 %v1551, %v1596
  %v1608 = vadd.f32 %v1552, %v1596
  %v1609 = vadd.f32 %v1553, %v1596
  %v1610 = vadd.f32 %v1554, %v1596
  %v1611 = vadd.f32 %v1555, %v1596
  %v1612 = vadd.f32 %v1556, %v1596
  %v1613 = vadd.f32 %v1557, %v1596
  %v1614 = vadd.f32 %v1558, %v1596
  %v1615 = vadd.f32 %v1559, %v1596
  %v1616 = vadd.f32 %v1560, %v1596
  %v1617 = vadd.f32 %v1561, %v1596
  %v1618 = vadd.f32 %v1562, %v1596
  %v1619 = vadd.f32 %v1563, %v1596
  %v1620 = vadd.f32 %v1564, %v1596
  %v1621 = vadd.f32 %v1565, %v1596
  %v1622 = vadd.f32 %v1566, %v1596
  %v1623 = vadd.f32 %v1567, %v1596
  %v1624 = vadd.f32 %v1568, %v1596
  %v1625 = vadd.f32 %v1569, %v1596
  %v1626 = vadd.f32 %v1570, %v1596
  %v1627 = vadd.f32 %v1571, %v1596
  %v1628 = vadd.f32 %v1572, %v1596
  %v1629 = vadd.f32 %v1573, %v1596
  %v1630 = vadd.f32 %v1574, %v1596
  %v1631 = vadd.f32 %v1575, %v1596
  %v1632 = vadd.f32 %v1576, %v1596
  %v1633 = vadd.f32 %v1577, %v1596
  %v1634 = vadd.f32 %v1578, %v1596
  %v1635 = vadd.f32 %v1579, %v1596
  %v1636 = vadd.f32 %v1580, %v1596
  %v1637 = vadd.f32 %v1581, %v1596
  %v1638 = vadd.f32 %v1582, %v1596
  %v1639 = vadd.f32 %v1583, %v1596
  %v1640 = vadd.f32 %v1584, %v1596
  %v1641 = vadd.f32 %v1585, %v1596
  %v1642 = vadd.f32 %v1586, %v1596
  %v1643 = vadd.f32 %v1587, %v1596
  %v1644 = vadd.f32 %v1588, %v1596
  %v1645 = vadd.f32 %v1589, %v1596
  %v1646 = vadd.f32 %v1590, %v1596
  %vm1647 = vcmask 490496
  %1648 = vst.msk [vmem:[%s5] sm:$0xff] %vm1647, %v1598
  %1649 = vst.msk [vmem:[%s5 + $0x8] sm:$0xff] %vm1647, %v1599
  %1650 = vst.msk [vmem:[%s5 + $0x10] sm:$0xff] %vm1647, %v1600
  %1651 = vst.msk [vmem:[%s5 + $0x18] sm:$0xff] %vm1647, %v1601
  %1652 = vst.msk [vmem:[%s5 + $0x20] sm:$0xff] %vm1647, %v1602
  %1653 = vst.msk [vmem:[%s5 + $0x28] sm:$0xff] %vm1647, %v1603
  %1654 = vst.msk [vmem:[%s5 + $0x30] sm:$0xff] %vm1647, %v1604
  %1655 = vst.msk [vmem:[%s5 + $0x38] sm:$0xff] %vm1647, %v1605
  %1656 = vst.msk [vmem:[%s5 + $0x40] sm:$0xff] %vm1647, %v1606
  %1657 = vst.msk [vmem:[%s5 + $0x48] sm:$0xff] %vm1647, %v1607
  %1658 = vst.msk [vmem:[%s5 + $0x50] sm:$0xff] %vm1647, %v1608
  %1659 = vst.msk [vmem:[%s5 + $0x58] sm:$0xff] %vm1647, %v1609
  %1660 = vst.msk [vmem:[%s5 + $0x60] sm:$0xff] %vm1647, %v1610
  %1661 = vst.msk [vmem:[%s5 + $0x68] sm:$0xff] %vm1647, %v1611
  %1662 = vst.msk [vmem:[%s5 + $0x70] sm:$0xff] %vm1647, %v1612
  %1663 = vst.msk [vmem:[%s5 + $0x78] sm:$0xff] %vm1647, %v1613
  %1664 = vst.msk [vmem:[%s5 + $0x80] sm:$0xff] %vm1647, %v1614
  %1665 = vst.msk [vmem:[%s5 + $0x88] sm:$0xff] %vm1647, %v1615
  %1666 = vst.msk [vmem:[%s5 + $0x90] sm:$0xff] %vm1647, %v1616
  %1667 = vst.msk [vmem:[%s5 + $0x98] sm:$0xff] %vm1647, %v1617
  %1668 = vst.msk [vmem:[%s5 + $0xa0] sm:$0xff] %vm1647, %v1618
  %1669 = vst.msk [vmem:[%s5 + $0xa8] sm:$0xff] %vm1647, %v1619
  %1670 = vst.msk [vmem:[%s5 + $0xb0] sm:$0xff] %vm1647, %v1620
  %1671 = vst.msk [vmem:[%s5 + $0xb8] sm:$0xff] %vm1647, %v1621
  %1672 = vst.msk [vmem:[%s5 + $0xc0] sm:$0xff] %vm1647, %v1622
  %1673 = vst.msk [vmem:[%s5 + $0xc8] sm:$0xff] %vm1647, %v1623
  %1674 = vst.msk [vmem:[%s5 + $0xd0] sm:$0xff] %vm1647, %v1624
  %1675 = vst.msk [vmem:[%s5 + $0xd8] sm:$0xff] %vm1647, %v1625
  %1676 = vst.msk [vmem:[%s5 + $0xe0] sm:$0xff] %vm1647, %v1626
  %1677 = vst.msk [vmem:[%s5 + $0xe8] sm:$0xff] %vm1647, %v1627
  %1678 = vst.msk [vmem:[%s5 + $0xf0] sm:$0xff] %vm1647, %v1628
  %1679 = vst.msk [vmem:[%s5 + $0xf8] sm:$0xff] %vm1647, %v1629
  %1680 = vst.msk [vmem:[%s5 + $0x100] sm:$0xff] %vm1647, %v1630
  %1681 = vst.msk [vmem:[%s5 + $0x108] sm:$0xff] %vm1647, %v1631
  %1682 = vst.msk [vmem:[%s5 + $0x110] sm:$0xff] %vm1647, %v1632
  %1683 = vst.msk [vmem:[%s5 + $0x118] sm:$0xff] %vm1647, %v1633
  %1684 = vst.msk [vmem:[%s5 + $0x120] sm:$0xff] %vm1647, %v1634
  %1685 = vst.msk [vmem:[%s5 + $0x128] sm:$0xff] %vm1647, %v1635
  %1686 = vst.msk [vmem:[%s5 + $0x130] sm:$0xff] %vm1647, %v1636
  %1687 = vst.msk [vmem:[%s5 + $0x138] sm:$0xff] %vm1647, %v1637
  %1688 = vst.msk [vmem:[%s5 + $0x140] sm:$0xff] %vm1647, %v1638
  %1689 = vst.msk [vmem:[%s5 + $0x148] sm:$0xff] %vm1647, %v1639
  %1690 = vst.msk [vmem:[%s5 + $0x150] sm:$0xff] %vm1647, %v1640
  %1691 = vst.msk [vmem:[%s5 + $0x158] sm:$0xff] %vm1647, %v1641
  %1692 = vst.msk [vmem:[%s5 + $0x160] sm:$0xff] %vm1647, %v1642
  %1693 = vst.msk [vmem:[%s5 + $0x168] sm:$0xff] %vm1647, %v1643
  %1694 = vst.msk [vmem:[%s5 + $0x170] sm:$0xff] %vm1647, %v1644
  %1695 = vst.msk [vmem:[%s5 + $0x178] sm:$0xff] %vm1647, %v1645
  %1696 = vst.msk [vmem:[%s5 + $0x180] sm:$0xff] %vm1647, %v1646
  // Predicated region
  $region22: #{forward.6} parent=0 // pred_check
    _
  $region23: #{forward.6} parent=0 // pred_check_branch
    %1698 = sbr.rel (0) target = $region25
  $region24: #{forward.6} parent=0 // pred_region
    _
  $region25: #{forward.6} parent=0 // pred_fallthru
    _
  // Predicated region
  $region26: #{forward.6} parent=0 // pred_check
    _
  $region27: #{forward.6} parent=0 // pred_check_branch
    %1700 = sbr.rel (0) target = $region29
  $region28: #{forward.6} parent=0 // pred_region
    _
  $region29: #{forward.6} parent=0 // pred_fallthru
    _

// kernel: forward.7
$region0: #{forward.7}
  #allocation0 [shape = 'u32[]', space=smem, size = 0x4, offset = 0x4, fixed_abs, tag = 'smem constant byte address 0x4 - core index']
  #allocation1 [shape = 'u32[144,128]{1,0:T(1,128)}', space=vmem, size = 0x12000, scoped, tag = 'internal scratch']
  #allocation2 [shape = 'f32[8,512]{1,0:T(8,128)}', space=vmem, size = 0x4000, scoped, tag = 'scratch operand']
  %s0 = inlined_call_operand.vmem [shape: bf16[8,11776], index: 0, kind: input, shape index: {}]
  %s1 = inlined_call_operand.vmem [shape: bf16[11776,1024], index: 1, kind: input, shape index: {}]
  %s2 = inlined_call_operand.vmem [shape: f32[1,1024], index: 2, kind: input, shape index: {}]
  %s3 = inlined_call_operand.vmem [shape: f32[8,1024], index: 3, kind: output, shape index: {}]
  %s4 = sld [smem:[#allocation0]]
  $region76: #{forward.7} parent=0
    _
  %s6 = ssub.s32 1, %s4
  %s7 = scalar_select 0, %s6, %s4
  $region1: #{forward.7} parent=0
    #allocation3 [shape = 'u8[6029312]{0}', space=vmem, size = 0x5c0000, scoped, tag = 'input window, operand 1']
    loop: start=0, step=1, limit=10
    $region2: #{forward.7} parent=1 // loop_pre_header
      _
    $region3: #{forward.7} parent=1 // loop_header
      %s9 = sphi 0, %s13
      %p10 = scmp.ge.s32.totalorder %s9, 10
      %s16 = sphi 0, %s35
      %s17 = sphi 0, %s31
      %s18 = sphi 0, %s27
      %s19 = sphi 0, %s16
      %s20 = sphi 0, %s17
      %s21 = sphi 0, %s18
      %s22 = sphi 0, %s19
      %s23 = sphi 0, %s20
      %s24 = sphi 0, %s21
      %s40 = sphi 0, %s42
      %s43 = sphi 0, %s40
      %s44 = sphi 0, %s43
      %s60 = sphi 0, %s44
      %s68 = sphi 0, %s70
      %s71 = sphi 0, %s68
      %s72 = sphi 0, %s71
      %s88 = sphi 0, %s72
      %s94 = sphi 0, %s96
      %s97 = sphi 0, %s94
      %s98 = sphi 0, %s97
      %s114 = sphi 0, %s98
      %s122 = sphi 0, %s124
      %s125 = sphi 0, %s122
      %s126 = sphi 0, %s125
      %s142 = sphi 0, %s126
    $region4: #{forward.7} parent=1 // loop_header_branch
      %12 = sbr.rel (%p10) target = $region8
    $region5: #{forward.7} parent=1 // loop_body
      %s14 = ssub.s32 %s9, 1
      %s15 = ssub.s32 %s9, 2
      %s25 = sadd.s32 1, %s18
      %p26 = scmp.ge.s32.totalorder %s25, 4
      %s27 = scalar_select %p26, 0, %s25
      %s28 = sadd.s32 1, %s17
      %s29 = scalar_select %p26, %s28, %s17
      %p30 = scmp.ge.s32.totalorder %s29, 2
      %s31 = scalar_select %p30, 0, %s29
      %s32 = sadd.s32 1, %s16
      %s33 = scalar_select %p30, %s32, %s16
      %p34 = scmp.ge.s32.totalorder %s33, 1
      %s35 = scalar_select %p34, 0, %s33
      %s36 = ssub.s32 %s16, %s35
      %s37 = ssub.s32 %s18, %s27
      %s38 = sor.u32 %s36, %s37
      %p39 = scmp.eq.s32.totalorder %s38, 0
      %s41 = sadd.s32 %s40, 1
      %s42 = scalar_select %p39, %s40, %s41
      %p45 = pneg %p39
      %p46 = scmp.eq.s32.totalorder %s9, 7
      %p47 = por %p45, %p46
      %p48 = scmp.ne.s32.totalorder %s40, %s43
      %p49 = scmp.eq.s32.totalorder %s9, 0
      %p50 = por %p48, %p49
      %p51 = scmp.ne.s32.totalorder %s40, %s43
      %p52 = scmp.eq.s32.totalorder %s14, 7
      %p53 = por %p51, %p52
      %p54 = scmp.ne.s32.totalorder %s43, %s44
      %p55 = scmp.eq.s32.totalorder %s14, 0
      %p56 = por %p54, %p55
      %p57 = scmp.ne.s32.totalorder %s43, %s44
      %p58 = scmp.eq.s32.totalorder %s15, 7
      %p59 = por %p57, %p58
      %p61 = scmp.ne.s32.totalorder %s44, %s60
      %p62 = scmp.eq.s32.totalorder %s15, 0
      %p63 = por %p61, %p62
      %s64 = ssub.s32 %s18, %s27
      %s65 = ssub.s32 %s17, %s31
      %s66 = sor.u32 %s64, %s65
      %p67 = scmp.eq.s32.totalorder %s66, 0
      %s69 = sadd.s32 %s68, 1
      %s70 = scalar_select %p67, %s68, %s69
      %p73 = pneg %p67
      %p74 = scmp.eq.s32.totalorder %s9, 7
      %p75 = por %p73, %p74
      %p76 = scmp.ne.s32.totalorder %s68, %s71
      %p77 = scmp.eq.s32.totalorder %s9, 0
      %p78 = por %p76, %p77
      %p79 = scmp.ne.s32.totalorder %s68, %s71
      %p80 = scmp.eq.s32.totalorder %s14, 7
      %p81 = por %p79, %p80
      %p82 = scmp.ne.s32.totalorder %s71, %s72
      %p83 = scmp.eq.s32.totalorder %s14, 0
      %p84 = por %p82, %p83
      %p85 = scmp.ne.s32.totalorder %s71, %s72
      %p86 = scmp.eq.s32.totalorder %s15, 7
      %p87 = por %p85, %p86
      %p89 = scmp.ne.s32.totalorder %s72, %s88
      %p90 = scmp.eq.s32.totalorder %s15, 0
      %p91 = por %p89, %p90
      %s92 = ssub.s32 %s17, %s31
      %p93 = scmp.eq.s32.totalorder %s92, 0
      %s95 = sadd.s32 %s94, 1
      %s96 = scalar_select %p93, %s94, %s95
      %p99 = pneg %p93
      %p100 = scmp.eq.s32.totalorder %s9, 7
      %p101 = por %p99, %p100
      %p102 = scmp.ne.s32.totalorder %s94, %s97
      %p103 = scmp.eq.s32.totalorder %s9, 0
      %p104 = por %p102, %p103
      %p105 = scmp.ne.s32.totalorder %s94, %s97
      %p106 = scmp.eq.s32.totalorder %s14, 7
      %p107 = por %p105, %p106
      %p108 = scmp.ne.s32.totalorder %s97, %s98
      %p109 = scmp.eq.s32.totalorder %s14, 0
      %p110 = por %p108, %p109
      %p111 = scmp.ne.s32.totalorder %s97, %s98
      %p112 = scmp.eq.s32.totalorder %s15, 7
      %p113 = por %p111, %p112
      %p115 = scmp.ne.s32.totalorder %s98, %s114
      %p116 = scmp.eq.s32.totalorder %s15, 0
      %p117 = por %p115, %p116
      %s118 = ssub.s32 %s16, %s35
      %s119 = ssub.s32 %s17, %s31
      %s120 = sor.u32 %s118, %s119
      %p121 = scmp.eq.s32.totalorder %s120, 0
      %s123 = sadd.s32 %s122, 1
      %s124 = scalar_select %p121, %s122, %s123
      %p127 = pneg %p121
      %p128 = scmp.eq.s32.totalorder %s9, 7
      %p129 = por %p127, %p128
      %p130 = scmp.ne.s32.totalorder %s122, %s125
      %p131 = scmp.eq.s32.totalorder %s9, 0
      %p132 = por %p130, %p131
      %p133 = scmp.ne.s32.totalorder %s122, %s125
      %p134 = scmp.eq.s32.totalorder %s14, 7
      %p135 = por %p133, %p134
      %p136 = scmp.ne.s32.totalorder %s125, %s126
      %p137 = scmp.eq.s32.totalorder %s14, 0
      %p138 = por %p136, %p137
      %p139 = scmp.ne.s32.totalorder %s125, %s126
      %p140 = scmp.eq.s32.totalorder %s15, 7
      %p141 = por %p139, %p140
      %p143 = scmp.ne.s32.totalorder %s126, %s142
      %p144 = scmp.eq.s32.totalorder %s15, 0
      %p145 = por %p143, %p144
      %p146 = scmp.le.s32.totalorder 1, %s9
      %p147 = scmp.lt.s32.totalorder %s9, 9
      %p148 = pnand %p146, %p147
      %p149 = pneg %p148
      // Predicated region
      $region9: #{forward.7} parent=5 // pred_check
        _
      $region10: #{forward.7} parent=5 // pred_check_branch
        %151 = sbr.rel (%p148) target = $region12
      $region11: #{forward.7} parent=5 // pred_region
        %s152 = ssub.s32 %s9, 1
      $region12: #{forward.7} parent=5 // pred_fallthru
        _
      %p153 = scmp.lt.s32.totalorder %s9, 8
      // Predicated region
      $region13: #{forward.7} parent=5 // pred_check
        %p154 = pneg %p153
      $region14: #{forward.7} parent=5 // pred_check_branch
        %156 = sbr.rel (%p154) target = $region16
      $region15: #{forward.7} parent=5 // pred_region
        // Predicated region
        $region17: #{forward.7} parent=15 // pred_check
          %p157 = pneg %p50
        $region18: #{forward.7} parent=15 // pred_check_branch
          %159 = sbr.rel (%p157) target = $region20
        $region19: #{forward.7} parent=15 // pred_region
          %s160 = smul.u32 23, %s18
          %p161 = scmp.lt.s32.totalorder %s16, 0
          %s162 = scalar_select %p161, %s16, 0
          %p163 = scmp.lt.s32.totalorder %s160, 91
          %s164 = scalar_select %p163, %s160, 91
          %s165 = smul.addr %s162, 92
          %s166 = sadd.s32 %s164, %s165
          %s167 = smul.addr %s166, 4
          %s168 = scalar_lea.vmem %s0, %s167
          %s169 = smul.u32 23, %s18
        $region20: #{forward.7} parent=15 // pred_fallthru
          _
        // Predicated region
        $region21: #{forward.7} parent=15 // pred_check
          %p170 = pneg %p78
        $region22: #{forward.7} parent=15 // pred_check_branch
          %172 = sbr.rel (%p170) target = $region24
        $region23: #{forward.7} parent=15 // pred_region
          %s173 = sand.u32 %s68, 1
          %s174 = sand.u32 %s68, 1
          %s175 = smul.addr %s174, 5888
          %s176 = scalar_lea.vmem [#allocation3], %s175
          %s177 = smul.u32 368, %s18
          %s178 = smul.u32 4, %s17
          %s179 = smul.addr %s177, 8
          %s180 = sadd.s32 %s178, %s179
          %s181 = smul.addr %s180, 4
          %s182 = scalar_lea.vmem %s1, %s181
          // Predicated region
          $region25: #{forward.7} parent=23 // pred_check
            _
          $region26: #{forward.7} parent=23 // pred_check_branch
            %184 = sbr.rel (0) target = $region28
          $region27: #{forward.7} parent=23 // pred_region
            // Predicated region
            $region29: #{forward.7} parent=27 // pred_check
              _
            $region30: #{forward.7} parent=27 // pred_check_branch
              %186 = sbr.rel (0) target = $region32
            $region31: #{forward.7} parent=27 // pred_region
              loop: start=0, step=1, limit=1
              $region33: #{forward.7} parent=31 // loop_pre_header
                _
              $region34: #{forward.7} parent=31 // loop_header
                %s188 = sphi 0, %s192
                %p189 = scmp.ge.s32.totalorder %s188, 1
                %s193 = sphi %s182, %s182
                %s194 = sphi %s176, %s176
              $region35: #{forward.7} parent=31 // loop_header_branch
                %191 = sbr.rel (%p189) target = $region39
              $region36: #{forward.7} parent=31 // loop_body
                %v195 = vld [vmem:[%s193] sm:$0xff]
                %196 = vst [vmem:[%s194] sm:$0xff] %v195
                %v197 = vld [vmem:[%s193 + $0x8] sm:$0xff]
                %198 = vst [vmem:[%s194 + $0x8] sm:$0xff] %v197
                %v199 = vld [vmem:[%s193 + $0x20] sm:$0xff]
                %200 = vst [vmem:[%s194 + $0x10] sm:$0xff] %v199
                %v201 = vld [vmem:[%s193 + $0x28] sm:$0xff]
                %202 = vst [vmem:[%s194 + $0x18] sm:$0xff] %v201
                %v203 = vld [vmem:[%s193 + $0x40] sm:$0xff]
                %204 = vst [vmem:[%s194 + $0x20] sm:$0xff] %v203
                %v205 = vld [vmem:[%s193 + $0x48] sm:$0xff]
                %206 = vst [vmem:[%s194 + $0x28] sm:$0xff] %v205
                %v207 = vld [vmem:[%s193 + $0x60] sm:$0xff]
                %208 = vst [vmem:[%s194 + $0x30] sm:$0xff] %v207
                %v209 = vld [vmem:[%s193 + $0x68] sm:$0xff]
                %210 = vst [vmem:[%s194 + $0x38] sm:$0xff] %v209
                %v211 = vld [vmem:[%s193 + $0x80] sm:$0xff]
                %212 = vst [vmem:[%s194 + $0x40] sm:$0xff] %v211
                %v213 = vld [vmem:[%s193 + $0x88] sm:$0xff]
                %214 = vst [vmem:[%s194 + $0x48] sm:$0xff] %v213
                %v215 = vld [vmem:[%s193 + $0xa0] sm:$0xff]
                %216 = vst [vmem:[%s194 + $0x50] sm:$0xff] %v215
                %v217 = vld [vmem:[%s193 + $0xa8] sm:$0xff]
                %218 = vst [vmem:[%s194 + $0x58] sm:$0xff] %v217
                %v219 = vld [vmem:[%s193 + $0xc0] sm:$0xff]
                %220 = vst [vmem:[%s194 + $0x60] sm:$0xff] %v219
                %v221 = vld [vmem:[%s193 + $0xc8] sm:$0xff]
                %222 = vst [vmem:[%s194 + $0x68] sm:$0xff] %v221
                %v223 = vld [vmem:[%s193 + $0xe0] sm:$0xff]
                %224 = vst [vmem:[%s194 + $0x70] sm:$0xff] %v223
                %v225 = vld [vmem:[%s193 + $0xe8] sm:$0xff]
                %226 = vst [vmem:[%s194 + $0x78] sm:$0xff] %v225
                %v227 = vld [vmem:[%s193 + $0x100] sm:$0xff]
                %228 = vst [vmem:[%s194 + $0x80] sm:$0xff] %v227
                %v229 = vld [vmem:[%s193 + $0x108] sm:$0xff]
                %230 = vst [vmem:[%s194 + $0x88] sm:$0xff] %v229
                %v231 = vld [vmem:[%s193 + $0x120] sm:$0xff]
                %232 = vst [vmem:[%s194 + $0x90] sm:$0xff] %v231
                %v233 = vld [vmem:[%s193 + $0x128] sm:$0xff]
                %234 = vst [vmem:[%s194 + $0x98] sm:$0xff] %v233
                %v235 = vld [vmem:[%s193 + $0x140] sm:$0xff]
                %236 = vst [vmem:[%s194 + $0xa0] sm:$0xff] %v235
                %v237 = vld [vmem:[%s193 + $0x148] sm:$0xff]
                %238 = vst [vmem:[%s194 + $0xa8] sm:$0xff] %v237
                %v239 = vld [vmem:[%s193 + $0x160] sm:$0xff]
                %240 = vst [vmem:[%s194 + $0xb0] sm:$0xff] %v239
                %v241 = vld [vmem:[%s193 + $0x168] sm:$0xff]
                %242 = vst [vmem:[%s194 + $0xb8] sm:$0xff] %v241
                %v243 = vld [vmem:[%s193 + $0x180] sm:$0xff]
                %244 = vst [vmem:[%s194 + $0xc0] sm:$0xff] %v243
                %v245 = vld [vmem:[%s193 + $0x188] sm:$0xff]
                %246 = vst [vmem:[%s194 + $0xc8] sm:$0xff] %v245
                %v247 = vld [vmem:[%s193 + $0x1a0] sm:$0xff]
                %248 = vst [vmem:[%s194 + $0xd0] sm:$0xff] %v247
                %v249 = vld [vmem:[%s193 + $0x1a8] sm:$0xff]
                %250 = vst [vmem:[%s194 + $0xd8] sm:$0xff] %v249
                %v251 = vld [vmem:[%s193 + $0x1c0] sm:$0xff]
                %252 = vst [vmem:[%s194 + $0xe0] sm:$0xff] %v251
                %v253 = vld [vmem:[%s193 + $0x1c8] sm:$0xff]
                %254 = vst [vmem:[%s194 + $0xe8] sm:$0xff] %v253
                %v255 = vld [vmem:[%s193 + $0x1e0] sm:$0xff]
                %256 = vst [vmem:[%s194 + $0xf0] sm:$0xff] %v255
                %v257 = vld [vmem:[%s193 + $0x1e8] sm:$0xff]
                %258 = vst [vmem:[%s194 + $0xf8] sm:$0xff] %v257
                %v259 = vld [vmem:[%s193 + $0x200] sm:$0xff]
                %260 = vst [vmem:[%s194 + $0x100] sm:$0xff] %v259
                %v261 = vld [vmem:[%s193 + $0x208] sm:$0xff]
                %262 = vst [vmem:[%s194 + $0x108] sm:$0xff] %v261
                %v263 = vld [vmem:[%s193 + $0x220] sm:$0xff]
                %264 = vst [vmem:[%s194 + $0x110] sm:$0xff] %v263
                %v265 = vld [vmem:[%s193 + $0x228] sm:$0xff]
                %266 = vst [vmem:[%s194 + $0x118] sm:$0xff] %v265
                %v267 = vld [vmem:[%s193 + $0x240] sm:$0xff]
                %268 = vst [vmem:[%s194 + $0x120] sm:$0xff] %v267
                %v269 = vld [vmem:[%s193 + $0x248] sm:$0xff]
                %270 = vst [vmem:[%s194 + $0x128] sm:$0xff] %v269
                %v271 = vld [vmem:[%s193 + $0x260] sm:$0xff]
                %272 = vst [vmem:[%s194 + $0x130] sm:$0xff] %v271
                %v273 = vld [vmem:[%s193 + $0x268] sm:$0xff]
                %274 = vst [vmem:[%s194 + $0x138] sm:$0xff] %v273
                %v275 = vld [vmem:[%s193 + $0x280] sm:$0xff]
                %276 = vst [vmem:[%s194 + $0x140] sm:$0xff] %v275
                %v277 = vld [vmem:[%s193 + $0x288] sm:$0xff]
                %278 = vst [vmem:[%s194 + $0x148] sm:$0xff] %v277
                %v279 = vld [vmem:[%s193 + $0x2a0] sm:$0xff]
                %280 = vst [vmem:[%s194 + $0x150] sm:$0xff] %v279
                %v281 = vld [vmem:[%s193 + $0x2a8] sm:$0xff]
                %282 = vst [vmem:[%s194 + $0x158] sm:$0xff] %v281
                %v283 = vld [vmem:[%s193 + $0x2c0] sm:$0xff]
                %284 = vst [vmem:[%s194 + $0x160] sm:$0xff] %v283
                %v285 = vld [vmem:[%s193 + $0x2c8] sm:$0xff]
                %286 = vst [vmem:[%s194 + $0x168] sm:$0xff] %v285
                %v287 = vld [vmem:[%s193 + $0x2e0] sm:$0xff]
                %288 = vst [vmem:[%s194 + $0x170] sm:$0xff] %v287
                %v289 = vld [vmem:[%s193 + $0x2e8] sm:$0xff]
                %290 = vst [vmem:[%s194 + $0x178] sm:$0xff] %v289
                %v291 = vld [vmem:[%s193 + $0x300] sm:$0xff]
                %292 = vst [vmem:[%s194 + $0x180] sm:$0xff] %v291
                %v293 = vld [vmem:[%s193 + $0x308] sm:$0xff]
                %294 = vst [vmem:[%s194 + $0x188] sm:$0xff] %v293
                %v295 = vld [vmem:[%s193 + $0x320] sm:$0xff]
                %296 = vst [vmem:[%s194 + $0x190] sm:$0xff] %v295
                %v297 = vld [vmem:[%s193 + $0x328] sm:$0xff]
                %298 = vst [vmem:[%s194 + $0x198] sm:$0xff] %v297
                %v299 = vld [vmem:[%s193 + $0x340] sm:$0xff]
                %300 = vst [vmem:[%s194 + $0x1a0] sm:$0xff] %v299
                %v301 = vld [vmem:[%s193 + $0x348] sm:$0xff]
                %302 = vst [vmem:[%s194 + $0x1a8] sm:$0xff] %v301
                %v303 = vld [vmem:[%s193 + $0x360] sm:$0xff]
                %304 = vst [vmem:[%s194 + $0x1b0] sm:$0xff] %v303
                %v305 = vld [vmem:[%s193 + $0x368] sm:$0xff]
                %306 = vst [vmem:[%s194 + $0x1b8] sm:$0xff] %v305
                %v307 = vld [vmem:[%s193 + $0x380] sm:$0xff]
                %308 = vst [vmem:[%s194 + $0x1c0] sm:$0xff] %v307
                %v309 = vld [vmem:[%s193 + $0x388] sm:$0xff]
                %310 = vst [vmem:[%s194 + $0x1c8] sm:$0xff] %v309
                %v311 = vld [vmem:[%s193 + $0x3a0] sm:$0xff]
                %312 = vst [vmem:[%s194 + $0x1d0] sm:$0xff] %v311
                %v313 = vld [vmem:[%s193 + $0x3a8] sm:$0xff]
                %314 = vst [vmem:[%s194 + $0x1d8] sm:$0xff] %v313
                %v315 = vld [vmem:[%s193 + $0x3c0] sm:$0xff]
                %316 = vst [vmem:[%s194 + $0x1e0] sm:$0xff] %v315
                %v317 = vld [vmem:[%s193 + $0x3c8] sm:$0xff]
                %318 = vst [vmem:[%s194 + $0x1e8] sm:$0xff] %v317
                %v319 = vld [vmem:[%s193 + $0x3e0] sm:$0xff]
                %320 = vst [vmem:[%s194 + $0x1f0] sm:$0xff] %v319
                %v321 = vld [vmem:[%s193 + $0x3e8] sm:$0xff]
                %322 = vst [vmem:[%s194 + $0x1f8] sm:$0xff] %v321
                %v323 = vld [vmem:[%s193 + $0x400] sm:$0xff]
                %324 = vst [vmem:[%s194 + $0x200] sm:$0xff] %v323
                %v325 = vld [vmem:[%s193 + $0x408] sm:$0xff]
                %326 = vst [vmem:[%s194 + $0x208] sm:$0xff] %v325
                %v327 = vld [vmem:[%s193 + $0x420] sm:$0xff]
                %328 = vst [vmem:[%s194 + $0x210] sm:$0xff] %v327
                %v329 = vld [vmem:[%s193 + $0x428] sm:$0xff]
                %330 = vst [vmem:[%s194 + $0x218] sm:$0xff] %v329
                %v331 = vld [vmem:[%s193 + $0x440] sm:$0xff]
                %332 = vst [vmem:[%s194 + $0x220] sm:$0xff] %v331
                %v333 = vld [vmem:[%s193 + $0x448] sm:$0xff]
                %334 = vst [vmem:[%s194 + $0x228] sm:$0xff] %v333
                %v335 = vld [vmem:[%s193 + $0x460] sm:$0xff]
                %336 = vst [vmem:[%s194 + $0x230] sm:$0xff] %v335
                %v337 = vld [vmem:[%s193 + $0x468] sm:$0xff]
                %338 = vst [vmem:[%s194 + $0x238] sm:$0xff] %v337
                %v339 = vld [vmem:[%s193 + $0x480] sm:$0xff]
                %340 = vst [vmem:[%s194 + $0x240] sm:$0xff] %v339
                %v341 = vld [vmem:[%s193 + $0x488] sm:$0xff]
                %342 = vst [vmem:[%s194 + $0x248] sm:$0xff] %v341
                %v343 = vld [vmem:[%s193 + $0x4a0] sm:$0xff]
                %344 = vst [vmem:[%s194 + $0x250] sm:$0xff] %v343
                %v345 = vld [vmem:[%s193 + $0x4a8] sm:$0xff]
                %346 = vst [vmem:[%s194 + $0x258] sm:$0xff] %v345
                %v347 = vld [vmem:[%s193 + $0x4c0] sm:$0xff]
                %348 = vst [vmem:[%s194 + $0x260] sm:$0xff] %v347
                %v349 = vld [vmem:[%s193 + $0x4c8] sm:$0xff]
                %350 = vst [vmem:[%s194 + $0x268] sm:$0xff] %v349
                %v351 = vld [vmem:[%s193 + $0x4e0] sm:$0xff]
                %352 = vst [vmem:[%s194 + $0x270] sm:$0xff] %v351
                %v353 = vld [vmem:[%s193 + $0x4e8] sm:$0xff]
                %354 = vst [vmem:[%s194 + $0x278] sm:$0xff] %v353
                %v355 = vld [vmem:[%s193 + $0x500] sm:$0xff]
                %356 = vst [vmem:[%s194 + $0x280] sm:$0xff] %v355
                %v357 = vld [vmem:[%s193 + $0x508] sm:$0xff]
                %358 = vst [vmem:[%s194 + $0x288] sm:$0xff] %v357
                %v359 = vld [vmem:[%s193 + $0x520] sm:$0xff]
                %360 = vst [vmem:[%s194 + $0x290] sm:$0xff] %v359
                %v361 = vld [vmem:[%s193 + $0x528] sm:$0xff]
                %362 = vst [vmem:[%s194 + $0x298] sm:$0xff] %v361
                %v363 = vld [vmem:[%s193 + $0x540] sm:$0xff]
                %364 = vst [vmem:[%s194 + $0x2a0] sm:$0xff] %v363
                %v365 = vld [vmem:[%s193 + $0x548] sm:$0xff]
                %366 = vst [vmem:[%s194 + $0x2a8] sm:$0xff] %v365
                %v367 = vld [vmem:[%s193 + $0x560] sm:$0xff]
                %368 = vst [vmem:[%s194 + $0x2b0] sm:$0xff] %v367
                %v369 = vld [vmem:[%s193 + $0x568] sm:$0xff]
                %370 = vst [vmem:[%s194 + $0x2b8] sm:$0xff] %v369
                %v371 = vld [vmem:[%s193 + $0x580] sm:$0xff]
                %372 = vst [vmem:[%s194 + $0x2c0] sm:$0xff] %v371
                %v373 = vld [vmem:[%s193 + $0x588] sm:$0xff]
                %374 = vst [vmem:[%s194 + $0x2c8] sm:$0xff] %v373
                %v375 = vld [vmem:[%s193 + $0x5a0] sm:$0xff]
                %376 = vst [vmem:[%s194 + $0x2d0] sm:$0xff] %v375
                %v377 = vld [vmem:[%s193 + $0x5a8] sm:$0xff]
                %378 = vst [vmem:[%s194 + $0x2d8] sm:$0xff] %v377
                %v379 = vld [vmem:[%s193 + $0x5c0] sm:$0xff]
                %380 = vst [vmem:[%s194 + $0x2e0] sm:$0xff] %v379
                %v381 = vld [vmem:[%s193 + $0x5c8] sm:$0xff]
                %382 = vst [vmem:[%s194 + $0x2e8] sm:$0xff] %v381
                %v383 = vld [vmem:[%s193 + $0x5e0] sm:$0xff]
                %384 = vst [vmem:[%s194 + $0x2f0] sm:$0xff] %v383
                %v385 = vld [vmem:[%s193 + $0x5e8] sm:$0xff]
                %386 = vst [vmem:[%s194 + $0x2f8] sm:$0xff] %v385
                %v387 = vld [vmem:[%s193 + $0x600] sm:$0xff]
                %388 = vst [vmem:[%s194 + $0x300] sm:$0xff] %v387
                %v389 = vld [vmem:[%s193 + $0x608] sm:$0xff]
                %390 = vst [vmem:[%s194 + $0x308] sm:$0xff] %v389
                %v391 = vld [vmem:[%s193 + $0x620] sm:$0xff]
                %392 = vst [vmem:[%s194 + $0x310] sm:$0xff] %v391
                %v393 = vld [vmem:[%s193 + $0x628] sm:$0xff]
                %394 = vst [vmem:[%s194 + $0x318] sm:$0xff] %v393
                %v395 = vld [vmem:[%s193 + $0x640] sm:$0xff]
                %396 = vst [vmem:[%s194 + $0x320] sm:$0xff] %v395
                %v397 = vld [vmem:[%s193 + $0x648] sm:$0xff]
                %398 = vst [vmem:[%s194 + $0x328] sm:$0xff] %v397
                %v399 = vld [vmem:[%s193 + $0x660] sm:$0xff]
                %400 = vst [vmem:[%s194 + $0x330] sm:$0xff] %v399
                %v401 = vld [vmem:[%s193 + $0x668] sm:$0xff]
                %402 = vst [vmem:[%s194 + $0x338] sm:$0xff] %v401
                %v403 = vld [vmem:[%s193 + $0x680] sm:$0xff]
                %404 = vst [vmem:[%s194 + $0x340] sm:$0xff] %v403
                %v405 = vld [vmem:[%s193 + $0x688] sm:$0xff]
                %406 = vst [vmem:[%s194 + $0x348] sm:$0xff] %v405
                %v407 = vld [vmem:[%s193 + $0x6a0] sm:$0xff]
                %408 = vst [vmem:[%s194 + $0x350] sm:$0xff] %v407
                %v409 = vld [vmem:[%s193 + $0x6a8] sm:$0xff]
                %410 = vst [vmem:[%s194 + $0x358] sm:$0xff] %v409
                %v411 = vld [vmem:[%s193 + $0x6c0] sm:$0xff]
                %412 = vst [vmem:[%s194 + $0x360] sm:$0xff] %v411
                %v413 = vld [vmem:[%s193 + $0x6c8] sm:$0xff]
                %414 = vst [vmem:[%s194 + $0x368] sm:$0xff] %v413
                %v415 = vld [vmem:[%s193 + $0x6e0] sm:$0xff]
                %416 = vst [vmem:[%s194 + $0x370] sm:$0xff] %v415
                %v417 = vld [vmem:[%s193 + $0x6e8] sm:$0xff]
                %418 = vst [vmem:[%s194 + $0x378] sm:$0xff] %v417
                %v419 = vld [vmem:[%s193 + $0x700] sm:$0xff]
                %420 = vst [vmem:[%s194 + $0x380] sm:$0xff] %v419
                %v421 = vld [vmem:[%s193 + $0x708] sm:$0xff]
                %422 = vst [vmem:[%s194 + $0x388] sm:$0xff] %v421
                %v423 = vld [vmem:[%s193 + $0x720] sm:$0xff]
                %424 = vst [vmem:[%s194 + $0x390] sm:$0xff] %v423
                %v425 = vld [vmem:[%s193 + $0x728] sm:$0xff]
                %426 = vst [vmem:[%s194 + $0x398] sm:$0xff] %v425
                %v427 = vld [vmem:[%s193 + $0x740] sm:$0xff]
                %428 = vst [vmem:[%s194 + $0x3a0] sm:$0xff] %v427
                %v429 = vld [vmem:[%s193 + $0x748] sm:$0xff]
                %430 = vst [vmem:[%s194 + $0x3a8] sm:$0xff] %v429
                %v431 = vld [vmem:[%s193 + $0x760] sm:$0xff]
                %432 = vst [vmem:[%s194 + $0x3b0] sm:$0xff] %v431
                %v433 = vld [vmem:[%s193 + $0x768] sm:$0xff]
                %434 = vst [vmem:[%s194 + $0x3b8] sm:$0xff] %v433
                %v435 = vld [vmem:[%s193 + $0x780] sm:$0xff]
                %436 = vst [vmem:[%s194 + $0x3c0] sm:$0xff] %v435
                %v437 = vld [vmem:[%s193 + $0x788] sm:$0xff]
                %438 = vst [vmem:[%s194 + $0x3c8] sm:$0xff] %v437
                %v439 = vld [vmem:[%s193 + $0x7a0] sm:$0xff]
                %440 = vst [vmem:[%s194 + $0x3d0] sm:$0xff] %v439
                %v441 = vld [vmem:[%s193 + $0x7a8] sm:$0xff]
                %442 = vst [vmem:[%s194 + $0x3d8] sm:$0xff] %v441
                %v443 = vld [vmem:[%s193 + $0x7c0] sm:$0xff]
                %444 = vst [vmem:[%s194 + $0x3e0] sm:$0xff] %v443
                %v445 = vld [vmem:[%s193 + $0x7c8] sm:$0xff]
                %446 = vst [vmem:[%s194 + $0x3e8] sm:$0xff] %v445
                %v447 = vld [vmem:[%s193 + $0x7e0] sm:$0xff]
                %448 = vst [vmem:[%s194 + $0x3f0] sm:$0xff] %v447
                %v449 = vld [vmem:[%s193 + $0x7e8] sm:$0xff]
                %450 = vst [vmem:[%s194 + $0x3f8] sm:$0xff] %v449
                %v451 = vld [vmem:[%s193 + $0x800] sm:$0xff]
                %452 = vst [vmem:[%s194 + $0x400] sm:$0xff] %v451
                %v453 = vld [vmem:[%s193 + $0x808] sm:$0xff]
                %454 = vst [vmem:[%s194 + $0x408] sm:$0xff] %v453
                %v455 = vld [vmem:[%s193 + $0x820] sm:$0xff]
                %456 = vst [vmem:[%s194 + $0x410] sm:$0xff] %v455
                %v457 = vld [vmem:[%s193 + $0x828] sm:$0xff]
                %458 = vst [vmem:[%s194 + $0x418] sm:$0xff] %v457
                %v459 = vld [vmem:[%s193 + $0x840] sm:$0xff]
                %460 = vst [vmem:[%s194 + $0x420] sm:$0xff] %v459
                %v461 = vld [vmem:[%s193 + $0x848] sm:$0xff]
                %462 = vst [vmem:[%s194 + $0x428] sm:$0xff] %v461
                %v463 = vld [vmem:[%s193 + $0x860] sm:$0xff]
                %464 = vst [vmem:[%s194 + $0x430] sm:$0xff] %v463
                %v465 = vld [vmem:[%s193 + $0x868] sm:$0xff]
                %466 = vst [vmem:[%s194 + $0x438] sm:$0xff] %v465
                %v467 = vld [vmem:[%s193 + $0x880] sm:$0xff]
                %468 = vst [vmem:[%s194 + $0x440] sm:$0xff] %v467
                %v469 = vld [vmem:[%s193 + $0x888] sm:$0xff]
                %470 = vst [vmem:[%s194 + $0x448] sm:$0xff] %v469
                %v471 = vld [vmem:[%s193 + $0x8a0] sm:$0xff]
                %472 = vst [vmem:[%s194 + $0x450] sm:$0xff] %v471
                %v473 = vld [vmem:[%s193 + $0x8a8] sm:$0xff]
                %474 = vst [vmem:[%s194 + $0x458] sm:$0xff] %v473
                %v475 = vld [vmem:[%s193 + $0x8c0] sm:$0xff]
                %476 = vst [vmem:[%s194 + $0x460] sm:$0xff] %v475
                %v477 = vld [vmem:[%s193 + $0x8c8] sm:$0xff]
                %478 = vst [vmem:[%s194 + $0x468] sm:$0xff] %v477
                %v479 = vld [vmem:[%s193 + $0x8e0] sm:$0xff]
                %480 = vst [vmem:[%s194 + $0x470] sm:$0xff] %v479
                %v481 = vld [vmem:[%s193 + $0x8e8] sm:$0xff]
                %482 = vst [vmem:[%s194 + $0x478] sm:$0xff] %v481
                %v483 = vld [vmem:[%s193 + $0x900] sm:$0xff]
                %484 = vst [vmem:[%s194 + $0x480] sm:$0xff] %v483
                %v485 = vld [vmem:[%s193 + $0x908] sm:$0xff]
                %486 = vst [vmem:[%s194 + $0x488] sm:$0xff] %v485
                %v487 = vld [vmem:[%s193 + $0x920] sm:$0xff]
                %488 = vst [vmem:[%s194 + $0x490] sm:$0xff] %v487
                %v489 = vld [vmem:[%s193 + $0x928] sm:$0xff]
                %490 = vst [vmem:[%s194 + $0x498] sm:$0xff] %v489
                %v491 = vld [vmem:[%s193 + $0x940] sm:$0xff]
                %492 = vst [vmem:[%s194 + $0x4a0] sm:$0xff] %v491
                %v493 = vld [vmem:[%s193 + $0x948] sm:$0xff]
                %494 = vst [vmem:[%s194 + $0x4a8] sm:$0xff] %v493
                %v495 = vld [vmem:[%s193 + $0x960] sm:$0xff]
                %496 = vst [vmem:[%s194 + $0x4b0] sm:$0xff] %v495
                %v497 = vld [vmem:[%s193 + $0x968] sm:$0xff]
                %498 = vst [vmem:[%s194 + $0x4b8] sm:$0xff] %v497
                %v499 = vld [vmem:[%s193 + $0x980] sm:$0xff]
                %500 = vst [vmem:[%s194 + $0x4c0] sm:$0xff] %v499
                %v501 = vld [vmem:[%s193 + $0x988] sm:$0xff]
                %502 = vst [vmem:[%s194 + $0x4c8] sm:$0xff] %v501
                %v503 = vld [vmem:[%s193 + $0x9a0] sm:$0xff]
                %504 = vst [vmem:[%s194 + $0x4d0] sm:$0xff] %v503
                %v505 = vld [vmem:[%s193 + $0x9a8] sm:$0xff]
                %506 = vst [vmem:[%s194 + $0x4d8] sm:$0xff] %v505
                %v507 = vld [vmem:[%s193 + $0x9c0] sm:$0xff]
                %508 = vst [vmem:[%s194 + $0x4e0] sm:$0xff] %v507
                %v509 = vld [vmem:[%s193 + $0x9c8] sm:$0xff]
                %510 = vst [vmem:[%s194 + $0x4e8] sm:$0xff] %v509
                %v511 = vld [vmem:[%s193 + $0x9e0] sm:$0xff]
                %512 = vst [vmem:[%s194 + $0x4f0] sm:$0xff] %v511
                %v513 = vld [vmem:[%s193 + $0x9e8] sm:$0xff]
                %514 = vst [vmem:[%s194 + $0x4f8] sm:$0xff] %v513
                %v515 = vld [vmem:[%s193 + $0xa00] sm:$0xff]
                %516 = vst [vmem:[%s194 + $0x500] sm:$0xff] %v515
                %v517 = vld [vmem:[%s193 + $0xa08] sm:$0xff]
                %518 = vst [vmem:[%s194 + $0x508] sm:$0xff] %v517
                %v519 = vld [vmem:[%s193 + $0xa20] sm:$0xff]
                %520 = vst [vmem:[%s194 + $0x510] sm:$0xff] %v519
                %v521 = vld [vmem:[%s193 + $0xa28] sm:$0xff]
                %522 = vst [vmem:[%s194 + $0x518] sm:$0xff] %v521
                %v523 = vld [vmem:[%s193 + $0xa40] sm:$0xff]
                %524 = vst [vmem:[%s194 + $0x520] sm:$0xff] %v523
                %v525 = vld [vmem:[%s193 + $0xa48] sm:$0xff]
                %526 = vst [vmem:[%s194 + $0x528] sm:$0xff] %v525
                %v527 = vld [vmem:[%s193 + $0xa60] sm:$0xff]
                %528 = vst [vmem:[%s194 + $0x530] sm:$0xff] %v527
                %v529 = vld [vmem:[%s193 + $0xa68] sm:$0xff]
                %530 = vst [vmem:[%s194 + $0x538] sm:$0xff] %v529
                %v531 = vld [vmem:[%s193 + $0xa80] sm:$0xff]
                %532 = vst [vmem:[%s194 + $0x540] sm:$0xff] %v531
                %v533 = vld [vmem:[%s193 + $0xa88] sm:$0xff]
                %534 = vst [vmem:[%s194 + $0x548] sm:$0xff] %v533
                %v535 = vld [vmem:[%s193 + $0xaa0] sm:$0xff]
                %536 = vst [vmem:[%s194 + $0x550] sm:$0xff] %v535
                %v537 = vld [vmem:[%s193 + $0xaa8] sm:$0xff]
                %538 = vst [vmem:[%s194 + $0x558] sm:$0xff] %v537
                %v539 = vld [vmem:[%s193 + $0xac0] sm:$0xff]
                %540 = vst [vmem:[%s194 + $0x560] sm:$0xff] %v539
                %v541 = vld [vmem:[%s193 + $0xac8] sm:$0xff]
                %542 = vst [vmem:[%s194 + $0x568] sm:$0xff] %v541
                %v543 = vld [vmem:[%s193 + $0xae0] sm:$0xff]
                %544 = vst [vmem:[%s194 + $0x570] sm:$0xff] %v543
                %v545 = vld [vmem:[%s193 + $0xae8] sm:$0xff]
                %546 = vst [vmem:[%s194 + $0x578] sm:$0xff] %v545
                %v547 = vld [vmem:[%s193 + $0xb00] sm:$0xff]
                %548 = vst [vmem:[%s194 + $0x580] sm:$0xff] %v547
                %v549 = vld [vmem:[%s193 + $0xb08] sm:$0xff]
                %550 = vst [vmem:[%s194 + $0x588] sm:$0xff] %v549
                %v551 = vld [vmem:[%s193 + $0xb20] sm:$0xff]
                %552 = vst [vmem:[%s194 + $0x590] sm:$0xff] %v551
                %v553 = vld [vmem:[%s193 + $0xb28] sm:$0xff]
                %554 = vst [vmem:[%s194 + $0x598] sm:$0xff] %v553
                %v555 = vld [vmem:[%s193 + $0xb40] sm:$0xff]
                %556 = vst [vmem:[%s194 + $0x5a0] sm:$0xff] %v555
                %v557 = vld [vmem:[%s193 + $0xb48] sm:$0xff]
                %558 = vst [vmem:[%s194 + $0x5a8] sm:$0xff] %v557
                %v559 = vld [vmem:[%s193 + $0xb60] sm:$0xff]
                %560 = vst [vmem:[%s194 + $0x5b0] sm:$0xff] %v559
                %v561 = vld [vmem:[%s193 + $0xb68] sm:$0xff]
                %562 = vst [vmem:[%s194 + $0x5b8] sm:$0xff] %v561
                %v563 = vld [vmem:[%s193 + $0xb80] sm:$0xff]
                %564 = vst [vmem:[%s194 + $0x5c0] sm:$0xff] %v563
                %v565 = vld [vmem:[%s193 + $0xb88] sm:$0xff]
                %566 = vst [vmem:[%s194 + $0x5c8] sm:$0xff] %v565
                %v567 = vld [vmem:[%s193 + $0xba0] sm:$0xff]
                %568 = vst [vmem:[%s194 + $0x5d0] sm:$0xff] %v567
                %v569 = vld [vmem:[%s193 + $0xba8] sm:$0xff]
                %570 = vst [vmem:[%s194 + $0x5d8] sm:$0xff] %v569
                %v571 = vld [vmem:[%s193 + $0xbc0] sm:$0xff]
                %572 = vst [vmem:[%s194 + $0x5e0] sm:$0xff] %v571
                %v573 = vld [vmem:[%s193 + $0xbc8] sm:$0xff]
                %574 = vst [vmem:[%s194 + $0x5e8] sm:$0xff] %v573
                %v575 = vld [vmem:[%s193 + $0xbe0] sm:$0xff]
                %576 = vst [vmem:[%s194 + $0x5f0] sm:$0xff] %v575
                %v577 = vld [vmem:[%s193 + $0xbe8] sm:$0xff]
                %578 = vst [vmem:[%s194 + $0x5f8] sm:$0xff] %v577
                %v579 = vld [vmem:[%s193 + $0xc00] sm:$0xff]
                %580 = vst [vmem:[%s194 + $0x600] sm:$0xff] %v579
                %v581 = vld [vmem:[%s193 + $0xc08] sm:$0xff]
                %582 = vst [vmem:[%s194 + $0x608] sm:$0xff] %v581
                %v583 = vld [vmem:[%s193 + $0xc20] sm:$0xff]
                %584 = vst [vmem:[%s194 + $0x610] sm:$0xff] %v583
                %v585 = vld [vmem:[%s193 + $0xc28] sm:$0xff]
                %586 = vst [vmem:[%s194 + $0x618] sm:$0xff] %v585
                %v587 = vld [vmem:[%s193 + $0xc40] sm:$0xff]
                %588 = vst [vmem:[%s194 + $0x620] sm:$0xff] %v587
                %v589 = vld [vmem:[%s193 + $0xc48] sm:$0xff]
                %590 = vst [vmem:[%s194 + $0x628] sm:$0xff] %v589
                %v591 = vld [vmem:[%s193 + $0xc60] sm:$0xff]
                %592 = vst [vmem:[%s194 + $0x630] sm:$0xff] %v591
                %v593 = vld [vmem:[%s193 + $0xc68] sm:$0xff]
                %594 = vst [vmem:[%s194 + $0x638] sm:$0xff] %v593
                %v595 = vld [vmem:[%s193 + $0xc80] sm:$0xff]
                %596 = vst [vmem:[%s194 + $0x640] sm:$0xff] %v595
                %v597 = vld [vmem:[%s193 + $0xc88] sm:$0xff]
                %598 = vst [vmem:[%s194 + $0x648] sm:$0xff] %v597
                %v599 = vld [vmem:[%s193 + $0xca0] sm:$0xff]
                %600 = vst [vmem:[%s194 + $0x650] sm:$0xff] %v599
                %v601 = vld [vmem:[%s193 + $0xca8] sm:$0xff]
                %602 = vst [vmem:[%s194 + $0x658] sm:$0xff] %v601
                %v603 = vld [vmem:[%s193 + $0xcc0] sm:$0xff]
                %604 = vst [vmem:[%s194 + $0x660] sm:$0xff] %v603
                %v605 = vld [vmem:[%s193 + $0xcc8] sm:$0xff]
                %606 = vst [vmem:[%s194 + $0x668] sm:$0xff] %v605
                %v607 = vld [vmem:[%s193 + $0xce0] sm:$0xff]
                %608 = vst [vmem:[%s194 + $0x670] sm:$0xff] %v607
                %v609 = vld [vmem:[%s193 + $0xce8] sm:$0xff]
                %610 = vst [vmem:[%s194 + $0x678] sm:$0xff] %v609
                %v611 = vld [vmem:[%s193 + $0xd00] sm:$0xff]
                %612 = vst [vmem:[%s194 + $0x680] sm:$0xff] %v611
                %v613 = vld [vmem:[%s193 + $0xd08] sm:$0xff]
                %614 = vst [vmem:[%s194 + $0x688] sm:$0xff] %v613
                %v615 = vld [vmem:[%s193 + $0xd20] sm:$0xff]
                %616 = vst [vmem:[%s194 + $0x690] sm:$0xff] %v615
                %v617 = vld [vmem:[%s193 + $0xd28] sm:$0xff]
                %618 = vst [vmem:[%s194 + $0x698] sm:$0xff] %v617
                %v619 = vld [vmem:[%s193 + $0xd40] sm:$0xff]
                %620 = vst [vmem:[%s194 + $0x6a0] sm:$0xff] %v619
                %v621 = vld [vmem:[%s193 + $0xd48] sm:$0xff]
                %622 = vst [vmem:[%s194 + $0x6a8] sm:$0xff] %v621
                %v623 = vld [vmem:[%s193 + $0xd60] sm:$0xff]
                %624 = vst [vmem:[%s194 + $0x6b0] sm:$0xff] %v623
                %v625 = vld [vmem:[%s193 + $0xd68] sm:$0xff]
                %626 = vst [vmem:[%s194 + $0x6b8] sm:$0xff] %v625
                %v627 = vld [vmem:[%s193 + $0xd80] sm:$0xff]
                %628 = vst [vmem:[%s194 + $0x6c0] sm:$0xff] %v627
                %v629 = vld [vmem:[%s193 + $0xd88] sm:$0xff]
                %630 = vst [vmem:[%s194 + $0x6c8] sm:$0xff] %v629
                %v631 = vld [vmem:[%s193 + $0xda0] sm:$0xff]
                %632 = vst [vmem:[%s194 + $0x6d0] sm:$0xff] %v631
                %v633 = vld [vmem:[%s193 + $0xda8] sm:$0xff]
                %634 = vst [vmem:[%s194 + $0x6d8] sm:$0xff] %v633
                %v635 = vld [vmem:[%s193 + $0xdc0] sm:$0xff]
                %636 = vst [vmem:[%s194 + $0x6e0] sm:$0xff] %v635
                %v637 = vld [vmem:[%s193 + $0xdc8] sm:$0xff]
                %638 = vst [vmem:[%s194 + $0x6e8] sm:$0xff] %v637
                %v639 = vld [vmem:[%s193 + $0xde0] sm:$0xff]
                %640 = vst [vmem:[%s194 + $0x6f0] sm:$0xff] %v639
                %v641 = vld [vmem:[%s193 + $0xde8] sm:$0xff]
                %642 = vst [vmem:[%s194 + $0x6f8] sm:$0xff] %v641
                %v643 = vld [vmem:[%s193 + $0xe00] sm:$0xff]
                %644 = vst [vmem:[%s194 + $0x700] sm:$0xff] %v643
                %v645 = vld [vmem:[%s193 + $0xe08] sm:$0xff]
                %646 = vst [vmem:[%s194 + $0x708] sm:$0xff] %v645
                %v647 = vld [vmem:[%s193 + $0xe20] sm:$0xff]
                %648 = vst [vmem:[%s194 + $0x710] sm:$0xff] %v647
                %v649 = vld [vmem:[%s193 + $0xe28] sm:$0xff]
                %650 = vst [vmem:[%s194 + $0x718] sm:$0xff] %v649
                %v651 = vld [vmem:[%s193 + $0xe40] sm:$0xff]
                %652 = vst [vmem:[%s194 + $0x720] sm:$0xff] %v651
                %v653 = vld [vmem:[%s193 + $0xe48] sm:$0xff]
                %654 = vst [vmem:[%s194 + $0x728] sm:$0xff] %v653
                %v655 = vld [vmem:[%s193 + $0xe60] sm:$0xff]
                %656 = vst [vmem:[%s194 + $0x730] sm:$0xff] %v655
                %v657 = vld [vmem:[%s193 + $0xe68] sm:$0xff]
                %658 = vst [vmem:[%s194 + $0x738] sm:$0xff] %v657
                %v659 = vld [vmem:[%s193 + $0xe80] sm:$0xff]
                %660 = vst [vmem:[%s194 + $0x740] sm:$0xff] %v659
                %v661 = vld [vmem:[%s193 + $0xe88] sm:$0xff]
                %662 = vst [vmem:[%s194 + $0x748] sm:$0xff] %v661
                %v663 = vld [vmem:[%s193 + $0xea0] sm:$0xff]
                %664 = vst [vmem:[%s194 + $0x750] sm:$0xff] %v663
                %v665 = vld [vmem:[%s193 + $0xea8] sm:$0xff]
                %666 = vst [vmem:[%s194 + $0x758] sm:$0xff] %v665
                %v667 = vld [vmem:[%s193 + $0xec0] sm:$0xff]
                %668 = vst [vmem:[%s194 + $0x760] sm:$0xff] %v667
                %v669 = vld [vmem:[%s193 + $0xec8] sm:$0xff]
                %670 = vst [vmem:[%s194 + $0x768] sm:$0xff] %v669
                %v671 = vld [vmem:[%s193 + $0xee0] sm:$0xff]
                %672 = vst [vmem:[%s194 + $0x770] sm:$0xff] %v671
                %v673 = vld [vmem:[%s193 + $0xee8] sm:$0xff]
                %674 = vst [vmem:[%s194 + $0x778] sm:$0xff] %v673
                %v675 = vld [vmem:[%s193 + $0xf00] sm:$0xff]
                %676 = vst [vmem:[%s194 + $0x780] sm:$0xff] %v675
                %v677 = vld [vmem:[%s193 + $0xf08] sm:$0xff]
                %678 = vst [vmem:[%s194 + $0x788] sm:$0xff] %v677
                %v679 = vld [vmem:[%s193 + $0xf20] sm:$0xff]
                %680 = vst [vmem:[%s194 + $0x790] sm:$0xff] %v679
                %v681 = vld [vmem:[%s193 + $0xf28] sm:$0xff]
                %682 = vst [vmem:[%s194 + $0x798] sm:$0xff] %v681
                %v683 = vld [vmem:[%s193 + $0xf40] sm:$0xff]
                %684 = vst [vmem:[%s194 + $0x7a0] sm:$0xff] %v683
                %v685 = vld [vmem:[%s193 + $0xf48] sm:$0xff]
                %686 = vst [vmem:[%s194 + $0x7a8] sm:$0xff] %v685
                %v687 = vld [vmem:[%s193 + $0xf60] sm:$0xff]
                %688 = vst [vmem:[%s194 + $0x7b0] sm:$0xff] %v687
                %v689 = vld [vmem:[%s193 + $0xf68] sm:$0xff]
                %690 = vst [vmem:[%s194 + $0x7b8] sm:$0xff] %v689
                %v691 = vld [vmem:[%s193 + $0xf80] sm:$0xff]
                %692 = vst [vmem:[%s194 + $0x7c0] sm:$0xff] %v691
                %v693 = vld [vmem:[%s193 + $0xf88] sm:$0xff]
                %694 = vst [vmem:[%s194 + $0x7c8] sm:$0xff] %v693
                %v695 = vld [vmem:[%s193 + $0xfa0] sm:$0xff]
                %696 = vst [vmem:[%s194 + $0x7d0] sm:$0xff] %v695
                %v697 = vld [vmem:[%s193 + $0xfa8] sm:$0xff]
                %698 = vst [vmem:[%s194 + $0x7d8] sm:$0xff] %v697
                %v699 = vld [vmem:[%s193 + $0xfc0] sm:$0xff]
                %700 = vst [vmem:[%s194 + $0x7e0] sm:$0xff] %v699
                %v701 = vld [vmem:[%s193 + $0xfc8] sm:$0xff]
                %702 = vst [vmem:[%s194 + $0x7e8] sm:$0xff] %v701
                %v703 = vld [vmem:[%s193 + $0xfe0] sm:$0xff]
                %704 = vst [vmem:[%s194 + $0x7f0] sm:$0xff] %v703
                %v705 = vld [vmem:[%s193 + $0xfe8] sm:$0xff]
                %706 = vst [vmem:[%s194 + $0x7f8] sm:$0xff] %v705
                %v707 = vld [vmem:[%s193 + $0x1000] sm:$0xff]
                %708 = vst [vmem:[%s194 + $0x800] sm:$0xff] %v707
                %v709 = vld [vmem:[%s193 + $0x1008] sm:$0xff]
                %710 = vst [vmem:[%s194 + $0x808] sm:$0xff] %v709
                %v711 = vld [vmem:[%s193 + $0x1020] sm:$0xff]
                %712 = vst [vmem:[%s194 + $0x810] sm:$0xff] %v711
                %v713 = vld [vmem:[%s193 + $0x1028] sm:$0xff]
                %714 = vst [vmem:[%s194 + $0x818] sm:$0xff] %v713
                %v715 = vld [vmem:[%s193 + $0x1040] sm:$0xff]
                %716 = vst [vmem:[%s194 + $0x820] sm:$0xff] %v715
                %v717 = vld [vmem:[%s193 + $0x1048] sm:$0xff]
                %718 = vst [vmem:[%s194 + $0x828] sm:$0xff] %v717
                %v719 = vld [vmem:[%s193 + $0x1060] sm:$0xff]
                %720 = vst [vmem:[%s194 + $0x830] sm:$0xff] %v719
                %v721 = vld [vmem:[%s193 + $0x1068] sm:$0xff]
                %722 = vst [vmem:[%s194 + $0x838] sm:$0xff] %v721
                %v723 = vld [vmem:[%s193 + $0x1080] sm:$0xff]
                %724 = vst [vmem:[%s194 + $0x840] sm:$0xff] %v723
                %v725 = vld [vmem:[%s193 + $0x1088] sm:$0xff]
                %726 = vst [vmem:[%s194 + $0x848] sm:$0xff] %v725
                %v727 = vld [vmem:[%s193 + $0x10a0] sm:$0xff]
                %728 = vst [vmem:[%s194 + $0x850] sm:$0xff] %v727
                %v729 = vld [vmem:[%s193 + $0x10a8] sm:$0xff]
                %730 = vst [vmem:[%s194 + $0x858] sm:$0xff] %v729
                %v731 = vld [vmem:[%s193 + $0x10c0] sm:$0xff]
                %732 = vst [vmem:[%s194 + $0x860] sm:$0xff] %v731
                %v733 = vld [vmem:[%s193 + $0x10c8] sm:$0xff]
                %734 = vst [vmem:[%s194 + $0x868] sm:$0xff] %v733
                %v735 = vld [vmem:[%s193 + $0x10e0] sm:$0xff]
                %736 = vst [vmem:[%s194 + $0x870] sm:$0xff] %v735
                %v737 = vld [vmem:[%s193 + $0x10e8] sm:$0xff]
                %738 = vst [vmem:[%s194 + $0x878] sm:$0xff] %v737
                %v739 = vld [vmem:[%s193 + $0x1100] sm:$0xff]
                %740 = vst [vmem:[%s194 + $0x880] sm:$0xff] %v739
                %v741 = vld [vmem:[%s193 + $0x1108] sm:$0xff]
                %742 = vst [vmem:[%s194 + $0x888] sm:$0xff] %v741
                %v743 = vld [vmem:[%s193 + $0x1120] sm:$0xff]
                %744 = vst [vmem:[%s194 + $0x890] sm:$0xff] %v743
                %v745 = vld [vmem:[%s193 + $0x1128] sm:$0xff]
                %746 = vst [vmem:[%s194 + $0x898] sm:$0xff] %v745
                %v747 = vld [vmem:[%s193 + $0x1140] sm:$0xff]
                %748 = vst [vmem:[%s194 + $0x8a0] sm:$0xff] %v747
                %v749 = vld [vmem:[%s193 + $0x1148] sm:$0xff]
                %750 = vst [vmem:[%s194 + $0x8a8] sm:$0xff] %v749
                %v751 = vld [vmem:[%s193 + $0x1160] sm:$0xff]
                %752 = vst [vmem:[%s194 + $0x8b0] sm:$0xff] %v751
                %v753 = vld [vmem:[%s193 + $0x1168] sm:$0xff]
                %754 = vst [vmem:[%s194 + $0x8b8] sm:$0xff] %v753
                %v755 = vld [vmem:[%s193 + $0x1180] sm:$0xff]
                %756 = vst [vmem:[%s194 + $0x8c0] sm:$0xff] %v755
                %v757 = vld [vmem:[%s193 + $0x1188] sm:$0xff]
                %758 = vst [vmem:[%s194 + $0x8c8] sm:$0xff] %v757
                %v759 = vld [vmem:[%s193 + $0x11a0] sm:$0xff]
                %760 = vst [vmem:[%s194 + $0x8d0] sm:$0xff] %v759
                %v761 = vld [vmem:[%s193 + $0x11a8] sm:$0xff]
                %762 = vst [vmem:[%s194 + $0x8d8] sm:$0xff] %v761
                %v763 = vld [vmem:[%s193 + $0x11c0] sm:$0xff]
                %764 = vst [vmem:[%s194 + $0x8e0] sm:$0xff] %v763
                %v765 = vld [vmem:[%s193 + $0x11c8] sm:$0xff]
                %766 = vst [vmem:[%s194 + $0x8e8] sm:$0xff] %v765
                %v767 = vld [vmem:[%s193 + $0x11e0] sm:$0xff]
                %768 = vst [vmem:[%s194 + $0x8f0] sm:$0xff] %v767
                %v769 = vld [vmem:[%s193 + $0x11e8] sm:$0xff]
                %770 = vst [vmem:[%s194 + $0x8f8] sm:$0xff] %v769
                %v771 = vld [vmem:[%s193 + $0x1200] sm:$0xff]
                %772 = vst [vmem:[%s194 + $0x900] sm:$0xff] %v771
                %v773 = vld [vmem:[%s193 + $0x1208] sm:$0xff]
                %774 = vst [vmem:[%s194 + $0x908] sm:$0xff] %v773
                %v775 = vld [vmem:[%s193 + $0x1220] sm:$0xff]
                %776 = vst [vmem:[%s194 + $0x910] sm:$0xff] %v775
                %v777 = vld [vmem:[%s193 + $0x1228] sm:$0xff]
                %778 = vst [vmem:[%s194 + $0x918] sm:$0xff] %v777
                %v779 = vld [vmem:[%s193 + $0x1240] sm:$0xff]
                %780 = vst [vmem:[%s194 + $0x920] sm:$0xff] %v779
                %v781 = vld [vmem:[%s193 + $0x1248] sm:$0xff]
                %782 = vst [vmem:[%s194 + $0x928] sm:$0xff] %v781
                %v783 = vld [vmem:[%s193 + $0x1260] sm:$0xff]
                %784 = vst [vmem:[%s194 + $0x930] sm:$0xff] %v783
                %v785 = vld [vmem:[%s193 + $0x1268] sm:$0xff]
                %786 = vst [vmem:[%s194 + $0x938] sm:$0xff] %v785
                %v787 = vld [vmem:[%s193 + $0x1280] sm:$0xff]
                %788 = vst [vmem:[%s194 + $0x940] sm:$0xff] %v787
                %v789 = vld [vmem:[%s193 + $0x1288] sm:$0xff]
                %790 = vst [vmem:[%s194 + $0x948] sm:$0xff] %v789
                %v791 = vld [vmem:[%s193 + $0x12a0] sm:$0xff]
                %792 = vst [vmem:[%s194 + $0x950] sm:$0xff] %v791
                %v793 = vld [vmem:[%s193 + $0x12a8] sm:$0xff]
                %794 = vst [vmem:[%s194 + $0x958] sm:$0xff] %v793
                %v795 = vld [vmem:[%s193 + $0x12c0] sm:$0xff]
                %796 = vst [vmem:[%s194 + $0x960] sm:$0xff] %v795
                %v797 = vld [vmem:[%s193 + $0x12c8] sm:$0xff]
                %798 = vst [vmem:[%s194 + $0x968] sm:$0xff] %v797
                %v799 = vld [vmem:[%s193 + $0x12e0] sm:$0xff]
                %800 = vst [vmem:[%s194 + $0x970] sm:$0xff] %v799
                %v801 = vld [vmem:[%s193 + $0x12e8] sm:$0xff]
                %802 = vst [vmem:[%s194 + $0x978] sm:$0xff] %v801
                %v803 = vld [vmem:[%s193 + $0x1300] sm:$0xff]
                %804 = vst [vmem:[%s194 + $0x980] sm:$0xff] %v803
                %v805 = vld [vmem:[%s193 + $0x1308] sm:$0xff]
                %806 = vst [vmem:[%s194 + $0x988] sm:$0xff] %v805
                %v807 = vld [vmem:[%s193 + $0x1320] sm:$0xff]
                %808 = vst [vmem:[%s194 + $0x990] sm:$0xff] %v807
                %v809 = vld [vmem:[%s193 + $0x1328] sm:$0xff]
                %810 = vst [vmem:[%s194 + $0x998] sm:$0xff] %v809
                %v811 = vld [vmem:[%s193 + $0x1340] sm:$0xff]
                %812 = vst [vmem:[%s194 + $0x9a0] sm:$0xff] %v811
                %v813 = vld [vmem:[%s193 + $0x1348] sm:$0xff]
                %814 = vst [vmem:[%s194 + $0x9a8] sm:$0xff] %v813
                %v815 = vld [vmem:[%s193 + $0x1360] sm:$0xff]
                %816 = vst [vmem:[%s194 + $0x9b0] sm:$0xff] %v815
                %v817 = vld [vmem:[%s193 + $0x1368] sm:$0xff]
                %818 = vst [vmem:[%s194 + $0x9b8] sm:$0xff] %v817
                %v819 = vld [vmem:[%s193 + $0x1380] sm:$0xff]
                %820 = vst [vmem:[%s194 + $0x9c0] sm:$0xff] %v819
                %v821 = vld [vmem:[%s193 + $0x1388] sm:$0xff]
                %822 = vst [vmem:[%s194 + $0x9c8] sm:$0xff] %v821
                %v823 = vld [vmem:[%s193 + $0x13a0] sm:$0xff]
                %824 = vst [vmem:[%s194 + $0x9d0] sm:$0xff] %v823
                %v825 = vld [vmem:[%s193 + $0x13a8] sm:$0xff]
                %826 = vst [vmem:[%s194 + $0x9d8] sm:$0xff] %v825
                %v827 = vld [vmem:[%s193 + $0x13c0] sm:$0xff]
                %828 = vst [vmem:[%s194 + $0x9e0] sm:$0xff] %v827
                %v829 = vld [vmem:[%s193 + $0x13c8] sm:$0xff]
                %830 = vst [vmem:[%s194 + $0x9e8] sm:$0xff] %v829
                %v831 = vld [vmem:[%s193 + $0x13e0] sm:$0xff]
                %832 = vst [vmem:[%s194 + $0x9f0] sm:$0xff] %v831
                %v833 = vld [vmem:[%s193 + $0x13e8] sm:$0xff]
                %834 = vst [vmem:[%s194 + $0x9f8] sm:$0xff] %v833
                %v835 = vld [vmem:[%s193 + $0x1400] sm:$0xff]
                %836 = vst [vmem:[%s194 + $0xa00] sm:$0xff] %v835
                %v837 = vld [vmem:[%s193 + $0x1408] sm:$0xff]
                %838 = vst [vmem:[%s194 + $0xa08] sm:$0xff] %v837
                %v839 = vld [vmem:[%s193 + $0x1420] sm:$0xff]
                %840 = vst [vmem:[%s194 + $0xa10] sm:$0xff] %v839
                %v841 = vld [vmem:[%s193 + $0x1428] sm:$0xff]
                %842 = vst [vmem:[%s194 + $0xa18] sm:$0xff] %v841
                %v843 = vld [vmem:[%s193 + $0x1440] sm:$0xff]
                %844 = vst [vmem:[%s194 + $0xa20] sm:$0xff] %v843
                %v845 = vld [vmem:[%s193 + $0x1448] sm:$0xff]
                %846 = vst [vmem:[%s194 + $0xa28] sm:$0xff] %v845
                %v847 = vld [vmem:[%s193 + $0x1460] sm:$0xff]
                %848 = vst [vmem:[%s194 + $0xa30] sm:$0xff] %v847
                %v849 = vld [vmem:[%s193 + $0x1468] sm:$0xff]
                %850 = vst [vmem:[%s194 + $0xa38] sm:$0xff] %v849
                %v851 = vld [vmem:[%s193 + $0x1480] sm:$0xff]
                %852 = vst [vmem:[%s194 + $0xa40] sm:$0xff] %v851
                %v853 = vld [vmem:[%s193 + $0x1488] sm:$0xff]
                %854 = vst [vmem:[%s194 + $0xa48] sm:$0xff] %v853
                %v855 = vld [vmem:[%s193 + $0x14a0] sm:$0xff]
                %856 = vst [vmem:[%s194 + $0xa50] sm:$0xff] %v855
                %v857 = vld [vmem:[%s193 + $0x14a8] sm:$0xff]
                %858 = vst [vmem:[%s194 + $0xa58] sm:$0xff] %v857
                %v859 = vld [vmem:[%s193 + $0x14c0] sm:$0xff]
                %860 = vst [vmem:[%s194 + $0xa60] sm:$0xff] %v859
                %v861 = vld [vmem:[%s193 + $0x14c8] sm:$0xff]
                %862 = vst [vmem:[%s194 + $0xa68] sm:$0xff] %v861
                %v863 = vld [vmem:[%s193 + $0x14e0] sm:$0xff]
                %864 = vst [vmem:[%s194 + $0xa70] sm:$0xff] %v863
                %v865 = vld [vmem:[%s193 + $0x14e8] sm:$0xff]
                %866 = vst [vmem:[%s194 + $0xa78] sm:$0xff] %v865
                %v867 = vld [vmem:[%s193 + $0x1500] sm:$0xff]
                %868 = vst [vmem:[%s194 + $0xa80] sm:$0xff] %v867
                %v869 = vld [vmem:[%s193 + $0x1508] sm:$0xff]
                %870 = vst [vmem:[%s194 + $0xa88] sm:$0xff] %v869
                %v871 = vld [vmem:[%s193 + $0x1520] sm:$0xff]
                %872 = vst [vmem:[%s194 + $0xa90] sm:$0xff] %v871
                %v873 = vld [vmem:[%s193 + $0x1528] sm:$0xff]
                %874 = vst [vmem:[%s194 + $0xa98] sm:$0xff] %v873
                %v875 = vld [vmem:[%s193 + $0x1540] sm:$0xff]
                %876 = vst [vmem:[%s194 + $0xaa0] sm:$0xff] %v875
                %v877 = vld [vmem:[%s193 + $0x1548] sm:$0xff]
                %878 = vst [vmem:[%s194 + $0xaa8] sm:$0xff] %v877
                %v879 = vld [vmem:[%s193 + $0x1560] sm:$0xff]
                %880 = vst [vmem:[%s194 + $0xab0] sm:$0xff] %v879
                %v881 = vld [vmem:[%s193 + $0x1568] sm:$0xff]
                %882 = vst [vmem:[%s194 + $0xab8] sm:$0xff] %v881
                %v883 = vld [vmem:[%s193 + $0x1580] sm:$0xff]
                %884 = vst [vmem:[%s194 + $0xac0] sm:$0xff] %v883
                %v885 = vld [vmem:[%s193 + $0x1588] sm:$0xff]
                %886 = vst [vmem:[%s194 + $0xac8] sm:$0xff] %v885
                %v887 = vld [vmem:[%s193 + $0x15a0] sm:$0xff]
                %888 = vst [vmem:[%s194 + $0xad0] sm:$0xff] %v887
                %v889 = vld [vmem:[%s193 + $0x15a8] sm:$0xff]
                %890 = vst [vmem:[%s194 + $0xad8] sm:$0xff] %v889
                %v891 = vld [vmem:[%s193 + $0x15c0] sm:$0xff]
                %892 = vst [vmem:[%s194 + $0xae0] sm:$0xff] %v891
                %v893 = vld [vmem:[%s193 + $0x15c8] sm:$0xff]
                %894 = vst [vmem:[%s194 + $0xae8] sm:$0xff] %v893
                %v895 = vld [vmem:[%s193 + $0x15e0] sm:$0xff]
                %896 = vst [vmem:[%s194 + $0xaf0] sm:$0xff] %v895
                %v897 = vld [vmem:[%s193 + $0x15e8] sm:$0xff]
                %898 = vst [vmem:[%s194 + $0xaf8] sm:$0xff] %v897
                %v899 = vld [vmem:[%s193 + $0x1600] sm:$0xff]
                %900 = vst [vmem:[%s194 + $0xb00] sm:$0xff] %v899
                %v901 = vld [vmem:[%s193 + $0x1608] sm:$0xff]
                %902 = vst [vmem:[%s194 + $0xb08] sm:$0xff] %v901
                %v903 = vld [vmem:[%s193 + $0x1620] sm:$0xff]
                %904 = vst [vmem:[%s194 + $0xb10] sm:$0xff] %v903
                %v905 = vld [vmem:[%s193 + $0x1628] sm:$0xff]
                %906 = vst [vmem:[%s194 + $0xb18] sm:$0xff] %v905
                %v907 = vld [vmem:[%s193 + $0x1640] sm:$0xff]
                %908 = vst [vmem:[%s194 + $0xb20] sm:$0xff] %v907
                %v909 = vld [vmem:[%s193 + $0x1648] sm:$0xff]
                %910 = vst [vmem:[%s194 + $0xb28] sm:$0xff] %v909
                %v911 = vld [vmem:[%s193 + $0x1660] sm:$0xff]
                %912 = vst [vmem:[%s194 + $0xb30] sm:$0xff] %v911
                %v913 = vld [vmem:[%s193 + $0x1668] sm:$0xff]
                %914 = vst [vmem:[%s194 + $0xb38] sm:$0xff] %v913
                %v915 = vld [vmem:[%s193 + $0x1680] sm:$0xff]
                %916 = vst [vmem:[%s194 + $0xb40] sm:$0xff] %v915
                %v917 = vld [vmem:[%s193 + $0x1688] sm:$0xff]
                %918 = vst [vmem:[%s194 + $0xb48] sm:$0xff] %v917
                %v919 = vld [vmem:[%s193 + $0x16a0] sm:$0xff]
                %920 = vst [vmem:[%s194 + $0xb50] sm:$0xff] %v919
                %v921 = vld [vmem:[%s193 + $0x16a8] sm:$0xff]
                %922 = vst [vmem:[%s194 + $0xb58] sm:$0xff] %v921
                %v923 = vld [vmem:[%s193 + $0x16c0] sm:$0xff]
                %924 = vst [vmem:[%s194 + $0xb60] sm:$0xff] %v923
                %v925 = vld [vmem:[%s193 + $0x16c8] sm:$0xff]
                %926 = vst [vmem:[%s194 + $0xb68] sm:$0xff] %v925
                %v927 = vld [vmem:[%s193 + $0x16e0] sm:$0xff]
                %928 = vst [vmem:[%s194 + $0xb70] sm:$0xff] %v927
                %v929 = vld [vmem:[%s193 + $0x16e8] sm:$0xff]
                %930 = vst [vmem:[%s194 + $0xb78] sm:$0xff] %v929
                %v931 = vld [vmem:[%s193 + $0x1700] sm:$0xff]
                %932 = vst [vmem:[%s194 + $0xb80] sm:$0xff] %v931
                %v933 = vld [vmem:[%s193 + $0x1708] sm:$0xff]
                %934 = vst [vmem:[%s194 + $0xb88] sm:$0xff] %v933
                %v935 = vld [vmem:[%s193 + $0x1720] sm:$0xff]
                %936 = vst [vmem:[%s194 + $0xb90] sm:$0xff] %v935
                %v937 = vld [vmem:[%s193 + $0x1728] sm:$0xff]
                %938 = vst [vmem:[%s194 + $0xb98] sm:$0xff] %v937
                %v939 = vld [vmem:[%s193 + $0x1740] sm:$0xff]
                %940 = vst [vmem:[%s194 + $0xba0] sm:$0xff] %v939
                %v941 = vld [vmem:[%s193 + $0x1748] sm:$0xff]
                %942 = vst [vmem:[%s194 + $0xba8] sm:$0xff] %v941
                %v943 = vld [vmem:[%s193 + $0x1760] sm:$0xff]
                %944 = vst [vmem:[%s194 + $0xbb0] sm:$0xff] %v943
                %v945 = vld [vmem:[%s193 + $0x1768] sm:$0xff]
                %946 = vst [vmem:[%s194 + $0xbb8] sm:$0xff] %v945
                %v947 = vld [vmem:[%s193 + $0x1780] sm:$0xff]
                %948 = vst [vmem:[%s194 + $0xbc0] sm:$0xff] %v947
                %v949 = vld [vmem:[%s193 + $0x1788] sm:$0xff]
                %950 = vst [vmem:[%s194 + $0xbc8] sm:$0xff] %v949
                %v951 = vld [vmem:[%s193 + $0x17a0] sm:$0xff]
                %952 = vst [vmem:[%s194 + $0xbd0] sm:$0xff] %v951
                %v953 = vld [vmem:[%s193 + $0x17a8] sm:$0xff]
                %954 = vst [vmem:[%s194 + $0xbd8] sm:$0xff] %v953
                %v955 = vld [vmem:[%s193 + $0x17c0] sm:$0xff]
                %956 = vst [vmem:[%s194 + $0xbe0] sm:$0xff] %v955
                %v957 = vld [vmem:[%s193 + $0x17c8] sm:$0xff]
                %958 = vst [vmem:[%s194 + $0xbe8] sm:$0xff] %v957
                %v959 = vld [vmem:[%s193 + $0x17e0] sm:$0xff]
                %960 = vst [vmem:[%s194 + $0xbf0] sm:$0xff] %v959
                %v961 = vld [vmem:[%s193 + $0x17e8] sm:$0xff]
                %962 = vst [vmem:[%s194 + $0xbf8] sm:$0xff] %v961
                %v963 = vld [vmem:[%s193 + $0x1800] sm:$0xff]
                %964 = vst [vmem:[%s194 + $0xc00] sm:$0xff] %v963
                %v965 = vld [vmem:[%s193 + $0x1808] sm:$0xff]
                %966 = vst [vmem:[%s194 + $0xc08] sm:$0xff] %v965
                %v967 = vld [vmem:[%s193 + $0x1820] sm:$0xff]
                %968 = vst [vmem:[%s194 + $0xc10] sm:$0xff] %v967
                %v969 = vld [vmem:[%s193 + $0x1828] sm:$0xff]
                %970 = vst [vmem:[%s194 + $0xc18] sm:$0xff] %v969
                %v971 = vld [vmem:[%s193 + $0x1840] sm:$0xff]
                %972 = vst [vmem:[%s194 + $0xc20] sm:$0xff] %v971
                %v973 = vld [vmem:[%s193 + $0x1848] sm:$0xff]
                %974 = vst [vmem:[%s194 + $0xc28] sm:$0xff] %v973
                %v975 = vld [vmem:[%s193 + $0x1860] sm:$0xff]
                %976 = vst [vmem:[%s194 + $0xc30] sm:$0xff] %v975
                %v977 = vld [vmem:[%s193 + $0x1868] sm:$0xff]
                %978 = vst [vmem:[%s194 + $0xc38] sm:$0xff] %v977
                %v979 = vld [vmem:[%s193 + $0x1880] sm:$0xff]
                %980 = vst [vmem:[%s194 + $0xc40] sm:$0xff] %v979
                %v981 = vld [vmem:[%s193 + $0x1888] sm:$0xff]
                %982 = vst [vmem:[%s194 + $0xc48] sm:$0xff] %v981
                %v983 = vld [vmem:[%s193 + $0x18a0] sm:$0xff]
                %984 = vst [vmem:[%s194 + $0xc50] sm:$0xff] %v983
                %v985 = vld [vmem:[%s193 + $0x18a8] sm:$0xff]
                %986 = vst [vmem:[%s194 + $0xc58] sm:$0xff] %v985
                %v987 = vld [vmem:[%s193 + $0x18c0] sm:$0xff]
                %988 = vst [vmem:[%s194 + $0xc60] sm:$0xff] %v987
                %v989 = vld [vmem:[%s193 + $0x18c8] sm:$0xff]
                %990 = vst [vmem:[%s194 + $0xc68] sm:$0xff] %v989
                %v991 = vld [vmem:[%s193 + $0x18e0] sm:$0xff]
                %992 = vst [vmem:[%s194 + $0xc70] sm:$0xff] %v991
                %v993 = vld [vmem:[%s193 + $0x18e8] sm:$0xff]
                %994 = vst [vmem:[%s194 + $0xc78] sm:$0xff] %v993
                %v995 = vld [vmem:[%s193 + $0x1900] sm:$0xff]
                %996 = vst [vmem:[%s194 + $0xc80] sm:$0xff] %v995
                %v997 = vld [vmem:[%s193 + $0x1908] sm:$0xff]
                %998 = vst [vmem:[%s194 + $0xc88] sm:$0xff] %v997
                %v999 = vld [vmem:[%s193 + $0x1920] sm:$0xff]
                %1000 = vst [vmem:[%s194 + $0xc90] sm:$0xff] %v999
                %v1001 = vld [vmem:[%s193 + $0x1928] sm:$0xff]
                %1002 = vst [vmem:[%s194 + $0xc98] sm:$0xff] %v1001
                %v1003 = vld [vmem:[%s193 + $0x1940] sm:$0xff]
                %1004 = vst [vmem:[%s194 + $0xca0] sm:$0xff] %v1003
                %v1005 = vld [vmem:[%s193 + $0x1948] sm:$0xff]
                %1006 = vst [vmem:[%s194 + $0xca8] sm:$0xff] %v1005
                %v1007 = vld [vmem:[%s193 + $0x1960] sm:$0xff]
                %1008 = vst [vmem:[%s194 + $0xcb0] sm:$0xff] %v1007
                %v1009 = vld [vmem:[%s193 + $0x1968] sm:$0xff]
                %1010 = vst [vmem:[%s194 + $0xcb8] sm:$0xff] %v1009
                %v1011 = vld [vmem:[%s193 + $0x1980] sm:$0xff]
                %1012 = vst [vmem:[%s194 + $0xcc0] sm:$0xff] %v1011
                %v1013 = vld [vmem:[%s193 + $0x1988] sm:$0xff]
                %1014 = vst [vmem:[%s194 + $0xcc8] sm:$0xff] %v1013
                %v1015 = vld [vmem:[%s193 + $0x19a0] sm:$0xff]
                %1016 = vst [vmem:[%s194 + $0xcd0] sm:$0xff] %v1015
                %v1017 = vld [vmem:[%s193 + $0x19a8] sm:$0xff]
                %1018 = vst [vmem:[%s194 + $0xcd8] sm:$0xff] %v1017
                %v1019 = vld [vmem:[%s193 + $0x19c0] sm:$0xff]
                %1020 = vst [vmem:[%s194 + $0xce0] sm:$0xff] %v1019
                %v1021 = vld [vmem:[%s193 + $0x19c8] sm:$0xff]
                %1022 = vst [vmem:[%s194 + $0xce8] sm:$0xff] %v1021
                %v1023 = vld [vmem:[%s193 + $0x19e0] sm:$0xff]
                %1024 = vst [vmem:[%s194 + $0xcf0] sm:$0xff] %v1023
                %v1025 = vld [vmem:[%s193 + $0x19e8] sm:$0xff]
                %1026 = vst [vmem:[%s194 + $0xcf8] sm:$0xff] %v1025
                %v1027 = vld [vmem:[%s193 + $0x1a00] sm:$0xff]
                %1028 = vst [vmem:[%s194 + $0xd00] sm:$0xff] %v1027
                %v1029 = vld [vmem:[%s193 + $0x1a08] sm:$0xff]
                %1030 = vst [vmem:[%s194 + $0xd08] sm:$0xff] %v1029
                %v1031 = vld [vmem:[%s193 + $0x1a20] sm:$0xff]
                %1032 = vst [vmem:[%s194 + $0xd10] sm:$0xff] %v1031
                %v1033 = vld [vmem:[%s193 + $0x1a28] sm:$0xff]
                %1034 = vst [vmem:[%s194 + $0xd18] sm:$0xff] %v1033
                %v1035 = vld [vmem:[%s193 + $0x1a40] sm:$0xff]
                %1036 = vst [vmem:[%s194 + $0xd20] sm:$0xff] %v1035
                %v1037 = vld [vmem:[%s193 + $0x1a48] sm:$0xff]
                %1038 = vst [vmem:[%s194 + $0xd28] sm:$0xff] %v1037
                %v1039 = vld [vmem:[%s193 + $0x1a60] sm:$0xff]
                %1040 = vst [vmem:[%s194 + $0xd30] sm:$0xff] %v1039
                %v1041 = vld [vmem:[%s193 + $0x1a68] sm:$0xff]
                %1042 = vst [vmem:[%s194 + $0xd38] sm:$0xff] %v1041
                %v1043 = vld [vmem:[%s193 + $0x1a80] sm:$0xff]
                %1044 = vst [vmem:[%s194 + $0xd40] sm:$0xff] %v1043
                %v1045 = vld [vmem:[%s193 + $0x1a88] sm:$0xff]
                %1046 = vst [vmem:[%s194 + $0xd48] sm:$0xff] %v1045
                %v1047 = vld [vmem:[%s193 + $0x1aa0] sm:$0xff]
                %1048 = vst [vmem:[%s194 + $0xd50] sm:$0xff] %v1047
                %v1049 = vld [vmem:[%s193 + $0x1aa8] sm:$0xff]
                %1050 = vst [vmem:[%s194 + $0xd58] sm:$0xff] %v1049
                %v1051 = vld [vmem:[%s193 + $0x1ac0] sm:$0xff]
                %1052 = vst [vmem:[%s194 + $0xd60] sm:$0xff] %v1051
                %v1053 = vld [vmem:[%s193 + $0x1ac8] sm:$0xff]
                %1054 = vst [vmem:[%s194 + $0xd68] sm:$0xff] %v1053
                %v1055 = vld [vmem:[%s193 + $0x1ae0] sm:$0xff]
                %1056 = vst [vmem:[%s194 + $0xd70] sm:$0xff] %v1055
                %v1057 = vld [vmem:[%s193 + $0x1ae8] sm:$0xff]
                %1058 = vst [vmem:[%s194 + $0xd78] sm:$0xff] %v1057
                %v1059 = vld [vmem:[%s193 + $0x1b00] sm:$0xff]
                %1060 = vst [vmem:[%s194 + $0xd80] sm:$0xff] %v1059
                %v1061 = vld [vmem:[%s193 + $0x1b08] sm:$0xff]
                %1062 = vst [vmem:[%s194 + $0xd88] sm:$0xff] %v1061
                %v1063 = vld [vmem:[%s193 + $0x1b20] sm:$0xff]
                %1064 = vst [vmem:[%s194 + $0xd90] sm:$0xff] %v1063
                %v1065 = vld [vmem:[%s193 + $0x1b28] sm:$0xff]
                %1066 = vst [vmem:[%s194 + $0xd98] sm:$0xff] %v1065
                %v1067 = vld [vmem:[%s193 + $0x1b40] sm:$0xff]
                %1068 = vst [vmem:[%s194 + $0xda0] sm:$0xff] %v1067
                %v1069 = vld [vmem:[%s193 + $0x1b48] sm:$0xff]
                %1070 = vst [vmem:[%s194 + $0xda8] sm:$0xff] %v1069
                %v1071 = vld [vmem:[%s193 + $0x1b60] sm:$0xff]
                %1072 = vst [vmem:[%s194 + $0xdb0] sm:$0xff] %v1071
                %v1073 = vld [vmem:[%s193 + $0x1b68] sm:$0xff]
                %1074 = vst [vmem:[%s194 + $0xdb8] sm:$0xff] %v1073
                %v1075 = vld [vmem:[%s193 + $0x1b80] sm:$0xff]
                %1076 = vst [vmem:[%s194 + $0xdc0] sm:$0xff] %v1075
                %v1077 = vld [vmem:[%s193 + $0x1b88] sm:$0xff]
                %1078 = vst [vmem:[%s194 + $0xdc8] sm:$0xff] %v1077
                %v1079 = vld [vmem:[%s193 + $0x1ba0] sm:$0xff]
                %1080 = vst [vmem:[%s194 + $0xdd0] sm:$0xff] %v1079
                %v1081 = vld [vmem:[%s193 + $0x1ba8] sm:$0xff]
                %1082 = vst [vmem:[%s194 + $0xdd8] sm:$0xff] %v1081
                %v1083 = vld [vmem:[%s193 + $0x1bc0] sm:$0xff]
                %1084 = vst [vmem:[%s194 + $0xde0] sm:$0xff] %v1083
                %v1085 = vld [vmem:[%s193 + $0x1bc8] sm:$0xff]
                %1086 = vst [vmem:[%s194 + $0xde8] sm:$0xff] %v1085
                %v1087 = vld [vmem:[%s193 + $0x1be0] sm:$0xff]
                %1088 = vst [vmem:[%s194 + $0xdf0] sm:$0xff] %v1087
                %v1089 = vld [vmem:[%s193 + $0x1be8] sm:$0xff]
                %1090 = vst [vmem:[%s194 + $0xdf8] sm:$0xff] %v1089
                %v1091 = vld [vmem:[%s193 + $0x1c00] sm:$0xff]
                %1092 = vst [vmem:[%s194 + $0xe00] sm:$0xff] %v1091
                %v1093 = vld [vmem:[%s193 + $0x1c08] sm:$0xff]
                %1094 = vst [vmem:[%s194 + $0xe08] sm:$0xff] %v1093
                %v1095 = vld [vmem:[%s193 + $0x1c20] sm:$0xff]
                %1096 = vst [vmem:[%s194 + $0xe10] sm:$0xff] %v1095
                %v1097 = vld [vmem:[%s193 + $0x1c28] sm:$0xff]
                %1098 = vst [vmem:[%s194 + $0xe18] sm:$0xff] %v1097
                %v1099 = vld [vmem:[%s193 + $0x1c40] sm:$0xff]
                %1100 = vst [vmem:[%s194 + $0xe20] sm:$0xff] %v1099
                %v1101 = vld [vmem:[%s193 + $0x1c48] sm:$0xff]
                %1102 = vst [vmem:[%s194 + $0xe28] sm:$0xff] %v1101
                %v1103 = vld [vmem:[%s193 + $0x1c60] sm:$0xff]
                %1104 = vst [vmem:[%s194 + $0xe30] sm:$0xff] %v1103
                %v1105 = vld [vmem:[%s193 + $0x1c68] sm:$0xff]
                %1106 = vst [vmem:[%s194 + $0xe38] sm:$0xff] %v1105
                %v1107 = vld [vmem:[%s193 + $0x1c80] sm:$0xff]
                %1108 = vst [vmem:[%s194 + $0xe40] sm:$0xff] %v1107
                %v1109 = vld [vmem:[%s193 + $0x1c88] sm:$0xff]
                %1110 = vst [vmem:[%s194 + $0xe48] sm:$0xff] %v1109
                %v1111 = vld [vmem:[%s193 + $0x1ca0] sm:$0xff]
                %1112 = vst [vmem:[%s194 + $0xe50] sm:$0xff] %v1111
                %v1113 = vld [vmem:[%s193 + $0x1ca8] sm:$0xff]
                %1114 = vst [vmem:[%s194 + $0xe58] sm:$0xff] %v1113
                %v1115 = vld [vmem:[%s193 + $0x1cc0] sm:$0xff]
                %1116 = vst [vmem:[%s194 + $0xe60] sm:$0xff] %v1115
                %v1117 = vld [vmem:[%s193 + $0x1cc8] sm:$0xff]
                %1118 = vst [vmem:[%s194 + $0xe68] sm:$0xff] %v1117
                %v1119 = vld [vmem:[%s193 + $0x1ce0] sm:$0xff]
                %1120 = vst [vmem:[%s194 + $0xe70] sm:$0xff] %v1119
                %v1121 = vld [vmem:[%s193 + $0x1ce8] sm:$0xff]
                %1122 = vst [vmem:[%s194 + $0xe78] sm:$0xff] %v1121
                %v1123 = vld [vmem:[%s193 + $0x1d00] sm:$0xff]
                %1124 = vst [vmem:[%s194 + $0xe80] sm:$0xff] %v1123
                %v1125 = vld [vmem:[%s193 + $0x1d08] sm:$0xff]
                %1126 = vst [vmem:[%s194 + $0xe88] sm:$0xff] %v1125
                %v1127 = vld [vmem:[%s193 + $0x1d20] sm:$0xff]
                %1128 = vst [vmem:[%s194 + $0xe90] sm:$0xff] %v1127
                %v1129 = vld [vmem:[%s193 + $0x1d28] sm:$0xff]
                %1130 = vst [vmem:[%s194 + $0xe98] sm:$0xff] %v1129
                %v1131 = vld [vmem:[%s193 + $0x1d40] sm:$0xff]
                %1132 = vst [vmem:[%s194 + $0xea0] sm:$0xff] %v1131
                %v1133 = vld [vmem:[%s193 + $0x1d48] sm:$0xff]
                %1134 = vst [vmem:[%s194 + $0xea8] sm:$0xff] %v1133
                %v1135 = vld [vmem:[%s193 + $0x1d60] sm:$0xff]
                %1136 = vst [vmem:[%s194 + $0xeb0] sm:$0xff] %v1135
                %v1137 = vld [vmem:[%s193 + $0x1d68] sm:$0xff]
                %1138 = vst [vmem:[%s194 + $0xeb8] sm:$0xff] %v1137
                %v1139 = vld [vmem:[%s193 + $0x1d80] sm:$0xff]
                %1140 = vst [vmem:[%s194 + $0xec0] sm:$0xff] %v1139
                %v1141 = vld [vmem:[%s193 + $0x1d88] sm:$0xff]
                %1142 = vst [vmem:[%s194 + $0xec8] sm:$0xff] %v1141
                %v1143 = vld [vmem:[%s193 + $0x1da0] sm:$0xff]
                %1144 = vst [vmem:[%s194 + $0xed0] sm:$0xff] %v1143
                %v1145 = vld [vmem:[%s193 + $0x1da8] sm:$0xff]
                %1146 = vst [vmem:[%s194 + $0xed8] sm:$0xff] %v1145
                %v1147 = vld [vmem:[%s193 + $0x1dc0] sm:$0xff]
                %1148 = vst [vmem:[%s194 + $0xee0] sm:$0xff] %v1147
                %v1149 = vld [vmem:[%s193 + $0x1dc8] sm:$0xff]
                %1150 = vst [vmem:[%s194 + $0xee8] sm:$0xff] %v1149
                %v1151 = vld [vmem:[%s193 + $0x1de0] sm:$0xff]
                %1152 = vst [vmem:[%s194 + $0xef0] sm:$0xff] %v1151
                %v1153 = vld [vmem:[%s193 + $0x1de8] sm:$0xff]
                %1154 = vst [vmem:[%s194 + $0xef8] sm:$0xff] %v1153
                %v1155 = vld [vmem:[%s193 + $0x1e00] sm:$0xff]
                %1156 = vst [vmem:[%s194 + $0xf00] sm:$0xff] %v1155
                %v1157 = vld [vmem:[%s193 + $0x1e08] sm:$0xff]
                %1158 = vst [vmem:[%s194 + $0xf08] sm:$0xff] %v1157
                %v1159 = vld [vmem:[%s193 + $0x1e20] sm:$0xff]
                %1160 = vst [vmem:[%s194 + $0xf10] sm:$0xff] %v1159
                %v1161 = vld [vmem:[%s193 + $0x1e28] sm:$0xff]
                %1162 = vst [vmem:[%s194 + $0xf18] sm:$0xff] %v1161
                %v1163 = vld [vmem:[%s193 + $0x1e40] sm:$0xff]
                %1164 = vst [vmem:[%s194 + $0xf20] sm:$0xff] %v1163
                %v1165 = vld [vmem:[%s193 + $0x1e48] sm:$0xff]
                %1166 = vst [vmem:[%s194 + $0xf28] sm:$0xff] %v1165
                %v1167 = vld [vmem:[%s193 + $0x1e60] sm:$0xff]
                %1168 = vst [vmem:[%s194 + $0xf30] sm:$0xff] %v1167
                %v1169 = vld [vmem:[%s193 + $0x1e68] sm:$0xff]
                %1170 = vst [vmem:[%s194 + $0xf38] sm:$0xff] %v1169
                %v1171 = vld [vmem:[%s193 + $0x1e80] sm:$0xff]
                %1172 = vst [vmem:[%s194 + $0xf40] sm:$0xff] %v1171
                %v1173 = vld [vmem:[%s193 + $0x1e88] sm:$0xff]
                %1174 = vst [vmem:[%s194 + $0xf48] sm:$0xff] %v1173
                %v1175 = vld [vmem:[%s193 + $0x1ea0] sm:$0xff]
                %1176 = vst [vmem:[%s194 + $0xf50] sm:$0xff] %v1175
                %v1177 = vld [vmem:[%s193 + $0x1ea8] sm:$0xff]
                %1178 = vst [vmem:[%s194 + $0xf58] sm:$0xff] %v1177
                %v1179 = vld [vmem:[%s193 + $0x1ec0] sm:$0xff]
                %1180 = vst [vmem:[%s194 + $0xf60] sm:$0xff] %v1179
                %v1181 = vld [vmem:[%s193 + $0x1ec8] sm:$0xff]
                %1182 = vst [vmem:[%s194 + $0xf68] sm:$0xff] %v1181
                %v1183 = vld [vmem:[%s193 + $0x1ee0] sm:$0xff]
                %1184 = vst [vmem:[%s194 + $0xf70] sm:$0xff] %v1183
                %v1185 = vld [vmem:[%s193 + $0x1ee8] sm:$0xff]
                %1186 = vst [vmem:[%s194 + $0xf78] sm:$0xff] %v1185
                %v1187 = vld [vmem:[%s193 + $0x1f00] sm:$0xff]
                %1188 = vst [vmem:[%s194 + $0xf80] sm:$0xff] %v1187
                %v1189 = vld [vmem:[%s193 + $0x1f08] sm:$0xff]
                %1190 = vst [vmem:[%s194 + $0xf88] sm:$0xff] %v1189
                %v1191 = vld [vmem:[%s193 + $0x1f20] sm:$0xff]
                %1192 = vst [vmem:[%s194 + $0xf90] sm:$0xff] %v1191
                %v1193 = vld [vmem:[%s193 + $0x1f28] sm:$0xff]
                %1194 = vst [vmem:[%s194 + $0xf98] sm:$0xff] %v1193
                %v1195 = vld [vmem:[%s193 + $0x1f40] sm:$0xff]
                %1196 = vst [vmem:[%s194 + $0xfa0] sm:$0xff] %v1195
                %v1197 = vld [vmem:[%s193 + $0x1f48] sm:$0xff]
                %1198 = vst [vmem:[%s194 + $0xfa8] sm:$0xff] %v1197
                %v1199 = vld [vmem:[%s193 + $0x1f60] sm:$0xff]
                %1200 = vst [vmem:[%s194 + $0xfb0] sm:$0xff] %v1199
                %v1201 = vld [vmem:[%s193 + $0x1f68] sm:$0xff]
                %1202 = vst [vmem:[%s194 + $0xfb8] sm:$0xff] %v1201
                %v1203 = vld [vmem:[%s193 + $0x1f80] sm:$0xff]
                %1204 = vst [vmem:[%s194 + $0xfc0] sm:$0xff] %v1203
                %v1205 = vld [vmem:[%s193 + $0x1f88] sm:$0xff]
                %1206 = vst [vmem:[%s194 + $0xfc8] sm:$0xff] %v1205
                %v1207 = vld [vmem:[%s193 + $0x1fa0] sm:$0xff]
                %1208 = vst [vmem:[%s194 + $0xfd0] sm:$0xff] %v1207
                %v1209 = vld [vmem:[%s193 + $0x1fa8] sm:$0xff]
                %1210 = vst [vmem:[%s194 + $0xfd8] sm:$0xff] %v1209
                %v1211 = vld [vmem:[%s193 + $0x1fc0] sm:$0xff]
                %1212 = vst [vmem:[%s194 + $0xfe0] sm:$0xff] %v1211
                %v1213 = vld [vmem:[%s193 + $0x1fc8] sm:$0xff]
                %1214 = vst [vmem:[%s194 + $0xfe8] sm:$0xff] %v1213
                %v1215 = vld [vmem:[%s193 + $0x1fe0] sm:$0xff]
                %1216 = vst [vmem:[%s194 + $0xff0] sm:$0xff] %v1215
                %v1217 = vld [vmem:[%s193 + $0x1fe8] sm:$0xff]
                %1218 = vst [vmem:[%s194 + $0xff8] sm:$0xff] %v1217
                %v1219 = vld [vmem:[%s193 + $0x2000] sm:$0xff]
                %1220 = vst [vmem:[%s194 + $0x1000] sm:$0xff] %v1219
                %v1221 = vld [vmem:[%s193 + $0x2008] sm:$0xff]
                %1222 = vst [vmem:[%s194 + $0x1008] sm:$0xff] %v1221
                %v1223 = vld [vmem:[%s193 + $0x2020] sm:$0xff]
                %1224 = vst [vmem:[%s194 + $0x1010] sm:$0xff] %v1223
                %v1225 = vld [vmem:[%s193 + $0x2028] sm:$0xff]
                %1226 = vst [vmem:[%s194 + $0x1018] sm:$0xff] %v1225
                %v1227 = vld [vmem:[%s193 + $0x2040] sm:$0xff]
                %1228 = vst [vmem:[%s194 + $0x1020] sm:$0xff] %v1227
                %v1229 = vld [vmem:[%s193 + $0x2048] sm:$0xff]
                %1230 = vst [vmem:[%s194 + $0x1028] sm:$0xff] %v1229
                %v1231 = vld [vmem:[%s193 + $0x2060] sm:$0xff]
                %1232 = vst [vmem:[%s194 + $0x1030] sm:$0xff] %v1231
                %v1233 = vld [vmem:[%s193 + $0x2068] sm:$0xff]
                %1234 = vst [vmem:[%s194 + $0x1038] sm:$0xff] %v1233
                %v1235 = vld [vmem:[%s193 + $0x2080] sm:$0xff]
                %1236 = vst [vmem:[%s194 + $0x1040] sm:$0xff] %v1235
                %v1237 = vld [vmem:[%s193 + $0x2088] sm:$0xff]
                %1238 = vst [vmem:[%s194 + $0x1048] sm:$0xff] %v1237
                %v1239 = vld [vmem:[%s193 + $0x20a0] sm:$0xff]
                %1240 = vst [vmem:[%s194 + $0x1050] sm:$0xff] %v1239
                %v1241 = vld [vmem:[%s193 + $0x20a8] sm:$0xff]
                %1242 = vst [vmem:[%s194 + $0x1058] sm:$0xff] %v1241
                %v1243 = vld [vmem:[%s193 + $0x20c0] sm:$0xff]
                %1244 = vst [vmem:[%s194 + $0x1060] sm:$0xff] %v1243
                %v1245 = vld [vmem:[%s193 + $0x20c8] sm:$0xff]
                %1246 = vst [vmem:[%s194 + $0x1068] sm:$0xff] %v1245
                %v1247 = vld [vmem:[%s193 + $0x20e0] sm:$0xff]
                %1248 = vst [vmem:[%s194 + $0x1070] sm:$0xff] %v1247
                %v1249 = vld [vmem:[%s193 + $0x20e8] sm:$0xff]
                %1250 = vst [vmem:[%s194 + $0x1078] sm:$0xff] %v1249
                %v1251 = vld [vmem:[%s193 + $0x2100] sm:$0xff]
                %1252 = vst [vmem:[%s194 + $0x1080] sm:$0xff] %v1251
                %v1253 = vld [vmem:[%s193 + $0x2108] sm:$0xff]
                %1254 = vst [vmem:[%s194 + $0x1088] sm:$0xff] %v1253
                %v1255 = vld [vmem:[%s193 + $0x2120] sm:$0xff]
                %1256 = vst [vmem:[%s194 + $0x1090] sm:$0xff] %v1255
                %v1257 = vld [vmem:[%s193 + $0x2128] sm:$0xff]
                %1258 = vst [vmem:[%s194 + $0x1098] sm:$0xff] %v1257
                %v1259 = vld [vmem:[%s193 + $0x2140] sm:$0xff]
                %1260 = vst [vmem:[%s194 + $0x10a0] sm:$0xff] %v1259
                %v1261 = vld [vmem:[%s193 + $0x2148] sm:$0xff]
                %1262 = vst [vmem:[%s194 + $0x10a8] sm:$0xff] %v1261
                %v1263 = vld [vmem:[%s193 + $0x2160] sm:$0xff]
                %1264 = vst [vmem:[%s194 + $0x10b0] sm:$0xff] %v1263
                %v1265 = vld [vmem:[%s193 + $0x2168] sm:$0xff]
                %1266 = vst [vmem:[%s194 + $0x10b8] sm:$0xff] %v1265
                %v1267 = vld [vmem:[%s193 + $0x2180] sm:$0xff]
                %1268 = vst [vmem:[%s194 + $0x10c0] sm:$0xff] %v1267
                %v1269 = vld [vmem:[%s193 + $0x2188] sm:$0xff]
                %1270 = vst [vmem:[%s194 + $0x10c8] sm:$0xff] %v1269
                %v1271 = vld [vmem:[%s193 + $0x21a0] sm:$0xff]
                %1272 = vst [vmem:[%s194 + $0x10d0] sm:$0xff] %v1271
                %v1273 = vld [vmem:[%s193 + $0x21a8] sm:$0xff]
                %1274 = vst [vmem:[%s194 + $0x10d8] sm:$0xff] %v1273
                %v1275 = vld [vmem:[%s193 + $0x21c0] sm:$0xff]
                %1276 = vst [vmem:[%s194 + $0x10e0] sm:$0xff] %v1275
                %v1277 = vld [vmem:[%s193 + $0x21c8] sm:$0xff]
                %1278 = vst [vmem:[%s194 + $0x10e8] sm:$0xff] %v1277
                %v1279 = vld [vmem:[%s193 + $0x21e0] sm:$0xff]
                %1280 = vst [vmem:[%s194 + $0x10f0] sm:$0xff] %v1279
                %v1281 = vld [vmem:[%s193 + $0x21e8] sm:$0xff]
                %1282 = vst [vmem:[%s194 + $0x10f8] sm:$0xff] %v1281
                %v1283 = vld [vmem:[%s193 + $0x2200] sm:$0xff]
                %1284 = vst [vmem:[%s194 + $0x1100] sm:$0xff] %v1283
                %v1285 = vld [vmem:[%s193 + $0x2208] sm:$0xff]
                %1286 = vst [vmem:[%s194 + $0x1108] sm:$0xff] %v1285
                %v1287 = vld [vmem:[%s193 + $0x2220] sm:$0xff]
                %1288 = vst [vmem:[%s194 + $0x1110] sm:$0xff] %v1287
                %v1289 = vld [vmem:[%s193 + $0x2228] sm:$0xff]
                %1290 = vst [vmem:[%s194 + $0x1118] sm:$0xff] %v1289
                %v1291 = vld [vmem:[%s193 + $0x2240] sm:$0xff]
                %1292 = vst [vmem:[%s194 + $0x1120] sm:$0xff] %v1291
                %v1293 = vld [vmem:[%s193 + $0x2248] sm:$0xff]
                %1294 = vst [vmem:[%s194 + $0x1128] sm:$0xff] %v1293
                %v1295 = vld [vmem:[%s193 + $0x2260] sm:$0xff]
                %1296 = vst [vmem:[%s194 + $0x1130] sm:$0xff] %v1295
                %v1297 = vld [vmem:[%s193 + $0x2268] sm:$0xff]
                %1298 = vst [vmem:[%s194 + $0x1138] sm:$0xff] %v1297
                %v1299 = vld [vmem:[%s193 + $0x2280] sm:$0xff]
                %1300 = vst [vmem:[%s194 + $0x1140] sm:$0xff] %v1299
                %v1301 = vld [vmem:[%s193 + $0x2288] sm:$0xff]
                %1302 = vst [vmem:[%s194 + $0x1148] sm:$0xff] %v1301
                %v1303 = vld [vmem:[%s193 + $0x22a0] sm:$0xff]
                %1304 = vst [vmem:[%s194 + $0x1150] sm:$0xff] %v1303
                %v1305 = vld [vmem:[%s193 + $0x22a8] sm:$0xff]
                %1306 = vst [vmem:[%s194 + $0x1158] sm:$0xff] %v1305
                %v1307 = vld [vmem:[%s193 + $0x22c0] sm:$0xff]
                %1308 = vst [vmem:[%s194 + $0x1160] sm:$0xff] %v1307
                %v1309 = vld [vmem:[%s193 + $0x22c8] sm:$0xff]
                %1310 = vst [vmem:[%s194 + $0x1168] sm:$0xff] %v1309
                %v1311 = vld [vmem:[%s193 + $0x22e0] sm:$0xff]
                %1312 = vst [vmem:[%s194 + $0x1170] sm:$0xff] %v1311
                %v1313 = vld [vmem:[%s193 + $0x22e8] sm:$0xff]
                %1314 = vst [vmem:[%s194 + $0x1178] sm:$0xff] %v1313
                %v1315 = vld [vmem:[%s193 + $0x2300] sm:$0xff]
                %1316 = vst [vmem:[%s194 + $0x1180] sm:$0xff] %v1315
                %v1317 = vld [vmem:[%s193 + $0x2308] sm:$0xff]
                %1318 = vst [vmem:[%s194 + $0x1188] sm:$0xff] %v1317
                %v1319 = vld [vmem:[%s193 + $0x2320] sm:$0xff]
                %1320 = vst [vmem:[%s194 + $0x1190] sm:$0xff] %v1319
                %v1321 = vld [vmem:[%s193 + $0x2328] sm:$0xff]
                %1322 = vst [vmem:[%s194 + $0x1198] sm:$0xff] %v1321
                %v1323 = vld [vmem:[%s193 + $0x2340] sm:$0xff]
                %1324 = vst [vmem:[%s194 + $0x11a0] sm:$0xff] %v1323
                %v1325 = vld [vmem:[%s193 + $0x2348] sm:$0xff]
                %1326 = vst [vmem:[%s194 + $0x11a8] sm:$0xff] %v1325
                %v1327 = vld [vmem:[%s193 + $0x2360] sm:$0xff]
                %1328 = vst [vmem:[%s194 + $0x11b0] sm:$0xff] %v1327
                %v1329 = vld [vmem:[%s193 + $0x2368] sm:$0xff]
                %1330 = vst [vmem:[%s194 + $0x11b8] sm:$0xff] %v1329
                %v1331 = vld [vmem:[%s193 + $0x2380] sm:$0xff]
                %1332 = vst [vmem:[%s194 + $0x11c0] sm:$0xff] %v1331
                %v1333 = vld [vmem:[%s193 + $0x2388] sm:$0xff]
                %1334 = vst [vmem:[%s194 + $0x11c8] sm:$0xff] %v1333
                %v1335 = vld [vmem:[%s193 + $0x23a0] sm:$0xff]
                %1336 = vst [vmem:[%s194 + $0x11d0] sm:$0xff] %v1335
                %v1337 = vld [vmem:[%s193 + $0x23a8] sm:$0xff]
                %1338 = vst [vmem:[%s194 + $0x11d8] sm:$0xff] %v1337
                %v1339 = vld [vmem:[%s193 + $0x23c0] sm:$0xff]
                %1340 = vst [vmem:[%s194 + $0x11e0] sm:$0xff] %v1339
                %v1341 = vld [vmem:[%s193 + $0x23c8] sm:$0xff]
                %1342 = vst [vmem:[%s194 + $0x11e8] sm:$0xff] %v1341
                %v1343 = vld [vmem:[%s193 + $0x23e0] sm:$0xff]
                %1344 = vst [vmem:[%s194 + $0x11f0] sm:$0xff] %v1343
                %v1345 = vld [vmem:[%s193 + $0x23e8] sm:$0xff]
                %1346 = vst [vmem:[%s194 + $0x11f8] sm:$0xff] %v1345
                %v1347 = vld [vmem:[%s193 + $0x2400] sm:$0xff]
                %1348 = vst [vmem:[%s194 + $0x1200] sm:$0xff] %v1347
                %v1349 = vld [vmem:[%s193 + $0x2408] sm:$0xff]
                %1350 = vst [vmem:[%s194 + $0x1208] sm:$0xff] %v1349
                %v1351 = vld [vmem:[%s193 + $0x2420] sm:$0xff]
                %1352 = vst [vmem:[%s194 + $0x1210] sm:$0xff] %v1351
                %v1353 = vld [vmem:[%s193 + $0x2428] sm:$0xff]
                %1354 = vst [vmem:[%s194 + $0x1218] sm:$0xff] %v1353
                %v1355 = vld [vmem:[%s193 + $0x2440] sm:$0xff]
                %1356 = vst [vmem:[%s194 + $0x1220] sm:$0xff] %v1355
                %v1357 = vld [vmem:[%s193 + $0x2448] sm:$0xff]
                %1358 = vst [vmem:[%s194 + $0x1228] sm:$0xff] %v1357
                %v1359 = vld [vmem:[%s193 + $0x2460] sm:$0xff]
                %1360 = vst [vmem:[%s194 + $0x1230] sm:$0xff] %v1359
                %v1361 = vld [vmem:[%s193 + $0x2468] sm:$0xff]
                %1362 = vst [vmem:[%s194 + $0x1238] sm:$0xff] %v1361
                %v1363 = vld [vmem:[%s193 + $0x2480] sm:$0xff]
                %1364 = vst [vmem:[%s194 + $0x1240] sm:$0xff] %v1363
                %v1365 = vld [vmem:[%s193 + $0x2488] sm:$0xff]
                %1366 = vst [vmem:[%s194 + $0x1248] sm:$0xff] %v1365
                %v1367 = vld [vmem:[%s193 + $0x24a0] sm:$0xff]
                %1368 = vst [vmem:[%s194 + $0x1250] sm:$0xff] %v1367
                %v1369 = vld [vmem:[%s193 + $0x24a8] sm:$0xff]
                %1370 = vst [vmem:[%s194 + $0x1258] sm:$0xff] %v1369
                %v1371 = vld [vmem:[%s193 + $0x24c0] sm:$0xff]
                %1372 = vst [vmem:[%s194 + $0x1260] sm:$0xff] %v1371
                %v1373 = vld [vmem:[%s193 + $0x24c8] sm:$0xff]
                %1374 = vst [vmem:[%s194 + $0x1268] sm:$0xff] %v1373
                %v1375 = vld [vmem:[%s193 + $0x24e0] sm:$0xff]
                %1376 = vst [vmem:[%s194 + $0x1270] sm:$0xff] %v1375
                %v1377 = vld [vmem:[%s193 + $0x24e8] sm:$0xff]
                %1378 = vst [vmem:[%s194 + $0x1278] sm:$0xff] %v1377
                %v1379 = vld [vmem:[%s193 + $0x2500] sm:$0xff]
                %1380 = vst [vmem:[%s194 + $0x1280] sm:$0xff] %v1379
                %v1381 = vld [vmem:[%s193 + $0x2508] sm:$0xff]
                %1382 = vst [vmem:[%s194 + $0x1288] sm:$0xff] %v1381
                %v1383 = vld [vmem:[%s193 + $0x2520] sm:$0xff]
                %1384 = vst [vmem:[%s194 + $0x1290] sm:$0xff] %v1383
                %v1385 = vld [vmem:[%s193 + $0x2528] sm:$0xff]
                %1386 = vst [vmem:[%s194 + $0x1298] sm:$0xff] %v1385
                %v1387 = vld [vmem:[%s193 + $0x2540] sm:$0xff]
                %1388 = vst [vmem:[%s194 + $0x12a0] sm:$0xff] %v1387
                %v1389 = vld [vmem:[%s193 + $0x2548] sm:$0xff]
                %1390 = vst [vmem:[%s194 + $0x12a8] sm:$0xff] %v1389
                %v1391 = vld [vmem:[%s193 + $0x2560] sm:$0xff]
                %1392 = vst [vmem:[%s194 + $0x12b0] sm:$0xff] %v1391
                %v1393 = vld [vmem:[%s193 + $0x2568] sm:$0xff]
                %1394 = vst [vmem:[%s194 + $0x12b8] sm:$0xff] %v1393
                %v1395 = vld [vmem:[%s193 + $0x2580] sm:$0xff]
                %1396 = vst [vmem:[%s194 + $0x12c0] sm:$0xff] %v1395
                %v1397 = vld [vmem:[%s193 + $0x2588] sm:$0xff]
                %1398 = vst [vmem:[%s194 + $0x12c8] sm:$0xff] %v1397
                %v1399 = vld [vmem:[%s193 + $0x25a0] sm:$0xff]
                %1400 = vst [vmem:[%s194 + $0x12d0] sm:$0xff] %v1399
                %v1401 = vld [vmem:[%s193 + $0x25a8] sm:$0xff]
                %1402 = vst [vmem:[%s194 + $0x12d8] sm:$0xff] %v1401
                %v1403 = vld [vmem:[%s193 + $0x25c0] sm:$0xff]
                %1404 = vst [vmem:[%s194 + $0x12e0] sm:$0xff] %v1403
                %v1405 = vld [vmem:[%s193 + $0x25c8] sm:$0xff]
                %1406 = vst [vmem:[%s194 + $0x12e8] sm:$0xff] %v1405
                %v1407 = vld [vmem:[%s193 + $0x25e0] sm:$0xff]
                %1408 = vst [vmem:[%s194 + $0x12f0] sm:$0xff] %v1407
                %v1409 = vld [vmem:[%s193 + $0x25e8] sm:$0xff]
                %1410 = vst [vmem:[%s194 + $0x12f8] sm:$0xff] %v1409
                %v1411 = vld [vmem:[%s193 + $0x2600] sm:$0xff]
                %1412 = vst [vmem:[%s194 + $0x1300] sm:$0xff] %v1411
                %v1413 = vld [vmem:[%s193 + $0x2608] sm:$0xff]
                %1414 = vst [vmem:[%s194 + $0x1308] sm:$0xff] %v1413
                %v1415 = vld [vmem:[%s193 + $0x2620] sm:$0xff]
                %1416 = vst [vmem:[%s194 + $0x1310] sm:$0xff] %v1415
                %v1417 = vld [vmem:[%s193 + $0x2628] sm:$0xff]
                %1418 = vst [vmem:[%s194 + $0x1318] sm:$0xff] %v1417
                %v1419 = vld [vmem:[%s193 + $0x2640] sm:$0xff]
                %1420 = vst [vmem:[%s194 + $0x1320] sm:$0xff] %v1419
                %v1421 = vld [vmem:[%s193 + $0x2648] sm:$0xff]
                %1422 = vst [vmem:[%s194 + $0x1328] sm:$0xff] %v1421
                %v1423 = vld [vmem:[%s193 + $0x2660] sm:$0xff]
                %1424 = vst [vmem:[%s194 + $0x1330] sm:$0xff] %v1423
                %v1425 = vld [vmem:[%s193 + $0x2668] sm:$0xff]
                %1426 = vst [vmem:[%s194 + $0x1338] sm:$0xff] %v1425
                %v1427 = vld [vmem:[%s193 + $0x2680] sm:$0xff]
                %1428 = vst [vmem:[%s194 + $0x1340] sm:$0xff] %v1427
                %v1429 = vld [vmem:[%s193 + $0x2688] sm:$0xff]
                %1430 = vst [vmem:[%s194 + $0x1348] sm:$0xff] %v1429
                %v1431 = vld [vmem:[%s193 + $0x26a0] sm:$0xff]
                %1432 = vst [vmem:[%s194 + $0x1350] sm:$0xff] %v1431
                %v1433 = vld [vmem:[%s193 + $0x26a8] sm:$0xff]
                %1434 = vst [vmem:[%s194 + $0x1358] sm:$0xff] %v1433
                %v1435 = vld [vmem:[%s193 + $0x26c0] sm:$0xff]
                %1436 = vst [vmem:[%s194 + $0x1360] sm:$0xff] %v1435
                %v1437 = vld [vmem:[%s193 + $0x26c8] sm:$0xff]
                %1438 = vst [vmem:[%s194 + $0x1368] sm:$0xff] %v1437
                %v1439 = vld [vmem:[%s193 + $0x26e0] sm:$0xff]
                %1440 = vst [vmem:[%s194 + $0x1370] sm:$0xff] %v1439
                %v1441 = vld [vmem:[%s193 + $0x26e8] sm:$0xff]
                %1442 = vst [vmem:[%s194 + $0x1378] sm:$0xff] %v1441
                %v1443 = vld [vmem:[%s193 + $0x2700] sm:$0xff]
                %1444 = vst [vmem:[%s194 + $0x1380] sm:$0xff] %v1443
                %v1445 = vld [vmem:[%s193 + $0x2708] sm:$0xff]
                %1446 = vst [vmem:[%s194 + $0x1388] sm:$0xff] %v1445
                %v1447 = vld [vmem:[%s193 + $0x2720] sm:$0xff]
                %1448 = vst [vmem:[%s194 + $0x1390] sm:$0xff] %v1447
                %v1449 = vld [vmem:[%s193 + $0x2728] sm:$0xff]
                %1450 = vst [vmem:[%s194 + $0x1398] sm:$0xff] %v1449
                %v1451 = vld [vmem:[%s193 + $0x2740] sm:$0xff]
                %1452 = vst [vmem:[%s194 + $0x13a0] sm:$0xff] %v1451
                %v1453 = vld [vmem:[%s193 + $0x2748] sm:$0xff]
                %1454 = vst [vmem:[%s194 + $0x13a8] sm:$0xff] %v1453
                %v1455 = vld [vmem:[%s193 + $0x2760] sm:$0xff]
                %1456 = vst [vmem:[%s194 + $0x13b0] sm:$0xff] %v1455
                %v1457 = vld [vmem:[%s193 + $0x2768] sm:$0xff]
                %1458 = vst [vmem:[%s194 + $0x13b8] sm:$0xff] %v1457
                %v1459 = vld [vmem:[%s193 + $0x2780] sm:$0xff]
                %1460 = vst [vmem:[%s194 + $0x13c0] sm:$0xff] %v1459
                %v1461 = vld [vmem:[%s193 + $0x2788] sm:$0xff]
                %1462 = vst [vmem:[%s194 + $0x13c8] sm:$0xff] %v1461
                %v1463 = vld [vmem:[%s193 + $0x27a0] sm:$0xff]
                %1464 = vst [vmem:[%s194 + $0x13d0] sm:$0xff] %v1463
                %v1465 = vld [vmem:[%s193 + $0x27a8] sm:$0xff]
                %1466 = vst [vmem:[%s194 + $0x13d8] sm:$0xff] %v1465
                %v1467 = vld [vmem:[%s193 + $0x27c0] sm:$0xff]
                %1468 = vst [vmem:[%s194 + $0x13e0] sm:$0xff] %v1467
                %v1469 = vld [vmem:[%s193 + $0x27c8] sm:$0xff]
                %1470 = vst [vmem:[%s194 + $0x13e8] sm:$0xff] %v1469
                %v1471 = vld [vmem:[%s193 + $0x27e0] sm:$0xff]
                %1472 = vst [vmem:[%s194 + $0x13f0] sm:$0xff] %v1471
                %v1473 = vld [vmem:[%s193 + $0x27e8] sm:$0xff]
                %1474 = vst [vmem:[%s194 + $0x13f8] sm:$0xff] %v1473
                %v1475 = vld [vmem:[%s193 + $0x2800] sm:$0xff]
                %1476 = vst [vmem:[%s194 + $0x1400] sm:$0xff] %v1475
                %v1477 = vld [vmem:[%s193 + $0x2808] sm:$0xff]
                %1478 = vst [vmem:[%s194 + $0x1408] sm:$0xff] %v1477
                %v1479 = vld [vmem:[%s193 + $0x2820] sm:$0xff]
                %1480 = vst [vmem:[%s194 + $0x1410] sm:$0xff] %v1479
                %v1481 = vld [vmem:[%s193 + $0x2828] sm:$0xff]
                %1482 = vst [vmem:[%s194 + $0x1418] sm:$0xff] %v1481
                %v1483 = vld [vmem:[%s193 + $0x2840] sm:$0xff]
                %1484 = vst [vmem:[%s194 + $0x1420] sm:$0xff] %v1483
                %v1485 = vld [vmem:[%s193 + $0x2848] sm:$0xff]
                %1486 = vst [vmem:[%s194 + $0x1428] sm:$0xff] %v1485
                %v1487 = vld [vmem:[%s193 + $0x2860] sm:$0xff]
                %1488 = vst [vmem:[%s194 + $0x1430] sm:$0xff] %v1487
                %v1489 = vld [vmem:[%s193 + $0x2868] sm:$0xff]
                %1490 = vst [vmem:[%s194 + $0x1438] sm:$0xff] %v1489
                %v1491 = vld [vmem:[%s193 + $0x2880] sm:$0xff]
                %1492 = vst [vmem:[%s194 + $0x1440] sm:$0xff] %v1491
                %v1493 = vld [vmem:[%s193 + $0x2888] sm:$0xff]
                %1494 = vst [vmem:[%s194 + $0x1448] sm:$0xff] %v1493
                %v1495 = vld [vmem:[%s193 + $0x28a0] sm:$0xff]
                %1496 = vst [vmem:[%s194 + $0x1450] sm:$0xff] %v1495
                %v1497 = vld [vmem:[%s193 + $0x28a8] sm:$0xff]
                %1498 = vst [vmem:[%s194 + $0x1458] sm:$0xff] %v1497
                %v1499 = vld [vmem:[%s193 + $0x28c0] sm:$0xff]
                %1500 = vst [vmem:[%s194 + $0x1460] sm:$0xff] %v1499
                %v1501 = vld [vmem:[%s193 + $0x28c8] sm:$0xff]
                %1502 = vst [vmem:[%s194 + $0x1468] sm:$0xff] %v1501
                %v1503 = vld [vmem:[%s193 + $0x28e0] sm:$0xff]
                %1504 = vst [vmem:[%s194 + $0x1470] sm:$0xff] %v1503
                %v1505 = vld [vmem:[%s193 + $0x28e8] sm:$0xff]
                %1506 = vst [vmem:[%s194 + $0x1478] sm:$0xff] %v1505
                %v1507 = vld [vmem:[%s193 + $0x2900] sm:$0xff]
                %1508 = vst [vmem:[%s194 + $0x1480] sm:$0xff] %v1507
                %v1509 = vld [vmem:[%s193 + $0x2908] sm:$0xff]
                %1510 = vst [vmem:[%s194 + $0x1488] sm:$0xff] %v1509
                %v1511 = vld [vmem:[%s193 + $0x2920] sm:$0xff]
                %1512 = vst [vmem:[%s194 + $0x1490] sm:$0xff] %v1511
                %v1513 = vld [vmem:[%s193 + $0x2928] sm:$0xff]
                %1514 = vst [vmem:[%s194 + $0x1498] sm:$0xff] %v1513
                %v1515 = vld [vmem:[%s193 + $0x2940] sm:$0xff]
                %1516 = vst [vmem:[%s194 + $0x14a0] sm:$0xff] %v1515
                %v1517 = vld [vmem:[%s193 + $0x2948] sm:$0xff]
                %1518 = vst [vmem:[%s194 + $0x14a8] sm:$0xff] %v1517
                %v1519 = vld [vmem:[%s193 + $0x2960] sm:$0xff]
                %1520 = vst [vmem:[%s194 + $0x14b0] sm:$0xff] %v1519
                %v1521 = vld [vmem:[%s193 + $0x2968] sm:$0xff]
                %1522 = vst [vmem:[%s194 + $0x14b8] sm:$0xff] %v1521
                %v1523 = vld [vmem:[%s193 + $0x2980] sm:$0xff]
                %1524 = vst [vmem:[%s194 + $0x14c0] sm:$0xff] %v1523
                %v1525 = vld [vmem:[%s193 + $0x2988] sm:$0xff]
                %1526 = vst [vmem:[%s194 + $0x14c8] sm:$0xff] %v1525
                %v1527 = vld [vmem:[%s193 + $0x29a0] sm:$0xff]
                %1528 = vst [vmem:[%s194 + $0x14d0] sm:$0xff] %v1527
                %v1529 = vld [vmem:[%s193 + $0x29a8] sm:$0xff]
                %1530 = vst [vmem:[%s194 + $0x14d8] sm:$0xff] %v1529
                %v1531 = vld [vmem:[%s193 + $0x29c0] sm:$0xff]
                %1532 = vst [vmem:[%s194 + $0x14e0] sm:$0xff] %v1531
                %v1533 = vld [vmem:[%s193 + $0x29c8] sm:$0xff]
                %1534 = vst [vmem:[%s194 + $0x14e8] sm:$0xff] %v1533
                %v1535 = vld [vmem:[%s193 + $0x29e0] sm:$0xff]
                %1536 = vst [vmem:[%s194 + $0x14f0] sm:$0xff] %v1535
                %v1537 = vld [vmem:[%s193 + $0x29e8] sm:$0xff]
                %1538 = vst [vmem:[%s194 + $0x14f8] sm:$0xff] %v1537
                %v1539 = vld [vmem:[%s193 + $0x2a00] sm:$0xff]
                %1540 = vst [vmem:[%s194 + $0x1500] sm:$0xff] %v1539
                %v1541 = vld [vmem:[%s193 + $0x2a08] sm:$0xff]
                %1542 = vst [vmem:[%s194 + $0x1508] sm:$0xff] %v1541
                %v1543 = vld [vmem:[%s193 + $0x2a20] sm:$0xff]
                %1544 = vst [vmem:[%s194 + $0x1510] sm:$0xff] %v1543
                %v1545 = vld [vmem:[%s193 + $0x2a28] sm:$0xff]
                %1546 = vst [vmem:[%s194 + $0x1518] sm:$0xff] %v1545
                %v1547 = vld [vmem:[%s193 + $0x2a40] sm:$0xff]
                %1548 = vst [vmem:[%s194 + $0x1520] sm:$0xff] %v1547
                %v1549 = vld [vmem:[%s193 + $0x2a48] sm:$0xff]
                %1550 = vst [vmem:[%s194 + $0x1528] sm:$0xff] %v1549
                %v1551 = vld [vmem:[%s193 + $0x2a60] sm:$0xff]
                %1552 = vst [vmem:[%s194 + $0x1530] sm:$0xff] %v1551
                %v1553 = vld [vmem:[%s193 + $0x2a68] sm:$0xff]
                %1554 = vst [vmem:[%s194 + $0x1538] sm:$0xff] %v1553
                %v1555 = vld [vmem:[%s193 + $0x2a80] sm:$0xff]
                %1556 = vst [vmem:[%s194 + $0x1540] sm:$0xff] %v1555
                %v1557 = vld [vmem:[%s193 + $0x2a88] sm:$0xff]
                %1558 = vst [vmem:[%s194 + $0x1548] sm:$0xff] %v1557
                %v1559 = vld [vmem:[%s193 + $0x2aa0] sm:$0xff]
                %1560 = vst [vmem:[%s194 + $0x1550] sm:$0xff] %v1559
                %v1561 = vld [vmem:[%s193 + $0x2aa8] sm:$0xff]
                %1562 = vst [vmem:[%s194 + $0x1558] sm:$0xff] %v1561
                %v1563 = vld [vmem:[%s193 + $0x2ac0] sm:$0xff]
                %1564 = vst [vmem:[%s194 + $0x1560] sm:$0xff] %v1563
                %v1565 = vld [vmem:[%s193 + $0x2ac8] sm:$0xff]
                %1566 = vst [vmem:[%s194 + $0x1568] sm:$0xff] %v1565
                %v1567 = vld [vmem:[%s193 + $0x2ae0] sm:$0xff]
                %1568 = vst [vmem:[%s194 + $0x1570] sm:$0xff] %v1567
                %v1569 = vld [vmem:[%s193 + $0x2ae8] sm:$0xff]
                %1570 = vst [vmem:[%s194 + $0x1578] sm:$0xff] %v1569
                %v1571 = vld [vmem:[%s193 + $0x2b00] sm:$0xff]
                %1572 = vst [vmem:[%s194 + $0x1580] sm:$0xff] %v1571
                %v1573 = vld [vmem:[%s193 + $0x2b08] sm:$0xff]
                %1574 = vst [vmem:[%s194 + $0x1588] sm:$0xff] %v1573
                %v1575 = vld [vmem:[%s193 + $0x2b20] sm:$0xff]
                %1576 = vst [vmem:[%s194 + $0x1590] sm:$0xff] %v1575
                %v1577 = vld [vmem:[%s193 + $0x2b28] sm:$0xff]
                %1578 = vst [vmem:[%s194 + $0x1598] sm:$0xff] %v1577
                %v1579 = vld [vmem:[%s193 + $0x2b40] sm:$0xff]
                %1580 = vst [vmem:[%s194 + $0x15a0] sm:$0xff] %v1579
                %v1581 = vld [vmem:[%s193 + $0x2b48] sm:$0xff]
                %1582 = vst [vmem:[%s194 + $0x15a8] sm:$0xff] %v1581
                %v1583 = vld [vmem:[%s193 + $0x2b60] sm:$0xff]
                %1584 = vst [vmem:[%s194 + $0x15b0] sm:$0xff] %v1583
                %v1585 = vld [vmem:[%s193 + $0x2b68] sm:$0xff]
                %1586 = vst [vmem:[%s194 + $0x15b8] sm:$0xff] %v1585
                %v1587 = vld [vmem:[%s193 + $0x2b80] sm:$0xff]
                %1588 = vst [vmem:[%s194 + $0x15c0] sm:$0xff] %v1587
                %v1589 = vld [vmem:[%s193 + $0x2b88] sm:$0xff]
                %1590 = vst [vmem:[%s194 + $0x15c8] sm:$0xff] %v1589
                %v1591 = vld [vmem:[%s193 + $0x2ba0] sm:$0xff]
                %1592 = vst [vmem:[%s194 + $0x15d0] sm:$0xff] %v1591
                %v1593 = vld [vmem:[%s193 + $0x2ba8] sm:$0xff]
                %1594 = vst [vmem:[%s194 + $0x15d8] sm:$0xff] %v1593
                %v1595 = vld [vmem:[%s193 + $0x2bc0] sm:$0xff]
                %1596 = vst [vmem:[%s194 + $0x15e0] sm:$0xff] %v1595
                %v1597 = vld [vmem:[%s193 + $0x2bc8] sm:$0xff]
                %1598 = vst [vmem:[%s194 + $0x15e8] sm:$0xff] %v1597
                %v1599 = vld [vmem:[%s193 + $0x2be0] sm:$0xff]
                %1600 = vst [vmem:[%s194 + $0x15f0] sm:$0xff] %v1599
                %v1601 = vld [vmem:[%s193 + $0x2be8] sm:$0xff]
                %1602 = vst [vmem:[%s194 + $0x15f8] sm:$0xff] %v1601
                %v1603 = vld [vmem:[%s193 + $0x2c00] sm:$0xff]
                %1604 = vst [vmem:[%s194 + $0x1600] sm:$0xff] %v1603
                %v1605 = vld [vmem:[%s193 + $0x2c08] sm:$0xff]
                %1606 = vst [vmem:[%s194 + $0x1608] sm:$0xff] %v1605
                %v1607 = vld [vmem:[%s193 + $0x2c20] sm:$0xff]
                %1608 = vst [vmem:[%s194 + $0x1610] sm:$0xff] %v1607
                %v1609 = vld [vmem:[%s193 + $0x2c28] sm:$0xff]
                %1610 = vst [vmem:[%s194 + $0x1618] sm:$0xff] %v1609
                %v1611 = vld [vmem:[%s193 + $0x2c40] sm:$0xff]
                %1612 = vst [vmem:[%s194 + $0x1620] sm:$0xff] %v1611
                %v1613 = vld [vmem:[%s193 + $0x2c48] sm:$0xff]
                %1614 = vst [vmem:[%s194 + $0x1628] sm:$0xff] %v1613
                %v1615 = vld [vmem:[%s193 + $0x2c60] sm:$0xff]
                %1616 = vst [vmem:[%s194 + $0x1630] sm:$0xff] %v1615
                %v1617 = vld [vmem:[%s193 + $0x2c68] sm:$0xff]
                %1618 = vst [vmem:[%s194 + $0x1638] sm:$0xff] %v1617
                %v1619 = vld [vmem:[%s193 + $0x2c80] sm:$0xff]
                %1620 = vst [vmem:[%s194 + $0x1640] sm:$0xff] %v1619
                %v1621 = vld [vmem:[%s193 + $0x2c88] sm:$0xff]
                %1622 = vst [vmem:[%s194 + $0x1648] sm:$0xff] %v1621
                %v1623 = vld [vmem:[%s193 + $0x2ca0] sm:$0xff]
                %1624 = vst [vmem:[%s194 + $0x1650] sm:$0xff] %v1623
                %v1625 = vld [vmem:[%s193 + $0x2ca8] sm:$0xff]
                %1626 = vst [vmem:[%s194 + $0x1658] sm:$0xff] %v1625
                %v1627 = vld [vmem:[%s193 + $0x2cc0] sm:$0xff]
                %1628 = vst [vmem:[%s194 + $0x1660] sm:$0xff] %v1627
                %v1629 = vld [vmem:[%s193 + $0x2cc8] sm:$0xff]
                %1630 = vst [vmem:[%s194 + $0x1668] sm:$0xff] %v1629
                %v1631 = vld [vmem:[%s193 + $0x2ce0] sm:$0xff]
                %1632 = vst [vmem:[%s194 + $0x1670] sm:$0xff] %v1631
                %v1633 = vld [vmem:[%s193 + $0x2ce8] sm:$0xff]
                %1634 = vst [vmem:[%s194 + $0x1678] sm:$0xff] %v1633
                %v1635 = vld [vmem:[%s193 + $0x2d00] sm:$0xff]
                %1636 = vst [vmem:[%s194 + $0x1680] sm:$0xff] %v1635
                %v1637 = vld [vmem:[%s193 + $0x2d08] sm:$0xff]
                %1638 = vst [vmem:[%s194 + $0x1688] sm:$0xff] %v1637
                %v1639 = vld [vmem:[%s193 + $0x2d20] sm:$0xff]
                %1640 = vst [vmem:[%s194 + $0x1690] sm:$0xff] %v1639
                %v1641 = vld [vmem:[%s193 + $0x2d28] sm:$0xff]
                %1642 = vst [vmem:[%s194 + $0x1698] sm:$0xff] %v1641
                %v1643 = vld [vmem:[%s193 + $0x2d40] sm:$0xff]
                %1644 = vst [vmem:[%s194 + $0x16a0] sm:$0xff] %v1643
                %v1645 = vld [vmem:[%s193 + $0x2d48] sm:$0xff]
                %1646 = vst [vmem:[%s194 + $0x16a8] sm:$0xff] %v1645
                %v1647 = vld [vmem:[%s193 + $0x2d60] sm:$0xff]
                %1648 = vst [vmem:[%s194 + $0x16b0] sm:$0xff] %v1647
                %v1649 = vld [vmem:[%s193 + $0x2d68] sm:$0xff]
                %1650 = vst [vmem:[%s194 + $0x16b8] sm:$0xff] %v1649
                %v1651 = vld [vmem:[%s193 + $0x2d80] sm:$0xff]
                %1652 = vst [vmem:[%s194 + $0x16c0] sm:$0xff] %v1651
                %v1653 = vld [vmem:[%s193 + $0x2d88] sm:$0xff]
                %1654 = vst [vmem:[%s194 + $0x16c8] sm:$0xff] %v1653
                %v1655 = vld [vmem:[%s193 + $0x2da0] sm:$0xff]
                %1656 = vst [vmem:[%s194 + $0x16d0] sm:$0xff] %v1655
                %v1657 = vld [vmem:[%s193 + $0x2da8] sm:$0xff]
                %1658 = vst [vmem:[%s194 + $0x16d8] sm:$0xff] %v1657
                %v1659 = vld [vmem:[%s193 + $0x2dc0] sm:$0xff]
                %1660 = vst [vmem:[%s194 + $0x16e0] sm:$0xff] %v1659
                %v1661 = vld [vmem:[%s193 + $0x2dc8] sm:$0xff]
                %1662 = vst [vmem:[%s194 + $0x16e8] sm:$0xff] %v1661
                %v1663 = vld [vmem:[%s193 + $0x2de0] sm:$0xff]
                %1664 = vst [vmem:[%s194 + $0x16f0] sm:$0xff] %v1663
                %v1665 = vld [vmem:[%s193 + $0x2de8] sm:$0xff]
                %1666 = vst [vmem:[%s194 + $0x16f8] sm:$0xff] %v1665
              $region37: #{forward.7} parent=31 // loop_footer
                %s192 = sadd.s32 1, %s188
              $region38: #{forward.7} parent=31 // loop_footer_branch
                %187 = sbr.rel target = $region34
              $region39: #{forward.7} parent=31 // loop_exit
                _
            $region32: #{forward.7} parent=27 // pred_fallthru
              _
            // Predicated region
            $region40: #{forward.7} parent=27 // pred_check
              _
            $region41: #{forward.7} parent=27 // pred_check_branch
              %1668 = sbr.rel target = $region43
            $region42: #{forward.7} parent=27 // pred_region
              _
            $region43: #{forward.7} parent=27 // pred_fallthru
              _
          $region28: #{forward.7} parent=23 // pred_fallthru
            _
          %1669 = vnop
        $region24: #{forward.7} parent=15 // pred_fallthru
          _
        // Predicated region
        $region44: #{forward.7} parent=15 // pred_check
          %p1670 = pneg %p104
        $region45: #{forward.7} parent=15 // pred_check_branch
          %1672 = sbr.rel (%p1670) target = $region47
        $region46: #{forward.7} parent=15 // pred_region
          %s1673 = smul.u32 4, %s17
          %p1674 = scmp.lt.s32.totalorder %s1673, 7
          %s1675 = scalar_select %p1674, %s1673, 7
          %s1676 = scalar_lea.vmem %s2, %s1675
          %s1677 = smul.u32 4, %s17
        $region47: #{forward.7} parent=15 // pred_fallthru
          _
      $region16: #{forward.7} parent=5 // pred_fallthru
        _
      %p1678 = scmp.le.s32.totalorder 1, %s9
      %p1679 = scmp.lt.s32.totalorder %s9, 9
      %p1680 = pnand %p1678, %p1679
      %p1681 = pneg %p1680
      // Predicated region
      $region48: #{forward.7} parent=5 // pred_check
        _
      $region49: #{forward.7} parent=5 // pred_check_branch
        %1683 = sbr.rel (%p1680) target = $region51
      $region50: #{forward.7} parent=5 // pred_region
        %s1684 = ssub.s32 %s9, 1
        %s1685 = sand.u32 %s71, 1
        %s1686 = sand.u32 %s71, 1
        %s1687 = smul.addr %s1686, 5888
        %s1688 = scalar_lea.vmem [#allocation3], %s1687
        // Predicated region
        $region52: #{forward.7} parent=50 // pred_check
          %p1689 = pneg %p84
        $region53: #{forward.7} parent=50 // pred_check_branch
          %1691 = sbr.rel (%p1689) target = $region55
        $region54: #{forward.7} parent=50 // pred_region
          _
        $region55: #{forward.7} parent=50 // pred_fallthru
          _
        %s1692 = smul.u32 23, %s21
        %p1693 = scmp.lt.s32.totalorder %s19, 0
        %s1694 = scalar_select %p1693, %s19, 0
        %p1695 = scmp.lt.s32.totalorder %s1692, 91
        %s1696 = scalar_select %p1695, %s1692, 91
        %s1697 = smul.addr %s1694, 92
        %s1698 = sadd.s32 %s1696, %s1697
        %s1699 = smul.addr %s1698, 4
        %s1700 = scalar_lea.vmem %s0, %s1699
        %p1701 = pneg %p56
        %p1702 = pneg %p53
        %s1703 = sand.u32 %s71, 1
        %s1704 = sand.u32 %s71, 1
        %s1705 = smul.addr %s1704, 5888
        %s1706 = scalar_lea.vmem [#allocation3], %s1705
        %p1707 = pneg %p84
        %p1708 = pneg %p81
        %s1709 = smul.u32 4, %s20
        %p1710 = scmp.lt.s32.totalorder %s1709, 7
        %s1711 = scalar_select %p1710, %s1709, 7
        %s1712 = scalar_lea.vmem %s2, %s1711
        %p1713 = pneg %p110
        %p1714 = pneg %p107
        %p1715 = pneg %p138
        %p1716 = pneg %p135
        %s1717 = smul.u32 4, %s20
        %p1718 = scmp.lt.s32.totalorder %s19, 0
        %s1719 = scalar_select %p1718, %s19, 0
        %p1720 = scmp.lt.s32.totalorder %s1717, 7
        %s1721 = scalar_select %p1720, %s1717, 7
        %s1722 = smul.addr %s1719, 8
        %s1723 = sadd.s32 %s1721, %s1722
        %s1724 = smul.addr %s1723, 8
        %s1725 = scalar_lea.vmem %s3, %s1724
        %s1726 = smul.u32 23, %s21
        %p1727 = scmp.lt.s32.totalorder %s19, 0
        %s1728 = scalar_select %p1727, %s19, 0
        %p1729 = scmp.lt.s32.totalorder %s1726, 91
        %s1730 = scalar_select %p1729, %s1726, 91
        %s1731 = smul.addr %s1728, 92
        %s1732 = sadd.s32 %s1730, %s1731
        %s1733 = smul.addr %s1732, 4
        %s1734 = scalar_lea.vmem %s0, %s1733
        %s1735 = smul.u32 23, %s21
        %s1736 = smul.u32 368, %s21
        %s1737 = smul.u32 4, %s20
        %s1738 = smul.u32 4, %s20
        %p1739 = scmp.lt.s32.totalorder %s1738, 7
        %s1740 = scalar_select %p1739, %s1738, 7
        %s1741 = scalar_lea.vmem %s2, %s1740
        %s1742 = smul.u32 4, %s20
        %s1743 = smul.u32 4, %s20
        %p1744 = scmp.lt.s32.totalorder %s19, 0
        %s1745 = scalar_select %p1744, %s19, 0
        %p1746 = scmp.lt.s32.totalorder %s1743, 7
        %s1747 = scalar_select %p1746, %s1743, 7
        %s1748 = smul.addr %s1745, 8
        %s1749 = sadd.s32 %s1747, %s1748
        %s1750 = smul.addr %s1749, 8
        %s1751 = scalar_lea.vmem %s3, %s1750
        %s1752 = smul.u32 4, %s20
        %p1754 = scmp.eq.s32.totalorder %s21, 0
        // Predicated region
        $region56: #{forward.7} parent=50 // pred_check
          %p1755 = pneg %p1754
        $region57: #{forward.7} parent=50 // pred_check_branch
          %1757 = sbr.rel (%p1755) target = $region59
        $region58: #{forward.7} parent=50 // pred_region
          %1758 = vst [vmem:[#allocation2] sm:$0xff] 0.0
          %1759 = vst [vmem:[#allocation2 + $0x8] sm:$0xff] 0.0
          %1760 = vst [vmem:[#allocation2 + $0x10] sm:$0xff] 0.0
          %1761 = vst [vmem:[#allocation2 + $0x18] sm:$0xff] 0.0
        $region59: #{forward.7} parent=50 // pred_fallthru
          _
        %v1762 = vld [vmem:[#allocation2] sm:$0xff]
        %v1763 = vld [vmem:[#allocation2 + $0x8] sm:$0xff]
        %v1764 = vld [vmem:[#allocation2 + $0x10] sm:$0xff]
        %v1765 = vld [vmem:[#allocation2 + $0x18] sm:$0xff]
        %v1766 = vld [vmem:[%s1734] sm:$0xff]
        %v1767 = vld [vmem:[%s1734 + $0x8] sm:$0xff]
        %v1768 = vld [vmem:[%s1734 + $0x10] sm:$0xff]
        %v1769 = vld [vmem:[%s1734 + $0x18] sm:$0xff]
        %v1770 = vld [vmem:[%s1734 + $0x20] sm:$0xff]
        %v1771 = vld [vmem:[%s1734 + $0x28] sm:$0xff]
        %v1772 = vld [vmem:[%s1734 + $0x30] sm:$0xff]
        %v1773 = vld [vmem:[%s1734 + $0x38] sm:$0xff]
        %v1774 = vld [vmem:[%s1734 + $0x40] sm:$0xff]
        %v1775 = vld [vmem:[%s1734 + $0x48] sm:$0xff]
        %v1776 = vld [vmem:[%s1734 + $0x50] sm:$0xff]
        %v1777 = vld [vmem:[%s1734 + $0x58] sm:$0xf]
        %v1778 = vld [vmem:[%s1688] sm:$0xff]
        %v1779 = vld [vmem:[%s1688 + $0x8] sm:$0xff]
        %v1780 = vld [vmem:[%s1688 + $0x10] sm:$0xff]
        %v1781 = vld [vmem:[%s1688 + $0x18] sm:$0xff]
        %v1782 = vld [vmem:[%s1688 + $0x20] sm:$0xff]
        %v1783 = vld [vmem:[%s1688 + $0x28] sm:$0xff]
        %v1784 = vld [vmem:[%s1688 + $0x30] sm:$0xff]
        %v1785 = vld [vmem:[%s1688 + $0x38] sm:$0xff]
        %v1786 = vld [vmem:[%s1688 + $0x40] sm:$0xff]
        %v1787 = vld [vmem:[%s1688 + $0x48] sm:$0xff]
        %v1788 = vld [vmem:[%s1688 + $0x50] sm:$0xff]
        %v1789 = vld [vmem:[%s1688 + $0x58] sm:$0xff]
        %v1790 = vld [vmem:[%s1688 + $0x60] sm:$0xff]
        %v1791 = vld [vmem:[%s1688 + $0x68] sm:$0xff]
        %v1792 = vld [vmem:[%s1688 + $0x70] sm:$0xff]
        %v1793 = vld [vmem:[%s1688 + $0x78] sm:$0xff]
        %v1794 = vld [vmem:[%s1688 + $0x80] sm:$0xff]
        %v1795 = vld [vmem:[%s1688 + $0x88] sm:$0xff]
        %v1796 = vld [vmem:[%s1688 + $0x90] sm:$0xff]
        %v1797 = vld [vmem:[%s1688 + $0x98] sm:$0xff]
        %v1798 = vld [vmem:[%s1688 + $0xa0] sm:$0xff]
        %v1799 = vld [vmem:[%s1688 + $0xa8] sm:$0xff]
        %v1800 = vld [vmem:[%s1688 + $0xb0] sm:$0xff]
        %v1801 = vld [vmem:[%s1688 + $0xb8] sm:$0xff]
        %v1802 = vld [vmem:[%s1688 + $0xc0] sm:$0xff]
        %v1803 = vld [vmem:[%s1688 + $0xc8] sm:$0xff]
        %v1804 = vld [vmem:[%s1688 + $0xd0] sm:$0xff]
        %v1805 = vld [vmem:[%s1688 + $0xd8] sm:$0xff]
        %v1806 = vld [vmem:[%s1688 + $0xe0] sm:$0xff]
        %v1807 = vld [vmem:[%s1688 + $0xe8] sm:$0xff]
        %v1808 = vld [vmem:[%s1688 + $0xf0] sm:$0xff]
        %v1809 = vld [vmem:[%s1688 + $0xf8] sm:$0xff]
        %v1810 = vld [vmem:[%s1688 + $0x100] sm:$0xff]
        %v1811 = vld [vmem:[%s1688 + $0x108] sm:$0xff]
        %v1812 = vld [vmem:[%s1688 + $0x110] sm:$0xff]
        %v1813 = vld [vmem:[%s1688 + $0x118] sm:$0xff]
        %v1814 = vld [vmem:[%s1688 + $0x120] sm:$0xff]
        %v1815 = vld [vmem:[%s1688 + $0x128] sm:$0xff]
        %v1816 = vld [vmem:[%s1688 + $0x130] sm:$0xff]
        %v1817 = vld [vmem:[%s1688 + $0x138] sm:$0xff]
        %v1818 = vld [vmem:[%s1688 + $0x140] sm:$0xff]
        %v1819 = vld [vmem:[%s1688 + $0x148] sm:$0xff]
        %v1820 = vld [vmem:[%s1688 + $0x150] sm:$0xff]
        %v1821 = vld [vmem:[%s1688 + $0x158] sm:$0xff]
        %v1822 = vld [vmem:[%s1688 + $0x160] sm:$0xff]
        %v1823 = vld [vmem:[%s1688 + $0x168] sm:$0xff]
        %v1824 = vld [vmem:[%s1688 + $0x170] sm:$0xff]
        %v1825 = vld [vmem:[%s1688 + $0x178] sm:$0xff]
        %v1826 = vld [vmem:[%s1688 + $0x180] sm:$0xff]
        %v1827 = vld [vmem:[%s1688 + $0x188] sm:$0xff]
        %v1828 = vld [vmem:[%s1688 + $0x190] sm:$0xff]
        %v1829 = vld [vmem:[%s1688 + $0x198] sm:$0xff]
        %v1830 = vld [vmem:[%s1688 + $0x1a0] sm:$0xff]
        %v1831 = vld [vmem:[%s1688 + $0x1a8] sm:$0xff]
        %v1832 = vld [vmem:[%s1688 + $0x1b0] sm:$0xff]
        %v1833 = vld [vmem:[%s1688 + $0x1b8] sm:$0xff]
        %v1834 = vld [vmem:[%s1688 + $0x1c0] sm:$0xff]
        %v1835 = vld [vmem:[%s1688 + $0x1c8] sm:$0xff]
        %v1836 = vld [vmem:[%s1688 + $0x1d0] sm:$0xff]
        %v1837 = vld [vmem:[%s1688 + $0x1d8] sm:$0xff]
        %v1838 = vld [vmem:[%s1688 + $0x1e0] sm:$0xff]
        %v1839 = vld [vmem:[%s1688 + $0x1e8] sm:$0xff]
        %v1840 = vld [vmem:[%s1688 + $0x1f0] sm:$0xff]
        %v1841 = vld [vmem:[%s1688 + $0x1f8] sm:$0xff]
        %v1842 = vld [vmem:[%s1688 + $0x200] sm:$0xff]
        %v1843 = vld [vmem:[%s1688 + $0x208] sm:$0xff]
        %v1844 = vld [vmem:[%s1688 + $0x210] sm:$0xff]
        %v1845 = vld [vmem:[%s1688 + $0x218] sm:$0xff]
        %v1846 = vld [vmem:[%s1688 + $0x220] sm:$0xff]
        %v1847 = vld [vmem:[%s1688 + $0x228] sm:$0xff]
        %v1848 = vld [vmem:[%s1688 + $0x230] sm:$0xff]
        %v1849 = vld [vmem:[%s1688 + $0x238] sm:$0xff]
        %v1850 = vld [vmem:[%s1688 + $0x240] sm:$0xff]
        %v1851 = vld [vmem:[%s1688 + $0x248] sm:$0xff]
        %v1852 = vld [vmem:[%s1688 + $0x250] sm:$0xff]
        %v1853 = vld [vmem:[%s1688 + $0x258] sm:$0xff]
        %v1854 = vld [vmem:[%s1688 + $0x260] sm:$0xff]
        %v1855 = vld [vmem:[%s1688 + $0x268] sm:$0xff]
        %v1856 = vld [vmem:[%s1688 + $0x270] sm:$0xff]
        %v1857 = vld [vmem:[%s1688 + $0x278] sm:$0xff]
        %v1858 = vld [vmem:[%s1688 + $0x280] sm:$0xff]
        %v1859 = vld [vmem:[%s1688 + $0x288] sm:$0xff]
        %v1860 = vld [vmem:[%s1688 + $0x290] sm:$0xff]
        %v1861 = vld [vmem:[%s1688 + $0x298] sm:$0xff]
        %v1862 = vld [vmem:[%s1688 + $0x2a0] sm:$0xff]
        %v1863 = vld [vmem:[%s1688 + $0x2a8] sm:$0xff]
        %v1864 = vld [vmem:[%s1688 + $0x2b0] sm:$0xff]
        %v1865 = vld [vmem:[%s1688 + $0x2b8] sm:$0xff]
        %v1866 = vld [vmem:[%s1688 + $0x2c0] sm:$0xff]
        %v1867 = vld [vmem:[%s1688 + $0x2c8] sm:$0xff]
        %v1868 = vld [vmem:[%s1688 + $0x2d0] sm:$0xff]
        %v1869 = vld [vmem:[%s1688 + $0x2d8] sm:$0xff]
        %v1870 = vld [vmem:[%s1688 + $0x2e0] sm:$0xff]
        %v1871 = vld [vmem:[%s1688 + $0x2e8] sm:$0xff]
        %v1872 = vld [vmem:[%s1688 + $0x2f0] sm:$0xff]
        %v1873 = vld [vmem:[%s1688 + $0x2f8] sm:$0xff]
        %v1874 = vld [vmem:[%s1688 + $0x300] sm:$0xff]
        %v1875 = vld [vmem:[%s1688 + $0x308] sm:$0xff]
        %v1876 = vld [vmem:[%s1688 + $0x310] sm:$0xff]
        %v1877 = vld [vmem:[%s1688 + $0x318] sm:$0xff]
        %v1878 = vld [vmem:[%s1688 + $0x320] sm:$0xff]
        %v1879 = vld [vmem:[%s1688 + $0x328] sm:$0xff]
        %v1880 = vld [vmem:[%s1688 + $0x330] sm:$0xff]
        %v1881 = vld [vmem:[%s1688 + $0x338] sm:$0xff]
        %v1882 = vld [vmem:[%s1688 + $0x340] sm:$0xff]
        %v1883 = vld [vmem:[%s1688 + $0x348] sm:$0xff]
        %v1884 = vld [vmem:[%s1688 + $0x350] sm:$0xff]
        %v1885 = vld [vmem:[%s1688 + $0x358] sm:$0xff]
        %v1886 = vld [vmem:[%s1688 + $0x360] sm:$0xff]
        %v1887 = vld [vmem:[%s1688 + $0x368] sm:$0xff]
        %v1888 = vld [vmem:[%s1688 + $0x370] sm:$0xff]
        %v1889 = vld [vmem:[%s1688 + $0x378] sm:$0xff]
        %v1890 = vld [vmem:[%s1688 + $0x380] sm:$0xff]
        %v1891 = vld [vmem:[%s1688 + $0x388] sm:$0xff]
        %v1892 = vld [vmem:[%s1688 + $0x390] sm:$0xff]
        %v1893 = vld [vmem:[%s1688 + $0x398] sm:$0xff]
        %v1894 = vld [vmem:[%s1688 + $0x3a0] sm:$0xff]
        %v1895 = vld [vmem:[%s1688 + $0x3a8] sm:$0xff]
        %v1896 = vld [vmem:[%s1688 + $0x3b0] sm:$0xff]
        %v1897 = vld [vmem:[%s1688 + $0x3b8] sm:$0xff]
        %v1898 = vld [vmem:[%s1688 + $0x3c0] sm:$0xff]
        %v1899 = vld [vmem:[%s1688 + $0x3c8] sm:$0xff]
        %v1900 = vld [vmem:[%s1688 + $0x3d0] sm:$0xff]
        %v1901 = vld [vmem:[%s1688 + $0x3d8] sm:$0xff]
        %v1902 = vld [vmem:[%s1688 + $0x3e0] sm:$0xff]
        %v1903 = vld [vmem:[%s1688 + $0x3e8] sm:$0xff]
        %v1904 = vld [vmem:[%s1688 + $0x3f0] sm:$0xff]
        %v1905 = vld [vmem:[%s1688 + $0x3f8] sm:$0xff]
        %v1906 = vld [vmem:[%s1688 + $0x400] sm:$0xff]
        %v1907 = vld [vmem:[%s1688 + $0x408] sm:$0xff]
        %v1908 = vld [vmem:[%s1688 + $0x410] sm:$0xff]
        %v1909 = vld [vmem:[%s1688 + $0x418] sm:$0xff]
        %v1910 = vld [vmem:[%s1688 + $0x420] sm:$0xff]
        %v1911 = vld [vmem:[%s1688 + $0x428] sm:$0xff]
        %v1912 = vld [vmem:[%s1688 + $0x430] sm:$0xff]
        %v1913 = vld [vmem:[%s1688 + $0x438] sm:$0xff]
        %v1914 = vld [vmem:[%s1688 + $0x440] sm:$0xff]
        %v1915 = vld [vmem:[%s1688 + $0x448] sm:$0xff]
        %v1916 = vld [vmem:[%s1688 + $0x450] sm:$0xff]
        %v1917 = vld [vmem:[%s1688 + $0x458] sm:$0xff]
        %v1918 = vld [vmem:[%s1688 + $0x460] sm:$0xff]
        %v1919 = vld [vmem:[%s1688 + $0x468] sm:$0xff]
        %v1920 = vld [vmem:[%s1688 + $0x470] sm:$0xff]
        %v1921 = vld [vmem:[%s1688 + $0x478] sm:$0xff]
        %v1922 = vld [vmem:[%s1688 + $0x480] sm:$0xff]
        %v1923 = vld [vmem:[%s1688 + $0x488] sm:$0xff]
        %v1924 = vld [vmem:[%s1688 + $0x490] sm:$0xff]
        %v1925 = vld [vmem:[%s1688 + $0x498] sm:$0xff]
        %v1926 = vld [vmem:[%s1688 + $0x4a0] sm:$0xff]
        %v1927 = vld [vmem:[%s1688 + $0x4a8] sm:$0xff]
        %v1928 = vld [vmem:[%s1688 + $0x4b0] sm:$0xff]
        %v1929 = vld [vmem:[%s1688 + $0x4b8] sm:$0xff]
        %v1930 = vld [vmem:[%s1688 + $0x4c0] sm:$0xff]
        %v1931 = vld [vmem:[%s1688 + $0x4c8] sm:$0xff]
        %v1932 = vld [vmem:[%s1688 + $0x4d0] sm:$0xff]
        %v1933 = vld [vmem:[%s1688 + $0x4d8] sm:$0xff]
        %v1934 = vld [vmem:[%s1688 + $0x4e0] sm:$0xff]
        %v1935 = vld [vmem:[%s1688 + $0x4e8] sm:$0xff]
        %v1936 = vld [vmem:[%s1688 + $0x4f0] sm:$0xff]
        %v1937 = vld [vmem:[%s1688 + $0x4f8] sm:$0xff]
        %v1938 = vld [vmem:[%s1688 + $0x500] sm:$0xff]
        %v1939 = vld [vmem:[%s1688 + $0x508] sm:$0xff]
        %v1940 = vld [vmem:[%s1688 + $0x510] sm:$0xff]
        %v1941 = vld [vmem:[%s1688 + $0x518] sm:$0xff]
        %v1942 = vld [vmem:[%s1688 + $0x520] sm:$0xff]
        %v1943 = vld [vmem:[%s1688 + $0x528] sm:$0xff]
        %v1944 = vld [vmem:[%s1688 + $0x530] sm:$0xff]
        %v1945 = vld [vmem:[%s1688 + $0x538] sm:$0xff]
        %v1946 = vld [vmem:[%s1688 + $0x540] sm:$0xff]
        %v1947 = vld [vmem:[%s1688 + $0x548] sm:$0xff]
        %v1948 = vld [vmem:[%s1688 + $0x550] sm:$0xff]
        %v1949 = vld [vmem:[%s1688 + $0x558] sm:$0xff]
        %v1950 = vld [vmem:[%s1688 + $0x560] sm:$0xff]
        %v1951 = vld [vmem:[%s1688 + $0x568] sm:$0xff]
        %v1952 = vld [vmem:[%s1688 + $0x570] sm:$0xff]
        %v1953 = vld [vmem:[%s1688 + $0x578] sm:$0xff]
        %v1954 = vld [vmem:[%s1688 + $0x580] sm:$0xff]
        %v1955 = vld [vmem:[%s1688 + $0x588] sm:$0xff]
        %v1956 = vld [vmem:[%s1688 + $0x590] sm:$0xff]
        %v1957 = vld [vmem:[%s1688 + $0x598] sm:$0xff]
        %v1958 = vld [vmem:[%s1688 + $0x5a0] sm:$0xff]
        %v1959 = vld [vmem:[%s1688 + $0x5a8] sm:$0xff]
        %v1960 = vld [vmem:[%s1688 + $0x5b0] sm:$0xff]
        %v1961 = vld [vmem:[%s1688 + $0x5b8] sm:$0xff]
        %v1962 = vld [vmem:[%s1688 + $0x5c0] sm:$0xff]
        %v1963 = vld [vmem:[%s1688 + $0x5c8] sm:$0xff]
        %v1964 = vld [vmem:[%s1688 + $0x5d0] sm:$0xff]
        %v1965 = vld [vmem:[%s1688 + $0x5d8] sm:$0xff]
        %v1966 = vld [vmem:[%s1688 + $0x5e0] sm:$0xff]
        %v1967 = vld [vmem:[%s1688 + $0x5e8] sm:$0xff]
        %v1968 = vld [vmem:[%s1688 + $0x5f0] sm:$0xff]
        %v1969 = vld [vmem:[%s1688 + $0x5f8] sm:$0xff]
        %v1970 = vld [vmem:[%s1688 + $0x600] sm:$0xff]
        %v1971 = vld [vmem:[%s1688 + $0x608] sm:$0xff]
        %v1972 = vld [vmem:[%s1688 + $0x610] sm:$0xff]
        %v1973 = vld [vmem:[%s1688 + $0x618] sm:$0xff]
        %v1974 = vld [vmem:[%s1688 + $0x620] sm:$0xff]
        %v1975 = vld [vmem:[%s1688 + $0x628] sm:$0xff]
        %v1976 = vld [vmem:[%s1688 + $0x630] sm:$0xff]
        %v1977 = vld [vmem:[%s1688 + $0x638] sm:$0xff]
        %v1978 = vld [vmem:[%s1688 + $0x640] sm:$0xff]
        %v1979 = vld [vmem:[%s1688 + $0x648] sm:$0xff]
        %v1980 = vld [vmem:[%s1688 + $0x650] sm:$0xff]
        %v1981 = vld [vmem:[%s1688 + $0x658] sm:$0xff]
        %v1982 = vld [vmem:[%s1688 + $0x660] sm:$0xff]
        %v1983 = vld [vmem:[%s1688 + $0x668] sm:$0xff]
        %v1984 = vld [vmem:[%s1688 + $0x670] sm:$0xff]
        %v1985 = vld [vmem:[%s1688 + $0x678] sm:$0xff]
        %v1986 = vld [vmem:[%s1688 + $0x680] sm:$0xff]
        %v1987 = vld [vmem:[%s1688 + $0x688] sm:$0xff]
        %v1988 = vld [vmem:[%s1688 + $0x690] sm:$0xff]
        %v1989 = vld [vmem:[%s1688 + $0x698] sm:$0xff]
        %v1990 = vld [vmem:[%s1688 + $0x6a0] sm:$0xff]
        %v1991 = vld [vmem:[%s1688 + $0x6a8] sm:$0xff]
        %v1992 = vld [vmem:[%s1688 + $0x6b0] sm:$0xff]
        %v1993 = vld [vmem:[%s1688 + $0x6b8] sm:$0xff]
        %v1994 = vld [vmem:[%s1688 + $0x6c0] sm:$0xff]
        %v1995 = vld [vmem:[%s1688 + $0x6c8] sm:$0xff]
        %v1996 = vld [vmem:[%s1688 + $0x6d0] sm:$0xff]
        %v1997 = vld [vmem:[%s1688 + $0x6d8] sm:$0xff]
        %v1998 = vld [vmem:[%s1688 + $0x6e0] sm:$0xff]
        %v1999 = vld [vmem:[%s1688 + $0x6e8] sm:$0xff]
        %v2000 = vld [vmem:[%s1688 + $0x6f0] sm:$0xff]
        %v2001 = vld [vmem:[%s1688 + $0x6f8] sm:$0xff]
        %v2002 = vld [vmem:[%s1688 + $0x700] sm:$0xff]
        %v2003 = vld [vmem:[%s1688 + $0x708] sm:$0xff]
        %v2004 = vld [vmem:[%s1688 + $0x710] sm:$0xff]
        %v2005 = vld [vmem:[%s1688 + $0x718] sm:$0xff]
        %v2006 = vld [vmem:[%s1688 + $0x720] sm:$0xff]
        %v2007 = vld [vmem:[%s1688 + $0x728] sm:$0xff]
        %v2008 = vld [vmem:[%s1688 + $0x730] sm:$0xff]
        %v2009 = vld [vmem:[%s1688 + $0x738] sm:$0xff]
        %v2010 = vld [vmem:[%s1688 + $0x740] sm:$0xff]
        %v2011 = vld [vmem:[%s1688 + $0x748] sm:$0xff]
        %v2012 = vld [vmem:[%s1688 + $0x750] sm:$0xff]
        %v2013 = vld [vmem:[%s1688 + $0x758] sm:$0xff]
        %v2014 = vld [vmem:[%s1688 + $0x760] sm:$0xff]
        %v2015 = vld [vmem:[%s1688 + $0x768] sm:$0xff]
        %v2016 = vld [vmem:[%s1688 + $0x770] sm:$0xff]
        %v2017 = vld [vmem:[%s1688 + $0x778] sm:$0xff]
        %v2018 = vld [vmem:[%s1688 + $0x780] sm:$0xff]
        %v2019 = vld [vmem:[%s1688 + $0x788] sm:$0xff]
        %v2020 = vld [vmem:[%s1688 + $0x790] sm:$0xff]
        %v2021 = vld [vmem:[%s1688 + $0x798] sm:$0xff]
        %v2022 = vld [vmem:[%s1688 + $0x7a0] sm:$0xff]
        %v2023 = vld [vmem:[%s1688 + $0x7a8] sm:$0xff]
        %v2024 = vld [vmem:[%s1688 + $0x7b0] sm:$0xff]
        %v2025 = vld [vmem:[%s1688 + $0x7b8] sm:$0xff]
        %v2026 = vld [vmem:[%s1688 + $0x7c0] sm:$0xff]
        %v2027 = vld [vmem:[%s1688 + $0x7c8] sm:$0xff]
        %v2028 = vld [vmem:[%s1688 + $0x7d0] sm:$0xff]
        %v2029 = vld [vmem:[%s1688 + $0x7d8] sm:$0xff]
        %v2030 = vld [vmem:[%s1688 + $0x7e0] sm:$0xff]
        %v2031 = vld [vmem:[%s1688 + $0x7e8] sm:$0xff]
        %v2032 = vld [vmem:[%s1688 + $0x7f0] sm:$0xff]
        %v2033 = vld [vmem:[%s1688 + $0x7f8] sm:$0xff]
        %v2034 = vld [vmem:[%s1688 + $0x800] sm:$0xff]
        %v2035 = vld [vmem:[%s1688 + $0x808] sm:$0xff]
        %v2036 = vld [vmem:[%s1688 + $0x810] sm:$0xff]
        %v2037 = vld [vmem:[%s1688 + $0x818] sm:$0xff]
        %v2038 = vld [vmem:[%s1688 + $0x820] sm:$0xff]
        %v2039 = vld [vmem:[%s1688 + $0x828] sm:$0xff]
        %v2040 = vld [vmem:[%s1688 + $0x830] sm:$0xff]
        %v2041 = vld [vmem:[%s1688 + $0x838] sm:$0xff]
        %v2042 = vld [vmem:[%s1688 + $0x840] sm:$0xff]
        %v2043 = vld [vmem:[%s1688 + $0x848] sm:$0xff]
        %v2044 = vld [vmem:[%s1688 + $0x850] sm:$0xff]
        %v2045 = vld [vmem:[%s1688 + $0x858] sm:$0xff]
        %v2046 = vld [vmem:[%s1688 + $0x860] sm:$0xff]
        %v2047 = vld [vmem:[%s1688 + $0x868] sm:$0xff]
        %v2048 = vld [vmem:[%s1688 + $0x870] sm:$0xff]
        %v2049 = vld [vmem:[%s1688 + $0x878] sm:$0xff]
        %v2050 = vld [vmem:[%s1688 + $0x880] sm:$0xff]
        %v2051 = vld [vmem:[%s1688 + $0x888] sm:$0xff]
        %v2052 = vld [vmem:[%s1688 + $0x890] sm:$0xff]
        %v2053 = vld [vmem:[%s1688 + $0x898] sm:$0xff]
        %v2054 = vld [vmem:[%s1688 + $0x8a0] sm:$0xff]
        %v2055 = vld [vmem:[%s1688 + $0x8a8] sm:$0xff]
        %v2056 = vld [vmem:[%s1688 + $0x8b0] sm:$0xff]
        %v2057 = vld [vmem:[%s1688 + $0x8b8] sm:$0xff]
        %v2058 = vld [vmem:[%s1688 + $0x8c0] sm:$0xff]
        %v2059 = vld [vmem:[%s1688 + $0x8c8] sm:$0xff]
        %v2060 = vld [vmem:[%s1688 + $0x8d0] sm:$0xff]
        %v2061 = vld [vmem:[%s1688 + $0x8d8] sm:$0xff]
        %v2062 = vld [vmem:[%s1688 + $0x8e0] sm:$0xff]
        %v2063 = vld [vmem:[%s1688 + $0x8e8] sm:$0xff]
        %v2064 = vld [vmem:[%s1688 + $0x8f0] sm:$0xff]
        %v2065 = vld [vmem:[%s1688 + $0x8f8] sm:$0xff]
        %v2066 = vld [vmem:[%s1688 + $0x900] sm:$0xff]
        %v2067 = vld [vmem:[%s1688 + $0x908] sm:$0xff]
        %v2068 = vld [vmem:[%s1688 + $0x910] sm:$0xff]
        %v2069 = vld [vmem:[%s1688 + $0x918] sm:$0xff]
        %v2070 = vld [vmem:[%s1688 + $0x920] sm:$0xff]
        %v2071 = vld [vmem:[%s1688 + $0x928] sm:$0xff]
        %v2072 = vld [vmem:[%s1688 + $0x930] sm:$0xff]
        %v2073 = vld [vmem:[%s1688 + $0x938] sm:$0xff]
        %v2074 = vld [vmem:[%s1688 + $0x940] sm:$0xff]
        %v2075 = vld [vmem:[%s1688 + $0x948] sm:$0xff]
        %v2076 = vld [vmem:[%s1688 + $0x950] sm:$0xff]
        %v2077 = vld [vmem:[%s1688 + $0x958] sm:$0xff]
        %v2078 = vld [vmem:[%s1688 + $0x960] sm:$0xff]
        %v2079 = vld [vmem:[%s1688 + $0x968] sm:$0xff]
        %v2080 = vld [vmem:[%s1688 + $0x970] sm:$0xff]
        %v2081 = vld [vmem:[%s1688 + $0x978] sm:$0xff]
        %v2082 = vld [vmem:[%s1688 + $0x980] sm:$0xff]
        %v2083 = vld [vmem:[%s1688 + $0x988] sm:$0xff]
        %v2084 = vld [vmem:[%s1688 + $0x990] sm:$0xff]
        %v2085 = vld [vmem:[%s1688 + $0x998] sm:$0xff]
        %v2086 = vld [vmem:[%s1688 + $0x9a0] sm:$0xff]
        %v2087 = vld [vmem:[%s1688 + $0x9a8] sm:$0xff]
        %v2088 = vld [vmem:[%s1688 + $0x9b0] sm:$0xff]
        %v2089 = vld [vmem:[%s1688 + $0x9b8] sm:$0xff]
        %v2090 = vld [vmem:[%s1688 + $0x9c0] sm:$0xff]
        %v2091 = vld [vmem:[%s1688 + $0x9c8] sm:$0xff]
        %v2092 = vld [vmem:[%s1688 + $0x9d0] sm:$0xff]
        %v2093 = vld [vmem:[%s1688 + $0x9d8] sm:$0xff]
        %v2094 = vld [vmem:[%s1688 + $0x9e0] sm:$0xff]
        %v2095 = vld [vmem:[%s1688 + $0x9e8] sm:$0xff]
        %v2096 = vld [vmem:[%s1688 + $0x9f0] sm:$0xff]
        %v2097 = vld [vmem:[%s1688 + $0x9f8] sm:$0xff]
        %v2098 = vld [vmem:[%s1688 + $0xa00] sm:$0xff]
        %v2099 = vld [vmem:[%s1688 + $0xa08] sm:$0xff]
        %v2100 = vld [vmem:[%s1688 + $0xa10] sm:$0xff]
        %v2101 = vld [vmem:[%s1688 + $0xa18] sm:$0xff]
        %v2102 = vld [vmem:[%s1688 + $0xa20] sm:$0xff]
        %v2103 = vld [vmem:[%s1688 + $0xa28] sm:$0xff]
        %v2104 = vld [vmem:[%s1688 + $0xa30] sm:$0xff]
        %v2105 = vld [vmem:[%s1688 + $0xa38] sm:$0xff]
        %v2106 = vld [vmem:[%s1688 + $0xa40] sm:$0xff]
        %v2107 = vld [vmem:[%s1688 + $0xa48] sm:$0xff]
        %v2108 = vld [vmem:[%s1688 + $0xa50] sm:$0xff]
        %v2109 = vld [vmem:[%s1688 + $0xa58] sm:$0xff]
        %v2110 = vld [vmem:[%s1688 + $0xa60] sm:$0xff]
        %v2111 = vld [vmem:[%s1688 + $0xa68] sm:$0xff]
        %v2112 = vld [vmem:[%s1688 + $0xa70] sm:$0xff]
        %v2113 = vld [vmem:[%s1688 + $0xa78] sm:$0xff]
        %v2114 = vld [vmem:[%s1688 + $0xa80] sm:$0xff]
        %v2115 = vld [vmem:[%s1688 + $0xa88] sm:$0xff]
        %v2116 = vld [vmem:[%s1688 + $0xa90] sm:$0xff]
        %v2117 = vld [vmem:[%s1688 + $0xa98] sm:$0xff]
        %v2118 = vld [vmem:[%s1688 + $0xaa0] sm:$0xff]
        %v2119 = vld [vmem:[%s1688 + $0xaa8] sm:$0xff]
        %v2120 = vld [vmem:[%s1688 + $0xab0] sm:$0xff]
        %v2121 = vld [vmem:[%s1688 + $0xab8] sm:$0xff]
        %v2122 = vld [vmem:[%s1688 + $0xac0] sm:$0xff]
        %v2123 = vld [vmem:[%s1688 + $0xac8] sm:$0xff]
        %v2124 = vld [vmem:[%s1688 + $0xad0] sm:$0xff]
        %v2125 = vld [vmem:[%s1688 + $0xad8] sm:$0xff]
        %v2126 = vld [vmem:[%s1688 + $0xae0] sm:$0xff]
        %v2127 = vld [vmem:[%s1688 + $0xae8] sm:$0xff]
        %v2128 = vld [vmem:[%s1688 + $0xaf0] sm:$0xff]
        %v2129 = vld [vmem:[%s1688 + $0xaf8] sm:$0xff]
        %v2130 = vld [vmem:[%s1688 + $0xb00] sm:$0xff]
        %v2131 = vld [vmem:[%s1688 + $0xb08] sm:$0xff]
        %v2132 = vld [vmem:[%s1688 + $0xb10] sm:$0xff]
        %v2133 = vld [vmem:[%s1688 + $0xb18] sm:$0xff]
        %v2134 = vld [vmem:[%s1688 + $0xb20] sm:$0xff]
        %v2135 = vld [vmem:[%s1688 + $0xb28] sm:$0xff]
        %v2136 = vld [vmem:[%s1688 + $0xb30] sm:$0xff]
        %v2137 = vld [vmem:[%s1688 + $0xb38] sm:$0xff]
        %v2138 = vld [vmem:[%s1688 + $0xb40] sm:$0xff]
        %v2139 = vld [vmem:[%s1688 + $0xb48] sm:$0xff]
        %v2140 = vld [vmem:[%s1688 + $0xb50] sm:$0xff]
        %v2141 = vld [vmem:[%s1688 + $0xb58] sm:$0xff]
        %v2142 = vld [vmem:[%s1688 + $0xb60] sm:$0xff]
        %v2143 = vld [vmem:[%s1688 + $0xb68] sm:$0xff]
        %v2144 = vld [vmem:[%s1688 + $0xb70] sm:$0xff]
        %v2145 = vld [vmem:[%s1688 + $0xb78] sm:$0xff]
        %v2146 = vld [vmem:[%s1688 + $0xb80] sm:$0xff]
        %v2147 = vld [vmem:[%s1688 + $0xb88] sm:$0xff]
        %v2148 = vld [vmem:[%s1688 + $0xb90] sm:$0xff]
        %v2149 = vld [vmem:[%s1688 + $0xb98] sm:$0xff]
        %v2150 = vld [vmem:[%s1688 + $0xba0] sm:$0xff]
        %v2151 = vld [vmem:[%s1688 + $0xba8] sm:$0xff]
        %v2152 = vld [vmem:[%s1688 + $0xbb0] sm:$0xff]
        %v2153 = vld [vmem:[%s1688 + $0xbb8] sm:$0xff]
        %v2154 = vld [vmem:[%s1688 + $0xbc0] sm:$0xff]
        %v2155 = vld [vmem:[%s1688 + $0xbc8] sm:$0xff]
        %v2156 = vld [vmem:[%s1688 + $0xbd0] sm:$0xff]
        %v2157 = vld [vmem:[%s1688 + $0xbd8] sm:$0xff]
        %v2158 = vld [vmem:[%s1688 + $0xbe0] sm:$0xff]
        %v2159 = vld [vmem:[%s1688 + $0xbe8] sm:$0xff]
        %v2160 = vld [vmem:[%s1688 + $0xbf0] sm:$0xff]
        %v2161 = vld [vmem:[%s1688 + $0xbf8] sm:$0xff]
        %v2162 = vld [vmem:[%s1688 + $0xc00] sm:$0xff]
        %v2163 = vld [vmem:[%s1688 + $0xc08] sm:$0xff]
        %v2164 = vld [vmem:[%s1688 + $0xc10] sm:$0xff]
        %v2165 = vld [vmem:[%s1688 + $0xc18] sm:$0xff]
        %v2166 = vld [vmem:[%s1688 + $0xc20] sm:$0xff]
        %v2167 = vld [vmem:[%s1688 + $0xc28] sm:$0xff]
        %v2168 = vld [vmem:[%s1688 + $0xc30] sm:$0xff]
        %v2169 = vld [vmem:[%s1688 + $0xc38] sm:$0xff]
        %v2170 = vld [vmem:[%s1688 + $0xc40] sm:$0xff]
        %v2171 = vld [vmem:[%s1688 + $0xc48] sm:$0xff]
        %v2172 = vld [vmem:[%s1688 + $0xc50] sm:$0xff]
        %v2173 = vld [vmem:[%s1688 + $0xc58] sm:$0xff]
        %v2174 = vld [vmem:[%s1688 + $0xc60] sm:$0xff]
        %v2175 = vld [vmem:[%s1688 + $0xc68] sm:$0xff]
        %v2176 = vld [vmem:[%s1688 + $0xc70] sm:$0xff]
        %v2177 = vld [vmem:[%s1688 + $0xc78] sm:$0xff]
        %v2178 = vld [vmem:[%s1688 + $0xc80] sm:$0xff]
        %v2179 = vld [vmem:[%s1688 + $0xc88] sm:$0xff]
        %v2180 = vld [vmem:[%s1688 + $0xc90] sm:$0xff]
        %v2181 = vld [vmem:[%s1688 + $0xc98] sm:$0xff]
        %v2182 = vld [vmem:[%s1688 + $0xca0] sm:$0xff]
        %v2183 = vld [vmem:[%s1688 + $0xca8] sm:$0xff]
        %v2184 = vld [vmem:[%s1688 + $0xcb0] sm:$0xff]
        %v2185 = vld [vmem:[%s1688 + $0xcb8] sm:$0xff]
        %v2186 = vld [vmem:[%s1688 + $0xcc0] sm:$0xff]
        %v2187 = vld [vmem:[%s1688 + $0xcc8] sm:$0xff]
        %v2188 = vld [vmem:[%s1688 + $0xcd0] sm:$0xff]
        %v2189 = vld [vmem:[%s1688 + $0xcd8] sm:$0xff]
        %v2190 = vld [vmem:[%s1688 + $0xce0] sm:$0xff]
        %v2191 = vld [vmem:[%s1688 + $0xce8] sm:$0xff]
        %v2192 = vld [vmem:[%s1688 + $0xcf0] sm:$0xff]
        %v2193 = vld [vmem:[%s1688 + $0xcf8] sm:$0xff]
        %v2194 = vld [vmem:[%s1688 + $0xd00] sm:$0xff]
        %v2195 = vld [vmem:[%s1688 + $0xd08] sm:$0xff]
        %v2196 = vld [vmem:[%s1688 + $0xd10] sm:$0xff]
        %v2197 = vld [vmem:[%s1688 + $0xd18] sm:$0xff]
        %v2198 = vld [vmem:[%s1688 + $0xd20] sm:$0xff]
        %v2199 = vld [vmem:[%s1688 + $0xd28] sm:$0xff]
        %v2200 = vld [vmem:[%s1688 + $0xd30] sm:$0xff]
        %v2201 = vld [vmem:[%s1688 + $0xd38] sm:$0xff]
        %v2202 = vld [vmem:[%s1688 + $0xd40] sm:$0xff]
        %v2203 = vld [vmem:[%s1688 + $0xd48] sm:$0xff]
        %v2204 = vld [vmem:[%s1688 + $0xd50] sm:$0xff]
        %v2205 = vld [vmem:[%s1688 + $0xd58] sm:$0xff]
        %v2206 = vld [vmem:[%s1688 + $0xd60] sm:$0xff]
        %v2207 = vld [vmem:[%s1688 + $0xd68] sm:$0xff]
        %v2208 = vld [vmem:[%s1688 + $0xd70] sm:$0xff]
        %v2209 = vld [vmem:[%s1688 + $0xd78] sm:$0xff]
        %v2210 = vld [vmem:[%s1688 + $0xd80] sm:$0xff]
        %v2211 = vld [vmem:[%s1688 + $0xd88] sm:$0xff]
        %v2212 = vld [vmem:[%s1688 + $0xd90] sm:$0xff]
        %v2213 = vld [vmem:[%s1688 + $0xd98] sm:$0xff]
        %v2214 = vld [vmem:[%s1688 + $0xda0] sm:$0xff]
        %v2215 = vld [vmem:[%s1688 + $0xda8] sm:$0xff]
        %v2216 = vld [vmem:[%s1688 + $0xdb0] sm:$0xff]
        %v2217 = vld [vmem:[%s1688 + $0xdb8] sm:$0xff]
        %v2218 = vld [vmem:[%s1688 + $0xdc0] sm:$0xff]
        %v2219 = vld [vmem:[%s1688 + $0xdc8] sm:$0xff]
        %v2220 = vld [vmem:[%s1688 + $0xdd0] sm:$0xff]
        %v2221 = vld [vmem:[%s1688 + $0xdd8] sm:$0xff]
        %v2222 = vld [vmem:[%s1688 + $0xde0] sm:$0xff]
        %v2223 = vld [vmem:[%s1688 + $0xde8] sm:$0xff]
        %v2224 = vld [vmem:[%s1688 + $0xdf0] sm:$0xff]
        %v2225 = vld [vmem:[%s1688 + $0xdf8] sm:$0xff]
        %v2226 = vld [vmem:[%s1688 + $0xe00] sm:$0xff]
        %v2227 = vld [vmem:[%s1688 + $0xe08] sm:$0xff]
        %v2228 = vld [vmem:[%s1688 + $0xe10] sm:$0xff]
        %v2229 = vld [vmem:[%s1688 + $0xe18] sm:$0xff]
        %v2230 = vld [vmem:[%s1688 + $0xe20] sm:$0xff]
        %v2231 = vld [vmem:[%s1688 + $0xe28] sm:$0xff]
        %v2232 = vld [vmem:[%s1688 + $0xe30] sm:$0xff]
        %v2233 = vld [vmem:[%s1688 + $0xe38] sm:$0xff]
        %v2234 = vld [vmem:[%s1688 + $0xe40] sm:$0xff]
        %v2235 = vld [vmem:[%s1688 + $0xe48] sm:$0xff]
        %v2236 = vld [vmem:[%s1688 + $0xe50] sm:$0xff]
        %v2237 = vld [vmem:[%s1688 + $0xe58] sm:$0xff]
        %v2238 = vld [vmem:[%s1688 + $0xe60] sm:$0xff]
        %v2239 = vld [vmem:[%s1688 + $0xe68] sm:$0xff]
        %v2240 = vld [vmem:[%s1688 + $0xe70] sm:$0xff]
        %v2241 = vld [vmem:[%s1688 + $0xe78] sm:$0xff]
        %v2242 = vld [vmem:[%s1688 + $0xe80] sm:$0xff]
        %v2243 = vld [vmem:[%s1688 + $0xe88] sm:$0xff]
        %v2244 = vld [vmem:[%s1688 + $0xe90] sm:$0xff]
        %v2245 = vld [vmem:[%s1688 + $0xe98] sm:$0xff]
        %v2246 = vld [vmem:[%s1688 + $0xea0] sm:$0xff]
        %v2247 = vld [vmem:[%s1688 + $0xea8] sm:$0xff]
        %v2248 = vld [vmem:[%s1688 + $0xeb0] sm:$0xff]
        %v2249 = vld [vmem:[%s1688 + $0xeb8] sm:$0xff]
        %v2250 = vld [vmem:[%s1688 + $0xec0] sm:$0xff]
        %v2251 = vld [vmem:[%s1688 + $0xec8] sm:$0xff]
        %v2252 = vld [vmem:[%s1688 + $0xed0] sm:$0xff]
        %v2253 = vld [vmem:[%s1688 + $0xed8] sm:$0xff]
        %v2254 = vld [vmem:[%s1688 + $0xee0] sm:$0xff]
        %v2255 = vld [vmem:[%s1688 + $0xee8] sm:$0xff]
        %v2256 = vld [vmem:[%s1688 + $0xef0] sm:$0xff]
        %v2257 = vld [vmem:[%s1688 + $0xef8] sm:$0xff]
        %v2258 = vld [vmem:[%s1688 + $0xf00] sm:$0xff]
        %v2259 = vld [vmem:[%s1688 + $0xf08] sm:$0xff]
        %v2260 = vld [vmem:[%s1688 + $0xf10] sm:$0xff]
        %v2261 = vld [vmem:[%s1688 + $0xf18] sm:$0xff]
        %v2262 = vld [vmem:[%s1688 + $0xf20] sm:$0xff]
        %v2263 = vld [vmem:[%s1688 + $0xf28] sm:$0xff]
        %v2264 = vld [vmem:[%s1688 + $0xf30] sm:$0xff]
        %v2265 = vld [vmem:[%s1688 + $0xf38] sm:$0xff]
        %v2266 = vld [vmem:[%s1688 + $0xf40] sm:$0xff]
        %v2267 = vld [vmem:[%s1688 + $0xf48] sm:$0xff]
        %v2268 = vld [vmem:[%s1688 + $0xf50] sm:$0xff]
        %v2269 = vld [vmem:[%s1688 + $0xf58] sm:$0xff]
        %v2270 = vld [vmem:[%s1688 + $0xf60] sm:$0xff]
        %v2271 = vld [vmem:[%s1688 + $0xf68] sm:$0xff]
        %v2272 = vld [vmem:[%s1688 + $0xf70] sm:$0xff]
        %v2273 = vld [vmem:[%s1688 + $0xf78] sm:$0xff]
        %v2274 = vld [vmem:[%s1688 + $0xf80] sm:$0xff]
        %v2275 = vld [vmem:[%s1688 + $0xf88] sm:$0xff]
        %v2276 = vld [vmem:[%s1688 + $0xf90] sm:$0xff]
        %v2277 = vld [vmem:[%s1688 + $0xf98] sm:$0xff]
        %v2278 = vld [vmem:[%s1688 + $0xfa0] sm:$0xff]
        %v2279 = vld [vmem:[%s1688 + $0xfa8] sm:$0xff]
        %v2280 = vld [vmem:[%s1688 + $0xfb0] sm:$0xff]
        %v2281 = vld [vmem:[%s1688 + $0xfb8] sm:$0xff]
        %v2282 = vld [vmem:[%s1688 + $0xfc0] sm:$0xff]
        %v2283 = vld [vmem:[%s1688 + $0xfc8] sm:$0xff]
        %v2284 = vld [vmem:[%s1688 + $0xfd0] sm:$0xff]
        %v2285 = vld [vmem:[%s1688 + $0xfd8] sm:$0xff]
        %v2286 = vld [vmem:[%s1688 + $0xfe0] sm:$0xff]
        %v2287 = vld [vmem:[%s1688 + $0xfe8] sm:$0xff]
        %v2288 = vld [vmem:[%s1688 + $0xff0] sm:$0xff]
        %v2289 = vld [vmem:[%s1688 + $0xff8] sm:$0xff]
        %v2290 = vld [vmem:[%s1688 + $0x1000] sm:$0xff]
        %v2291 = vld [vmem:[%s1688 + $0x1008] sm:$0xff]
        %v2292 = vld [vmem:[%s1688 + $0x1010] sm:$0xff]
        %v2293 = vld [vmem:[%s1688 + $0x1018] sm:$0xff]
        %v2294 = vld [vmem:[%s1688 + $0x1020] sm:$0xff]
        %v2295 = vld [vmem:[%s1688 + $0x1028] sm:$0xff]
        %v2296 = vld [vmem:[%s1688 + $0x1030] sm:$0xff]
        %v2297 = vld [vmem:[%s1688 + $0x1038] sm:$0xff]
        %v2298 = vld [vmem:[%s1688 + $0x1040] sm:$0xff]
        %v2299 = vld [vmem:[%s1688 + $0x1048] sm:$0xff]
        %v2300 = vld [vmem:[%s1688 + $0x1050] sm:$0xff]
        %v2301 = vld [vmem:[%s1688 + $0x1058] sm:$0xff]
        %v2302 = vld [vmem:[%s1688 + $0x1060] sm:$0xff]
        %v2303 = vld [vmem:[%s1688 + $0x1068] sm:$0xff]
        %v2304 = vld [vmem:[%s1688 + $0x1070] sm:$0xff]
        %v2305 = vld [vmem:[%s1688 + $0x1078] sm:$0xff]
        %v2306 = vld [vmem:[%s1688 + $0x1080] sm:$0xff]
        %v2307 = vld [vmem:[%s1688 + $0x1088] sm:$0xff]
        %v2308 = vld [vmem:[%s1688 + $0x1090] sm:$0xff]
        %v2309 = vld [vmem:[%s1688 + $0x1098] sm:$0xff]
        %v2310 = vld [vmem:[%s1688 + $0x10a0] sm:$0xff]
        %v2311 = vld [vmem:[%s1688 + $0x10a8] sm:$0xff]
        %v2312 = vld [vmem:[%s1688 + $0x10b0] sm:$0xff]
        %v2313 = vld [vmem:[%s1688 + $0x10b8] sm:$0xff]
        %v2314 = vld [vmem:[%s1688 + $0x10c0] sm:$0xff]
        %v2315 = vld [vmem:[%s1688 + $0x10c8] sm:$0xff]
        %v2316 = vld [vmem:[%s1688 + $0x10d0] sm:$0xff]
        %v2317 = vld [vmem:[%s1688 + $0x10d8] sm:$0xff]
        %v2318 = vld [vmem:[%s1688 + $0x10e0] sm:$0xff]
        %v2319 = vld [vmem:[%s1688 + $0x10e8] sm:$0xff]
        %v2320 = vld [vmem:[%s1688 + $0x10f0] sm:$0xff]
        %v2321 = vld [vmem:[%s1688 + $0x10f8] sm:$0xff]
        %v2322 = vld [vmem:[%s1688 + $0x1100] sm:$0xff]
        %v2323 = vld [vmem:[%s1688 + $0x1108] sm:$0xff]
        %v2324 = vld [vmem:[%s1688 + $0x1110] sm:$0xff]
        %v2325 = vld [vmem:[%s1688 + $0x1118] sm:$0xff]
        %v2326 = vld [vmem:[%s1688 + $0x1120] sm:$0xff]
        %v2327 = vld [vmem:[%s1688 + $0x1128] sm:$0xff]
        %v2328 = vld [vmem:[%s1688 + $0x1130] sm:$0xff]
        %v2329 = vld [vmem:[%s1688 + $0x1138] sm:$0xff]
        %v2330 = vld [vmem:[%s1688 + $0x1140] sm:$0xff]
        %v2331 = vld [vmem:[%s1688 + $0x1148] sm:$0xff]
        %v2332 = vld [vmem:[%s1688 + $0x1150] sm:$0xff]
        %v2333 = vld [vmem:[%s1688 + $0x1158] sm:$0xff]
        %v2334 = vld [vmem:[%s1688 + $0x1160] sm:$0xff]
        %v2335 = vld [vmem:[%s1688 + $0x1168] sm:$0xff]
        %v2336 = vld [vmem:[%s1688 + $0x1170] sm:$0xff]
        %v2337 = vld [vmem:[%s1688 + $0x1178] sm:$0xff]
        %v2338 = vld [vmem:[%s1688 + $0x1180] sm:$0xff]
        %v2339 = vld [vmem:[%s1688 + $0x1188] sm:$0xff]
        %v2340 = vld [vmem:[%s1688 + $0x1190] sm:$0xff]
        %v2341 = vld [vmem:[%s1688 + $0x1198] sm:$0xff]
        %v2342 = vld [vmem:[%s1688 + $0x11a0] sm:$0xff]
        %v2343 = vld [vmem:[%s1688 + $0x11a8] sm:$0xff]
        %v2344 = vld [vmem:[%s1688 + $0x11b0] sm:$0xff]
        %v2345 = vld [vmem:[%s1688 + $0x11b8] sm:$0xff]
        %v2346 = vld [vmem:[%s1688 + $0x11c0] sm:$0xff]
        %v2347 = vld [vmem:[%s1688 + $0x11c8] sm:$0xff]
        %v2348 = vld [vmem:[%s1688 + $0x11d0] sm:$0xff]
        %v2349 = vld [vmem:[%s1688 + $0x11d8] sm:$0xff]
        %v2350 = vld [vmem:[%s1688 + $0x11e0] sm:$0xff]
        %v2351 = vld [vmem:[%s1688 + $0x11e8] sm:$0xff]
        %v2352 = vld [vmem:[%s1688 + $0x11f0] sm:$0xff]
        %v2353 = vld [vmem:[%s1688 + $0x11f8] sm:$0xff]
        %v2354 = vld [vmem:[%s1688 + $0x1200] sm:$0xff]
        %v2355 = vld [vmem:[%s1688 + $0x1208] sm:$0xff]
        %v2356 = vld [vmem:[%s1688 + $0x1210] sm:$0xff]
        %v2357 = vld [vmem:[%s1688 + $0x1218] sm:$0xff]
        %v2358 = vld [vmem:[%s1688 + $0x1220] sm:$0xff]
        %v2359 = vld [vmem:[%s1688 + $0x1228] sm:$0xff]
        %v2360 = vld [vmem:[%s1688 + $0x1230] sm:$0xff]
        %v2361 = vld [vmem:[%s1688 + $0x1238] sm:$0xff]
        %v2362 = vld [vmem:[%s1688 + $0x1240] sm:$0xff]
        %v2363 = vld [vmem:[%s1688 + $0x1248] sm:$0xff]
        %v2364 = vld [vmem:[%s1688 + $0x1250] sm:$0xff]
        %v2365 = vld [vmem:[%s1688 + $0x1258] sm:$0xff]
        %v2366 = vld [vmem:[%s1688 + $0x1260] sm:$0xff]
        %v2367 = vld [vmem:[%s1688 + $0x1268] sm:$0xff]
        %v2368 = vld [vmem:[%s1688 + $0x1270] sm:$0xff]
        %v2369 = vld [vmem:[%s1688 + $0x1278] sm:$0xff]
        %v2370 = vld [vmem:[%s1688 + $0x1280] sm:$0xff]
        %v2371 = vld [vmem:[%s1688 + $0x1288] sm:$0xff]
        %v2372 = vld [vmem:[%s1688 + $0x1290] sm:$0xff]
        %v2373 = vld [vmem:[%s1688 + $0x1298] sm:$0xff]
        %v2374 = vld [vmem:[%s1688 + $0x12a0] sm:$0xff]
        %v2375 = vld [vmem:[%s1688 + $0x12a8] sm:$0xff]
        %v2376 = vld [vmem:[%s1688 + $0x12b0] sm:$0xff]
        %v2377 = vld [vmem:[%s1688 + $0x12b8] sm:$0xff]
        %v2378 = vld [vmem:[%s1688 + $0x12c0] sm:$0xff]
        %v2379 = vld [vmem:[%s1688 + $0x12c8] sm:$0xff]
        %v2380 = vld [vmem:[%s1688 + $0x12d0] sm:$0xff]
        %v2381 = vld [vmem:[%s1688 + $0x12d8] sm:$0xff]
        %v2382 = vld [vmem:[%s1688 + $0x12e0] sm:$0xff]
        %v2383 = vld [vmem:[%s1688 + $0x12e8] sm:$0xff]
        %v2384 = vld [vmem:[%s1688 + $0x12f0] sm:$0xff]
        %v2385 = vld [vmem:[%s1688 + $0x12f8] sm:$0xff]
        %v2386 = vld [vmem:[%s1688 + $0x1300] sm:$0xff]
        %v2387 = vld [vmem:[%s1688 + $0x1308] sm:$0xff]
        %v2388 = vld [vmem:[%s1688 + $0x1310] sm:$0xff]
        %v2389 = vld [vmem:[%s1688 + $0x1318] sm:$0xff]
        %v2390 = vld [vmem:[%s1688 + $0x1320] sm:$0xff]
        %v2391 = vld [vmem:[%s1688 + $0x1328] sm:$0xff]
        %v2392 = vld [vmem:[%s1688 + $0x1330] sm:$0xff]
        %v2393 = vld [vmem:[%s1688 + $0x1338] sm:$0xff]
        %v2394 = vld [vmem:[%s1688 + $0x1340] sm:$0xff]
        %v2395 = vld [vmem:[%s1688 + $0x1348] sm:$0xff]
        %v2396 = vld [vmem:[%s1688 + $0x1350] sm:$0xff]
        %v2397 = vld [vmem:[%s1688 + $0x1358] sm:$0xff]
        %v2398 = vld [vmem:[%s1688 + $0x1360] sm:$0xff]
        %v2399 = vld [vmem:[%s1688 + $0x1368] sm:$0xff]
        %v2400 = vld [vmem:[%s1688 + $0x1370] sm:$0xff]
        %v2401 = vld [vmem:[%s1688 + $0x1378] sm:$0xff]
        %v2402 = vld [vmem:[%s1688 + $0x1380] sm:$0xff]
        %v2403 = vld [vmem:[%s1688 + $0x1388] sm:$0xff]
        %v2404 = vld [vmem:[%s1688 + $0x1390] sm:$0xff]
        %v2405 = vld [vmem:[%s1688 + $0x1398] sm:$0xff]
        %v2406 = vld [vmem:[%s1688 + $0x13a0] sm:$0xff]
        %v2407 = vld [vmem:[%s1688 + $0x13a8] sm:$0xff]
        %v2408 = vld [vmem:[%s1688 + $0x13b0] sm:$0xff]
        %v2409 = vld [vmem:[%s1688 + $0x13b8] sm:$0xff]
        %v2410 = vld [vmem:[%s1688 + $0x13c0] sm:$0xff]
        %v2411 = vld [vmem:[%s1688 + $0x13c8] sm:$0xff]
        %v2412 = vld [vmem:[%s1688 + $0x13d0] sm:$0xff]
        %v2413 = vld [vmem:[%s1688 + $0x13d8] sm:$0xff]
        %v2414 = vld [vmem:[%s1688 + $0x13e0] sm:$0xff]
        %v2415 = vld [vmem:[%s1688 + $0x13e8] sm:$0xff]
        %v2416 = vld [vmem:[%s1688 + $0x13f0] sm:$0xff]
        %v2417 = vld [vmem:[%s1688 + $0x13f8] sm:$0xff]
        %v2418 = vld [vmem:[%s1688 + $0x1400] sm:$0xff]
        %v2419 = vld [vmem:[%s1688 + $0x1408] sm:$0xff]
        %v2420 = vld [vmem:[%s1688 + $0x1410] sm:$0xff]
        %v2421 = vld [vmem:[%s1688 + $0x1418] sm:$0xff]
        %v2422 = vld [vmem:[%s1688 + $0x1420] sm:$0xff]
        %v2423 = vld [vmem:[%s1688 + $0x1428] sm:$0xff]
        %v2424 = vld [vmem:[%s1688 + $0x1430] sm:$0xff]
        %v2425 = vld [vmem:[%s1688 + $0x1438] sm:$0xff]
        %v2426 = vld [vmem:[%s1688 + $0x1440] sm:$0xff]
        %v2427 = vld [vmem:[%s1688 + $0x1448] sm:$0xff]
        %v2428 = vld [vmem:[%s1688 + $0x1450] sm:$0xff]
        %v2429 = vld [vmem:[%s1688 + $0x1458] sm:$0xff]
        %v2430 = vld [vmem:[%s1688 + $0x1460] sm:$0xff]
        %v2431 = vld [vmem:[%s1688 + $0x1468] sm:$0xff]
        %v2432 = vld [vmem:[%s1688 + $0x1470] sm:$0xff]
        %v2433 = vld [vmem:[%s1688 + $0x1478] sm:$0xff]
        %v2434 = vld [vmem:[%s1688 + $0x1480] sm:$0xff]
        %v2435 = vld [vmem:[%s1688 + $0x1488] sm:$0xff]
        %v2436 = vld [vmem:[%s1688 + $0x1490] sm:$0xff]
        %v2437 = vld [vmem:[%s1688 + $0x1498] sm:$0xff]
        %v2438 = vld [vmem:[%s1688 + $0x14a0] sm:$0xff]
        %v2439 = vld [vmem:[%s1688 + $0x14a8] sm:$0xff]
        %v2440 = vld [vmem:[%s1688 + $0x14b0] sm:$0xff]
        %v2441 = vld [vmem:[%s1688 + $0x14b8] sm:$0xff]
        %v2442 = vld [vmem:[%s1688 + $0x14c0] sm:$0xff]
        %v2443 = vld [vmem:[%s1688 + $0x14c8] sm:$0xff]
        %v2444 = vld [vmem:[%s1688 + $0x14d0] sm:$0xff]
        %v2445 = vld [vmem:[%s1688 + $0x14d8] sm:$0xff]
        %v2446 = vld [vmem:[%s1688 + $0x14e0] sm:$0xff]
        %v2447 = vld [vmem:[%s1688 + $0x14e8] sm:$0xff]
        %v2448 = vld [vmem:[%s1688 + $0x14f0] sm:$0xff]
        %v2449 = vld [vmem:[%s1688 + $0x14f8] sm:$0xff]
        %v2450 = vld [vmem:[%s1688 + $0x1500] sm:$0xff]
        %v2451 = vld [vmem:[%s1688 + $0x1508] sm:$0xff]
        %v2452 = vld [vmem:[%s1688 + $0x1510] sm:$0xff]
        %v2453 = vld [vmem:[%s1688 + $0x1518] sm:$0xff]
        %v2454 = vld [vmem:[%s1688 + $0x1520] sm:$0xff]
        %v2455 = vld [vmem:[%s1688 + $0x1528] sm:$0xff]
        %v2456 = vld [vmem:[%s1688 + $0x1530] sm:$0xff]
        %v2457 = vld [vmem:[%s1688 + $0x1538] sm:$0xff]
        %v2458 = vld [vmem:[%s1688 + $0x1540] sm:$0xff]
        %v2459 = vld [vmem:[%s1688 + $0x1548] sm:$0xff]
        %v2460 = vld [vmem:[%s1688 + $0x1550] sm:$0xff]
        %v2461 = vld [vmem:[%s1688 + $0x1558] sm:$0xff]
        %v2462 = vld [vmem:[%s1688 + $0x1560] sm:$0xff]
        %v2463 = vld [vmem:[%s1688 + $0x1568] sm:$0xff]
        %v2464 = vld [vmem:[%s1688 + $0x1570] sm:$0xff]
        %v2465 = vld [vmem:[%s1688 + $0x1578] sm:$0xff]
        %v2466 = vld [vmem:[%s1688 + $0x1580] sm:$0xff]
        %v2467 = vld [vmem:[%s1688 + $0x1588] sm:$0xff]
        %v2468 = vld [vmem:[%s1688 + $0x1590] sm:$0xff]
        %v2469 = vld [vmem:[%s1688 + $0x1598] sm:$0xff]
        %v2470 = vld [vmem:[%s1688 + $0x15a0] sm:$0xff]
        %v2471 = vld [vmem:[%s1688 + $0x15a8] sm:$0xff]
        %v2472 = vld [vmem:[%s1688 + $0x15b0] sm:$0xff]
        %v2473 = vld [vmem:[%s1688 + $0x15b8] sm:$0xff]
        %v2474 = vld [vmem:[%s1688 + $0x15c0] sm:$0xff]
        %v2475 = vld [vmem:[%s1688 + $0x15c8] sm:$0xff]
        %v2476 = vld [vmem:[%s1688 + $0x15d0] sm:$0xff]
        %v2477 = vld [vmem:[%s1688 + $0x15d8] sm:$0xff]
        %v2478 = vld [vmem:[%s1688 + $0x15e0] sm:$0xff]
        %v2479 = vld [vmem:[%s1688 + $0x15e8] sm:$0xff]
        %v2480 = vld [vmem:[%s1688 + $0x15f0] sm:$0xff]
        %v2481 = vld [vmem:[%s1688 + $0x15f8] sm:$0xff]
        %v2482 = vld [vmem:[%s1688 + $0x1600] sm:$0xff]
        %v2483 = vld [vmem:[%s1688 + $0x1608] sm:$0xff]
        %v2484 = vld [vmem:[%s1688 + $0x1610] sm:$0xff]
        %v2485 = vld [vmem:[%s1688 + $0x1618] sm:$0xff]
        %v2486 = vld [vmem:[%s1688 + $0x1620] sm:$0xff]
        %v2487 = vld [vmem:[%s1688 + $0x1628] sm:$0xff]
        %v2488 = vld [vmem:[%s1688 + $0x1630] sm:$0xff]
        %v2489 = vld [vmem:[%s1688 + $0x1638] sm:$0xff]
        %v2490 = vld [vmem:[%s1688 + $0x1640] sm:$0xff]
        %v2491 = vld [vmem:[%s1688 + $0x1648] sm:$0xff]
        %v2492 = vld [vmem:[%s1688 + $0x1650] sm:$0xff]
        %v2493 = vld [vmem:[%s1688 + $0x1658] sm:$0xff]
        %v2494 = vld [vmem:[%s1688 + $0x1660] sm:$0xff]
        %v2495 = vld [vmem:[%s1688 + $0x1668] sm:$0xff]
        %v2496 = vld [vmem:[%s1688 + $0x1670] sm:$0xff]
        %v2497 = vld [vmem:[%s1688 + $0x1678] sm:$0xff]
        %v2498 = vld [vmem:[%s1688 + $0x1680] sm:$0xff]
        %v2499 = vld [vmem:[%s1688 + $0x1688] sm:$0xff]
        %v2500 = vld [vmem:[%s1688 + $0x1690] sm:$0xff]
        %v2501 = vld [vmem:[%s1688 + $0x1698] sm:$0xff]
        %v2502 = vld [vmem:[%s1688 + $0x16a0] sm:$0xff]
        %v2503 = vld [vmem:[%s1688 + $0x16a8] sm:$0xff]
        %v2504 = vld [vmem:[%s1688 + $0x16b0] sm:$0xff]
        %v2505 = vld [vmem:[%s1688 + $0x16b8] sm:$0xff]
        %v2506 = vld [vmem:[%s1688 + $0x16c0] sm:$0xff]
        %v2507 = vld [vmem:[%s1688 + $0x16c8] sm:$0xff]
        %v2508 = vld [vmem:[%s1688 + $0x16d0] sm:$0xff]
        %v2509 = vld [vmem:[%s1688 + $0x16d8] sm:$0xff]
        %v2510 = vld [vmem:[%s1688 + $0x16e0] sm:$0xff]
        %v2511 = vld [vmem:[%s1688 + $0x16e8] sm:$0xff]
        %v2512 = vld [vmem:[%s1688 + $0x16f0] sm:$0xff]
        %v2513 = vld [vmem:[%s1688 + $0x16f8] sm:$0xff]
        %v2526 = vunpack.c.l.b16 %v1766
        %v2527 = vunpack.c.h.b16 %v1766
        %v2528 = vunpack.c.l.b16 %v1767
        %v2529 = vunpack.c.h.b16 %v1767
        %v2530 = vunpack.c.l.b16 %v1768
        %v2531 = vunpack.c.h.b16 %v1768
        %v2532 = vunpack.c.l.b16 %v1769
        %v2533 = vunpack.c.h.b16 %v1769
        %v2534 = vunpack.c.l.b16 %v1770
        %v2535 = vunpack.c.h.b16 %v1770
        %v2536 = vunpack.c.l.b16 %v1771
        %v2537 = vunpack.c.h.b16 %v1771
        %v2538 = vunpack.c.l.b16 %v1772
        %v2539 = vunpack.c.h.b16 %v1772
        %v2540 = vunpack.c.l.b16 %v1773
        %v2541 = vunpack.c.h.b16 %v1773
        %v2542 = vunpack.c.l.b16 %v1774
        %v2543 = vunpack.c.h.b16 %v1774
        %v2544 = vunpack.c.l.b16 %v1775
        %v2545 = vunpack.c.h.b16 %v1775
        %v2546 = vunpack.c.l.b16 %v1776
        %v2547 = vunpack.c.h.b16 %v1776
        %v2548 = vunpack.c.l.b16 %v1777
        %v2549 = vpack.c.b16 %v2526, %v2526
        %v2550 = vpack.c.b16 %v2527, %v2527
        %v2551 = vpack.c.b16 %v2528, %v2528
        %v2552 = vpack.c.b16 %v2529, %v2529
        %v2553 = vpack.c.b16 %v2530, %v2530
        %v2554 = vpack.c.b16 %v2531, %v2531
        %v2555 = vpack.c.b16 %v2532, %v2532
        %v2556 = vpack.c.b16 %v2533, %v2533
        %v2557 = vpack.c.b16 %v2534, %v2534
        %v2558 = vpack.c.b16 %v2535, %v2535
        %v2559 = vpack.c.b16 %v2536, %v2536
        %v2560 = vpack.c.b16 %v2537, %v2537
        %v2561 = vpack.c.b16 %v2538, %v2538
        %v2562 = vpack.c.b16 %v2539, %v2539
        %v2563 = vpack.c.b16 %v2540, %v2540
        %v2564 = vpack.c.b16 %v2541, %v2541
        %v2565 = vpack.c.b16 %v2542, %v2542
        %v2566 = vpack.c.b16 %v2543, %v2543
        %v2567 = vpack.c.b16 %v2544, %v2544
        %v2568 = vpack.c.b16 %v2545, %v2545
        %v2569 = vpack.c.b16 %v2546, %v2546
        %v2570 = vpack.c.b16 %v2547, %v2547
        %v2571 = vpack.c.b16 %v2548, %v2548
        %v3331 = vunpack.c.l.b16 %v1778
        %v3332 = vunpack.c.h.b16 %v1778
        %v3333 = vunpack.c.l.b16 %v1779
        %v3334 = vunpack.c.h.b16 %v1779
        %v3335 = vunpack.c.l.b16 %v1780
        %v3336 = vunpack.c.h.b16 %v1780
        %v3337 = vunpack.c.l.b16 %v1781
        %v3338 = vunpack.c.h.b16 %v1781
        %v3339 = vunpack.c.l.b16 %v1782
        %v3340 = vunpack.c.h.b16 %v1782
        %v3341 = vunpack.c.l.b16 %v1783
        %v3342 = vunpack.c.h.b16 %v1783
        %v3343 = vunpack.c.l.b16 %v1784
        %v3344 = vunpack.c.h.b16 %v1784
        %v3345 = vunpack.c.l.b16 %v1785
        %v3346 = vunpack.c.h.b16 %v1785
        %v3347 = vunpack.c.l.b16 %v1786
        %v3348 = vunpack.c.h.b16 %v1786
        %v3349 = vunpack.c.l.b16 %v1787
        %v3350 = vunpack.c.h.b16 %v1787
        %v3351 = vunpack.c.l.b16 %v1788
        %v3352 = vunpack.c.h.b16 %v1788
        %v3353 = vunpack.c.l.b16 %v1789
        %v3354 = vunpack.c.h.b16 %v1789
        %v3355 = vunpack.c.l.b16 %v1790
        %v3356 = vunpack.c.h.b16 %v1790
        %v3357 = vunpack.c.l.b16 %v1791
        %v3358 = vunpack.c.h.b16 %v1791
        %v3359 = vunpack.c.l.b16 %v1792
        %v3360 = vunpack.c.h.b16 %v1792
        %v3361 = vunpack.c.l.b16 %v1793
        %v3362 = vunpack.c.h.b16 %v1793
        %v3363 = vunpack.c.l.b16 %v1794
        %v3364 = vunpack.c.h.b16 %v1794
        %v3365 = vunpack.c.l.b16 %v1795
        %v3366 = vunpack.c.h.b16 %v1795
        %v3367 = vunpack.c.l.b16 %v1796
        %v3368 = vunpack.c.h.b16 %v1796
        %v3369 = vunpack.c.l.b16 %v1797
        %v3370 = vunpack.c.h.b16 %v1797
        %v3371 = vunpack.c.l.b16 %v1798
        %v3372 = vunpack.c.h.b16 %v1798
        %v3373 = vunpack.c.l.b16 %v1799
        %v3374 = vunpack.c.h.b16 %v1799
        %v3375 = vunpack.c.l.b16 %v1800
        %v3376 = vunpack.c.h.b16 %v1800
        %v3377 = vunpack.c.l.b16 %v1801
        %v3378 = vunpack.c.h.b16 %v1801
        %v3379 = vunpack.c.l.b16 %v1802
        %v3380 = vunpack.c.h.b16 %v1802
        %v3381 = vunpack.c.l.b16 %v1803
        %v3382 = vunpack.c.h.b16 %v1803
        %v3383 = vunpack.c.l.b16 %v1804
        %v3384 = vunpack.c.h.b16 %v1804
        %v3385 = vunpack.c.l.b16 %v1805
        %v3386 = vunpack.c.h.b16 %v1805
        %v3387 = vunpack.c.l.b16 %v1806
        %v3388 = vunpack.c.h.b16 %v1806
        %v3389 = vunpack.c.l.b16 %v1807
        %v3390 = vunpack.c.h.b16 %v1807
        %v3391 = vunpack.c.l.b16 %v1808
        %v3392 = vunpack.c.h.b16 %v1808
        %v3393 = vunpack.c.l.b16 %v1809
        %v3394 = vunpack.c.h.b16 %v1809
        %v3395 = vunpack.c.l.b16 %v1810
        %v3396 = vunpack.c.h.b16 %v1810
        %v3397 = vunpack.c.l.b16 %v1811
        %v3398 = vunpack.c.h.b16 %v1811
        %v3399 = vunpack.c.l.b16 %v1812
        %v3400 = vunpack.c.h.b16 %v1812
        %v3401 = vunpack.c.l.b16 %v1813
        %v3402 = vunpack.c.h.b16 %v1813
        %v3403 = vunpack.c.l.b16 %v1814
        %v3404 = vunpack.c.h.b16 %v1814
        %v3405 = vunpack.c.l.b16 %v1815
        %v3406 = vunpack.c.h.b16 %v1815
        %v3407 = vunpack.c.l.b16 %v1816
        %v3408 = vunpack.c.h.b16 %v1816
        %v3409 = vunpack.c.l.b16 %v1817
        %v3410 = vunpack.c.h.b16 %v1817
        %v3411 = vunpack.c.l.b16 %v1818
        %v3412 = vunpack.c.h.b16 %v1818
        %v3413 = vunpack.c.l.b16 %v1819
        %v3414 = vunpack.c.h.b16 %v1819
        %v3415 = vunpack.c.l.b16 %v1820
        %v3416 = vunpack.c.h.b16 %v1820
        %v3417 = vunpack.c.l.b16 %v1821
        %v3418 = vunpack.c.h.b16 %v1821
        %v3419 = vunpack.c.l.b16 %v1822
        %v3420 = vunpack.c.h.b16 %v1822
        %v3421 = vunpack.c.l.b16 %v1823
        %v3422 = vunpack.c.h.b16 %v1823
        %v3423 = vunpack.c.l.b16 %v1824
        %v3424 = vunpack.c.h.b16 %v1824
        %v3425 = vunpack.c.l.b16 %v1825
        %v3426 = vunpack.c.h.b16 %v1825
        %v3427 = vunpack.c.l.b16 %v1826
        %v3428 = vunpack.c.h.b16 %v1826
        %v3429 = vunpack.c.l.b16 %v1827
        %v3430 = vunpack.c.h.b16 %v1827
        %v3431 = vunpack.c.l.b16 %v1828
        %v3432 = vunpack.c.h.b16 %v1828
        %v3433 = vunpack.c.l.b16 %v1829
        %v3434 = vunpack.c.h.b16 %v1829
        %v3435 = vunpack.c.l.b16 %v1830
        %v3436 = vunpack.c.h.b16 %v1830
        %v3437 = vunpack.c.l.b16 %v1831
        %v3438 = vunpack.c.h.b16 %v1831
        %v3439 = vunpack.c.l.b16 %v1832
        %v3440 = vunpack.c.h.b16 %v1832
        %v3441 = vunpack.c.l.b16 %v1833
        %v3442 = vunpack.c.h.b16 %v1833
        %v3443 = vunpack.c.l.b16 %v1834
        %v3444 = vunpack.c.h.b16 %v1834
        %v3445 = vunpack.c.l.b16 %v1835
        %v3446 = vunpack.c.h.b16 %v1835
        %v3447 = vunpack.c.l.b16 %v1836
        %v3448 = vunpack.c.h.b16 %v1836
        %v3449 = vunpack.c.l.b16 %v1837
        %v3450 = vunpack.c.h.b16 %v1837
        %v3451 = vunpack.c.l.b16 %v1838
        %v3452 = vunpack.c.h.b16 %v1838
        %v3453 = vunpack.c.l.b16 %v1839
        %v3454 = vunpack.c.h.b16 %v1839
        %v3455 = vunpack.c.l.b16 %v1840
        %v3456 = vunpack.c.h.b16 %v1840
        %v3457 = vunpack.c.l.b16 %v1841
        %v3458 = vunpack.c.h.b16 %v1841
        %v3459 = vunpack.c.l.b16 %v1842
        %v3460 = vunpack.c.h.b16 %v1842
        %v3461 = vunpack.c.l.b16 %v1843
        %v3462 = vunpack.c.h.b16 %v1843
        %v3463 = vunpack.c.l.b16 %v1844
        %v3464 = vunpack.c.h.b16 %v1844
        %v3465 = vunpack.c.l.b16 %v1845
        %v3466 = vunpack.c.h.b16 %v1845
        %v3467 = vunpack.c.l.b16 %v1846
        %v3468 = vunpack.c.h.b16 %v1846
        %v3469 = vunpack.c.l.b16 %v1847
        %v3470 = vunpack.c.h.b16 %v1847
        %v3471 = vunpack.c.l.b16 %v1848
        %v3472 = vunpack.c.h.b16 %v1848
        %v3473 = vunpack.c.l.b16 %v1849
        %v3474 = vunpack.c.h.b16 %v1849
        %v3475 = vunpack.c.l.b16 %v1850
        %v3476 = vunpack.c.h.b16 %v1850
        %v3477 = vunpack.c.l.b16 %v1851
        %v3478 = vunpack.c.h.b16 %v1851
        %v3479 = vunpack.c.l.b16 %v1852
        %v3480 = vunpack.c.h.b16 %v1852
        %v3481 = vunpack.c.l.b16 %v1853
        %v3482 = vunpack.c.h.b16 %v1853
        %v3483 = vunpack.c.l.b16 %v1854
        %v3484 = vunpack.c.h.b16 %v1854
        %v3485 = vunpack.c.l.b16 %v1855
        %v3486 = vunpack.c.h.b16 %v1855
        %v3487 = vunpack.c.l.b16 %v1856
        %v3488 = vunpack.c.h.b16 %v1856
        %v3489 = vunpack.c.l.b16 %v1857
        %v3490 = vunpack.c.h.b16 %v1857
        %v3491 = vunpack.c.l.b16 %v1858
        %v3492 = vunpack.c.h.b16 %v1858
        %v3493 = vunpack.c.l.b16 %v1859
        %v3494 = vunpack.c.h.b16 %v1859
        %v3495 = vunpack.c.l.b16 %v1860
        %v3496 = vunpack.c.h.b16 %v1860
        %v3497 = vunpack.c.l.b16 %v1861
        %v3498 = vunpack.c.h.b16 %v1861
        %v3499 = vunpack.c.l.b16 %v1862
        %v3500 = vunpack.c.h.b16 %v1862
        %v3501 = vunpack.c.l.b16 %v1863
        %v3502 = vunpack.c.h.b16 %v1863
        %v3503 = vunpack.c.l.b16 %v1864
        %v3504 = vunpack.c.h.b16 %v1864
        %v3505 = vunpack.c.l.b16 %v1865
        %v3506 = vunpack.c.h.b16 %v1865
        %v3507 = vunpack.c.l.b16 %v1866
        %v3508 = vunpack.c.h.b16 %v1866
        %v3509 = vunpack.c.l.b16 %v1867
        %v3510 = vunpack.c.h.b16 %v1867
        %v3511 = vunpack.c.l.b16 %v1868
        %v3512 = vunpack.c.h.b16 %v1868
        %v3513 = vunpack.c.l.b16 %v1869
        %v3514 = vunpack.c.h.b16 %v1869
        %v3515 = vunpack.c.l.b16 %v1870
        %v3516 = vunpack.c.h.b16 %v1870
        %v3517 = vunpack.c.l.b16 %v1871
        %v3518 = vunpack.c.h.b16 %v1871
        %v3519 = vunpack.c.l.b16 %v1872
        %v3520 = vunpack.c.h.b16 %v1872
        %v3521 = vunpack.c.l.b16 %v1873
        %v3522 = vunpack.c.h.b16 %v1873
        %v3523 = vunpack.c.l.b16 %v1874
        %v3524 = vunpack.c.h.b16 %v1874
        %v3525 = vunpack.c.l.b16 %v1875
        %v3526 = vunpack.c.h.b16 %v1875
        %v3527 = vunpack.c.l.b16 %v1876
        %v3528 = vunpack.c.h.b16 %v1876
        %v3529 = vunpack.c.l.b16 %v1877
        %v3530 = vunpack.c.h.b16 %v1877
        %v3531 = vunpack.c.l.b16 %v1878
        %v3532 = vunpack.c.h.b16 %v1878
        %v3533 = vunpack.c.l.b16 %v1879
        %v3534 = vunpack.c.h.b16 %v1879
        %v3535 = vunpack.c.l.b16 %v1880
        %v3536 = vunpack.c.h.b16 %v1880
        %v3537 = vunpack.c.l.b16 %v1881
        %v3538 = vunpack.c.h.b16 %v1881
        %v3539 = vunpack.c.l.b16 %v1882
        %v3540 = vunpack.c.h.b16 %v1882
        %v3541 = vunpack.c.l.b16 %v1883
        %v3542 = vunpack.c.h.b16 %v1883
        %v3543 = vunpack.c.l.b16 %v1884
        %v3544 = vunpack.c.h.b16 %v1884
        %v3545 = vunpack.c.l.b16 %v1885
        %v3546 = vunpack.c.h.b16 %v1885
        %v3547 = vunpack.c.l.b16 %v1886
        %v3548 = vunpack.c.h.b16 %v1886
        %v3549 = vunpack.c.l.b16 %v1887
        %v3550 = vunpack.c.h.b16 %v1887
        %v3551 = vunpack.c.l.b16 %v1888
        %v3552 = vunpack.c.h.b16 %v1888
        %v3553 = vunpack.c.l.b16 %v1889
        %v3554 = vunpack.c.h.b16 %v1889
        %v3555 = vunpack.c.l.b16 %v1890
        %v3556 = vunpack.c.h.b16 %v1890
        %v3557 = vunpack.c.l.b16 %v1891
        %v3558 = vunpack.c.h.b16 %v1891
        %v3559 = vunpack.c.l.b16 %v1892
        %v3560 = vunpack.c.h.b16 %v1892
        %v3561 = vunpack.c.l.b16 %v1893
        %v3562 = vunpack.c.h.b16 %v1893
        %v3563 = vunpack.c.l.b16 %v1894
        %v3564 = vunpack.c.h.b16 %v1894
        %v3565 = vunpack.c.l.b16 %v1895
        %v3566 = vunpack.c.h.b16 %v1895
        %v3567 = vunpack.c.l.b16 %v1896
        %v3568 = vunpack.c.h.b16 %v1896
        %v3569 = vunpack.c.l.b16 %v1897
        %v3570 = vunpack.c.h.b16 %v1897
        %v3571 = vunpack.c.l.b16 %v1898
        %v3572 = vunpack.c.h.b16 %v1898
        %v3573 = vunpack.c.l.b16 %v1899
        %v3574 = vunpack.c.h.b16 %v1899
        %v3575 = vunpack.c.l.b16 %v1900
        %v3576 = vunpack.c.h.b16 %v1900
        %v3577 = vunpack.c.l.b16 %v1901
        %v3578 = vunpack.c.h.b16 %v1901
        %v3579 = vunpack.c.l.b16 %v1902
        %v3580 = vunpack.c.h.b16 %v1902
        %v3581 = vunpack.c.l.b16 %v1903
        %v3582 = vunpack.c.h.b16 %v1903
        %v3583 = vunpack.c.l.b16 %v1904
        %v3584 = vunpack.c.h.b16 %v1904
        %v3585 = vunpack.c.l.b16 %v1905
        %v3586 = vunpack.c.h.b16 %v1905
        %v3587 = vunpack.c.l.b16 %v1906
        %v3588 = vunpack.c.h.b16 %v1906
        %v3589 = vunpack.c.l.b16 %v1907
        %v3590 = vunpack.c.h.b16 %v1907
        %v3591 = vunpack.c.l.b16 %v1908
        %v3592 = vunpack.c.h.b16 %v1908
        %v3593 = vunpack.c.l.b16 %v1909
        %v3594 = vunpack.c.h.b16 %v1909
        %v3595 = vunpack.c.l.b16 %v1910
        %v3596 = vunpack.c.h.b16 %v1910
        %v3597 = vunpack.c.l.b16 %v1911
        %v3598 = vunpack.c.h.b16 %v1911
        %v3599 = vunpack.c.l.b16 %v1912
        %v3600 = vunpack.c.h.b16 %v1912
        %v3601 = vunpack.c.l.b16 %v1913
        %v3602 = vunpack.c.h.b16 %v1913
        %v3603 = vunpack.c.l.b16 %v1914
        %v3604 = vunpack.c.h.b16 %v1914
        %v3605 = vunpack.c.l.b16 %v1915
        %v3606 = vunpack.c.h.b16 %v1915
        %v3607 = vunpack.c.l.b16 %v1916
        %v3608 = vunpack.c.h.b16 %v1916
        %v3609 = vunpack.c.l.b16 %v1917
        %v3610 = vunpack.c.h.b16 %v1917
        %v3611 = vunpack.c.l.b16 %v1918
        %v3612 = vunpack.c.h.b16 %v1918
        %v3613 = vunpack.c.l.b16 %v1919
        %v3614 = vunpack.c.h.b16 %v1919
        %v3615 = vunpack.c.l.b16 %v1920
        %v3616 = vunpack.c.h.b16 %v1920
        %v3617 = vunpack.c.l.b16 %v1921
        %v3618 = vunpack.c.h.b16 %v1921
        %v3619 = vunpack.c.l.b16 %v1922
        %v3620 = vunpack.c.h.b16 %v1922
        %v3621 = vunpack.c.l.b16 %v1923
        %v3622 = vunpack.c.h.b16 %v1923
        %v3623 = vunpack.c.l.b16 %v1924
        %v3624 = vunpack.c.h.b16 %v1924
        %v3625 = vunpack.c.l.b16 %v1925
        %v3626 = vunpack.c.h.b16 %v1925
        %v3627 = vunpack.c.l.b16 %v1926
        %v3628 = vunpack.c.h.b16 %v1926
        %v3629 = vunpack.c.l.b16 %v1927
        %v3630 = vunpack.c.h.b16 %v1927
        %v3631 = vunpack.c.l.b16 %v1928
        %v3632 = vunpack.c.h.b16 %v1928
        %v3633 = vunpack.c.l.b16 %v1929
        %v3634 = vunpack.c.h.b16 %v1929
        %v3635 = vunpack.c.l.b16 %v1930
        %v3636 = vunpack.c.h.b16 %v1930
        %v3637 = vunpack.c.l.b16 %v1931
        %v3638 = vunpack.c.h.b16 %v1931
        %v3639 = vunpack.c.l.b16 %v1932
        %v3640 = vunpack.c.h.b16 %v1932
        %v3641 = vunpack.c.l.b16 %v1933
        %v3642 = vunpack.c.h.b16 %v1933
        %v3643 = vunpack.c.l.b16 %v1934
        %v3644 = vunpack.c.h.b16 %v1934
        %v3645 = vunpack.c.l.b16 %v1935
        %v3646 = vunpack.c.h.b16 %v1935
        %v3647 = vunpack.c.l.b16 %v1936
        %v3648 = vunpack.c.h.b16 %v1936
        %v3649 = vunpack.c.l.b16 %v1937
        %v3650 = vunpack.c.h.b16 %v1937
        %v3651 = vunpack.c.l.b16 %v1938
        %v3652 = vunpack.c.h.b16 %v1938
        %v3653 = vunpack.c.l.b16 %v1939
        %v3654 = vunpack.c.h.b16 %v1939
        %v3655 = vunpack.c.l.b16 %v1940
        %v3656 = vunpack.c.h.b16 %v1940
        %v3657 = vunpack.c.l.b16 %v1941
        %v3658 = vunpack.c.h.b16 %v1941
        %v3659 = vunpack.c.l.b16 %v1942
        %v3660 = vunpack.c.h.b16 %v1942
        %v3661 = vunpack.c.l.b16 %v1943
        %v3662 = vunpack.c.h.b16 %v1943
        %v3663 = vunpack.c.l.b16 %v1944
        %v3664 = vunpack.c.h.b16 %v1944
        %v3665 = vunpack.c.l.b16 %v1945
        %v3666 = vunpack.c.h.b16 %v1945
        %v3667 = vunpack.c.l.b16 %v1946
        %v3668 = vunpack.c.h.b16 %v1946
        %v3669 = vunpack.c.l.b16 %v1947
        %v3670 = vunpack.c.h.b16 %v1947
        %v3671 = vunpack.c.l.b16 %v1948
        %v3672 = vunpack.c.h.b16 %v1948
        %v3673 = vunpack.c.l.b16 %v1949
        %v3674 = vunpack.c.h.b16 %v1949
        %v3675 = vunpack.c.l.b16 %v1950
        %v3676 = vunpack.c.h.b16 %v1950
        %v3677 = vunpack.c.l.b16 %v1951
        %v3678 = vunpack.c.h.b16 %v1951
        %v3679 = vunpack.c.l.b16 %v1952
        %v3680 = vunpack.c.h.b16 %v1952
        %v3681 = vunpack.c.l.b16 %v1953
        %v3682 = vunpack.c.h.b16 %v1953
        %v3683 = vunpack.c.l.b16 %v1954
        %v3684 = vunpack.c.h.b16 %v1954
        %v3685 = vunpack.c.l.b16 %v1955
        %v3686 = vunpack.c.h.b16 %v1955
        %v3687 = vunpack.c.l.b16 %v1956
        %v3688 = vunpack.c.h.b16 %v1956
        %v3689 = vunpack.c.l.b16 %v1957
        %v3690 = vunpack.c.h.b16 %v1957
        %v3691 = vunpack.c.l.b16 %v1958
        %v3692 = vunpack.c.h.b16 %v1958
        %v3693 = vunpack.c.l.b16 %v1959
        %v3694 = vunpack.c.h.b16 %v1959
        %v3695 = vunpack.c.l.b16 %v1960
        %v3696 = vunpack.c.h.b16 %v1960
        %v3697 = vunpack.c.l.b16 %v1961
        %v3698 = vunpack.c.h.b16 %v1961
        %v3699 = vunpack.c.l.b16 %v1962
        %v3700 = vunpack.c.h.b16 %v1962
        %v3701 = vunpack.c.l.b16 %v1963
        %v3702 = vunpack.c.h.b16 %v1963
        %v3703 = vunpack.c.l.b16 %v1964
        %v3704 = vunpack.c.h.b16 %v1964
        %v3705 = vunpack.c.l.b16 %v1965
        %v3706 = vunpack.c.h.b16 %v1965
        %v3707 = vunpack.c.l.b16 %v1966
        %v3708 = vunpack.c.h.b16 %v1966
        %v3709 = vunpack.c.l.b16 %v1967
        %v3710 = vunpack.c.h.b16 %v1967
        %v3711 = vunpack.c.l.b16 %v1968
        %v3712 = vunpack.c.h.b16 %v1968
        %v3713 = vunpack.c.l.b16 %v1969
        %v3714 = vunpack.c.h.b16 %v1969
        %v3715 = vunpack.c.l.b16 %v1970
        %v3716 = vunpack.c.h.b16 %v1970
        %v3717 = vunpack.c.l.b16 %v1971
        %v3718 = vunpack.c.h.b16 %v1971
        %v3719 = vunpack.c.l.b16 %v1972
        %v3720 = vunpack.c.h.b16 %v1972
        %v3721 = vunpack.c.l.b16 %v1973
        %v3722 = vunpack.c.h.b16 %v1973
        %v3723 = vunpack.c.l.b16 %v1974
        %v3724 = vunpack.c.h.b16 %v1974
        %v3725 = vunpack.c.l.b16 %v1975
        %v3726 = vunpack.c.h.b16 %v1975
        %v3727 = vunpack.c.l.b16 %v1976
        %v3728 = vunpack.c.h.b16 %v1976
        %v3729 = vunpack.c.l.b16 %v1977
        %v3730 = vunpack.c.h.b16 %v1977
        %v3731 = vunpack.c.l.b16 %v1978
        %v3732 = vunpack.c.h.b16 %v1978
        %v3733 = vunpack.c.l.b16 %v1979
        %v3734 = vunpack.c.h.b16 %v1979
        %v3735 = vunpack.c.l.b16 %v1980
        %v3736 = vunpack.c.h.b16 %v1980
        %v3737 = vunpack.c.l.b16 %v1981
        %v3738 = vunpack.c.h.b16 %v1981
        %v3739 = vunpack.c.l.b16 %v1982
        %v3740 = vunpack.c.h.b16 %v1982
        %v3741 = vunpack.c.l.b16 %v1983
        %v3742 = vunpack.c.h.b16 %v1983
        %v3743 = vunpack.c.l.b16 %v1984
        %v3744 = vunpack.c.h.b16 %v1984
        %v3745 = vunpack.c.l.b16 %v1985
        %v3746 = vunpack.c.h.b16 %v1985
        %v3747 = vunpack.c.l.b16 %v1986
        %v3748 = vunpack.c.h.b16 %v1986
        %v3749 = vunpack.c.l.b16 %v1987
        %v3750 = vunpack.c.h.b16 %v1987
        %v3751 = vunpack.c.l.b16 %v1988
        %v3752 = vunpack.c.h.b16 %v1988
        %v3753 = vunpack.c.l.b16 %v1989
        %v3754 = vunpack.c.h.b16 %v1989
        %v3755 = vunpack.c.l.b16 %v1990
        %v3756 = vunpack.c.h.b16 %v1990
        %v3757 = vunpack.c.l.b16 %v1991
        %v3758 = vunpack.c.h.b16 %v1991
        %v3759 = vunpack.c.l.b16 %v1992
        %v3760 = vunpack.c.h.b16 %v1992
        %v3761 = vunpack.c.l.b16 %v1993
        %v3762 = vunpack.c.h.b16 %v1993
        %v3763 = vunpack.c.l.b16 %v1994
        %v3764 = vunpack.c.h.b16 %v1994
        %v3765 = vunpack.c.l.b16 %v1995
        %v3766 = vunpack.c.h.b16 %v1995
        %v3767 = vunpack.c.l.b16 %v1996
        %v3768 = vunpack.c.h.b16 %v1996
        %v3769 = vunpack.c.l.b16 %v1997
        %v3770 = vunpack.c.h.b16 %v1997
        %v3771 = vunpack.c.l.b16 %v1998
        %v3772 = vunpack.c.h.b16 %v1998
        %v3773 = vunpack.c.l.b16 %v1999
        %v3774 = vunpack.c.h.b16 %v1999
        %v3775 = vunpack.c.l.b16 %v2000
        %v3776 = vunpack.c.h.b16 %v2000
        %v3777 = vunpack.c.l.b16 %v2001
        %v3778 = vunpack.c.h.b16 %v2001
        %v3779 = vunpack.c.l.b16 %v2002
        %v3780 = vunpack.c.h.b16 %v2002
        %v3781 = vunpack.c.l.b16 %v2003
        %v3782 = vunpack.c.h.b16 %v2003
        %v3783 = vunpack.c.l.b16 %v2004
        %v3784 = vunpack.c.h.b16 %v2004
        %v3785 = vunpack.c.l.b16 %v2005
        %v3786 = vunpack.c.h.b16 %v2005
        %v3787 = vunpack.c.l.b16 %v2006
        %v3788 = vunpack.c.h.b16 %v2006
        %v3789 = vunpack.c.l.b16 %v2007
        %v3790 = vunpack.c.h.b16 %v2007
        %v3791 = vunpack.c.l.b16 %v2008
        %v3792 = vunpack.c.h.b16 %v2008
        %v3793 = vunpack.c.l.b16 %v2009
        %v3794 = vunpack.c.h.b16 %v2009
        %v3795 = vunpack.c.l.b16 %v2010
        %v3796 = vunpack.c.h.b16 %v2010
        %v3797 = vunpack.c.l.b16 %v2011
        %v3798 = vunpack.c.h.b16 %v2011
        %v3799 = vunpack.c.l.b16 %v2012
        %v3800 = vunpack.c.h.b16 %v2012
        %v3801 = vunpack.c.l.b16 %v2013
        %v3802 = vunpack.c.h.b16 %v2013
        %v3803 = vunpack.c.l.b16 %v2014
        %v3804 = vunpack.c.h.b16 %v2014
        %v3805 = vunpack.c.l.b16 %v2015
        %v3806 = vunpack.c.h.b16 %v2015
        %v3807 = vunpack.c.l.b16 %v2016
        %v3808 = vunpack.c.h.b16 %v2016
        %v3809 = vunpack.c.l.b16 %v2017
        %v3810 = vunpack.c.h.b16 %v2017
        %v3811 = vunpack.c.l.b16 %v2018
        %v3812 = vunpack.c.h.b16 %v2018
        %v3813 = vunpack.c.l.b16 %v2019
        %v3814 = vunpack.c.h.b16 %v2019
        %v3815 = vunpack.c.l.b16 %v2020
        %v3816 = vunpack.c.h.b16 %v2020
        %v3817 = vunpack.c.l.b16 %v2021
        %v3818 = vunpack.c.h.b16 %v2021
        %v3819 = vunpack.c.l.b16 %v2022
        %v3820 = vunpack.c.h.b16 %v2022
        %v3821 = vunpack.c.l.b16 %v2023
        %v3822 = vunpack.c.h.b16 %v2023
        %v3823 = vunpack.c.l.b16 %v2024
        %v3824 = vunpack.c.h.b16 %v2024
        %v3825 = vunpack.c.l.b16 %v2025
        %v3826 = vunpack.c.h.b16 %v2025
        %v3827 = vunpack.c.l.b16 %v2026
        %v3828 = vunpack.c.h.b16 %v2026
        %v3829 = vunpack.c.l.b16 %v2027
        %v3830 = vunpack.c.h.b16 %v2027
        %v3831 = vunpack.c.l.b16 %v2028
        %v3832 = vunpack.c.h.b16 %v2028
        %v3833 = vunpack.c.l.b16 %v2029
        %v3834 = vunpack.c.h.b16 %v2029
        %v3835 = vunpack.c.l.b16 %v2030
        %v3836 = vunpack.c.h.b16 %v2030
        %v3837 = vunpack.c.l.b16 %v2031
        %v3838 = vunpack.c.h.b16 %v2031
        %v3839 = vunpack.c.l.b16 %v2032
        %v3840 = vunpack.c.h.b16 %v2032
        %v3841 = vunpack.c.l.b16 %v2033
        %v3842 = vunpack.c.h.b16 %v2033
        %v3843 = vunpack.c.l.b16 %v2034
        %v3844 = vunpack.c.h.b16 %v2034
        %v3845 = vunpack.c.l.b16 %v2035
        %v3846 = vunpack.c.h.b16 %v2035
        %v3847 = vunpack.c.l.b16 %v2036
        %v3848 = vunpack.c.h.b16 %v2036
        %v3849 = vunpack.c.l.b16 %v2037
        %v3850 = vunpack.c.h.b16 %v2037
        %v3851 = vunpack.c.l.b16 %v2038
        %v3852 = vunpack.c.h.b16 %v2038
        %v3853 = vunpack.c.l.b16 %v2039
        %v3854 = vunpack.c.h.b16 %v2039
        %v3855 = vunpack.c.l.b16 %v2040
        %v3856 = vunpack.c.h.b16 %v2040
        %v3857 = vunpack.c.l.b16 %v2041
        %v3858 = vunpack.c.h.b16 %v2041
        %v3859 = vunpack.c.l.b16 %v2042
        %v3860 = vunpack.c.h.b16 %v2042
        %v3861 = vunpack.c.l.b16 %v2043
        %v3862 = vunpack.c.h.b16 %v2043
        %v3863 = vunpack.c.l.b16 %v2044
        %v3864 = vunpack.c.h.b16 %v2044
        %v3865 = vunpack.c.l.b16 %v2045
        %v3866 = vunpack.c.h.b16 %v2045
        %v3867 = vunpack.c.l.b16 %v2046
        %v3868 = vunpack.c.h.b16 %v2046
        %v3869 = vunpack.c.l.b16 %v2047
        %v3870 = vunpack.c.h.b16 %v2047
        %v3871 = vunpack.c.l.b16 %v2048
        %v3872 = vunpack.c.h.b16 %v2048
        %v3873 = vunpack.c.l.b16 %v2049
        %v3874 = vunpack.c.h.b16 %v2049
        %v3875 = vunpack.c.l.b16 %v2050
        %v3876 = vunpack.c.h.b16 %v2050
        %v3877 = vunpack.c.l.b16 %v2051
        %v3878 = vunpack.c.h.b16 %v2051
        %v3879 = vunpack.c.l.b16 %v2052
        %v3880 = vunpack.c.h.b16 %v2052
        %v3881 = vunpack.c.l.b16 %v2053
        %v3882 = vunpack.c.h.b16 %v2053
        %v3883 = vunpack.c.l.b16 %v2054
        %v3884 = vunpack.c.h.b16 %v2054
        %v3885 = vunpack.c.l.b16 %v2055
        %v3886 = vunpack.c.h.b16 %v2055
        %v3887 = vunpack.c.l.b16 %v2056
        %v3888 = vunpack.c.h.b16 %v2056
        %v3889 = vunpack.c.l.b16 %v2057
        %v3890 = vunpack.c.h.b16 %v2057
        %v3891 = vunpack.c.l.b16 %v2058
        %v3892 = vunpack.c.h.b16 %v2058
        %v3893 = vunpack.c.l.b16 %v2059
        %v3894 = vunpack.c.h.b16 %v2059
        %v3895 = vunpack.c.l.b16 %v2060
        %v3896 = vunpack.c.h.b16 %v2060
        %v3897 = vunpack.c.l.b16 %v2061
        %v3898 = vunpack.c.h.b16 %v2061
        %v3899 = vunpack.c.l.b16 %v2062
        %v3900 = vunpack.c.h.b16 %v2062
        %v3901 = vunpack.c.l.b16 %v2063
        %v3902 = vunpack.c.h.b16 %v2063
        %v3903 = vunpack.c.l.b16 %v2064
        %v3904 = vunpack.c.h.b16 %v2064
        %v3905 = vunpack.c.l.b16 %v2065
        %v3906 = vunpack.c.h.b16 %v2065
        %v3907 = vunpack.c.l.b16 %v2066
        %v3908 = vunpack.c.h.b16 %v2066
        %v3909 = vunpack.c.l.b16 %v2067
        %v3910 = vunpack.c.h.b16 %v2067
        %v3911 = vunpack.c.l.b16 %v2068
        %v3912 = vunpack.c.h.b16 %v2068
        %v3913 = vunpack.c.l.b16 %v2069
        %v3914 = vunpack.c.h.b16 %v2069
        %v3915 = vunpack.c.l.b16 %v2070
        %v3916 = vunpack.c.h.b16 %v2070
        %v3917 = vunpack.c.l.b16 %v2071
        %v3918 = vunpack.c.h.b16 %v2071
        %v3919 = vunpack.c.l.b16 %v2072
        %v3920 = vunpack.c.h.b16 %v2072
        %v3921 = vunpack.c.l.b16 %v2073
        %v3922 = vunpack.c.h.b16 %v2073
        %v3923 = vunpack.c.l.b16 %v2074
        %v3924 = vunpack.c.h.b16 %v2074
        %v3925 = vunpack.c.l.b16 %v2075
        %v3926 = vunpack.c.h.b16 %v2075
        %v3927 = vunpack.c.l.b16 %v2076
        %v3928 = vunpack.c.h.b16 %v2076
        %v3929 = vunpack.c.l.b16 %v2077
        %v3930 = vunpack.c.h.b16 %v2077
        %v3931 = vunpack.c.l.b16 %v2078
        %v3932 = vunpack.c.h.b16 %v2078
        %v3933 = vunpack.c.l.b16 %v2079
        %v3934 = vunpack.c.h.b16 %v2079
        %v3935 = vunpack.c.l.b16 %v2080
        %v3936 = vunpack.c.h.b16 %v2080
        %v3937 = vunpack.c.l.b16 %v2081
        %v3938 = vunpack.c.h.b16 %v2081
        %v3939 = vunpack.c.l.b16 %v2082
        %v3940 = vunpack.c.h.b16 %v2082
        %v3941 = vunpack.c.l.b16 %v2083
        %v3942 = vunpack.c.h.b16 %v2083
        %v3943 = vunpack.c.l.b16 %v2084
        %v3944 = vunpack.c.h.b16 %v2084
        %v3945 = vunpack.c.l.b16 %v2085
        %v3946 = vunpack.c.h.b16 %v2085
        %v3947 = vunpack.c.l.b16 %v2086
        %v3948 = vunpack.c.h.b16 %v2086
        %v3949 = vunpack.c.l.b16 %v2087
        %v3950 = vunpack.c.h.b16 %v2087
        %v3951 = vunpack.c.l.b16 %v2088
        %v3952 = vunpack.c.h.b16 %v2088
        %v3953 = vunpack.c.l.b16 %v2089
        %v3954 = vunpack.c.h.b16 %v2089
        %v3955 = vunpack.c.l.b16 %v2090
        %v3956 = vunpack.c.h.b16 %v2090
        %v3957 = vunpack.c.l.b16 %v2091
        %v3958 = vunpack.c.h.b16 %v2091
        %v3959 = vunpack.c.l.b16 %v2092
        %v3960 = vunpack.c.h.b16 %v2092
        %v3961 = vunpack.c.l.b16 %v2093
        %v3962 = vunpack.c.h.b16 %v2093
        %v3963 = vunpack.c.l.b16 %v2094
        %v3964 = vunpack.c.h.b16 %v2094
        %v3965 = vunpack.c.l.b16 %v2095
        %v3966 = vunpack.c.h.b16 %v2095
        %v3967 = vunpack.c.l.b16 %v2096
        %v3968 = vunpack.c.h.b16 %v2096
        %v3969 = vunpack.c.l.b16 %v2097
        %v3970 = vunpack.c.h.b16 %v2097
        %v3971 = vunpack.c.l.b16 %v2098
        %v3972 = vunpack.c.h.b16 %v2098
        %v3973 = vunpack.c.l.b16 %v2099
        %v3974 = vunpack.c.h.b16 %v2099
        %v3975 = vunpack.c.l.b16 %v2100
        %v3976 = vunpack.c.h.b16 %v2100
        %v3977 = vunpack.c.l.b16 %v2101
        %v3978 = vunpack.c.h.b16 %v2101
        %v3979 = vunpack.c.l.b16 %v2102
        %v3980 = vunpack.c.h.b16 %v2102
        %v3981 = vunpack.c.l.b16 %v2103
        %v3982 = vunpack.c.h.b16 %v2103
        %v3983 = vunpack.c.l.b16 %v2104
        %v3984 = vunpack.c.h.b16 %v2104
        %v3985 = vunpack.c.l.b16 %v2105
        %v3986 = vunpack.c.h.b16 %v2105
        %v3987 = vunpack.c.l.b16 %v2106
        %v3988 = vunpack.c.h.b16 %v2106
        %v3989 = vunpack.c.l.b16 %v2107
        %v3990 = vunpack.c.h.b16 %v2107
        %v3991 = vunpack.c.l.b16 %v2108
        %v3992 = vunpack.c.h.b16 %v2108
        %v3993 = vunpack.c.l.b16 %v2109
        %v3994 = vunpack.c.h.b16 %v2109
        %v3995 = vunpack.c.l.b16 %v2110
        %v3996 = vunpack.c.h.b16 %v2110
        %v3997 = vunpack.c.l.b16 %v2111
        %v3998 = vunpack.c.h.b16 %v2111
        %v3999 = vunpack.c.l.b16 %v2112
        %v4000 = vunpack.c.h.b16 %v2112
        %v4001 = vunpack.c.l.b16 %v2113
        %v4002 = vunpack.c.h.b16 %v2113
        %v4003 = vunpack.c.l.b16 %v2114
        %v4004 = vunpack.c.h.b16 %v2114
        %v4005 = vunpack.c.l.b16 %v2115
        %v4006 = vunpack.c.h.b16 %v2115
        %v4007 = vunpack.c.l.b16 %v2116
        %v4008 = vunpack.c.h.b16 %v2116
        %v4009 = vunpack.c.l.b16 %v2117
        %v4010 = vunpack.c.h.b16 %v2117
        %v4011 = vunpack.c.l.b16 %v2118
        %v4012 = vunpack.c.h.b16 %v2118
        %v4013 = vunpack.c.l.b16 %v2119
        %v4014 = vunpack.c.h.b16 %v2119
        %v4015 = vunpack.c.l.b16 %v2120
        %v4016 = vunpack.c.h.b16 %v2120
        %v4017 = vunpack.c.l.b16 %v2121
        %v4018 = vunpack.c.h.b16 %v2121
        %v4019 = vunpack.c.l.b16 %v2122
        %v4020 = vunpack.c.h.b16 %v2122
        %v4021 = vunpack.c.l.b16 %v2123
        %v4022 = vunpack.c.h.b16 %v2123
        %v4023 = vunpack.c.l.b16 %v2124
        %v4024 = vunpack.c.h.b16 %v2124
        %v4025 = vunpack.c.l.b16 %v2125
        %v4026 = vunpack.c.h.b16 %v2125
        %v4027 = vunpack.c.l.b16 %v2126
        %v4028 = vunpack.c.h.b16 %v2126
        %v4029 = vunpack.c.l.b16 %v2127
        %v4030 = vunpack.c.h.b16 %v2127
        %v4031 = vunpack.c.l.b16 %v2128
        %v4032 = vunpack.c.h.b16 %v2128
        %v4033 = vunpack.c.l.b16 %v2129
        %v4034 = vunpack.c.h.b16 %v2129
        %v4035 = vunpack.c.l.b16 %v2130
        %v4036 = vunpack.c.h.b16 %v2130
        %v4037 = vunpack.c.l.b16 %v2131
        %v4038 = vunpack.c.h.b16 %v2131
        %v4039 = vunpack.c.l.b16 %v2132
        %v4040 = vunpack.c.h.b16 %v2132
        %v4041 = vunpack.c.l.b16 %v2133
        %v4042 = vunpack.c.h.b16 %v2133
        %v4043 = vunpack.c.l.b16 %v2134
        %v4044 = vunpack.c.h.b16 %v2134
        %v4045 = vunpack.c.l.b16 %v2135
        %v4046 = vunpack.c.h.b16 %v2135
        %v4047 = vunpack.c.l.b16 %v2136
        %v4048 = vunpack.c.h.b16 %v2136
        %v4049 = vunpack.c.l.b16 %v2137
        %v4050 = vunpack.c.h.b16 %v2137
        %v4051 = vunpack.c.l.b16 %v2138
        %v4052 = vunpack.c.h.b16 %v2138
        %v4053 = vunpack.c.l.b16 %v2139
        %v4054 = vunpack.c.h.b16 %v2139
        %v4055 = vunpack.c.l.b16 %v2140
        %v4056 = vunpack.c.h.b16 %v2140
        %v4057 = vunpack.c.l.b16 %v2141
        %v4058 = vunpack.c.h.b16 %v2141
        %v4059 = vunpack.c.l.b16 %v2142
        %v4060 = vunpack.c.h.b16 %v2142
        %v4061 = vunpack.c.l.b16 %v2143
        %v4062 = vunpack.c.h.b16 %v2143
        %v4063 = vunpack.c.l.b16 %v2144
        %v4064 = vunpack.c.h.b16 %v2144
        %v4065 = vunpack.c.l.b16 %v2145
        %v4066 = vunpack.c.h.b16 %v2145
        %v4067 = vunpack.c.l.b16 %v2146
        %v4068 = vunpack.c.h.b16 %v2146
        %v4069 = vunpack.c.l.b16 %v2147
        %v4070 = vunpack.c.h.b16 %v2147
        %v4071 = vunpack.c.l.b16 %v2148
        %v4072 = vunpack.c.h.b16 %v2148
        %v4073 = vunpack.c.l.b16 %v2149
        %v4074 = vunpack.c.h.b16 %v2149
        %v4075 = vunpack.c.l.b16 %v2150
        %v4076 = vunpack.c.h.b16 %v2150
        %v4077 = vunpack.c.l.b16 %v2151
        %v4078 = vunpack.c.h.b16 %v2151
        %v4079 = vunpack.c.l.b16 %v2152
        %v4080 = vunpack.c.h.b16 %v2152
        %v4081 = vunpack.c.l.b16 %v2153
        %v4082 = vunpack.c.h.b16 %v2153
        %v4083 = vunpack.c.l.b16 %v2154
        %v4084 = vunpack.c.h.b16 %v2154
        %v4085 = vunpack.c.l.b16 %v2155
        %v4086 = vunpack.c.h.b16 %v2155
        %v4087 = vunpack.c.l.b16 %v2156
        %v4088 = vunpack.c.h.b16 %v2156
        %v4089 = vunpack.c.l.b16 %v2157
        %v4090 = vunpack.c.h.b16 %v2157
        %v4091 = vunpack.c.l.b16 %v2158
        %v4092 = vunpack.c.h.b16 %v2158
        %v4093 = vunpack.c.l.b16 %v2159
        %v4094 = vunpack.c.h.b16 %v2159
        %v4095 = vunpack.c.l.b16 %v2160
        %v4096 = vunpack.c.h.b16 %v2160
        %v4097 = vunpack.c.l.b16 %v2161
        %v4098 = vunpack.c.h.b16 %v2161
        %v4099 = vunpack.c.l.b16 %v2162
        %v4100 = vunpack.c.h.b16 %v2162
        %v4101 = vunpack.c.l.b16 %v2163
        %v4102 = vunpack.c.h.b16 %v2163
        %v4103 = vunpack.c.l.b16 %v2164
        %v4104 = vunpack.c.h.b16 %v2164
        %v4105 = vunpack.c.l.b16 %v2165
        %v4106 = vunpack.c.h.b16 %v2165
        %v4107 = vunpack.c.l.b16 %v2166
        %v4108 = vunpack.c.h.b16 %v2166
        %v4109 = vunpack.c.l.b16 %v2167
        %v4110 = vunpack.c.h.b16 %v2167
        %v4111 = vunpack.c.l.b16 %v2168
        %v4112 = vunpack.c.h.b16 %v2168
        %v4113 = vunpack.c.l.b16 %v2169
        %v4114 = vunpack.c.h.b16 %v2169
        %v4115 = vunpack.c.l.b16 %v2170
        %v4116 = vunpack.c.h.b16 %v2170
        %v4117 = vunpack.c.l.b16 %v2171
        %v4118 = vunpack.c.h.b16 %v2171
        %v4119 = vunpack.c.l.b16 %v2172
        %v4120 = vunpack.c.h.b16 %v2172
        %v4121 = vunpack.c.l.b16 %v2173
        %v4122 = vunpack.c.h.b16 %v2173
        %v4123 = vunpack.c.l.b16 %v2174
        %v4124 = vunpack.c.h.b16 %v2174
        %v4125 = vunpack.c.l.b16 %v2175
        %v4126 = vunpack.c.h.b16 %v2175
        %v4127 = vunpack.c.l.b16 %v2176
        %v4128 = vunpack.c.h.b16 %v2176
        %v4129 = vunpack.c.l.b16 %v2177
        %v4130 = vunpack.c.h.b16 %v2177
        %v4131 = vunpack.c.l.b16 %v2178
        %v4132 = vunpack.c.h.b16 %v2178
        %v4133 = vunpack.c.l.b16 %v2179
        %v4134 = vunpack.c.h.b16 %v2179
        %v4135 = vunpack.c.l.b16 %v2180
        %v4136 = vunpack.c.h.b16 %v2180
        %v4137 = vunpack.c.l.b16 %v2181
        %v4138 = vunpack.c.h.b16 %v2181
        %v4139 = vunpack.c.l.b16 %v2182
        %v4140 = vunpack.c.h.b16 %v2182
        %v4141 = vunpack.c.l.b16 %v2183
        %v4142 = vunpack.c.h.b16 %v2183
        %v4143 = vunpack.c.l.b16 %v2184
        %v4144 = vunpack.c.h.b16 %v2184
        %v4145 = vunpack.c.l.b16 %v2185
        %v4146 = vunpack.c.h.b16 %v2185
        %v4147 = vunpack.c.l.b16 %v2186
        %v4148 = vunpack.c.h.b16 %v2186
        %v4149 = vunpack.c.l.b16 %v2187
        %v4150 = vunpack.c.h.b16 %v2187
        %v4151 = vunpack.c.l.b16 %v2188
        %v4152 = vunpack.c.h.b16 %v2188
        %v4153 = vunpack.c.l.b16 %v2189
        %v4154 = vunpack.c.h.b16 %v2189
        %v4155 = vunpack.c.l.b16 %v2190
        %v4156 = vunpack.c.h.b16 %v2190
        %v4157 = vunpack.c.l.b16 %v2191
        %v4158 = vunpack.c.h.b16 %v2191
        %v4159 = vunpack.c.l.b16 %v2192
        %v4160 = vunpack.c.h.b16 %v2192
        %v4161 = vunpack.c.l.b16 %v2193
        %v4162 = vunpack.c.h.b16 %v2193
        %v4163 = vunpack.c.l.b16 %v2194
        %v4164 = vunpack.c.h.b16 %v2194
        %v4165 = vunpack.c.l.b16 %v2195
        %v4166 = vunpack.c.h.b16 %v2195
        %v4167 = vunpack.c.l.b16 %v2196
        %v4168 = vunpack.c.h.b16 %v2196
        %v4169 = vunpack.c.l.b16 %v2197
        %v4170 = vunpack.c.h.b16 %v2197
        %v4171 = vunpack.c.l.b16 %v2198
        %v4172 = vunpack.c.h.b16 %v2198
        %v4173 = vunpack.c.l.b16 %v2199
        %v4174 = vunpack.c.h.b16 %v2199
        %v4175 = vunpack.c.l.b16 %v2200
        %v4176 = vunpack.c.h.b16 %v2200
        %v4177 = vunpack.c.l.b16 %v2201
        %v4178 = vunpack.c.h.b16 %v2201
        %v4179 = vunpack.c.l.b16 %v2202
        %v4180 = vunpack.c.h.b16 %v2202
        %v4181 = vunpack.c.l.b16 %v2203
        %v4182 = vunpack.c.h.b16 %v2203
        %v4183 = vunpack.c.l.b16 %v2204
        %v4184 = vunpack.c.h.b16 %v2204
        %v4185 = vunpack.c.l.b16 %v2205
        %v4186 = vunpack.c.h.b16 %v2205
        %v4187 = vunpack.c.l.b16 %v2206
        %v4188 = vunpack.c.h.b16 %v2206
        %v4189 = vunpack.c.l.b16 %v2207
        %v4190 = vunpack.c.h.b16 %v2207
        %v4191 = vunpack.c.l.b16 %v2208
        %v4192 = vunpack.c.h.b16 %v2208
        %v4193 = vunpack.c.l.b16 %v2209
        %v4194 = vunpack.c.h.b16 %v2209
        %v4195 = vunpack.c.l.b16 %v2210
        %v4196 = vunpack.c.h.b16 %v2210
        %v4197 = vunpack.c.l.b16 %v2211
        %v4198 = vunpack.c.h.b16 %v2211
        %v4199 = vunpack.c.l.b16 %v2212
        %v4200 = vunpack.c.h.b16 %v2212
        %v4201 = vunpack.c.l.b16 %v2213
        %v4202 = vunpack.c.h.b16 %v2213
        %v4203 = vunpack.c.l.b16 %v2214
        %v4204 = vunpack.c.h.b16 %v2214
        %v4205 = vunpack.c.l.b16 %v2215
        %v4206 = vunpack.c.h.b16 %v2215
        %v4207 = vunpack.c.l.b16 %v2216
        %v4208 = vunpack.c.h.b16 %v2216
        %v4209 = vunpack.c.l.b16 %v2217
        %v4210 = vunpack.c.h.b16 %v2217
        %v4211 = vunpack.c.l.b16 %v2218
        %v4212 = vunpack.c.h.b16 %v2218
        %v4213 = vunpack.c.l.b16 %v2219
        %v4214 = vunpack.c.h.b16 %v2219
        %v4215 = vunpack.c.l.b16 %v2220
        %v4216 = vunpack.c.h.b16 %v2220
        %v4217 = vunpack.c.l.b16 %v2221
        %v4218 = vunpack.c.h.b16 %v2221
        %v4219 = vunpack.c.l.b16 %v2222
        %v4220 = vunpack.c.h.b16 %v2222
        %v4221 = vunpack.c.l.b16 %v2223
        %v4222 = vunpack.c.h.b16 %v2223
        %v4223 = vunpack.c.l.b16 %v2224
        %v4224 = vunpack.c.h.b16 %v2224
        %v4225 = vunpack.c.l.b16 %v2225
        %v4226 = vunpack.c.h.b16 %v2225
        %v4227 = vunpack.c.l.b16 %v2226
        %v4228 = vunpack.c.h.b16 %v2226
        %v4229 = vunpack.c.l.b16 %v2227
        %v4230 = vunpack.c.h.b16 %v2227
        %v4231 = vunpack.c.l.b16 %v2228
        %v4232 = vunpack.c.h.b16 %v2228
        %v4233 = vunpack.c.l.b16 %v2229
        %v4234 = vunpack.c.h.b16 %v2229
        %v4235 = vunpack.c.l.b16 %v2230
        %v4236 = vunpack.c.h.b16 %v2230
        %v4237 = vunpack.c.l.b16 %v2231
        %v4238 = vunpack.c.h.b16 %v2231
        %v4239 = vunpack.c.l.b16 %v2232
        %v4240 = vunpack.c.h.b16 %v2232
        %v4241 = vunpack.c.l.b16 %v2233
        %v4242 = vunpack.c.h.b16 %v2233
        %v4243 = vunpack.c.l.b16 %v2234
        %v4244 = vunpack.c.h.b16 %v2234
        %v4245 = vunpack.c.l.b16 %v2235
        %v4246 = vunpack.c.h.b16 %v2235
        %v4247 = vunpack.c.l.b16 %v2236
        %v4248 = vunpack.c.h.b16 %v2236
        %v4249 = vunpack.c.l.b16 %v2237
        %v4250 = vunpack.c.h.b16 %v2237
        %v4251 = vunpack.c.l.b16 %v2238
        %v4252 = vunpack.c.h.b16 %v2238
        %v4253 = vunpack.c.l.b16 %v2239
        %v4254 = vunpack.c.h.b16 %v2239
        %v4255 = vunpack.c.l.b16 %v2240
        %v4256 = vunpack.c.h.b16 %v2240
        %v4257 = vunpack.c.l.b16 %v2241
        %v4258 = vunpack.c.h.b16 %v2241
        %v4259 = vunpack.c.l.b16 %v2242
        %v4260 = vunpack.c.h.b16 %v2242
        %v4261 = vunpack.c.l.b16 %v2243
        %v4262 = vunpack.c.h.b16 %v2243
        %v4263 = vunpack.c.l.b16 %v2244
        %v4264 = vunpack.c.h.b16 %v2244
        %v4265 = vunpack.c.l.b16 %v2245
        %v4266 = vunpack.c.h.b16 %v2245
        %v4267 = vunpack.c.l.b16 %v2246
        %v4268 = vunpack.c.h.b16 %v2246
        %v4269 = vunpack.c.l.b16 %v2247
        %v4270 = vunpack.c.h.b16 %v2247
        %v4271 = vunpack.c.l.b16 %v2248
        %v4272 = vunpack.c.h.b16 %v2248
        %v4273 = vunpack.c.l.b16 %v2249
        %v4274 = vunpack.c.h.b16 %v2249
        %v4275 = vunpack.c.l.b16 %v2250
        %v4276 = vunpack.c.h.b16 %v2250
        %v4277 = vunpack.c.l.b16 %v2251
        %v4278 = vunpack.c.h.b16 %v2251
        %v4279 = vunpack.c.l.b16 %v2252
        %v4280 = vunpack.c.h.b16 %v2252
        %v4281 = vunpack.c.l.b16 %v2253
        %v4282 = vunpack.c.h.b16 %v2253
        %v4283 = vunpack.c.l.b16 %v2254
        %v4284 = vunpack.c.h.b16 %v2254
        %v4285 = vunpack.c.l.b16 %v2255
        %v4286 = vunpack.c.h.b16 %v2255
        %v4287 = vunpack.c.l.b16 %v2256
        %v4288 = vunpack.c.h.b16 %v2256
        %v4289 = vunpack.c.l.b16 %v2257
        %v4290 = vunpack.c.h.b16 %v2257
        %v4291 = vunpack.c.l.b16 %v2258
        %v4292 = vunpack.c.h.b16 %v2258
        %v4293 = vunpack.c.l.b16 %v2259
        %v4294 = vunpack.c.h.b16 %v2259
        %v4295 = vunpack.c.l.b16 %v2260
        %v4296 = vunpack.c.h.b16 %v2260
        %v4297 = vunpack.c.l.b16 %v2261
        %v4298 = vunpack.c.h.b16 %v2261
        %v4299 = vunpack.c.l.b16 %v2262
        %v4300 = vunpack.c.h.b16 %v2262
        %v4301 = vunpack.c.l.b16 %v2263
        %v4302 = vunpack.c.h.b16 %v2263
        %v4303 = vunpack.c.l.b16 %v2264
        %v4304 = vunpack.c.h.b16 %v2264
        %v4305 = vunpack.c.l.b16 %v2265
        %v4306 = vunpack.c.h.b16 %v2265
        %v4307 = vunpack.c.l.b16 %v2266
        %v4308 = vunpack.c.h.b16 %v2266
        %v4309 = vunpack.c.l.b16 %v2267
        %v4310 = vunpack.c.h.b16 %v2267
        %v4311 = vunpack.c.l.b16 %v2268
        %v4312 = vunpack.c.h.b16 %v2268
        %v4313 = vunpack.c.l.b16 %v2269
        %v4314 = vunpack.c.h.b16 %v2269
        %v4315 = vunpack.c.l.b16 %v2270
        %v4316 = vunpack.c.h.b16 %v2270
        %v4317 = vunpack.c.l.b16 %v2271
        %v4318 = vunpack.c.h.b16 %v2271
        %v4319 = vunpack.c.l.b16 %v2272
        %v4320 = vunpack.c.h.b16 %v2272
        %v4321 = vunpack.c.l.b16 %v2273
        %v4322 = vunpack.c.h.b16 %v2273
        %v4323 = vunpack.c.l.b16 %v2274
        %v4324 = vunpack.c.h.b16 %v2274
        %v4325 = vunpack.c.l.b16 %v2275
        %v4326 = vunpack.c.h.b16 %v2275
        %v4327 = vunpack.c.l.b16 %v2276
        %v4328 = vunpack.c.h.b16 %v2276
        %v4329 = vunpack.c.l.b16 %v2277
        %v4330 = vunpack.c.h.b16 %v2277
        %v4331 = vunpack.c.l.b16 %v2278
        %v4332 = vunpack.c.h.b16 %v2278
        %v4333 = vunpack.c.l.b16 %v2279
        %v4334 = vunpack.c.h.b16 %v2279
        %v4335 = vunpack.c.l.b16 %v2280
        %v4336 = vunpack.c.h.b16 %v2280
        %v4337 = vunpack.c.l.b16 %v2281
        %v4338 = vunpack.c.h.b16 %v2281
        %v4339 = vunpack.c.l.b16 %v2282
        %v4340 = vunpack.c.h.b16 %v2282
        %v4341 = vunpack.c.l.b16 %v2283
        %v4342 = vunpack.c.h.b16 %v2283
        %v4343 = vunpack.c.l.b16 %v2284
        %v4344 = vunpack.c.h.b16 %v2284
        %v4345 = vunpack.c.l.b16 %v2285
        %v4346 = vunpack.c.h.b16 %v2285
        %v4347 = vunpack.c.l.b16 %v2286
        %v4348 = vunpack.c.h.b16 %v2286
        %v4349 = vunpack.c.l.b16 %v2287
        %v4350 = vunpack.c.h.b16 %v2287
        %v4351 = vunpack.c.l.b16 %v2288
        %v4352 = vunpack.c.h.b16 %v2288
        %v4353 = vunpack.c.l.b16 %v2289
        %v4354 = vunpack.c.h.b16 %v2289
        %v4355 = vunpack.c.l.b16 %v2290
        %v4356 = vunpack.c.h.b16 %v2290
        %v4357 = vunpack.c.l.b16 %v2291
        %v4358 = vunpack.c.h.b16 %v2291
        %v4359 = vunpack.c.l.b16 %v2292
        %v4360 = vunpack.c.h.b16 %v2292
        %v4361 = vunpack.c.l.b16 %v2293
        %v4362 = vunpack.c.h.b16 %v2293
        %v4363 = vunpack.c.l.b16 %v2294
        %v4364 = vunpack.c.h.b16 %v2294
        %v4365 = vunpack.c.l.b16 %v2295
        %v4366 = vunpack.c.h.b16 %v2295
        %v4367 = vunpack.c.l.b16 %v2296
        %v4368 = vunpack.c.h.b16 %v2296
        %v4369 = vunpack.c.l.b16 %v2297
        %v4370 = vunpack.c.h.b16 %v2297
        %v4371 = vunpack.c.l.b16 %v2298
        %v4372 = vunpack.c.h.b16 %v2298
        %v4373 = vunpack.c.l.b16 %v2299
        %v4374 = vunpack.c.h.b16 %v2299
        %v4375 = vunpack.c.l.b16 %v2300
        %v4376 = vunpack.c.h.b16 %v2300
        %v4377 = vunpack.c.l.b16 %v2301
        %v4378 = vunpack.c.h.b16 %v2301
        %v4379 = vunpack.c.l.b16 %v2302
        %v4380 = vunpack.c.h.b16 %v2302
        %v4381 = vunpack.c.l.b16 %v2303
        %v4382 = vunpack.c.h.b16 %v2303
        %v4383 = vunpack.c.l.b16 %v2304
        %v4384 = vunpack.c.h.b16 %v2304
        %v4385 = vunpack.c.l.b16 %v2305
        %v4386 = vunpack.c.h.b16 %v2305
        %v4387 = vunpack.c.l.b16 %v2306
        %v4388 = vunpack.c.h.b16 %v2306
        %v4389 = vunpack.c.l.b16 %v2307
        %v4390 = vunpack.c.h.b16 %v2307
        %v4391 = vunpack.c.l.b16 %v2308
        %v4392 = vunpack.c.h.b16 %v2308
        %v4393 = vunpack.c.l.b16 %v2309
        %v4394 = vunpack.c.h.b16 %v2309
        %v4395 = vunpack.c.l.b16 %v2310
        %v4396 = vunpack.c.h.b16 %v2310
        %v4397 = vunpack.c.l.b16 %v2311
        %v4398 = vunpack.c.h.b16 %v2311
        %v4399 = vunpack.c.l.b16 %v2312
        %v4400 = vunpack.c.h.b16 %v2312
        %v4401 = vunpack.c.l.b16 %v2313
        %v4402 = vunpack.c.h.b16 %v2313
        %v4403 = vunpack.c.l.b16 %v2314
        %v4404 = vunpack.c.h.b16 %v2314
        %v4405 = vunpack.c.l.b16 %v2315
        %v4406 = vunpack.c.h.b16 %v2315
        %v4407 = vunpack.c.l.b16 %v2316
        %v4408 = vunpack.c.h.b16 %v2316
        %v4409 = vunpack.c.l.b16 %v2317
        %v4410 = vunpack.c.h.b16 %v2317
        %v4411 = vunpack.c.l.b16 %v2318
        %v4412 = vunpack.c.h.b16 %v2318
        %v4413 = vunpack.c.l.b16 %v2319
        %v4414 = vunpack.c.h.b16 %v2319
        %v4415 = vunpack.c.l.b16 %v2320
        %v4416 = vunpack.c.h.b16 %v2320
        %v4417 = vunpack.c.l.b16 %v2321
        %v4418 = vunpack.c.h.b16 %v2321
        %v4419 = vunpack.c.l.b16 %v2322
        %v4420 = vunpack.c.h.b16 %v2322
        %v4421 = vunpack.c.l.b16 %v2323
        %v4422 = vunpack.c.h.b16 %v2323
        %v4423 = vunpack.c.l.b16 %v2324
        %v4424 = vunpack.c.h.b16 %v2324
        %v4425 = vunpack.c.l.b16 %v2325
        %v4426 = vunpack.c.h.b16 %v2325
        %v4427 = vunpack.c.l.b16 %v2326
        %v4428 = vunpack.c.h.b16 %v2326
        %v4429 = vunpack.c.l.b16 %v2327
        %v4430 = vunpack.c.h.b16 %v2327
        %v4431 = vunpack.c.l.b16 %v2328
        %v4432 = vunpack.c.h.b16 %v2328
        %v4433 = vunpack.c.l.b16 %v2329
        %v4434 = vunpack.c.h.b16 %v2329
        %v4435 = vunpack.c.l.b16 %v2330
        %v4436 = vunpack.c.h.b16 %v2330
        %v4437 = vunpack.c.l.b16 %v2331
        %v4438 = vunpack.c.h.b16 %v2331
        %v4439 = vunpack.c.l.b16 %v2332
        %v4440 = vunpack.c.h.b16 %v2332
        %v4441 = vunpack.c.l.b16 %v2333
        %v4442 = vunpack.c.h.b16 %v2333
        %v4443 = vunpack.c.l.b16 %v2334
        %v4444 = vunpack.c.h.b16 %v2334
        %v4445 = vunpack.c.l.b16 %v2335
        %v4446 = vunpack.c.h.b16 %v2335
        %v4447 = vunpack.c.l.b16 %v2336
        %v4448 = vunpack.c.h.b16 %v2336
        %v4449 = vunpack.c.l.b16 %v2337
        %v4450 = vunpack.c.h.b16 %v2337
        %v4451 = vunpack.c.l.b16 %v2338
        %v4452 = vunpack.c.h.b16 %v2338
        %v4453 = vunpack.c.l.b16 %v2339
        %v4454 = vunpack.c.h.b16 %v2339
        %v4455 = vunpack.c.l.b16 %v2340
        %v4456 = vunpack.c.h.b16 %v2340
        %v4457 = vunpack.c.l.b16 %v2341
        %v4458 = vunpack.c.h.b16 %v2341
        %v4459 = vunpack.c.l.b16 %v2342
        %v4460 = vunpack.c.h.b16 %v2342
        %v4461 = vunpack.c.l.b16 %v2343
        %v4462 = vunpack.c.h.b16 %v2343
        %v4463 = vunpack.c.l.b16 %v2344
        %v4464 = vunpack.c.h.b16 %v2344
        %v4465 = vunpack.c.l.b16 %v2345
        %v4466 = vunpack.c.h.b16 %v2345
        %v4467 = vunpack.c.l.b16 %v2346
        %v4468 = vunpack.c.h.b16 %v2346
        %v4469 = vunpack.c.l.b16 %v2347
        %v4470 = vunpack.c.h.b16 %v2347
        %v4471 = vunpack.c.l.b16 %v2348
        %v4472 = vunpack.c.h.b16 %v2348
        %v4473 = vunpack.c.l.b16 %v2349
        %v4474 = vunpack.c.h.b16 %v2349
        %v4475 = vunpack.c.l.b16 %v2350
        %v4476 = vunpack.c.h.b16 %v2350
        %v4477 = vunpack.c.l.b16 %v2351
        %v4478 = vunpack.c.h.b16 %v2351
        %v4479 = vunpack.c.l.b16 %v2352
        %v4480 = vunpack.c.h.b16 %v2352
        %v4481 = vunpack.c.l.b16 %v2353
        %v4482 = vunpack.c.h.b16 %v2353
        %v4483 = vunpack.c.l.b16 %v2354
        %v4484 = vunpack.c.h.b16 %v2354
        %v4485 = vunpack.c.l.b16 %v2355
        %v4486 = vunpack.c.h.b16 %v2355
        %v4487 = vunpack.c.l.b16 %v2356
        %v4488 = vunpack.c.h.b16 %v2356
        %v4489 = vunpack.c.l.b16 %v2357
        %v4490 = vunpack.c.h.b16 %v2357
        %v4491 = vunpack.c.l.b16 %v2358
        %v4492 = vunpack.c.h.b16 %v2358
        %v4493 = vunpack.c.l.b16 %v2359
        %v4494 = vunpack.c.h.b16 %v2359
        %v4495 = vunpack.c.l.b16 %v2360
        %v4496 = vunpack.c.h.b16 %v2360
        %v4497 = vunpack.c.l.b16 %v2361
        %v4498 = vunpack.c.h.b16 %v2361
        %v4499 = vunpack.c.l.b16 %v2362
        %v4500 = vunpack.c.h.b16 %v2362
        %v4501 = vunpack.c.l.b16 %v2363
        %v4502 = vunpack.c.h.b16 %v2363
        %v4503 = vunpack.c.l.b16 %v2364
        %v4504 = vunpack.c.h.b16 %v2364
        %v4505 = vunpack.c.l.b16 %v2365
        %v4506 = vunpack.c.h.b16 %v2365
        %v4507 = vunpack.c.l.b16 %v2366
        %v4508 = vunpack.c.h.b16 %v2366
        %v4509 = vunpack.c.l.b16 %v2367
        %v4510 = vunpack.c.h.b16 %v2367
        %v4511 = vunpack.c.l.b16 %v2368
        %v4512 = vunpack.c.h.b16 %v2368
        %v4513 = vunpack.c.l.b16 %v2369
        %v4514 = vunpack.c.h.b16 %v2369
        %v4515 = vunpack.c.l.b16 %v2370
        %v4516 = vunpack.c.h.b16 %v2370
        %v4517 = vunpack.c.l.b16 %v2371
        %v4518 = vunpack.c.h.b16 %v2371
        %v4519 = vunpack.c.l.b16 %v2372
        %v4520 = vunpack.c.h.b16 %v2372
        %v4521 = vunpack.c.l.b16 %v2373
        %v4522 = vunpack.c.h.b16 %v2373
        %v4523 = vunpack.c.l.b16 %v2374
        %v4524 = vunpack.c.h.b16 %v2374
        %v4525 = vunpack.c.l.b16 %v2375
        %v4526 = vunpack.c.h.b16 %v2375
        %v4527 = vunpack.c.l.b16 %v2376
        %v4528 = vunpack.c.h.b16 %v2376
        %v4529 = vunpack.c.l.b16 %v2377
        %v4530 = vunpack.c.h.b16 %v2377
        %v4531 = vunpack.c.l.b16 %v2378
        %v4532 = vunpack.c.h.b16 %v2378
        %v4533 = vunpack.c.l.b16 %v2379
        %v4534 = vunpack.c.h.b16 %v2379
        %v4535 = vunpack.c.l.b16 %v2380
        %v4536 = vunpack.c.h.b16 %v2380
        %v4537 = vunpack.c.l.b16 %v2381
        %v4538 = vunpack.c.h.b16 %v2381
        %v4539 = vunpack.c.l.b16 %v2382
        %v4540 = vunpack.c.h.b16 %v2382
        %v4541 = vunpack.c.l.b16 %v2383
        %v4542 = vunpack.c.h.b16 %v2383
        %v4543 = vunpack.c.l.b16 %v2384
        %v4544 = vunpack.c.h.b16 %v2384
        %v4545 = vunpack.c.l.b16 %v2385
        %v4546 = vunpack.c.h.b16 %v2385
        %v4547 = vunpack.c.l.b16 %v2386
        %v4548 = vunpack.c.h.b16 %v2386
        %v4549 = vunpack.c.l.b16 %v2387
        %v4550 = vunpack.c.h.b16 %v2387
        %v4551 = vunpack.c.l.b16 %v2388
        %v4552 = vunpack.c.h.b16 %v2388
        %v4553 = vunpack.c.l.b16 %v2389
        %v4554 = vunpack.c.h.b16 %v2389
        %v4555 = vunpack.c.l.b16 %v2390
        %v4556 = vunpack.c.h.b16 %v2390
        %v4557 = vunpack.c.l.b16 %v2391
        %v4558 = vunpack.c.h.b16 %v2391
        %v4559 = vunpack.c.l.b16 %v2392
        %v4560 = vunpack.c.h.b16 %v2392
        %v4561 = vunpack.c.l.b16 %v2393
        %v4562 = vunpack.c.h.b16 %v2393
        %v4563 = vunpack.c.l.b16 %v2394
        %v4564 = vunpack.c.h.b16 %v2394
        %v4565 = vunpack.c.l.b16 %v2395
        %v4566 = vunpack.c.h.b16 %v2395
        %v4567 = vunpack.c.l.b16 %v2396
        %v4568 = vunpack.c.h.b16 %v2396
        %v4569 = vunpack.c.l.b16 %v2397
        %v4570 = vunpack.c.h.b16 %v2397
        %v4571 = vunpack.c.l.b16 %v2398
        %v4572 = vunpack.c.h.b16 %v2398
        %v4573 = vunpack.c.l.b16 %v2399
        %v4574 = vunpack.c.h.b16 %v2399
        %v4575 = vunpack.c.l.b16 %v2400
        %v4576 = vunpack.c.h.b16 %v2400
        %v4577 = vunpack.c.l.b16 %v2401
        %v4578 = vunpack.c.h.b16 %v2401
        %v4579 = vunpack.c.l.b16 %v2402
        %v4580 = vunpack.c.h.b16 %v2402
        %v4581 = vunpack.c.l.b16 %v2403
        %v4582 = vunpack.c.h.b16 %v2403
        %v4583 = vunpack.c.l.b16 %v2404
        %v4584 = vunpack.c.h.b16 %v2404
        %v4585 = vunpack.c.l.b16 %v2405
        %v4586 = vunpack.c.h.b16 %v2405
        %v4587 = vunpack.c.l.b16 %v2406
        %v4588 = vunpack.c.h.b16 %v2406
        %v4589 = vunpack.c.l.b16 %v2407
        %v4590 = vunpack.c.h.b16 %v2407
        %v4591 = vunpack.c.l.b16 %v2408
        %v4592 = vunpack.c.h.b16 %v2408
        %v4593 = vunpack.c.l.b16 %v2409
        %v4594 = vunpack.c.h.b16 %v2409
        %v4595 = vunpack.c.l.b16 %v2410
        %v4596 = vunpack.c.h.b16 %v2410
        %v4597 = vunpack.c.l.b16 %v2411
        %v4598 = vunpack.c.h.b16 %v2411
        %v4599 = vunpack.c.l.b16 %v2412
        %v4600 = vunpack.c.h.b16 %v2412
        %v4601 = vunpack.c.l.b16 %v2413
        %v4602 = vunpack.c.h.b16 %v2413
        %v4603 = vunpack.c.l.b16 %v2414
        %v4604 = vunpack.c.h.b16 %v2414
        %v4605 = vunpack.c.l.b16 %v2415
        %v4606 = vunpack.c.h.b16 %v2415
        %v4607 = vunpack.c.l.b16 %v2416
        %v4608 = vunpack.c.h.b16 %v2416
        %v4609 = vunpack.c.l.b16 %v2417
        %v4610 = vunpack.c.h.b16 %v2417
        %v4611 = vunpack.c.l.b16 %v2418
        %v4612 = vunpack.c.h.b16 %v2418
        %v4613 = vunpack.c.l.b16 %v2419
        %v4614 = vunpack.c.h.b16 %v2419
        %v4615 = vunpack.c.l.b16 %v2420
        %v4616 = vunpack.c.h.b16 %v2420
        %v4617 = vunpack.c.l.b16 %v2421
        %v4618 = vunpack.c.h.b16 %v2421
        %v4619 = vunpack.c.l.b16 %v2422
        %v4620 = vunpack.c.h.b16 %v2422
        %v4621 = vunpack.c.l.b16 %v2423
        %v4622 = vunpack.c.h.b16 %v2423
        %v4623 = vunpack.c.l.b16 %v2424
        %v4624 = vunpack.c.h.b16 %v2424
        %v4625 = vunpack.c.l.b16 %v2425
        %v4626 = vunpack.c.h.b16 %v2425
        %v4627 = vunpack.c.l.b16 %v2426
        %v4628 = vunpack.c.h.b16 %v2426
        %v4629 = vunpack.c.l.b16 %v2427
        %v4630 = vunpack.c.h.b16 %v2427
        %v4631 = vunpack.c.l.b16 %v2428
        %v4632 = vunpack.c.h.b16 %v2428
        %v4633 = vunpack.c.l.b16 %v2429
        %v4634 = vunpack.c.h.b16 %v2429
        %v4635 = vunpack.c.l.b16 %v2430
        %v4636 = vunpack.c.h.b16 %v2430
        %v4637 = vunpack.c.l.b16 %v2431
        %v4638 = vunpack.c.h.b16 %v2431
        %v4639 = vunpack.c.l.b16 %v2432
        %v4640 = vunpack.c.h.b16 %v2432
        %v4641 = vunpack.c.l.b16 %v2433
        %v4642 = vunpack.c.h.b16 %v2433
        %v4643 = vunpack.c.l.b16 %v2434
        %v4644 = vunpack.c.h.b16 %v2434
        %v4645 = vunpack.c.l.b16 %v2435
        %v4646 = vunpack.c.h.b16 %v2435
        %v4647 = vunpack.c.l.b16 %v2436
        %v4648 = vunpack.c.h.b16 %v2436
        %v4649 = vunpack.c.l.b16 %v2437
        %v4650 = vunpack.c.h.b16 %v2437
        %v4651 = vunpack.c.l.b16 %v2438
        %v4652 = vunpack.c.h.b16 %v2438
        %v4653 = vunpack.c.l.b16 %v2439
        %v4654 = vunpack.c.h.b16 %v2439
        %v4655 = vunpack.c.l.b16 %v2440
        %v4656 = vunpack.c.h.b16 %v2440
        %v4657 = vunpack.c.l.b16 %v2441
        %v4658 = vunpack.c.h.b16 %v2441
        %v4659 = vunpack.c.l.b16 %v2442
        %v4660 = vunpack.c.h.b16 %v2442
        %v4661 = vunpack.c.l.b16 %v2443
        %v4662 = vunpack.c.h.b16 %v2443
        %v4663 = vunpack.c.l.b16 %v2444
        %v4664 = vunpack.c.h.b16 %v2444
        %v4665 = vunpack.c.l.b16 %v2445
        %v4666 = vunpack.c.h.b16 %v2445
        %v4667 = vunpack.c.l.b16 %v2446
        %v4668 = vunpack.c.h.b16 %v2446
        %v4669 = vunpack.c.l.b16 %v2447
        %v4670 = vunpack.c.h.b16 %v2447
        %v4671 = vunpack.c.l.b16 %v2448
        %v4672 = vunpack.c.h.b16 %v2448
        %v4673 = vunpack.c.l.b16 %v2449
        %v4674 = vunpack.c.h.b16 %v2449
        %v4675 = vunpack.c.l.b16 %v2450
        %v4676 = vunpack.c.h.b16 %v2450
        %v4677 = vunpack.c.l.b16 %v2451
        %v4678 = vunpack.c.h.b16 %v2451
        %v4679 = vunpack.c.l.b16 %v2452
        %v4680 = vunpack.c.h.b16 %v2452
        %v4681 = vunpack.c.l.b16 %v2453
        %v4682 = vunpack.c.h.b16 %v2453
        %v4683 = vunpack.c.l.b16 %v2454
        %v4684 = vunpack.c.h.b16 %v2454
        %v4685 = vunpack.c.l.b16 %v2455
        %v4686 = vunpack.c.h.b16 %v2455
        %v4687 = vunpack.c.l.b16 %v2456
        %v4688 = vunpack.c.h.b16 %v2456
        %v4689 = vunpack.c.l.b16 %v2457
        %v4690 = vunpack.c.h.b16 %v2457
        %v4691 = vunpack.c.l.b16 %v2458
        %v4692 = vunpack.c.h.b16 %v2458
        %v4693 = vunpack.c.l.b16 %v2459
        %v4694 = vunpack.c.h.b16 %v2459
        %v4695 = vunpack.c.l.b16 %v2460
        %v4696 = vunpack.c.h.b16 %v2460
        %v4697 = vunpack.c.l.b16 %v2461
        %v4698 = vunpack.c.h.b16 %v2461
        %v4699 = vunpack.c.l.b16 %v2462
        %v4700 = vunpack.c.h.b16 %v2462
        %v4701 = vunpack.c.l.b16 %v2463
        %v4702 = vunpack.c.h.b16 %v2463
        %v4703 = vunpack.c.l.b16 %v2464
        %v4704 = vunpack.c.h.b16 %v2464
        %v4705 = vunpack.c.l.b16 %v2465
        %v4706 = vunpack.c.h.b16 %v2465
        %v4707 = vunpack.c.l.b16 %v2466
        %v4708 = vunpack.c.h.b16 %v2466
        %v4709 = vunpack.c.l.b16 %v2467
        %v4710 = vunpack.c.h.b16 %v2467
        %v4711 = vunpack.c.l.b16 %v2468
        %v4712 = vunpack.c.h.b16 %v2468
        %v4713 = vunpack.c.l.b16 %v2469
        %v4714 = vunpack.c.h.b16 %v2469
        %v4715 = vunpack.c.l.b16 %v2470
        %v4716 = vunpack.c.h.b16 %v2470
        %v4717 = vunpack.c.l.b16 %v2471
        %v4718 = vunpack.c.h.b16 %v2471
        %v4719 = vunpack.c.l.b16 %v2472
        %v4720 = vunpack.c.h.b16 %v2472
        %v4721 = vunpack.c.l.b16 %v2473
        %v4722 = vunpack.c.h.b16 %v2473
        %v4723 = vunpack.c.l.b16 %v2474
        %v4724 = vunpack.c.h.b16 %v2474
        %v4725 = vunpack.c.l.b16 %v2475
        %v4726 = vunpack.c.h.b16 %v2475
        %v4727 = vunpack.c.l.b16 %v2476
        %v4728 = vunpack.c.h.b16 %v2476
        %v4729 = vunpack.c.l.b16 %v2477
        %v4730 = vunpack.c.h.b16 %v2477
        %v4731 = vunpack.c.l.b16 %v2478
        %v4732 = vunpack.c.h.b16 %v2478
        %v4733 = vunpack.c.l.b16 %v2479
        %v4734 = vunpack.c.h.b16 %v2479
        %v4735 = vunpack.c.l.b16 %v2480
        %v4736 = vunpack.c.h.b16 %v2480
        %v4737 = vunpack.c.l.b16 %v2481
        %v4738 = vunpack.c.h.b16 %v2481
        %v4739 = vunpack.c.l.b16 %v2482
        %v4740 = vunpack.c.h.b16 %v2482
        %v4741 = vunpack.c.l.b16 %v2483
        %v4742 = vunpack.c.h.b16 %v2483
        %v4743 = vunpack.c.l.b16 %v2484
        %v4744 = vunpack.c.h.b16 %v2484
        %v4745 = vunpack.c.l.b16 %v2485
        %v4746 = vunpack.c.h.b16 %v2485
        %v4747 = vunpack.c.l.b16 %v2486
        %v4748 = vunpack.c.h.b16 %v2486
        %v4749 = vunpack.c.l.b16 %v2487
        %v4750 = vunpack.c.h.b16 %v2487
        %v4751 = vunpack.c.l.b16 %v2488
        %v4752 = vunpack.c.h.b16 %v2488
        %v4753 = vunpack.c.l.b16 %v2489
        %v4754 = vunpack.c.h.b16 %v2489
        %v4755 = vunpack.c.l.b16 %v2490
        %v4756 = vunpack.c.h.b16 %v2490
        %v4757 = vunpack.c.l.b16 %v2491
        %v4758 = vunpack.c.h.b16 %v2491
        %v4759 = vunpack.c.l.b16 %v2492
        %v4760 = vunpack.c.h.b16 %v2492
        %v4761 = vunpack.c.l.b16 %v2493
        %v4762 = vunpack.c.h.b16 %v2493
        %v4763 = vunpack.c.l.b16 %v2494
        %v4764 = vunpack.c.h.b16 %v2494
        %v4765 = vunpack.c.l.b16 %v2495
        %v4766 = vunpack.c.h.b16 %v2495
        %v4767 = vunpack.c.l.b16 %v2496
        %v4768 = vunpack.c.h.b16 %v2496
        %v4769 = vunpack.c.l.b16 %v2497
        %v4770 = vunpack.c.h.b16 %v2497
        %v4771 = vunpack.c.l.b16 %v2498
        %v4772 = vunpack.c.h.b16 %v2498
        %v4773 = vunpack.c.l.b16 %v2499
        %v4774 = vunpack.c.h.b16 %v2499
        %v4775 = vunpack.c.l.b16 %v2500
        %v4776 = vunpack.c.h.b16 %v2500
        %v4777 = vunpack.c.l.b16 %v2501
        %v4778 = vunpack.c.h.b16 %v2501
        %v4779 = vunpack.c.l.b16 %v2502
        %v4780 = vunpack.c.h.b16 %v2502
        %v4781 = vunpack.c.l.b16 %v2503
        %v4782 = vunpack.c.h.b16 %v2503
        %v4783 = vunpack.c.l.b16 %v2504
        %v4784 = vunpack.c.h.b16 %v2504
        %v4785 = vunpack.c.l.b16 %v2505
        %v4786 = vunpack.c.h.b16 %v2505
        %v4787 = vunpack.c.l.b16 %v2506
        %v4788 = vunpack.c.h.b16 %v2506
        %v4789 = vunpack.c.l.b16 %v2507
        %v4790 = vunpack.c.h.b16 %v2507
        %v4791 = vunpack.c.l.b16 %v2508
        %v4792 = vunpack.c.h.b16 %v2508
        %v4793 = vunpack.c.l.b16 %v2509
        %v4794 = vunpack.c.h.b16 %v2509
        %v4795 = vunpack.c.l.b16 %v2510
        %v4796 = vunpack.c.h.b16 %v2510
        %v4797 = vunpack.c.l.b16 %v2511
        %v4798 = vunpack.c.h.b16 %v2511
        %v4799 = vunpack.c.l.b16 %v2512
        %v4800 = vunpack.c.h.b16 %v2512
        %v4801 = vunpack.c.l.b16 %v2513
        %v4802 = vunpack.c.h.b16 %v2513
        %v4803 = vpack.c.b16 %v3335, %v3331
        %v4804 = vpack.c.b16 %v3336, %v3332
        %v4805 = vpack.c.b16 %v3337, %v3333
        %v4806 = vpack.c.b16 %v3338, %v3334
        %v4807 = vpack.c.b16 %v3343, %v3339
        %v4808 = vpack.c.b16 %v3344, %v3340
        %v4809 = vpack.c.b16 %v3345, %v3341
        %v4810 = vpack.c.b16 %v3346, %v3342
        %v4811 = vpack.c.b16 %v3351, %v3347
        %v4812 = vpack.c.b16 %v3352, %v3348
        %v4813 = vpack.c.b16 %v3353, %v3349
        %v4814 = vpack.c.b16 %v3354, %v3350
        %v4815 = vpack.c.b16 %v3359, %v3355
        %v4816 = vpack.c.b16 %v3360, %v3356
        %v4817 = vpack.c.b16 %v3361, %v3357
        %v4818 = vpack.c.b16 %v3362, %v3358
        %v4819 = vpack.c.b16 %v3367, %v3363
        %v4820 = vpack.c.b16 %v3368, %v3364
        %v4821 = vpack.c.b16 %v3369, %v3365
        %v4822 = vpack.c.b16 %v3370, %v3366
        %v4823 = vpack.c.b16 %v3375, %v3371
        %v4824 = vpack.c.b16 %v3376, %v3372
        %v4825 = vpack.c.b16 %v3377, %v3373
        %v4826 = vpack.c.b16 %v3378, %v3374
        %v4827 = vpack.c.b16 %v3383, %v3379
        %v4828 = vpack.c.b16 %v3384, %v3380
        %v4829 = vpack.c.b16 %v3385, %v3381
        %v4830 = vpack.c.b16 %v3386, %v3382
        %v4831 = vpack.c.b16 %v3391, %v3387
        %v4832 = vpack.c.b16 %v3392, %v3388
        %v4833 = vpack.c.b16 %v3393, %v3389
        %v4834 = vpack.c.b16 %v3394, %v3390
        %v4835 = vpack.c.b16 %v3399, %v3395
        %v4836 = vpack.c.b16 %v3400, %v3396
        %v4837 = vpack.c.b16 %v3401, %v3397
        %v4838 = vpack.c.b16 %v3402, %v3398
        %v4839 = vpack.c.b16 %v3407, %v3403
        %v4840 = vpack.c.b16 %v3408, %v3404
        %v4841 = vpack.c.b16 %v3409, %v3405
        %v4842 = vpack.c.b16 %v3410, %v3406
        %v4843 = vpack.c.b16 %v3415, %v3411
        %v4844 = vpack.c.b16 %v3416, %v3412
        %v4845 = vpack.c.b16 %v3417, %v3413
        %v4846 = vpack.c.b16 %v3418, %v3414
        %v4847 = vpack.c.b16 %v3423, %v3419
        %v4848 = vpack.c.b16 %v3424, %v3420
        %v4849 = vpack.c.b16 %v3425, %v3421
        %v4850 = vpack.c.b16 %v3426, %v3422
        %v4851 = vpack.c.b16 %v3431, %v3427
        %v4852 = vpack.c.b16 %v3432, %v3428
        %v4853 = vpack.c.b16 %v3433, %v3429
        %v4854 = vpack.c.b16 %v3434, %v3430
        %v4855 = vpack.c.b16 %v3439, %v3435
        %v4856 = vpack.c.b16 %v3440, %v3436
        %v4857 = vpack.c.b16 %v3441, %v3437
        %v4858 = vpack.c.b16 %v3442, %v3438
        %v4859 = vpack.c.b16 %v3447, %v3443
        %v4860 = vpack.c.b16 %v3448, %v3444
        %v4861 = vpack.c.b16 %v3449, %v3445
        %v4862 = vpack.c.b16 %v3450, %v3446
        %v4863 = vpack.c.b16 %v3455, %v3451
        %v4864 = vpack.c.b16 %v3456, %v3452
        %v4865 = vpack.c.b16 %v3457, %v3453
        %v4866 = vpack.c.b16 %v3458, %v3454
        %v4867 = vpack.c.b16 %v3463, %v3459
        %v4868 = vpack.c.b16 %v3464, %v3460
        %v4869 = vpack.c.b16 %v3465, %v3461
        %v4870 = vpack.c.b16 %v3466, %v3462
        %v4871 = vpack.c.b16 %v3471, %v3467
        %v4872 = vpack.c.b16 %v3472, %v3468
        %v4873 = vpack.c.b16 %v3473, %v3469
        %v4874 = vpack.c.b16 %v3474, %v3470
        %v4875 = vpack.c.b16 %v3479, %v3475
        %v4876 = vpack.c.b16 %v3480, %v3476
        %v4877 = vpack.c.b16 %v3481, %v3477
        %v4878 = vpack.c.b16 %v3482, %v3478
        %v4879 = vpack.c.b16 %v3487, %v3483
        %v4880 = vpack.c.b16 %v3488, %v3484
        %v4881 = vpack.c.b16 %v3489, %v3485
        %v4882 = vpack.c.b16 %v3490, %v3486
        %v4883 = vpack.c.b16 %v3495, %v3491
        %v4884 = vpack.c.b16 %v3496, %v3492
        %v4885 = vpack.c.b16 %v3497, %v3493
        %v4886 = vpack.c.b16 %v3498, %v3494
        %v4887 = vpack.c.b16 %v3503, %v3499
        %v4888 = vpack.c.b16 %v3504, %v3500
        %v4889 = vpack.c.b16 %v3505, %v3501
        %v4890 = vpack.c.b16 %v3506, %v3502
        %v4891 = vpack.c.b16 %v3511, %v3507
        %v4892 = vpack.c.b16 %v3512, %v3508
        %v4893 = vpack.c.b16 %v3513, %v3509
        %v4894 = vpack.c.b16 %v3514, %v3510
        %v4895 = vpack.c.b16 %v3519, %v3515
        %v4896 = vpack.c.b16 %v3520, %v3516
        %v4897 = vpack.c.b16 %v3521, %v3517
        %v4898 = vpack.c.b16 %v3522, %v3518
        %v4899 = vpack.c.b16 %v3527, %v3523
        %v4900 = vpack.c.b16 %v3528, %v3524
        %v4901 = vpack.c.b16 %v3529, %v3525
        %v4902 = vpack.c.b16 %v3530, %v3526
        %v4903 = vpack.c.b16 %v3535, %v3531
        %v4904 = vpack.c.b16 %v3536, %v3532
        %v4905 = vpack.c.b16 %v3537, %v3533
        %v4906 = vpack.c.b16 %v3538, %v3534
        %v4907 = vpack.c.b16 %v3543, %v3539
        %v4908 = vpack.c.b16 %v3544, %v3540
        %v4909 = vpack.c.b16 %v3545, %v3541
        %v4910 = vpack.c.b16 %v3546, %v3542
        %v4911 = vpack.c.b16 %v3551, %v3547
        %v4912 = vpack.c.b16 %v3552, %v3548
        %v4913 = vpack.c.b16 %v3553, %v3549
        %v4914 = vpack.c.b16 %v3554, %v3550
        %v4915 = vpack.c.b16 %v3559, %v3555
        %v4916 = vpack.c.b16 %v3560, %v3556
        %v4917 = vpack.c.b16 %v3561, %v3557
        %v4918 = vpack.c.b16 %v3562, %v3558
        %v4919 = vpack.c.b16 %v3567, %v3563
        %v4920 = vpack.c.b16 %v3568, %v3564
        %v4921 = vpack.c.b16 %v3569, %v3565
        %v4922 = vpack.c.b16 %v3570, %v3566
        %v4923 = vpack.c.b16 %v3575, %v3571
        %v4924 = vpack.c.b16 %v3576, %v3572
        %v4925 = vpack.c.b16 %v3577, %v3573
        %v4926 = vpack.c.b16 %v3578, %v3574
        %v4927 = vpack.c.b16 %v3583, %v3579
        %v4928 = vpack.c.b16 %v3584, %v3580
        %v4929 = vpack.c.b16 %v3585, %v3581
        %v4930 = vpack.c.b16 %v3586, %v3582
        %v4931 = vpack.c.b16 %v3591, %v3587
        %v4932 = vpack.c.b16 %v3592, %v3588
        %v4933 = vpack.c.b16 %v3593, %v3589
        %v4934 = vpack.c.b16 %v3594, %v3590
        %v4935 = vpack.c.b16 %v3599, %v3595
        %v4936 = vpack.c.b16 %v3600, %v3596
        %v4937 = vpack.c.b16 %v3601, %v3597
        %v4938 = vpack.c.b16 %v3602, %v3598
        %v4939 = vpack.c.b16 %v3607, %v3603
        %v4940 = vpack.c.b16 %v3608, %v3604
        %v4941 = vpack.c.b16 %v3609, %v3605
        %v4942 = vpack.c.b16 %v3610, %v3606
        %v4943 = vpack.c.b16 %v3615, %v3611
        %v4944 = vpack.c.b16 %v3616, %v3612
        %v4945 = vpack.c.b16 %v3617, %v3613
        %v4946 = vpack.c.b16 %v3618, %v3614
        %v4947 = vpack.c.b16 %v3623, %v3619
        %v4948 = vpack.c.b16 %v3624, %v3620
        %v4949 = vpack.c.b16 %v3625, %v3621
        %v4950 = vpack.c.b16 %v3626, %v3622
        %v4951 = vpack.c.b16 %v3631, %v3627
        %v4952 = vpack.c.b16 %v3632, %v3628
        %v4953 = vpack.c.b16 %v3633, %v3629
        %v4954 = vpack.c.b16 %v3634, %v3630
        %v4955 = vpack.c.b16 %v3639, %v3635
        %v4956 = vpack.c.b16 %v3640, %v3636
        %v4957 = vpack.c.b16 %v3641, %v3637
        %v4958 = vpack.c.b16 %v3642, %v3638
        %v4959 = vpack.c.b16 %v3647, %v3643
        %v4960 = vpack.c.b16 %v3648, %v3644
        %v4961 = vpack.c.b16 %v3649, %v3645
        %v4962 = vpack.c.b16 %v3650, %v3646
        %v4963 = vpack.c.b16 %v3655, %v3651
        %v4964 = vpack.c.b16 %v3656, %v3652
        %v4965 = vpack.c.b16 %v3657, %v3653
        %v4966 = vpack.c.b16 %v3658, %v3654
        %v4967 = vpack.c.b16 %v3663, %v3659
        %v4968 = vpack.c.b16 %v3664, %v3660
        %v4969 = vpack.c.b16 %v3665, %v3661
        %v4970 = vpack.c.b16 %v3666, %v3662
        %v4971 = vpack.c.b16 %v3671, %v3667
        %v4972 = vpack.c.b16 %v3672, %v3668
        %v4973 = vpack.c.b16 %v3673, %v3669
        %v4974 = vpack.c.b16 %v3674, %v3670
        %v4975 = vpack.c.b16 %v3679, %v3675
        %v4976 = vpack.c.b16 %v3680, %v3676
        %v4977 = vpack.c.b16 %v3681, %v3677
        %v4978 = vpack.c.b16 %v3682, %v3678
        %v4979 = vpack.c.b16 %v3687, %v3683
        %v4980 = vpack.c.b16 %v3688, %v3684
        %v4981 = vpack.c.b16 %v3689, %v3685
        %v4982 = vpack.c.b16 %v3690, %v3686
        %v4983 = vpack.c.b16 %v3695, %v3691
        %v4984 = vpack.c.b16 %v3696, %v3692
        %v4985 = vpack.c.b16 %v3697, %v3693
        %v4986 = vpack.c.b16 %v3698, %v3694
        %v4987 = vpack.c.b16 %v3703, %v3699
        %v4988 = vpack.c.b16 %v3704, %v3700
        %v4989 = vpack.c.b16 %v3705, %v3701
        %v4990 = vpack.c.b16 %v3706, %v3702
        %v4991 = vpack.c.b16 %v3711, %v3707
        %v4992 = vpack.c.b16 %v3712, %v3708
        %v4993 = vpack.c.b16 %v3713, %v3709
        %v4994 = vpack.c.b16 %v3714, %v3710
        %v4995 = vpack.c.b16 %v3719, %v3715
        %v4996 = vpack.c.b16 %v3720, %v3716
        %v4997 = vpack.c.b16 %v3721, %v3717
        %v4998 = vpack.c.b16 %v3722, %v3718
        %v4999 = vpack.c.b16 %v3727, %v3723
        %v5000 = vpack.c.b16 %v3728, %v3724
        %v5001 = vpack.c.b16 %v3729, %v3725
        %v5002 = vpack.c.b16 %v3730, %v3726
        %v5003 = vpack.c.b16 %v3735, %v3731
        %v5004 = vpack.c.b16 %v3736, %v3732
        %v5005 = vpack.c.b16 %v3737, %v3733
        %v5006 = vpack.c.b16 %v3738, %v3734
        %v5007 = vpack.c.b16 %v3743, %v3739
        %v5008 = vpack.c.b16 %v3744, %v3740
        %v5009 = vpack.c.b16 %v3745, %v3741
        %v5010 = vpack.c.b16 %v3746, %v3742
        %v5011 = vpack.c.b16 %v3751, %v3747
        %v5012 = vpack.c.b16 %v3752, %v3748
        %v5013 = vpack.c.b16 %v3753, %v3749
        %v5014 = vpack.c.b16 %v3754, %v3750
        %v5015 = vpack.c.b16 %v3759, %v3755
        %v5016 = vpack.c.b16 %v3760, %v3756
        %v5017 = vpack.c.b16 %v3761, %v3757
        %v5018 = vpack.c.b16 %v3762, %v3758
        %v5019 = vpack.c.b16 %v3767, %v3763
        %v5020 = vpack.c.b16 %v3768, %v3764
        %v5021 = vpack.c.b16 %v3769, %v3765
        %v5022 = vpack.c.b16 %v3770, %v3766
        %v5023 = vpack.c.b16 %v3775, %v3771
        %v5024 = vpack.c.b16 %v3776, %v3772
        %v5025 = vpack.c.b16 %v3777, %v3773
        %v5026 = vpack.c.b16 %v3778, %v3774
        %v5027 = vpack.c.b16 %v3783, %v3779
        %v5028 = vpack.c.b16 %v3784, %v3780
        %v5029 = vpack.c.b16 %v3785, %v3781
        %v5030 = vpack.c.b16 %v3786, %v3782
        %v5031 = vpack.c.b16 %v3791, %v3787
        %v5032 = vpack.c.b16 %v3792, %v3788
        %v5033 = vpack.c.b16 %v3793, %v3789
        %v5034 = vpack.c.b16 %v3794, %v3790
        %v5035 = vpack.c.b16 %v3799, %v3795
        %v5036 = vpack.c.b16 %v3800, %v3796
        %v5037 = vpack.c.b16 %v3801, %v3797
        %v5038 = vpack.c.b16 %v3802, %v3798
        %v5039 = vpack.c.b16 %v3807, %v3803
        %v5040 = vpack.c.b16 %v3808, %v3804
        %v5041 = vpack.c.b16 %v3809, %v3805
        %v5042 = vpack.c.b16 %v3810, %v3806
        %v5043 = vpack.c.b16 %v3815, %v3811
        %v5044 = vpack.c.b16 %v3816, %v3812
        %v5045 = vpack.c.b16 %v3817, %v3813
        %v5046 = vpack.c.b16 %v3818, %v3814
        %v5047 = vpack.c.b16 %v3823, %v3819
        %v5048 = vpack.c.b16 %v3824, %v3820
        %v5049 = vpack.c.b16 %v3825, %v3821
        %v5050 = vpack.c.b16 %v3826, %v3822
        %v5051 = vpack.c.b16 %v3831, %v3827
        %v5052 = vpack.c.b16 %v3832, %v3828
        %v5053 = vpack.c.b16 %v3833, %v3829
        %v5054 = vpack.c.b16 %v3834, %v3830
        %v5055 = vpack.c.b16 %v3839, %v3835
        %v5056 = vpack.c.b16 %v3840, %v3836
        %v5057 = vpack.c.b16 %v3841, %v3837
        %v5058 = vpack.c.b16 %v3842, %v3838
        %v5059 = vpack.c.b16 %v3847, %v3843
        %v5060 = vpack.c.b16 %v3848, %v3844
        %v5061 = vpack.c.b16 %v3849, %v3845
        %v5062 = vpack.c.b16 %v3850, %v3846
        %v5063 = vpack.c.b16 %v3855, %v3851
        %v5064 = vpack.c.b16 %v3856, %v3852
        %v5065 = vpack.c.b16 %v3857, %v3853
        %v5066 = vpack.c.b16 %v3858, %v3854
        %v5067 = vpack.c.b16 %v3863, %v3859
        %v5068 = vpack.c.b16 %v3864, %v3860
        %v5069 = vpack.c.b16 %v3865, %v3861
        %v5070 = vpack.c.b16 %v3866, %v3862
        %v5071 = vpack.c.b16 %v3871, %v3867
        %v5072 = vpack.c.b16 %v3872, %v3868
        %v5073 = vpack.c.b16 %v3873, %v3869
        %v5074 = vpack.c.b16 %v3874, %v3870
        %v5075 = vpack.c.b16 %v3879, %v3875
        %v5076 = vpack.c.b16 %v3880, %v3876
        %v5077 = vpack.c.b16 %v3881, %v3877
        %v5078 = vpack.c.b16 %v3882, %v3878
        %v5079 = vpack.c.b16 %v3887, %v3883
        %v5080 = vpack.c.b16 %v3888, %v3884
        %v5081 = vpack.c.b16 %v3889, %v3885
        %v5082 = vpack.c.b16 %v3890, %v3886
        %v5083 = vpack.c.b16 %v3895, %v3891
        %v5084 = vpack.c.b16 %v3896, %v3892
        %v5085 = vpack.c.b16 %v3897, %v3893
        %v5086 = vpack.c.b16 %v3898, %v3894
        %v5087 = vpack.c.b16 %v3903, %v3899
        %v5088 = vpack.c.b16 %v3904, %v3900
        %v5089 = vpack.c.b16 %v3905, %v3901
        %v5090 = vpack.c.b16 %v3906, %v3902
        %v5091 = vpack.c.b16 %v3911, %v3907
        %v5092 = vpack.c.b16 %v3912, %v3908
        %v5093 = vpack.c.b16 %v3913, %v3909
        %v5094 = vpack.c.b16 %v3914, %v3910
        %v5095 = vpack.c.b16 %v3919, %v3915
        %v5096 = vpack.c.b16 %v3920, %v3916
        %v5097 = vpack.c.b16 %v3921, %v3917
        %v5098 = vpack.c.b16 %v3922, %v3918
        %v5099 = vpack.c.b16 %v3927, %v3923
        %v5100 = vpack.c.b16 %v3928, %v3924
        %v5101 = vpack.c.b16 %v3929, %v3925
        %v5102 = vpack.c.b16 %v3930, %v3926
        %v5103 = vpack.c.b16 %v3935, %v3931
        %v5104 = vpack.c.b16 %v3936, %v3932
        %v5105 = vpack.c.b16 %v3937, %v3933
        %v5106 = vpack.c.b16 %v3938, %v3934
        %v5107 = vpack.c.b16 %v3943, %v3939
        %v5108 = vpack.c.b16 %v3944, %v3940
        %v5109 = vpack.c.b16 %v3945, %v3941
        %v5110 = vpack.c.b16 %v3946, %v3942
        %v5111 = vpack.c.b16 %v3951, %v3947
        %v5112 = vpack.c.b16 %v3952, %v3948
        %v5113 = vpack.c.b16 %v3953, %v3949
        %v5114 = vpack.c.b16 %v3954, %v3950
        %v5115 = vpack.c.b16 %v3959, %v3955
        %v5116 = vpack.c.b16 %v3960, %v3956
        %v5117 = vpack.c.b16 %v3961, %v3957
        %v5118 = vpack.c.b16 %v3962, %v3958
        %v5119 = vpack.c.b16 %v3967, %v3963
        %v5120 = vpack.c.b16 %v3968, %v3964
        %v5121 = vpack.c.b16 %v3969, %v3965
        %v5122 = vpack.c.b16 %v3970, %v3966
        %v5123 = vpack.c.b16 %v3975, %v3971
        %v5124 = vpack.c.b16 %v3976, %v3972
        %v5125 = vpack.c.b16 %v3977, %v3973
        %v5126 = vpack.c.b16 %v3978, %v3974
        %v5127 = vpack.c.b16 %v3983, %v3979
        %v5128 = vpack.c.b16 %v3984, %v3980
        %v5129 = vpack.c.b16 %v3985, %v3981
        %v5130 = vpack.c.b16 %v3986, %v3982
        %v5131 = vpack.c.b16 %v3991, %v3987
        %v5132 = vpack.c.b16 %v3992, %v3988
        %v5133 = vpack.c.b16 %v3993, %v3989
        %v5134 = vpack.c.b16 %v3994, %v3990
        %v5135 = vpack.c.b16 %v3999, %v3995
        %v5136 = vpack.c.b16 %v4000, %v3996
        %v5137 = vpack.c.b16 %v4001, %v3997
        %v5138 = vpack.c.b16 %v4002, %v3998
        %v5139 = vpack.c.b16 %v4007, %v4003
        %v5140 = vpack.c.b16 %v4008, %v4004
        %v5141 = vpack.c.b16 %v4009, %v4005
        %v5142 = vpack.c.b16 %v4010, %v4006
        %v5143 = vpack.c.b16 %v4015, %v4011
        %v5144 = vpack.c.b16 %v4016, %v4012
        %v5145 = vpack.c.b16 %v4017, %v4013
        %v5146 = vpack.c.b16 %v4018, %v4014
        %v5147 = vpack.c.b16 %v4023, %v4019
        %v5148 = vpack.c.b16 %v4024, %v4020
        %v5149 = vpack.c.b16 %v4025, %v4021
        %v5150 = vpack.c.b16 %v4026, %v4022
        %v5151 = vpack.c.b16 %v4031, %v4027
        %v5152 = vpack.c.b16 %v4032, %v4028
        %v5153 = vpack.c.b16 %v4033, %v4029
        %v5154 = vpack.c.b16 %v4034, %v4030
        %v5155 = vpack.c.b16 %v4039, %v4035
        %v5156 = vpack.c.b16 %v4040, %v4036
        %v5157 = vpack.c.b16 %v4041, %v4037
        %v5158 = vpack.c.b16 %v4042, %v4038
        %v5159 = vpack.c.b16 %v4047, %v4043
        %v5160 = vpack.c.b16 %v4048, %v4044
        %v5161 = vpack.c.b16 %v4049, %v4045
        %v5162 = vpack.c.b16 %v4050, %v4046
        %v5163 = vpack.c.b16 %v4055, %v4051
        %v5164 = vpack.c.b16 %v4056, %v4052
        %v5165 = vpack.c.b16 %v4057, %v4053
        %v5166 = vpack.c.b16 %v4058, %v4054
        %v5167 = vpack.c.b16 %v4063, %v4059
        %v5168 = vpack.c.b16 %v4064, %v4060
        %v5169 = vpack.c.b16 %v4065, %v4061
        %v5170 = vpack.c.b16 %v4066, %v4062
        %v5171 = vpack.c.b16 %v4071, %v4067
        %v5172 = vpack.c.b16 %v4072, %v4068
        %v5173 = vpack.c.b16 %v4073, %v4069
        %v5174 = vpack.c.b16 %v4074, %v4070
        %v5175 = vpack.c.b16 %v4079, %v4075
        %v5176 = vpack.c.b16 %v4080, %v4076
        %v5177 = vpack.c.b16 %v4081, %v4077
        %v5178 = vpack.c.b16 %v4082, %v4078
        %v5179 = vpack.c.b16 %v4087, %v4083
        %v5180 = vpack.c.b16 %v4088, %v4084
        %v5181 = vpack.c.b16 %v4089, %v4085
        %v5182 = vpack.c.b16 %v4090, %v4086
        %v5183 = vpack.c.b16 %v4095, %v4091
        %v5184 = vpack.c.b16 %v4096, %v4092
        %v5185 = vpack.c.b16 %v4097, %v4093
        %v5186 = vpack.c.b16 %v4098, %v4094
        %v5187 = vpack.c.b16 %v4103, %v4099
        %v5188 = vpack.c.b16 %v4104, %v4100
        %v5189 = vpack.c.b16 %v4105, %v4101
        %v5190 = vpack.c.b16 %v4106, %v4102
        %v5191 = vpack.c.b16 %v4111, %v4107
        %v5192 = vpack.c.b16 %v4112, %v4108
        %v5193 = vpack.c.b16 %v4113, %v4109
        %v5194 = vpack.c.b16 %v4114, %v4110
        %v5195 = vpack.c.b16 %v4119, %v4115
        %v5196 = vpack.c.b16 %v4120, %v4116
        %v5197 = vpack.c.b16 %v4121, %v4117
        %v5198 = vpack.c.b16 %v4122, %v4118
        %v5199 = vpack.c.b16 %v4127, %v4123
        %v5200 = vpack.c.b16 %v4128, %v4124
        %v5201 = vpack.c.b16 %v4129, %v4125
        %v5202 = vpack.c.b16 %v4130, %v4126
        %v5203 = vpack.c.b16 %v4135, %v4131
        %v5204 = vpack.c.b16 %v4136, %v4132
        %v5205 = vpack.c.b16 %v4137, %v4133
        %v5206 = vpack.c.b16 %v4138, %v4134
        %v5207 = vpack.c.b16 %v4143, %v4139
        %v5208 = vpack.c.b16 %v4144, %v4140
        %v5209 = vpack.c.b16 %v4145, %v4141
        %v5210 = vpack.c.b16 %v4146, %v4142
        %v5211 = vpack.c.b16 %v4151, %v4147
        %v5212 = vpack.c.b16 %v4152, %v4148
        %v5213 = vpack.c.b16 %v4153, %v4149
        %v5214 = vpack.c.b16 %v4154, %v4150
        %v5215 = vpack.c.b16 %v4159, %v4155
        %v5216 = vpack.c.b16 %v4160, %v4156
        %v5217 = vpack.c.b16 %v4161, %v4157
        %v5218 = vpack.c.b16 %v4162, %v4158
        %v5219 = vpack.c.b16 %v4167, %v4163
        %v5220 = vpack.c.b16 %v4168, %v4164
        %v5221 = vpack.c.b16 %v4169, %v4165
        %v5222 = vpack.c.b16 %v4170, %v4166
        %v5223 = vpack.c.b16 %v4175, %v4171
        %v5224 = vpack.c.b16 %v4176, %v4172
        %v5225 = vpack.c.b16 %v4177, %v4173
        %v5226 = vpack.c.b16 %v4178, %v4174
        %v5227 = vpack.c.b16 %v4183, %v4179
        %v5228 = vpack.c.b16 %v4184, %v4180
        %v5229 = vpack.c.b16 %v4185, %v4181
        %v5230 = vpack.c.b16 %v4186, %v4182
        %v5231 = vpack.c.b16 %v4191, %v4187
        %v5232 = vpack.c.b16 %v4192, %v4188
        %v5233 = vpack.c.b16 %v4193, %v4189
        %v5234 = vpack.c.b16 %v4194, %v4190
        %v5235 = vpack.c.b16 %v4199, %v4195
        %v5236 = vpack.c.b16 %v4200, %v4196
        %v5237 = vpack.c.b16 %v4201, %v4197
        %v5238 = vpack.c.b16 %v4202, %v4198
        %v5239 = vpack.c.b16 %v4207, %v4203
        %v5240 = vpack.c.b16 %v4208, %v4204
        %v5241 = vpack.c.b16 %v4209, %v4205
        %v5242 = vpack.c.b16 %v4210, %v4206
        %v5243 = vpack.c.b16 %v4215, %v4211
        %v5244 = vpack.c.b16 %v4216, %v4212
        %v5245 = vpack.c.b16 %v4217, %v4213
        %v5246 = vpack.c.b16 %v4218, %v4214
        %v5247 = vpack.c.b16 %v4223, %v4219
        %v5248 = vpack.c.b16 %v4224, %v4220
        %v5249 = vpack.c.b16 %v4225, %v4221
        %v5250 = vpack.c.b16 %v4226, %v4222
        %v5251 = vpack.c.b16 %v4231, %v4227
        %v5252 = vpack.c.b16 %v4232, %v4228
        %v5253 = vpack.c.b16 %v4233, %v4229
        %v5254 = vpack.c.b16 %v4234, %v4230
        %v5255 = vpack.c.b16 %v4239, %v4235
        %v5256 = vpack.c.b16 %v4240, %v4236
        %v5257 = vpack.c.b16 %v4241, %v4237
        %v5258 = vpack.c.b16 %v4242, %v4238
        %v5259 = vpack.c.b16 %v4247, %v4243
        %v5260 = vpack.c.b16 %v4248, %v4244
        %v5261 = vpack.c.b16 %v4249, %v4245
        %v5262 = vpack.c.b16 %v4250, %v4246
        %v5263 = vpack.c.b16 %v4255, %v4251
        %v5264 = vpack.c.b16 %v4256, %v4252
        %v5265 = vpack.c.b16 %v4257, %v4253
        %v5266 = vpack.c.b16 %v4258, %v4254
        %v5267 = vpack.c.b16 %v4263, %v4259
        %v5268 = vpack.c.b16 %v4264, %v4260
        %v5269 = vpack.c.b16 %v4265, %v4261
        %v5270 = vpack.c.b16 %v4266, %v4262
        %v5271 = vpack.c.b16 %v4271, %v4267
        %v5272 = vpack.c.b16 %v4272, %v4268
        %v5273 = vpack.c.b16 %v4273, %v4269
        %v5274 = vpack.c.b16 %v4274, %v4270
        %v5275 = vpack.c.b16 %v4279, %v4275
        %v5276 = vpack.c.b16 %v4280, %v4276
        %v5277 = vpack.c.b16 %v4281, %v4277
        %v5278 = vpack.c.b16 %v4282, %v4278
        %v5279 = vpack.c.b16 %v4287, %v4283
        %v5280 = vpack.c.b16 %v4288, %v4284
        %v5281 = vpack.c.b16 %v4289, %v4285
        %v5282 = vpack.c.b16 %v4290, %v4286
        %v5283 = vpack.c.b16 %v4295, %v4291
        %v5284 = vpack.c.b16 %v4296, %v4292
        %v5285 = vpack.c.b16 %v4297, %v4293
        %v5286 = vpack.c.b16 %v4298, %v4294
        %v5287 = vpack.c.b16 %v4303, %v4299
        %v5288 = vpack.c.b16 %v4304, %v4300
        %v5289 = vpack.c.b16 %v4305, %v4301
        %v5290 = vpack.c.b16 %v4306, %v4302
        %v5291 = vpack.c.b16 %v4311, %v4307
        %v5292 = vpack.c.b16 %v4312, %v4308
        %v5293 = vpack.c.b16 %v4313, %v4309
        %v5294 = vpack.c.b16 %v4314, %v4310
        %v5295 = vpack.c.b16 %v4319, %v4315
        %v5296 = vpack.c.b16 %v4320, %v4316
        %v5297 = vpack.c.b16 %v4321, %v4317
        %v5298 = vpack.c.b16 %v4322, %v4318
        %v5299 = vpack.c.b16 %v4327, %v4323
        %v5300 = vpack.c.b16 %v4328, %v4324
        %v5301 = vpack.c.b16 %v4329, %v4325
        %v5302 = vpack.c.b16 %v4330, %v4326
        %v5303 = vpack.c.b16 %v4335, %v4331
        %v5304 = vpack.c.b16 %v4336, %v4332
        %v5305 = vpack.c.b16 %v4337, %v4333
        %v5306 = vpack.c.b16 %v4338, %v4334
        %v5307 = vpack.c.b16 %v4343, %v4339
        %v5308 = vpack.c.b16 %v4344, %v4340
        %v5309 = vpack.c.b16 %v4345, %v4341
        %v5310 = vpack.c.b16 %v4346, %v4342
        %v5311 = vpack.c.b16 %v4351, %v4347
        %v5312 = vpack.c.b16 %v4352, %v4348
        %v5313 = vpack.c.b16 %v4353, %v4349
        %v5314 = vpack.c.b16 %v4354, %v4350
        %v5315 = vpack.c.b16 %v4359, %v4355
        %v5316 = vpack.c.b16 %v4360, %v4356
        %v5317 = vpack.c.b16 %v4361, %v4357
        %v5318 = vpack.c.b16 %v4362, %v4358
        %v5319 = vpack.c.b16 %v4367, %v4363
        %v5320 = vpack.c.b16 %v4368, %v4364
        %v5321 = vpack.c.b16 %v4369, %v4365
        %v5322 = vpack.c.b16 %v4370, %v4366
        %v5323 = vpack.c.b16 %v4375, %v4371
        %v5324 = vpack.c.b16 %v4376, %v4372
        %v5325 = vpack.c.b16 %v4377, %v4373
        %v5326 = vpack.c.b16 %v4378, %v4374
        %v5327 = vpack.c.b16 %v4383, %v4379
        %v5328 = vpack.c.b16 %v4384, %v4380
        %v5329 = vpack.c.b16 %v4385, %v4381
        %v5330 = vpack.c.b16 %v4386, %v4382
        %v5331 = vpack.c.b16 %v4391, %v4387
        %v5332 = vpack.c.b16 %v4392, %v4388
        %v5333 = vpack.c.b16 %v4393, %v4389
        %v5334 = vpack.c.b16 %v4394, %v4390
        %v5335 = vpack.c.b16 %v4399, %v4395
        %v5336 = vpack.c.b16 %v4400, %v4396
        %v5337 = vpack.c.b16 %v4401, %v4397
        %v5338 = vpack.c.b16 %v4402, %v4398
        %v5339 = vpack.c.b16 %v4407, %v4403
        %v5340 = vpack.c.b16 %v4408, %v4404
        %v5341 = vpack.c.b16 %v4409, %v4405
        %v5342 = vpack.c.b16 %v4410, %v4406
        %v5343 = vpack.c.b16 %v4415, %v4411
        %v5344 = vpack.c.b16 %v4416, %v4412
        %v5345 = vpack.c.b16 %v4417, %v4413
        %v5346 = vpack.c.b16 %v4418, %v4414
        %v5347 = vpack.c.b16 %v4423, %v4419
        %v5348 = vpack.c.b16 %v4424, %v4420
        %v5349 = vpack.c.b16 %v4425, %v4421
        %v5350 = vpack.c.b16 %v4426, %v4422
        %v5351 = vpack.c.b16 %v4431, %v4427
        %v5352 = vpack.c.b16 %v4432, %v4428
        %v5353 = vpack.c.b16 %v4433, %v4429
        %v5354 = vpack.c.b16 %v4434, %v4430
        %v5355 = vpack.c.b16 %v4439, %v4435
        %v5356 = vpack.c.b16 %v4440, %v4436
        %v5357 = vpack.c.b16 %v4441, %v4437
        %v5358 = vpack.c.b16 %v4442, %v4438
        %v5359 = vpack.c.b16 %v4447, %v4443
        %v5360 = vpack.c.b16 %v4448, %v4444
        %v5361 = vpack.c.b16 %v4449, %v4445
        %v5362 = vpack.c.b16 %v4450, %v4446
        %v5363 = vpack.c.b16 %v4455, %v4451
        %v5364 = vpack.c.b16 %v4456, %v4452
        %v5365 = vpack.c.b16 %v4457, %v4453
        %v5366 = vpack.c.b16 %v4458, %v4454
        %v5367 = vpack.c.b16 %v4463, %v4459
        %v5368 = vpack.c.b16 %v4464, %v4460
        %v5369 = vpack.c.b16 %v4465, %v4461
        %v5370 = vpack.c.b16 %v4466, %v4462
        %v5371 = vpack.c.b16 %v4471, %v4467
        %v5372 = vpack.c.b16 %v4472, %v4468
        %v5373 = vpack.c.b16 %v4473, %v4469
        %v5374 = vpack.c.b16 %v4474, %v4470
        %v5375 = vpack.c.b16 %v4479, %v4475
        %v5376 = vpack.c.b16 %v4480, %v4476
        %v5377 = vpack.c.b16 %v4481, %v4477
        %v5378 = vpack.c.b16 %v4482, %v4478
        %v5379 = vpack.c.b16 %v4487, %v4483
        %v5380 = vpack.c.b16 %v4488, %v4484
        %v5381 = vpack.c.b16 %v4489, %v4485
        %v5382 = vpack.c.b16 %v4490, %v4486
        %v5383 = vpack.c.b16 %v4495, %v4491
        %v5384 = vpack.c.b16 %v4496, %v4492
        %v5385 = vpack.c.b16 %v4497, %v4493
        %v5386 = vpack.c.b16 %v4498, %v4494
        %v5387 = vpack.c.b16 %v4503, %v4499
        %v5388 = vpack.c.b16 %v4504, %v4500
        %v5389 = vpack.c.b16 %v4505, %v4501
        %v5390 = vpack.c.b16 %v4506, %v4502
        %v5391 = vpack.c.b16 %v4511, %v4507
        %v5392 = vpack.c.b16 %v4512, %v4508
        %v5393 = vpack.c.b16 %v4513, %v4509
        %v5394 = vpack.c.b16 %v4514, %v4510
        %v5395 = vpack.c.b16 %v4519, %v4515
        %v5396 = vpack.c.b16 %v4520, %v4516
        %v5397 = vpack.c.b16 %v4521, %v4517
        %v5398 = vpack.c.b16 %v4522, %v4518
        %v5399 = vpack.c.b16 %v4527, %v4523
        %v5400 = vpack.c.b16 %v4528, %v4524
        %v5401 = vpack.c.b16 %v4529, %v4525
        %v5402 = vpack.c.b16 %v4530, %v4526
        %v5403 = vpack.c.b16 %v4535, %v4531
        %v5404 = vpack.c.b16 %v4536, %v4532
        %v5405 = vpack.c.b16 %v4537, %v4533
        %v5406 = vpack.c.b16 %v4538, %v4534
        %v5407 = vpack.c.b16 %v4543, %v4539
        %v5408 = vpack.c.b16 %v4544, %v4540
        %v5409 = vpack.c.b16 %v4545, %v4541
        %v5410 = vpack.c.b16 %v4546, %v4542
        %v5411 = vpack.c.b16 %v4551, %v4547
        %v5412 = vpack.c.b16 %v4552, %v4548
        %v5413 = vpack.c.b16 %v4553, %v4549
        %v5414 = vpack.c.b16 %v4554, %v4550
        %v5415 = vpack.c.b16 %v4559, %v4555
        %v5416 = vpack.c.b16 %v4560, %v4556
        %v5417 = vpack.c.b16 %v4561, %v4557
        %v5418 = vpack.c.b16 %v4562, %v4558
        %v5419 = vpack.c.b16 %v4567, %v4563
        %v5420 = vpack.c.b16 %v4568, %v4564
        %v5421 = vpack.c.b16 %v4569, %v4565
        %v5422 = vpack.c.b16 %v4570, %v4566
        %v5423 = vpack.c.b16 %v4575, %v4571
        %v5424 = vpack.c.b16 %v4576, %v4572
        %v5425 = vpack.c.b16 %v4577, %v4573
        %v5426 = vpack.c.b16 %v4578, %v4574
        %v5427 = vpack.c.b16 %v4583, %v4579
        %v5428 = vpack.c.b16 %v4584, %v4580
        %v5429 = vpack.c.b16 %v4585, %v4581
        %v5430 = vpack.c.b16 %v4586, %v4582
        %v5431 = vpack.c.b16 %v4591, %v4587
        %v5432 = vpack.c.b16 %v4592, %v4588
        %v5433 = vpack.c.b16 %v4593, %v4589
        %v5434 = vpack.c.b16 %v4594, %v4590
        %v5435 = vpack.c.b16 %v4599, %v4595
        %v5436 = vpack.c.b16 %v4600, %v4596
        %v5437 = vpack.c.b16 %v4601, %v4597
        %v5438 = vpack.c.b16 %v4602, %v4598
        %v5439 = vpack.c.b16 %v4607, %v4603
        %v5440 = vpack.c.b16 %v4608, %v4604
        %v5441 = vpack.c.b16 %v4609, %v4605
        %v5442 = vpack.c.b16 %v4610, %v4606
        %v5443 = vpack.c.b16 %v4615, %v4611
        %v5444 = vpack.c.b16 %v4616, %v4612
        %v5445 = vpack.c.b16 %v4617, %v4613
        %v5446 = vpack.c.b16 %v4618, %v4614
        %v5447 = vpack.c.b16 %v4623, %v4619
        %v5448 = vpack.c.b16 %v4624, %v4620
        %v5449 = vpack.c.b16 %v4625, %v4621
        %v5450 = vpack.c.b16 %v4626, %v4622
        %v5451 = vpack.c.b16 %v4631, %v4627
        %v5452 = vpack.c.b16 %v4632, %v4628
        %v5453 = vpack.c.b16 %v4633, %v4629
        %v5454 = vpack.c.b16 %v4634, %v4630
        %v5455 = vpack.c.b16 %v4639, %v4635
        %v5456 = vpack.c.b16 %v4640, %v4636
        %v5457 = vpack.c.b16 %v4641, %v4637
        %v5458 = vpack.c.b16 %v4642, %v4638
        %v5459 = vpack.c.b16 %v4647, %v4643
        %v5460 = vpack.c.b16 %v4648, %v4644
        %v5461 = vpack.c.b16 %v4649, %v4645
        %v5462 = vpack.c.b16 %v4650, %v4646
        %v5463 = vpack.c.b16 %v4655, %v4651
        %v5464 = vpack.c.b16 %v4656, %v4652
        %v5465 = vpack.c.b16 %v4657, %v4653
        %v5466 = vpack.c.b16 %v4658, %v4654
        %v5467 = vpack.c.b16 %v4663, %v4659
        %v5468 = vpack.c.b16 %v4664, %v4660
        %v5469 = vpack.c.b16 %v4665, %v4661
        %v5470 = vpack.c.b16 %v4666, %v4662
        %v5471 = vpack.c.b16 %v4671, %v4667
        %v5472 = vpack.c.b16 %v4672, %v4668
        %v5473 = vpack.c.b16 %v4673, %v4669
        %v5474 = vpack.c.b16 %v4674, %v4670
        %v5475 = vpack.c.b16 %v4679, %v4675
        %v5476 = vpack.c.b16 %v4680, %v4676
        %v5477 = vpack.c.b16 %v4681, %v4677
        %v5478 = vpack.c.b16 %v4682, %v4678
        %v5479 = vpack.c.b16 %v4687, %v4683
        %v5480 = vpack.c.b16 %v4688, %v4684
        %v5481 = vpack.c.b16 %v4689, %v4685
        %v5482 = vpack.c.b16 %v4690, %v4686
        %v5483 = vpack.c.b16 %v4695, %v4691
        %v5484 = vpack.c.b16 %v4696, %v4692
        %v5485 = vpack.c.b16 %v4697, %v4693
        %v5486 = vpack.c.b16 %v4698, %v4694
        %v5487 = vpack.c.b16 %v4703, %v4699
        %v5488 = vpack.c.b16 %v4704, %v4700
        %v5489 = vpack.c.b16 %v4705, %v4701
        %v5490 = vpack.c.b16 %v4706, %v4702
        %v5491 = vpack.c.b16 %v4711, %v4707
        %v5492 = vpack.c.b16 %v4712, %v4708
        %v5493 = vpack.c.b16 %v4713, %v4709
        %v5494 = vpack.c.b16 %v4714, %v4710
        %v5495 = vpack.c.b16 %v4719, %v4715
        %v5496 = vpack.c.b16 %v4720, %v4716
        %v5497 = vpack.c.b16 %v4721, %v4717
        %v5498 = vpack.c.b16 %v4722, %v4718
        %v5499 = vpack.c.b16 %v4727, %v4723
        %v5500 = vpack.c.b16 %v4728, %v4724
        %v5501 = vpack.c.b16 %v4729, %v4725
        %v5502 = vpack.c.b16 %v4730, %v4726
        %v5503 = vpack.c.b16 %v4735, %v4731
        %v5504 = vpack.c.b16 %v4736, %v4732
        %v5505 = vpack.c.b16 %v4737, %v4733
        %v5506 = vpack.c.b16 %v4738, %v4734
        %v5507 = vpack.c.b16 %v4743, %v4739
        %v5508 = vpack.c.b16 %v4744, %v4740
        %v5509 = vpack.c.b16 %v4745, %v4741
        %v5510 = vpack.c.b16 %v4746, %v4742
        %v5511 = vpack.c.b16 %v4751, %v4747
        %v5512 = vpack.c.b16 %v4752, %v4748
        %v5513 = vpack.c.b16 %v4753, %v4749
        %v5514 = vpack.c.b16 %v4754, %v4750
        %v5515 = vpack.c.b16 %v4759, %v4755
        %v5516 = vpack.c.b16 %v4760, %v4756
        %v5517 = vpack.c.b16 %v4761, %v4757
        %v5518 = vpack.c.b16 %v4762, %v4758
        %v5519 = vpack.c.b16 %v4767, %v4763
        %v5520 = vpack.c.b16 %v4768, %v4764
        %v5521 = vpack.c.b16 %v4769, %v4765
        %v5522 = vpack.c.b16 %v4770, %v4766
        %v5523 = vpack.c.b16 %v4775, %v4771
        %v5524 = vpack.c.b16 %v4776, %v4772
        %v5525 = vpack.c.b16 %v4777, %v4773
        %v5526 = vpack.c.b16 %v4778, %v4774
        %v5527 = vpack.c.b16 %v4783, %v4779
        %v5528 = vpack.c.b16 %v4784, %v4780
        %v5529 = vpack.c.b16 %v4785, %v4781
        %v5530 = vpack.c.b16 %v4786, %v4782
        %v5531 = vpack.c.b16 %v4791, %v4787
        %v5532 = vpack.c.b16 %v4792, %v4788
        %v5533 = vpack.c.b16 %v4793, %v4789
        %v5534 = vpack.c.b16 %v4794, %v4790
        %v5535 = vpack.c.b16 %v4799, %v4795
        %v5536 = vpack.c.b16 %v4800, %v4796
        %v5537 = vpack.c.b16 %v4801, %v4797
        %v5538 = vpack.c.b16 %v4802, %v4798
        %6275 = vmatprep.subr.bf16.mxu0 %v4832
        %6276 = vmatpush1.bf16.msra.mxu0 %v4831
        %6277 = vmatprep.subr.bf16.mxu0 %v4828
        %6278 = vmatpush1.bf16.msra.mxu0 %v4827
        %6279 = vmatprep.subr.bf16.mxu0 %v4824
        %6280 = vmatpush1.bf16.msra.mxu0 %v4823
        %6281 = vmatprep.subr.bf16.mxu0 %v4820
        %6282 = vmatpush1.bf16.msra.mxu0 %v4819
        %6283 = vmatprep.subr.bf16.mxu0 %v4816
        %6284 = vmatpush1.bf16.msra.mxu0 %v4815
        %6285 = vmatprep.subr.bf16.mxu0 %v4812
        %6286 = vmatpush1.bf16.msra.mxu0 %v4811
        %6287 = vmatprep.subr.bf16.mxu0 %v4808
        %6288 = vmatpush1.bf16.msra.mxu0 %v4807
        %6289 = vmatprep.subr.bf16.mxu0 %v4804
        %6290 = vmatpush1.bf16.msra.mxu0 %v4803
        %6291 = vmatprep.subr.bf16.mxu0 %v4864
        %6292 = vmatpush2.bf16.msra.mxu0 %v4863
        %6293 = vmatprep.subr.bf16.mxu0 %v4860
        %6294 = vmatpush2.bf16.msra.mxu0 %v4859
        %6295 = vmatprep.subr.bf16.mxu0 %v4856
        %6296 = vmatpush2.bf16.msra.mxu0 %v4855
        %6297 = vmatprep.subr.bf16.mxu0 %v4852
        %6298 = vmatpush2.bf16.msra.mxu0 %v4851
        %6299 = vmatprep.subr.bf16.mxu0 %v4848
        %6300 = vmatpush2.bf16.msra.mxu0 %v4847
        %6301 = vmatprep.subr.bf16.mxu0 %v4844
        %6302 = vmatpush2.bf16.msra.mxu0 %v4843
        %6303 = vmatprep.subr.bf16.mxu0 %v4840
        %6304 = vmatpush2.bf16.msra.mxu0 %v4839
        %6305 = vmatprep.subr.bf16.mxu0 %v4836
        %6306 = vmatpush2.bf16.msra.mxu0 %v4835
        %6307 = vmatprep.mubr.bf16.mxu0 %v2550
        %6308 = vmatmul.mubr.bf16.gmra.mxu0 %v2549
        %v6309 = vpop.f32.mrf.mxu0
        %v6310 = vadd.f32 0.0, %v6309
        %v6311 = vpop.f32.mrf.mxu0
        %v6312 = vadd.f32 0.0, %v6311
        %v6313 = vpop.f32.mrf.mxu0
        %v6314 = vpop.f32.mrf.mxu0
        %6315 = vdwg.mxu0
        %6316 = vmatprep.subr.bf16.mxu0 %v4896
        %6317 = vmatpush1.bf16.msra.mxu0 %v4895
        %6318 = vmatprep.subr.bf16.mxu0 %v4892
        %6319 = vmatpush1.bf16.msra.mxu0 %v4891
        %6320 = vmatprep.subr.bf16.mxu0 %v4888
        %6321 = vmatpush1.bf16.msra.mxu0 %v4887
        %6322 = vmatprep.subr.bf16.mxu0 %v4884
        %6323 = vmatpush1.bf16.msra.mxu0 %v4883
        %6324 = vmatprep.subr.bf16.mxu0 %v4880
        %6325 = vmatpush1.bf16.msra.mxu0 %v4879
        %6326 = vmatprep.subr.bf16.mxu0 %v4876
        %6327 = vmatpush1.bf16.msra.mxu0 %v4875
        %6328 = vmatprep.subr.bf16.mxu0 %v4872
        %6329 = vmatpush1.bf16.msra.mxu0 %v4871
        %6330 = vmatprep.subr.bf16.mxu0 %v4868
        %6331 = vmatpush1.bf16.msra.mxu0 %v4867
        %6332 = vmatprep.subr.bf16.mxu0 %v4928
        %6333 = vmatpush2.bf16.msra.mxu0 %v4927
        %6334 = vmatprep.subr.bf16.mxu0 %v4924
        %6335 = vmatpush2.bf16.msra.mxu0 %v4923
        %6336 = vmatprep.subr.bf16.mxu0 %v4920
        %6337 = vmatpush2.bf16.msra.mxu0 %v4919
        %6338 = vmatprep.subr.bf16.mxu0 %v4916
        %6339 = vmatpush2.bf16.msra.mxu0 %v4915
        %6340 = vmatprep.subr.bf16.mxu0 %v4912
        %6341 = vmatpush2.bf16.msra.mxu0 %v4911
        %6342 = vmatprep.subr.bf16.mxu0 %v4908
        %6343 = vmatpush2.bf16.msra.mxu0 %v4907
        %6344 = vmatprep.subr.bf16.mxu0 %v4904
        %6345 = vmatpush2.bf16.msra.mxu0 %v4903
        %6346 = vmatprep.subr.bf16.mxu0 %v4900
        %6347 = vmatpush2.bf16.msra.mxu0 %v4899
        %6348 = vmatprep.mubr.bf16.mxu0 %v2552
        %6349 = vmatmul.mubr.bf16.gmra.mxu0 %v2551
        %v6350 = vpop.f32.mrf.mxu0
        %v6351 = vadd.f32 %v6310, %v6350
        %v6352 = vpop.f32.mrf.mxu0
        %v6353 = vadd.f32 %v6312, %v6352
        %v6354 = vpop.f32.mrf.mxu0
        %v6355 = vpop.f32.mrf.mxu0
        %6356 = vdwg.mxu0
        %6357 = vmatprep.subr.bf16.mxu0 %v4960
        %6358 = vmatpush1.bf16.msra.mxu0 %v4959
        %6359 = vmatprep.subr.bf16.mxu0 %v4956
        %6360 = vmatpush1.bf16.msra.mxu0 %v4955
        %6361 = vmatprep.subr.bf16.mxu0 %v4952
        %6362 = vmatpush1.bf16.msra.mxu0 %v4951
        %6363 = vmatprep.subr.bf16.mxu0 %v4948
        %6364 = vmatpush1.bf16.msra.mxu0 %v4947
        %6365 = vmatprep.subr.bf16.mxu0 %v4944
        %6366 = vmatpush1.bf16.msra.mxu0 %v4943
        %6367 = vmatprep.subr.bf16.mxu0 %v4940
        %6368 = vmatpush1.bf16.msra.mxu0 %v4939
        %6369 = vmatprep.subr.bf16.mxu0 %v4936
        %6370 = vmatpush1.bf16.msra.mxu0 %v4935
        %6371 = vmatprep.subr.bf16.mxu0 %v4932
        %6372 = vmatpush1.bf16.msra.mxu0 %v4931
        %6373 = vmatprep.subr.bf16.mxu0 %v4992
        %6374 = vmatpush2.bf16.msra.mxu0 %v4991
        %6375 = vmatprep.subr.bf16.mxu0 %v4988
        %6376 = vmatpush2.bf16.msra.mxu0 %v4987
        %6377 = vmatprep.subr.bf16.mxu0 %v4984
        %6378 = vmatpush2.bf16.msra.mxu0 %v4983
        %6379 = vmatprep.subr.bf16.mxu0 %v4980
        %6380 = vmatpush2.bf16.msra.mxu0 %v4979
        %6381 = vmatprep.subr.bf16.mxu0 %v4976
        %6382 = vmatpush2.bf16.msra.mxu0 %v4975
        %6383 = vmatprep.subr.bf16.mxu0 %v4972
        %6384 = vmatpush2.bf16.msra.mxu0 %v4971
        %6385 = vmatprep.subr.bf16.mxu0 %v4968
        %6386 = vmatpush2.bf16.msra.mxu0 %v4967
        %6387 = vmatprep.subr.bf16.mxu0 %v4964
        %6388 = vmatpush2.bf16.msra.mxu0 %v4963
        %6389 = vmatprep.mubr.bf16.mxu0 %v2554
        %6390 = vmatmul.mubr.bf16.gmra.mxu0 %v2553
        %v6391 = vpop.f32.mrf.mxu0
        %v6392 = vadd.f32 %v6351, %v6391
        %v6393 = vpop.f32.mrf.mxu0
        %v6394 = vadd.f32 %v6353, %v6393
        %v6395 = vpop.f32.mrf.mxu0
        %v6396 = vpop.f32.mrf.mxu0
        %6397 = vdwg.mxu0
        %6398 = vmatprep.subr.bf16.mxu0 %v5024
        %6399 = vmatpush1.bf16.msra.mxu0 %v5023
        %6400 = vmatprep.subr.bf16.mxu0 %v5020
        %6401 = vmatpush1.bf16.msra.mxu0 %v5019
        %6402 = vmatprep.subr.bf16.mxu0 %v5016
        %6403 = vmatpush1.bf16.msra.mxu0 %v5015
        %6404 = vmatprep.subr.bf16.mxu0 %v5012
        %6405 = vmatpush1.bf16.msra.mxu0 %v5011
        %6406 = vmatprep.subr.bf16.mxu0 %v5008
        %6407 = vmatpush1.bf16.msra.mxu0 %v5007
        %6408 = vmatprep.subr.bf16.mxu0 %v5004
        %6409 = vmatpush1.bf16.msra.mxu0 %v5003
        %6410 = vmatprep.subr.bf16.mxu0 %v5000
        %6411 = vmatpush1.bf16.msra.mxu0 %v4999
        %6412 = vmatprep.subr.bf16.mxu0 %v4996
        %6413 = vmatpush1.bf16.msra.mxu0 %v4995
        %6414 = vmatprep.subr.bf16.mxu0 %v5056
        %6415 = vmatpush2.bf16.msra.mxu0 %v5055
        %6416 = vmatprep.subr.bf16.mxu0 %v5052
        %6417 = vmatpush2.bf16.msra.mxu0 %v5051
        %6418 = vmatprep.subr.bf16.mxu0 %v5048
        %6419 = vmatpush2.bf16.msra.mxu0 %v5047
        %6420 = vmatprep.subr.bf16.mxu0 %v5044
        %6421 = vmatpush2.bf16.msra.mxu0 %v5043
        %6422 = vmatprep.subr.bf16.mxu0 %v5040
        %6423 = vmatpush2.bf16.msra.mxu0 %v5039
        %6424 = vmatprep.subr.bf16.mxu0 %v5036
        %6425 = vmatpush2.bf16.msra.mxu0 %v5035
        %6426 = vmatprep.subr.bf16.mxu0 %v5032
        %6427 = vmatpush2.bf16.msra.mxu0 %v5031
        %6428 = vmatprep.subr.bf16.mxu0 %v5028
        %6429 = vmatpush2.bf16.msra.mxu0 %v5027
        %6430 = vmatprep.mubr.bf16.mxu0 %v2556
        %6431 = vmatmul.mubr.bf16.gmra.mxu0 %v2555
        %v6432 = vpop.f32.mrf.mxu0
        %v6433 = vadd.f32 %v6392, %v6432
        %v6434 = vpop.f32.mrf.mxu0
        %v6435 = vadd.f32 %v6394, %v6434
        %v6436 = vpop.f32.mrf.mxu0
        %v6437 = vpop.f32.mrf.mxu0
        %6438 = vdwg.mxu0
        %6439 = vmatprep.subr.bf16.mxu0 %v5088
        %6440 = vmatpush1.bf16.msra.mxu0 %v5087
        %6441 = vmatprep.subr.bf16.mxu0 %v5084
        %6442 = vmatpush1.bf16.msra.mxu0 %v5083
        %6443 = vmatprep.subr.bf16.mxu0 %v5080
        %6444 = vmatpush1.bf16.msra.mxu0 %v5079
        %6445 = vmatprep.subr.bf16.mxu0 %v5076
        %6446 = vmatpush1.bf16.msra.mxu0 %v5075
        %6447 = vmatprep.subr.bf16.mxu0 %v5072
        %6448 = vmatpush1.bf16.msra.mxu0 %v5071
        %6449 = vmatprep.subr.bf16.mxu0 %v5068
        %6450 = vmatpush1.bf16.msra.mxu0 %v5067
        %6451 = vmatprep.subr.bf16.mxu0 %v5064
        %6452 = vmatpush1.bf16.msra.mxu0 %v5063
        %6453 = vmatprep.subr.bf16.mxu0 %v5060
        %6454 = vmatpush1.bf16.msra.mxu0 %v5059
        %6455 = vmatprep.subr.bf16.mxu0 %v5120
        %6456 = vmatpush2.bf16.msra.mxu0 %v5119
        %6457 = vmatprep.subr.bf16.mxu0 %v5116
        %6458 = vmatpush2.bf16.msra.mxu0 %v5115
        %6459 = vmatprep.subr.bf16.mxu0 %v5112
        %6460 = vmatpush2.bf16.msra.mxu0 %v5111
        %6461 = vmatprep.subr.bf16.mxu0 %v5108
        %6462 = vmatpush2.bf16.msra.mxu0 %v5107
        %6463 = vmatprep.subr.bf16.mxu0 %v5104
        %6464 = vmatpush2.bf16.msra.mxu0 %v5103
        %6465 = vmatprep.subr.bf16.mxu0 %v5100
        %6466 = vmatpush2.bf16.msra.mxu0 %v5099
        %6467 = vmatprep.subr.bf16.mxu0 %v5096
        %6468 = vmatpush2.bf16.msra.mxu0 %v5095
        %6469 = vmatprep.subr.bf16.mxu0 %v5092
        %6470 = vmatpush2.bf16.msra.mxu0 %v5091
        %6471 = vmatprep.mubr.bf16.mxu0 %v2558
        %6472 = vmatmul.mubr.bf16.gmra.mxu0 %v2557
        %v6473 = vpop.f32.mrf.mxu0
        %v6474 = vadd.f32 %v6433, %v6473
        %v6475 = vpop.f32.mrf.mxu0
        %v6476 = vadd.f32 %v6435, %v6475
        %v6477 = vpop.f32.mrf.mxu0
        %v6478 = vpop.f32.mrf.mxu0
        %6479 = vdwg.mxu0
        %6480 = vmatprep.subr.bf16.mxu0 %v5152
        %6481 = vmatpush1.bf16.msra.mxu0 %v5151
        %6482 = vmatprep.subr.bf16.mxu0 %v5148
        %6483 = vmatpush1.bf16.msra.mxu0 %v5147
        %6484 = vmatprep.subr.bf16.mxu0 %v5144
        %6485 = vmatpush1.bf16.msra.mxu0 %v5143
        %6486 = vmatprep.subr.bf16.mxu0 %v5140
        %6487 = vmatpush1.bf16.msra.mxu0 %v5139
        %6488 = vmatprep.subr.bf16.mxu0 %v5136
        %6489 = vmatpush1.bf16.msra.mxu0 %v5135
        %6490 = vmatprep.subr.bf16.mxu0 %v5132
        %6491 = vmatpush1.bf16.msra.mxu0 %v5131
        %6492 = vmatprep.subr.bf16.mxu0 %v5128
        %6493 = vmatpush1.bf16.msra.mxu0 %v5127
        %6494 = vmatprep.subr.bf16.mxu0 %v5124
        %6495 = vmatpush1.bf16.msra.mxu0 %v5123
        %6496 = vmatprep.subr.bf16.mxu0 %v5184
        %6497 = vmatpush2.bf16.msra.mxu0 %v5183
        %6498 = vmatprep.subr.bf16.mxu0 %v5180
        %6499 = vmatpush2.bf16.msra.mxu0 %v5179
        %6500 = vmatprep.subr.bf16.mxu0 %v5176
        %6501 = vmatpush2.bf16.msra.mxu0 %v5175
        %6502 = vmatprep.subr.bf16.mxu0 %v5172
        %6503 = vmatpush2.bf16.msra.mxu0 %v5171
        %6504 = vmatprep.subr.bf16.mxu0 %v5168
        %6505 = vmatpush2.bf16.msra.mxu0 %v5167
        %6506 = vmatprep.subr.bf16.mxu0 %v5164
        %6507 = vmatpush2.bf16.msra.mxu0 %v5163
        %6508 = vmatprep.subr.bf16.mxu0 %v5160
        %6509 = vmatpush2.bf16.msra.mxu0 %v5159
        %6510 = vmatprep.subr.bf16.mxu0 %v5156
        %6511 = vmatpush2.bf16.msra.mxu0 %v5155
        %6512 = vmatprep.mubr.bf16.mxu0 %v2560
        %6513 = vmatmul.mubr.bf16.gmra.mxu0 %v2559
        %v6514 = vpop.f32.mrf.mxu0
        %v6515 = vadd.f32 %v6474, %v6514
        %v6516 = vpop.f32.mrf.mxu0
        %v6517 = vadd.f32 %v6476, %v6516
        %v6518 = vpop.f32.mrf.mxu0
        %v6519 = vpop.f32.mrf.mxu0
        %6520 = vdwg.mxu0
        %6521 = vmatprep.subr.bf16.mxu0 %v5216
        %6522 = vmatpush1.bf16.msra.mxu0 %v5215
        %6523 = vmatprep.subr.bf16.mxu0 %v5212
        %6524 = vmatpush1.bf16.msra.mxu0 %v5211
        %6525 = vmatprep.subr.bf16.mxu0 %v5208
        %6526 = vmatpush1.bf16.msra.mxu0 %v5207
        %6527 = vmatprep.subr.bf16.mxu0 %v5204
        %6528 = vmatpush1.bf16.msra.mxu0 %v5203
        %6529 = vmatprep.subr.bf16.mxu0 %v5200
        %6530 = vmatpush1.bf16.msra.mxu0 %v5199
        %6531 = vmatprep.subr.bf16.mxu0 %v5196
        %6532 = vmatpush1.bf16.msra.mxu0 %v5195
        %6533 = vmatprep.subr.bf16.mxu0 %v5192
        %6534 = vmatpush1.bf16.msra.mxu0 %v5191
        %6535 = vmatprep.subr.bf16.mxu0 %v5188
        %6536 = vmatpush1.bf16.msra.mxu0 %v5187
        %6537 = vmatprep.subr.bf16.mxu0 %v5248
        %6538 = vmatpush2.bf16.msra.mxu0 %v5247
        %6539 = vmatprep.subr.bf16.mxu0 %v5244
        %6540 = vmatpush2.bf16.msra.mxu0 %v5243
        %6541 = vmatprep.subr.bf16.mxu0 %v5240
        %6542 = vmatpush2.bf16.msra.mxu0 %v5239
        %6543 = vmatprep.subr.bf16.mxu0 %v5236
        %6544 = vmatpush2.bf16.msra.mxu0 %v5235
        %6545 = vmatprep.subr.bf16.mxu0 %v5232
        %6546 = vmatpush2.bf16.msra.mxu0 %v5231
        %6547 = vmatprep.subr.bf16.mxu0 %v5228
        %6548 = vmatpush2.bf16.msra.mxu0 %v5227
        %6549 = vmatprep.subr.bf16.mxu0 %v5224
        %6550 = vmatpush2.bf16.msra.mxu0 %v5223
        %6551 = vmatprep.subr.bf16.mxu0 %v5220
        %6552 = vmatpush2.bf16.msra.mxu0 %v5219
        %6553 = vmatprep.mubr.bf16.mxu0 %v2562
        %6554 = vmatmul.mubr.bf16.gmra.mxu0 %v2561
        %v6555 = vpop.f32.mrf.mxu0
        %v6556 = vadd.f32 %v6515, %v6555
        %v6557 = vpop.f32.mrf.mxu0
        %v6558 = vadd.f32 %v6517, %v6557
        %v6559 = vpop.f32.mrf.mxu0
        %v6560 = vpop.f32.mrf.mxu0
        %6561 = vdwg.mxu0
        %6562 = vmatprep.subr.bf16.mxu0 %v5280
        %6563 = vmatpush1.bf16.msra.mxu0 %v5279
        %6564 = vmatprep.subr.bf16.mxu0 %v5276
        %6565 = vmatpush1.bf16.msra.mxu0 %v5275
        %6566 = vmatprep.subr.bf16.mxu0 %v5272
        %6567 = vmatpush1.bf16.msra.mxu0 %v5271
        %6568 = vmatprep.subr.bf16.mxu0 %v5268
        %6569 = vmatpush1.bf16.msra.mxu0 %v5267
        %6570 = vmatprep.subr.bf16.mxu0 %v5264
        %6571 = vmatpush1.bf16.msra.mxu0 %v5263
        %6572 = vmatprep.subr.bf16.mxu0 %v5260
        %6573 = vmatpush1.bf16.msra.mxu0 %v5259
        %6574 = vmatprep.subr.bf16.mxu0 %v5256
        %6575 = vmatpush1.bf16.msra.mxu0 %v5255
        %6576 = vmatprep.subr.bf16.mxu0 %v5252
        %6577 = vmatpush1.bf16.msra.mxu0 %v5251
        %6578 = vmatprep.subr.bf16.mxu0 %v5312
        %6579 = vmatpush2.bf16.msra.mxu0 %v5311
        %6580 = vmatprep.subr.bf16.mxu0 %v5308
        %6581 = vmatpush2.bf16.msra.mxu0 %v5307
        %6582 = vmatprep.subr.bf16.mxu0 %v5304
        %6583 = vmatpush2.bf16.msra.mxu0 %v5303
        %6584 = vmatprep.subr.bf16.mxu0 %v5300
        %6585 = vmatpush2.bf16.msra.mxu0 %v5299
        %6586 = vmatprep.subr.bf16.mxu0 %v5296
        %6587 = vmatpush2.bf16.msra.mxu0 %v5295
        %6588 = vmatprep.subr.bf16.mxu0 %v5292
        %6589 = vmatpush2.bf16.msra.mxu0 %v5291
        %6590 = vmatprep.subr.bf16.mxu0 %v5288
        %6591 = vmatpush2.bf16.msra.mxu0 %v5287
        %6592 = vmatprep.subr.bf16.mxu0 %v5284
        %6593 = vmatpush2.bf16.msra.mxu0 %v5283
        %6594 = vmatprep.mubr.bf16.mxu0 %v2564
        %6595 = vmatmul.mubr.bf16.gmra.mxu0 %v2563
        %v6596 = vpop.f32.mrf.mxu0
        %v6597 = vadd.f32 %v6556, %v6596
        %v6598 = vpop.f32.mrf.mxu0
        %v6599 = vadd.f32 %v6558, %v6598
        %v6600 = vpop.f32.mrf.mxu0
        %v6601 = vpop.f32.mrf.mxu0
        %6602 = vdwg.mxu0
        %6603 = vmatprep.subr.bf16.mxu0 %v5344
        %6604 = vmatpush1.bf16.msra.mxu0 %v5343
        %6605 = vmatprep.subr.bf16.mxu0 %v5340
        %6606 = vmatpush1.bf16.msra.mxu0 %v5339
        %6607 = vmatprep.subr.bf16.mxu0 %v5336
        %6608 = vmatpush1.bf16.msra.mxu0 %v5335
        %6609 = vmatprep.subr.bf16.mxu0 %v5332
        %6610 = vmatpush1.bf16.msra.mxu0 %v5331
        %6611 = vmatprep.subr.bf16.mxu0 %v5328
        %6612 = vmatpush1.bf16.msra.mxu0 %v5327
        %6613 = vmatprep.subr.bf16.mxu0 %v5324
        %6614 = vmatpush1.bf16.msra.mxu0 %v5323
        %6615 = vmatprep.subr.bf16.mxu0 %v5320
        %6616 = vmatpush1.bf16.msra.mxu0 %v5319
        %6617 = vmatprep.subr.bf16.mxu0 %v5316
        %6618 = vmatpush1.bf16.msra.mxu0 %v5315
        %6619 = vmatprep.subr.bf16.mxu0 %v5376
        %6620 = vmatpush2.bf16.msra.mxu0 %v5375
        %6621 = vmatprep.subr.bf16.mxu0 %v5372
        %6622 = vmatpush2.bf16.msra.mxu0 %v5371
        %6623 = vmatprep.subr.bf16.mxu0 %v5368
        %6624 = vmatpush2.bf16.msra.mxu0 %v5367
        %6625 = vmatprep.subr.bf16.mxu0 %v5364
        %6626 = vmatpush2.bf16.msra.mxu0 %v5363
        %6627 = vmatprep.subr.bf16.mxu0 %v5360
        %6628 = vmatpush2.bf16.msra.mxu0 %v5359
        %6629 = vmatprep.subr.bf16.mxu0 %v5356
        %6630 = vmatpush2.bf16.msra.mxu0 %v5355
        %6631 = vmatprep.subr.bf16.mxu0 %v5352
        %6632 = vmatpush2.bf16.msra.mxu0 %v5351
        %6633 = vmatprep.subr.bf16.mxu0 %v5348
        %6634 = vmatpush2.bf16.msra.mxu0 %v5347
        %6635 = vmatprep.mubr.bf16.mxu0 %v2566
        %6636 = vmatmul.mubr.bf16.gmra.mxu0 %v2565
        %v6637 = vpop.f32.mrf.mxu0
        %v6638 = vadd.f32 %v6597, %v6637
        %v6639 = vpop.f32.mrf.mxu0
        %v6640 = vadd.f32 %v6599, %v6639
        %v6641 = vpop.f32.mrf.mxu0
        %v6642 = vpop.f32.mrf.mxu0
        %6643 = vdwg.mxu0
        %6644 = vmatprep.subr.bf16.mxu0 %v5408
        %6645 = vmatpush1.bf16.msra.mxu0 %v5407
        %6646 = vmatprep.subr.bf16.mxu0 %v5404
        %6647 = vmatpush1.bf16.msra.mxu0 %v5403
        %6648 = vmatprep.subr.bf16.mxu0 %v5400
        %6649 = vmatpush1.bf16.msra.mxu0 %v5399
        %6650 = vmatprep.subr.bf16.mxu0 %v5396
        %6651 = vmatpush1.bf16.msra.mxu0 %v5395
        %6652 = vmatprep.subr.bf16.mxu0 %v5392
        %6653 = vmatpush1.bf16.msra.mxu0 %v5391
        %6654 = vmatprep.subr.bf16.mxu0 %v5388
        %6655 = vmatpush1.bf16.msra.mxu0 %v5387
        %6656 = vmatprep.subr.bf16.mxu0 %v5384
        %6657 = vmatpush1.bf16.msra.mxu0 %v5383
        %6658 = vmatprep.subr.bf16.mxu0 %v5380
        %6659 = vmatpush1.bf16.msra.mxu0 %v5379
        %6660 = vmatprep.subr.bf16.mxu0 %v5440
        %6661 = vmatpush2.bf16.msra.mxu0 %v5439
        %6662 = vmatprep.subr.bf16.mxu0 %v5436
        %6663 = vmatpush2.bf16.msra.mxu0 %v5435
        %6664 = vmatprep.subr.bf16.mxu0 %v5432
        %6665 = vmatpush2.bf16.msra.mxu0 %v5431
        %6666 = vmatprep.subr.bf16.mxu0 %v5428
        %6667 = vmatpush2.bf16.msra.mxu0 %v5427
        %6668 = vmatprep.subr.bf16.mxu0 %v5424
        %6669 = vmatpush2.bf16.msra.mxu0 %v5423
        %6670 = vmatprep.subr.bf16.mxu0 %v5420
        %6671 = vmatpush2.bf16.msra.mxu0 %v5419
        %6672 = vmatprep.subr.bf16.mxu0 %v5416
        %6673 = vmatpush2.bf16.msra.mxu0 %v5415
        %6674 = vmatprep.subr.bf16.mxu0 %v5412
        %6675 = vmatpush2.bf16.msra.mxu0 %v5411
        %6676 = vmatprep.mubr.bf16.mxu0 %v2568
        %6677 = vmatmul.mubr.bf16.gmra.mxu0 %v2567
        %v6678 = vpop.f32.mrf.mxu0
        %v6679 = vadd.f32 %v6638, %v6678
        %v6680 = vpop.f32.mrf.mxu0
        %v6681 = vadd.f32 %v6640, %v6680
        %v6682 = vpop.f32.mrf.mxu0
        %v6683 = vpop.f32.mrf.mxu0
        %6684 = vdwg.mxu0
        %6685 = vmatprep.subr.bf16.mxu0 %v5472
        %6686 = vmatpush1.bf16.msra.mxu0 %v5471
        %6687 = vmatprep.subr.bf16.mxu0 %v5468
        %6688 = vmatpush1.bf16.msra.mxu0 %v5467
        %6689 = vmatprep.subr.bf16.mxu0 %v5464
        %6690 = vmatpush1.bf16.msra.mxu0 %v5463
        %6691 = vmatprep.subr.bf16.mxu0 %v5460
        %6692 = vmatpush1.bf16.msra.mxu0 %v5459
        %6693 = vmatprep.subr.bf16.mxu0 %v5456
        %6694 = vmatpush1.bf16.msra.mxu0 %v5455
        %6695 = vmatprep.subr.bf16.mxu0 %v5452
        %6696 = vmatpush1.bf16.msra.mxu0 %v5451
        %6697 = vmatprep.subr.bf16.mxu0 %v5448
        %6698 = vmatpush1.bf16.msra.mxu0 %v5447
        %6699 = vmatprep.subr.bf16.mxu0 %v5444
        %6700 = vmatpush1.bf16.msra.mxu0 %v5443
        %6701 = vmatprep.subr.bf16.mxu0 %v5504
        %6702 = vmatpush2.bf16.msra.mxu0 %v5503
        %6703 = vmatprep.subr.bf16.mxu0 %v5500
        %6704 = vmatpush2.bf16.msra.mxu0 %v5499
        %6705 = vmatprep.subr.bf16.mxu0 %v5496
        %6706 = vmatpush2.bf16.msra.mxu0 %v5495
        %6707 = vmatprep.subr.bf16.mxu0 %v5492
        %6708 = vmatpush2.bf16.msra.mxu0 %v5491
        %6709 = vmatprep.subr.bf16.mxu0 %v5488
        %6710 = vmatpush2.bf16.msra.mxu0 %v5487
        %6711 = vmatprep.subr.bf16.mxu0 %v5484
        %6712 = vmatpush2.bf16.msra.mxu0 %v5483
        %6713 = vmatprep.subr.bf16.mxu0 %v5480
        %6714 = vmatpush2.bf16.msra.mxu0 %v5479
        %6715 = vmatprep.subr.bf16.mxu0 %v5476
        %6716 = vmatpush2.bf16.msra.mxu0 %v5475
        %6717 = vmatprep.mubr.bf16.mxu0 %v2570
        %6718 = vmatmul.mubr.bf16.gmra.mxu0 %v2569
        %v6719 = vpop.f32.mrf.mxu0
        %v6720 = vadd.f32 %v6679, %v6719
        %v6721 = vpop.f32.mrf.mxu0
        %v6722 = vadd.f32 %v6681, %v6721
        %v6723 = vpop.f32.mrf.mxu0
        %v6724 = vpop.f32.mrf.mxu0
        %6725 = vdwg.mxu0
        %6726 = vmatprep.subr.bf16.mxu0 %v5536
        %6727 = vmatpush1.bf16.msra.mxu0 %v5535
        %6728 = vmatprep.subr.bf16.mxu0 %v5532
        %6729 = vmatpush1.bf16.msra.mxu0 %v5531
        %6730 = vmatprep.subr.bf16.mxu0 %v5528
        %6731 = vmatpush1.bf16.msra.mxu0 %v5527
        %6732 = vmatprep.subr.bf16.mxu0 %v5524
        %6733 = vmatpush1.bf16.msra.mxu0 %v5523
        %6734 = vmatprep.subr.bf16.mxu0 %v5520
        %6735 = vmatpush1.bf16.msra.mxu0 %v5519
        %6736 = vmatprep.subr.bf16.mxu0 %v5516
        %6737 = vmatpush1.bf16.msra.mxu0 %v5515
        %6738 = vmatprep.subr.bf16.mxu0 %v5512
        %6739 = vmatpush1.bf16.msra.mxu0 %v5511
        %6740 = vmatprep.subr.bf16.mxu0 %v5508
        %6741 = vmatpush1.bf16.msra.mxu0 %v5507
        %6742 = vmatprep.subr.bf16.mxu0 0
        %6743 = vmatpush2.bf16.msra.mxu0 0
        %6744 = vmatprep.subr.bf16.mxu0 0
        %6745 = vmatpush2.bf16.msra.mxu0 0
        %6746 = vmatprep.subr.bf16.mxu0 0
        %6747 = vmatpush2.bf16.msra.mxu0 0
        %6748 = vmatprep.subr.bf16.mxu0 0
        %6749 = vmatpush2.bf16.msra.mxu0 0
        %6750 = vmatprep.subr.bf16.mxu0 0
        %6751 = vmatpush2.bf16.msra.mxu0 0
        %6752 = vmatprep.subr.bf16.mxu0 0
        %6753 = vmatpush2.bf16.msra.mxu0 0
        %6754 = vmatprep.subr.bf16.mxu0 0
        %6755 = vmatpush2.bf16.msra.mxu0 0
        %6756 = vmatprep.subr.bf16.mxu0 0
        %6757 = vmatpush2.bf16.msra.mxu0 0
        %6758 = vmatprep.mubr.bf16.mxu0 0
        %6759 = vmatmul.mubr.bf16.gmra.mxu0 %v2571
        %v6760 = vpop.f32.mrf.mxu0
        %v6761 = vadd.f32 %v6720, %v6760
        %v6762 = vpop.f32.mrf.mxu0
        %v6763 = vadd.f32 %v6722, %v6762
        %v6764 = vpop.f32.mrf.mxu0
        %v6765 = vpop.f32.mrf.mxu0
        %6766 = vdwg.mxu0
        %6767 = vmatprep.subr.bf16.mxu0 %v4834
        %6768 = vmatpush1.bf16.msra.mxu0 %v4833
        %6769 = vmatprep.subr.bf16.mxu0 %v4830
        %6770 = vmatpush1.bf16.msra.mxu0 %v4829
        %6771 = vmatprep.subr.bf16.mxu0 %v4826
        %6772 = vmatpush1.bf16.msra.mxu0 %v4825
        %6773 = vmatprep.subr.bf16.mxu0 %v4822
        %6774 = vmatpush1.bf16.msra.mxu0 %v4821
        %6775 = vmatprep.subr.bf16.mxu0 %v4818
        %6776 = vmatpush1.bf16.msra.mxu0 %v4817
        %6777 = vmatprep.subr.bf16.mxu0 %v4814
        %6778 = vmatpush1.bf16.msra.mxu0 %v4813
        %6779 = vmatprep.subr.bf16.mxu0 %v4810
        %6780 = vmatpush1.bf16.msra.mxu0 %v4809
        %6781 = vmatprep.subr.bf16.mxu0 %v4806
        %6782 = vmatpush1.bf16.msra.mxu0 %v4805
        %6783 = vmatprep.subr.bf16.mxu0 %v4866
        %6784 = vmatpush2.bf16.msra.mxu0 %v4865
        %6785 = vmatprep.subr.bf16.mxu0 %v4862
        %6786 = vmatpush2.bf16.msra.mxu0 %v4861
        %6787 = vmatprep.subr.bf16.mxu0 %v4858
        %6788 = vmatpush2.bf16.msra.mxu0 %v4857
        %6789 = vmatprep.subr.bf16.mxu0 %v4854
        %6790 = vmatpush2.bf16.msra.mxu0 %v4853
        %6791 = vmatprep.subr.bf16.mxu0 %v4850
        %6792 = vmatpush2.bf16.msra.mxu0 %v4849
        %6793 = vmatprep.subr.bf16.mxu0 %v4846
        %6794 = vmatpush2.bf16.msra.mxu0 %v4845
        %6795 = vmatprep.subr.bf16.mxu0 %v4842
        %6796 = vmatpush2.bf16.msra.mxu0 %v4841
        %6797 = vmatprep.subr.bf16.mxu0 %v4838
        %6798 = vmatpush2.bf16.msra.mxu0 %v4837
        %6799 = vmatprep.mubr.bf16.mxu0 %v2550
        %6800 = vmatmul.mubr.bf16.gmra.mxu0 %v2549
        %v6801 = vpop.f32.mrf.mxu0
        %v6802 = vadd.f32 0.0, %v6801
        %v6803 = vpop.f32.mrf.mxu0
        %v6804 = vadd.f32 0.0, %v6803
        %v6805 = vpop.f32.mrf.mxu0
        %v6806 = vpop.f32.mrf.mxu0
        %6807 = vdwg.mxu0
        %6808 = vmatprep.subr.bf16.mxu0 %v4898
        %6809 = vmatpush1.bf16.msra.mxu0 %v4897
        %6810 = vmatprep.subr.bf16.mxu0 %v4894
        %6811 = vmatpush1.bf16.msra.mxu0 %v4893
        %6812 = vmatprep.subr.bf16.mxu0 %v4890
        %6813 = vmatpush1.bf16.msra.mxu0 %v4889
        %6814 = vmatprep.subr.bf16.mxu0 %v4886
        %6815 = vmatpush1.bf16.msra.mxu0 %v4885
        %6816 = vmatprep.subr.bf16.mxu0 %v4882
        %6817 = vmatpush1.bf16.msra.mxu0 %v4881
        %6818 = vmatprep.subr.bf16.mxu0 %v4878
        %6819 = vmatpush1.bf16.msra.mxu0 %v4877
        %6820 = vmatprep.subr.bf16.mxu0 %v4874
        %6821 = vmatpush1.bf16.msra.mxu0 %v4873
        %6822 = vmatprep.subr.bf16.mxu0 %v4870
        %6823 = vmatpush1.bf16.msra.mxu0 %v4869
        %6824 = vmatprep.subr.bf16.mxu0 %v4930
        %6825 = vmatpush2.bf16.msra.mxu0 %v4929
        %6826 = vmatprep.subr.bf16.mxu0 %v4926
        %6827 = vmatpush2.bf16.msra.mxu0 %v4925
        %6828 = vmatprep.subr.bf16.mxu0 %v4922
        %6829 = vmatpush2.bf16.msra.mxu0 %v4921
        %6830 = vmatprep.subr.bf16.mxu0 %v4918
        %6831 = vmatpush2.bf16.msra.mxu0 %v4917
        %6832 = vmatprep.subr.bf16.mxu0 %v4914
        %6833 = vmatpush2.bf16.msra.mxu0 %v4913
        %6834 = vmatprep.subr.bf16.mxu0 %v4910
        %6835 = vmatpush2.bf16.msra.mxu0 %v4909
        %6836 = vmatprep.subr.bf16.mxu0 %v4906
        %6837 = vmatpush2.bf16.msra.mxu0 %v4905
        %6838 = vmatprep.subr.bf16.mxu0 %v4902
        %6839 = vmatpush2.bf16.msra.mxu0 %v4901
        %6840 = vmatprep.mubr.bf16.mxu0 %v2552
        %6841 = vmatmul.mubr.bf16.gmra.mxu0 %v2551
        %v6842 = vpop.f32.mrf.mxu0
        %v6843 = vadd.f32 %v6802, %v6842
        %v6844 = vpop.f32.mrf.mxu0
        %v6845 = vadd.f32 %v6804, %v6844
        %v6846 = vpop.f32.mrf.mxu0
        %v6847 = vpop.f32.mrf.mxu0
        %6848 = vdwg.mxu0
        %6849 = vmatprep.subr.bf16.mxu0 %v4962
        %6850 = vmatpush1.bf16.msra.mxu0 %v4961
        %6851 = vmatprep.subr.bf16.mxu0 %v4958
        %6852 = vmatpush1.bf16.msra.mxu0 %v4957
        %6853 = vmatprep.subr.bf16.mxu0 %v4954
        %6854 = vmatpush1.bf16.msra.mxu0 %v4953
        %6855 = vmatprep.subr.bf16.mxu0 %v4950
        %6856 = vmatpush1.bf16.msra.mxu0 %v4949
        %6857 = vmatprep.subr.bf16.mxu0 %v4946
        %6858 = vmatpush1.bf16.msra.mxu0 %v4945
        %6859 = vmatprep.subr.bf16.mxu0 %v4942
        %6860 = vmatpush1.bf16.msra.mxu0 %v4941
        %6861 = vmatprep.subr.bf16.mxu0 %v4938
        %6862 = vmatpush1.bf16.msra.mxu0 %v4937
        %6863 = vmatprep.subr.bf16.mxu0 %v4934
        %6864 = vmatpush1.bf16.msra.mxu0 %v4933
        %6865 = vmatprep.subr.bf16.mxu0 %v4994
        %6866 = vmatpush2.bf16.msra.mxu0 %v4993
        %6867 = vmatprep.subr.bf16.mxu0 %v4990
        %6868 = vmatpush2.bf16.msra.mxu0 %v4989
        %6869 = vmatprep.subr.bf16.mxu0 %v4986
        %6870 = vmatpush2.bf16.msra.mxu0 %v4985
        %6871 = vmatprep.subr.bf16.mxu0 %v4982
        %6872 = vmatpush2.bf16.msra.mxu0 %v4981
        %6873 = vmatprep.subr.bf16.mxu0 %v4978
        %6874 = vmatpush2.bf16.msra.mxu0 %v4977
        %6875 = vmatprep.subr.bf16.mxu0 %v4974
        %6876 = vmatpush2.bf16.msra.mxu0 %v4973
        %6877 = vmatprep.subr.bf16.mxu0 %v4970
        %6878 = vmatpush2.bf16.msra.mxu0 %v4969
        %6879 = vmatprep.subr.bf16.mxu0 %v4966
        %6880 = vmatpush2.bf16.msra.mxu0 %v4965
        %6881 = vmatprep.mubr.bf16.mxu0 %v2554
        %6882 = vmatmul.mubr.bf16.gmra.mxu0 %v2553
        %v6883 = vpop.f32.mrf.mxu0
        %v6884 = vadd.f32 %v6843, %v6883
        %v6885 = vpop.f32.mrf.mxu0
        %v6886 = vadd.f32 %v6845, %v6885
        %v6887 = vpop.f32.mrf.mxu0
        %v6888 = vpop.f32.mrf.mxu0
        %6889 = vdwg.mxu0
        %6890 = vmatprep.subr.bf16.mxu0 %v5026
        %6891 = vmatpush1.bf16.msra.mxu0 %v5025
        %6892 = vmatprep.subr.bf16.mxu0 %v5022
        %6893 = vmatpush1.bf16.msra.mxu0 %v5021
        %6894 = vmatprep.subr.bf16.mxu0 %v5018
        %6895 = vmatpush1.bf16.msra.mxu0 %v5017
        %6896 = vmatprep.subr.bf16.mxu0 %v5014
        %6897 = vmatpush1.bf16.msra.mxu0 %v5013
        %6898 = vmatprep.subr.bf16.mxu0 %v5010
        %6899 = vmatpush1.bf16.msra.mxu0 %v5009
        %6900 = vmatprep.subr.bf16.mxu0 %v5006
        %6901 = vmatpush1.bf16.msra.mxu0 %v5005
        %6902 = vmatprep.subr.bf16.mxu0 %v5002
        %6903 = vmatpush1.bf16.msra.mxu0 %v5001
        %6904 = vmatprep.subr.bf16.mxu0 %v4998
        %6905 = vmatpush1.bf16.msra.mxu0 %v4997
        %6906 = vmatprep.subr.bf16.mxu0 %v5058
        %6907 = vmatpush2.bf16.msra.mxu0 %v5057
        %6908 = vmatprep.subr.bf16.mxu0 %v5054
        %6909 = vmatpush2.bf16.msra.mxu0 %v5053
        %6910 = vmatprep.subr.bf16.mxu0 %v5050
        %6911 = vmatpush2.bf16.msra.mxu0 %v5049
        %6912 = vmatprep.subr.bf16.mxu0 %v5046
        %6913 = vmatpush2.bf16.msra.mxu0 %v5045
        %6914 = vmatprep.subr.bf16.mxu0 %v5042
        %6915 = vmatpush2.bf16.msra.mxu0 %v5041
        %6916 = vmatprep.subr.bf16.mxu0 %v5038
        %6917 = vmatpush2.bf16.msra.mxu0 %v5037
        %6918 = vmatprep.subr.bf16.mxu0 %v5034
        %6919 = vmatpush2.bf16.msra.mxu0 %v5033
        %6920 = vmatprep.subr.bf16.mxu0 %v5030
        %6921 = vmatpush2.bf16.msra.mxu0 %v5029
        %6922 = vmatprep.mubr.bf16.mxu0 %v2556
        %6923 = vmatmul.mubr.bf16.gmra.mxu0 %v2555
        %v6924 = vpop.f32.mrf.mxu0
        %v6925 = vadd.f32 %v6884, %v6924
        %v6926 = vpop.f32.mrf.mxu0
        %v6927 = vadd.f32 %v6886, %v6926
        %v6928 = vpop.f32.mrf.mxu0
        %v6929 = vpop.f32.mrf.mxu0
        %6930 = vdwg.mxu0
        %6931 = vmatprep.subr.bf16.mxu0 %v5090
        %6932 = vmatpush1.bf16.msra.mxu0 %v5089
        %6933 = vmatprep.subr.bf16.mxu0 %v5086
        %6934 = vmatpush1.bf16.msra.mxu0 %v5085
        %6935 = vmatprep.subr.bf16.mxu0 %v5082
        %6936 = vmatpush1.bf16.msra.mxu0 %v5081
        %6937 = vmatprep.subr.bf16.mxu0 %v5078
        %6938 = vmatpush1.bf16.msra.mxu0 %v5077
        %6939 = vmatprep.subr.bf16.mxu0 %v5074
        %6940 = vmatpush1.bf16.msra.mxu0 %v5073
        %6941 = vmatprep.subr.bf16.mxu0 %v5070
        %6942 = vmatpush1.bf16.msra.mxu0 %v5069
        %6943 = vmatprep.subr.bf16.mxu0 %v5066
        %6944 = vmatpush1.bf16.msra.mxu0 %v5065
        %6945 = vmatprep.subr.bf16.mxu0 %v5062
        %6946 = vmatpush1.bf16.msra.mxu0 %v5061
        %6947 = vmatprep.subr.bf16.mxu0 %v5122
        %6948 = vmatpush2.bf16.msra.mxu0 %v5121
        %6949 = vmatprep.subr.bf16.mxu0 %v5118
        %6950 = vmatpush2.bf16.msra.mxu0 %v5117
        %6951 = vmatprep.subr.bf16.mxu0 %v5114
        %6952 = vmatpush2.bf16.msra.mxu0 %v5113
        %6953 = vmatprep.subr.bf16.mxu0 %v5110
        %6954 = vmatpush2.bf16.msra.mxu0 %v5109
        %6955 = vmatprep.subr.bf16.mxu0 %v5106
        %6956 = vmatpush2.bf16.msra.mxu0 %v5105
        %6957 = vmatprep.subr.bf16.mxu0 %v5102
        %6958 = vmatpush2.bf16.msra.mxu0 %v5101
        %6959 = vmatprep.subr.bf16.mxu0 %v5098
        %6960 = vmatpush2.bf16.msra.mxu0 %v5097
        %6961 = vmatprep.subr.bf16.mxu0 %v5094
        %6962 = vmatpush2.bf16.msra.mxu0 %v5093
        %6963 = vmatprep.mubr.bf16.mxu0 %v2558
        %6964 = vmatmul.mubr.bf16.gmra.mxu0 %v2557
        %v6965 = vpop.f32.mrf.mxu0
        %v6966 = vadd.f32 %v6925, %v6965
        %v6967 = vpop.f32.mrf.mxu0
        %v6968 = vadd.f32 %v6927, %v6967
        %v6969 = vpop.f32.mrf.mxu0
        %v6970 = vpop.f32.mrf.mxu0
        %6971 = vdwg.mxu0
        %6972 = vmatprep.subr.bf16.mxu0 %v5154
        %6973 = vmatpush1.bf16.msra.mxu0 %v5153
        %6974 = vmatprep.subr.bf16.mxu0 %v5150
        %6975 = vmatpush1.bf16.msra.mxu0 %v5149
        %6976 = vmatprep.subr.bf16.mxu0 %v5146
        %6977 = vmatpush1.bf16.msra.mxu0 %v5145
        %6978 = vmatprep.subr.bf16.mxu0 %v5142
        %6979 = vmatpush1.bf16.msra.mxu0 %v5141
        %6980 = vmatprep.subr.bf16.mxu0 %v5138
        %6981 = vmatpush1.bf16.msra.mxu0 %v5137
        %6982 = vmatprep.subr.bf16.mxu0 %v5134
        %6983 = vmatpush1.bf16.msra.mxu0 %v5133
        %6984 = vmatprep.subr.bf16.mxu0 %v5130
        %6985 = vmatpush1.bf16.msra.mxu0 %v5129
        %6986 = vmatprep.subr.bf16.mxu0 %v5126
        %6987 = vmatpush1.bf16.msra.mxu0 %v5125
        %6988 = vmatprep.subr.bf16.mxu0 %v5186
        %6989 = vmatpush2.bf16.msra.mxu0 %v5185
        %6990 = vmatprep.subr.bf16.mxu0 %v5182
        %6991 = vmatpush2.bf16.msra.mxu0 %v5181
        %6992 = vmatprep.subr.bf16.mxu0 %v5178
        %6993 = vmatpush2.bf16.msra.mxu0 %v5177
        %6994 = vmatprep.subr.bf16.mxu0 %v5174
        %6995 = vmatpush2.bf16.msra.mxu0 %v5173
        %6996 = vmatprep.subr.bf16.mxu0 %v5170
        %6997 = vmatpush2.bf16.msra.mxu0 %v5169
        %6998 = vmatprep.subr.bf16.mxu0 %v5166
        %6999 = vmatpush2.bf16.msra.mxu0 %v5165
        %7000 = vmatprep.subr.bf16.mxu0 %v5162
        %7001 = vmatpush2.bf16.msra.mxu0 %v5161
        %7002 = vmatprep.subr.bf16.mxu0 %v5158
        %7003 = vmatpush2.bf16.msra.mxu0 %v5157
        %7004 = vmatprep.mubr.bf16.mxu0 %v2560
        %7005 = vmatmul.mubr.bf16.gmra.mxu0 %v2559
        %v7006 = vpop.f32.mrf.mxu0
        %v7007 = vadd.f32 %v6966, %v7006
        %v7008 = vpop.f32.mrf.mxu0
        %v7009 = vadd.f32 %v6968, %v7008
        %v7010 = vpop.f32.mrf.mxu0
        %v7011 = vpop.f32.mrf.mxu0
        %7012 = vdwg.mxu0
        %7013 = vmatprep.subr.bf16.mxu0 %v5218
        %7014 = vmatpush1.bf16.msra.mxu0 %v5217
        %7015 = vmatprep.subr.bf16.mxu0 %v5214
        %7016 = vmatpush1.bf16.msra.mxu0 %v5213
        %7017 = vmatprep.subr.bf16.mxu0 %v5210
        %7018 = vmatpush1.bf16.msra.mxu0 %v5209
        %7019 = vmatprep.subr.bf16.mxu0 %v5206
        %7020 = vmatpush1.bf16.msra.mxu0 %v5205
        %7021 = vmatprep.subr.bf16.mxu0 %v5202
        %7022 = vmatpush1.bf16.msra.mxu0 %v5201
        %7023 = vmatprep.subr.bf16.mxu0 %v5198
        %7024 = vmatpush1.bf16.msra.mxu0 %v5197
        %7025 = vmatprep.subr.bf16.mxu0 %v5194
        %7026 = vmatpush1.bf16.msra.mxu0 %v5193
        %7027 = vmatprep.subr.bf16.mxu0 %v5190
        %7028 = vmatpush1.bf16.msra.mxu0 %v5189
        %7029 = vmatprep.subr.bf16.mxu0 %v5250
        %7030 = vmatpush2.bf16.msra.mxu0 %v5249
        %7031 = vmatprep.subr.bf16.mxu0 %v5246
        %7032 = vmatpush2.bf16.msra.mxu0 %v5245
        %7033 = vmatprep.subr.bf16.mxu0 %v5242
        %7034 = vmatpush2.bf16.msra.mxu0 %v5241
        %7035 = vmatprep.subr.bf16.mxu0 %v5238
        %7036 = vmatpush2.bf16.msra.mxu0 %v5237
        %7037 = vmatprep.subr.bf16.mxu0 %v5234
        %7038 = vmatpush2.bf16.msra.mxu0 %v5233
        %7039 = vmatprep.subr.bf16.mxu0 %v5230
        %7040 = vmatpush2.bf16.msra.mxu0 %v5229
        %7041 = vmatprep.subr.bf16.mxu0 %v5226
        %7042 = vmatpush2.bf16.msra.mxu0 %v5225
        %7043 = vmatprep.subr.bf16.mxu0 %v5222
        %7044 = vmatpush2.bf16.msra.mxu0 %v5221
        %7045 = vmatprep.mubr.bf16.mxu0 %v2562
        %7046 = vmatmul.mubr.bf16.gmra.mxu0 %v2561
        %v7047 = vpop.f32.mrf.mxu0
        %v7048 = vadd.f32 %v7007, %v7047
        %v7049 = vpop.f32.mrf.mxu0
        %v7050 = vadd.f32 %v7009, %v7049
        %v7051 = vpop.f32.mrf.mxu0
        %v7052 = vpop.f32.mrf.mxu0
        %7053 = vdwg.mxu0
        %7054 = vmatprep.subr.bf16.mxu0 %v5282
        %7055 = vmatpush1.bf16.msra.mxu0 %v5281
        %7056 = vmatprep.subr.bf16.mxu0 %v5278
        %7057 = vmatpush1.bf16.msra.mxu0 %v5277
        %7058 = vmatprep.subr.bf16.mxu0 %v5274
        %7059 = vmatpush1.bf16.msra.mxu0 %v5273
        %7060 = vmatprep.subr.bf16.mxu0 %v5270
        %7061 = vmatpush1.bf16.msra.mxu0 %v5269
        %7062 = vmatprep.subr.bf16.mxu0 %v5266
        %7063 = vmatpush1.bf16.msra.mxu0 %v5265
        %7064 = vmatprep.subr.bf16.mxu0 %v5262
        %7065 = vmatpush1.bf16.msra.mxu0 %v5261
        %7066 = vmatprep.subr.bf16.mxu0 %v5258
        %7067 = vmatpush1.bf16.msra.mxu0 %v5257
        %7068 = vmatprep.subr.bf16.mxu0 %v5254
        %7069 = vmatpush1.bf16.msra.mxu0 %v5253
        %7070 = vmatprep.subr.bf16.mxu0 %v5314
        %7071 = vmatpush2.bf16.msra.mxu0 %v5313
        %7072 = vmatprep.subr.bf16.mxu0 %v5310
        %7073 = vmatpush2.bf16.msra.mxu0 %v5309
        %7074 = vmatprep.subr.bf16.mxu0 %v5306
        %7075 = vmatpush2.bf16.msra.mxu0 %v5305
        %7076 = vmatprep.subr.bf16.mxu0 %v5302
        %7077 = vmatpush2.bf16.msra.mxu0 %v5301
        %7078 = vmatprep.subr.bf16.mxu0 %v5298
        %7079 = vmatpush2.bf16.msra.mxu0 %v5297
        %7080 = vmatprep.subr.bf16.mxu0 %v5294
        %7081 = vmatpush2.bf16.msra.mxu0 %v5293
        %7082 = vmatprep.subr.bf16.mxu0 %v5290
        %7083 = vmatpush2.bf16.msra.mxu0 %v5289
        %7084 = vmatprep.subr.bf16.mxu0 %v5286
        %7085 = vmatpush2.bf16.msra.mxu0 %v5285
        %7086 = vmatprep.mubr.bf16.mxu0 %v2564
        %7087 = vmatmul.mubr.bf16.gmra.mxu0 %v2563
        %v7088 = vpop.f32.mrf.mxu0
        %v7089 = vadd.f32 %v7048, %v7088
        %v7090 = vpop.f32.mrf.mxu0
        %v7091 = vadd.f32 %v7050, %v7090
        %v7092 = vpop.f32.mrf.mxu0
        %v7093 = vpop.f32.mrf.mxu0
        %7094 = vdwg.mxu0
        %7095 = vmatprep.subr.bf16.mxu0 %v5346
        %7096 = vmatpush1.bf16.msra.mxu0 %v5345
        %7097 = vmatprep.subr.bf16.mxu0 %v5342
        %7098 = vmatpush1.bf16.msra.mxu0 %v5341
        %7099 = vmatprep.subr.bf16.mxu0 %v5338
        %7100 = vmatpush1.bf16.msra.mxu0 %v5337
        %7101 = vmatprep.subr.bf16.mxu0 %v5334
        %7102 = vmatpush1.bf16.msra.mxu0 %v5333
        %7103 = vmatprep.subr.bf16.mxu0 %v5330
        %7104 = vmatpush1.bf16.msra.mxu0 %v5329
        %7105 = vmatprep.subr.bf16.mxu0 %v5326
        %7106 = vmatpush1.bf16.msra.mxu0 %v5325
        %7107 = vmatprep.subr.bf16.mxu0 %v5322
        %7108 = vmatpush1.bf16.msra.mxu0 %v5321
        %7109 = vmatprep.subr.bf16.mxu0 %v5318
        %7110 = vmatpush1.bf16.msra.mxu0 %v5317
        %7111 = vmatprep.subr.bf16.mxu0 %v5378
        %7112 = vmatpush2.bf16.msra.mxu0 %v5377
        %7113 = vmatprep.subr.bf16.mxu0 %v5374
        %7114 = vmatpush2.bf16.msra.mxu0 %v5373
        %7115 = vmatprep.subr.bf16.mxu0 %v5370
        %7116 = vmatpush2.bf16.msra.mxu0 %v5369
        %7117 = vmatprep.subr.bf16.mxu0 %v5366
        %7118 = vmatpush2.bf16.msra.mxu0 %v5365
        %7119 = vmatprep.subr.bf16.mxu0 %v5362
        %7120 = vmatpush2.bf16.msra.mxu0 %v5361
        %7121 = vmatprep.subr.bf16.mxu0 %v5358
        %7122 = vmatpush2.bf16.msra.mxu0 %v5357
        %7123 = vmatprep.subr.bf16.mxu0 %v5354
        %7124 = vmatpush2.bf16.msra.mxu0 %v5353
        %7125 = vmatprep.subr.bf16.mxu0 %v5350
        %7126 = vmatpush2.bf16.msra.mxu0 %v5349
        %7127 = vmatprep.mubr.bf16.mxu0 %v2566
        %7128 = vmatmul.mubr.bf16.gmra.mxu0 %v2565
        %v7129 = vpop.f32.mrf.mxu0
        %v7130 = vadd.f32 %v7089, %v7129
        %v7131 = vpop.f32.mrf.mxu0
        %v7132 = vadd.f32 %v7091, %v7131
        %v7133 = vpop.f32.mrf.mxu0
        %v7134 = vpop.f32.mrf.mxu0
        %7135 = vdwg.mxu0
        %7136 = vmatprep.subr.bf16.mxu0 %v5410
        %7137 = vmatpush1.bf16.msra.mxu0 %v5409
        %7138 = vmatprep.subr.bf16.mxu0 %v5406
        %7139 = vmatpush1.bf16.msra.mxu0 %v5405
        %7140 = vmatprep.subr.bf16.mxu0 %v5402
        %7141 = vmatpush1.bf16.msra.mxu0 %v5401
        %7142 = vmatprep.subr.bf16.mxu0 %v5398
        %7143 = vmatpush1.bf16.msra.mxu0 %v5397
        %7144 = vmatprep.subr.bf16.mxu0 %v5394
        %7145 = vmatpush1.bf16.msra.mxu0 %v5393
        %7146 = vmatprep.subr.bf16.mxu0 %v5390
        %7147 = vmatpush1.bf16.msra.mxu0 %v5389
        %7148 = vmatprep.subr.bf16.mxu0 %v5386
        %7149 = vmatpush1.bf16.msra.mxu0 %v5385
        %7150 = vmatprep.subr.bf16.mxu0 %v5382
        %7151 = vmatpush1.bf16.msra.mxu0 %v5381
        %7152 = vmatprep.subr.bf16.mxu0 %v5442
        %7153 = vmatpush2.bf16.msra.mxu0 %v5441
        %7154 = vmatprep.subr.bf16.mxu0 %v5438
        %7155 = vmatpush2.bf16.msra.mxu0 %v5437
        %7156 = vmatprep.subr.bf16.mxu0 %v5434
        %7157 = vmatpush2.bf16.msra.mxu0 %v5433
        %7158 = vmatprep.subr.bf16.mxu0 %v5430
        %7159 = vmatpush2.bf16.msra.mxu0 %v5429
        %7160 = vmatprep.subr.bf16.mxu0 %v5426
        %7161 = vmatpush2.bf16.msra.mxu0 %v5425
        %7162 = vmatprep.subr.bf16.mxu0 %v5422
        %7163 = vmatpush2.bf16.msra.mxu0 %v5421
        %7164 = vmatprep.subr.bf16.mxu0 %v5418
        %7165 = vmatpush2.bf16.msra.mxu0 %v5417
        %7166 = vmatprep.subr.bf16.mxu0 %v5414
        %7167 = vmatpush2.bf16.msra.mxu0 %v5413
        %7168 = vmatprep.mubr.bf16.mxu0 %v2568
        %7169 = vmatmul.mubr.bf16.gmra.mxu0 %v2567
        %v7170 = vpop.f32.mrf.mxu0
        %v7171 = vadd.f32 %v7130, %v7170
        %v7172 = vpop.f32.mrf.mxu0
        %v7173 = vadd.f32 %v7132, %v7172
        %v7174 = vpop.f32.mrf.mxu0
        %v7175 = vpop.f32.mrf.mxu0
        %7176 = vdwg.mxu0
        %7177 = vmatprep.subr.bf16.mxu0 %v5474
        %7178 = vmatpush1.bf16.msra.mxu0 %v5473
        %7179 = vmatprep.subr.bf16.mxu0 %v5470
        %7180 = vmatpush1.bf16.msra.mxu0 %v5469
        %7181 = vmatprep.subr.bf16.mxu0 %v5466
        %7182 = vmatpush1.bf16.msra.mxu0 %v5465
        %7183 = vmatprep.subr.bf16.mxu0 %v5462
        %7184 = vmatpush1.bf16.msra.mxu0 %v5461
        %7185 = vmatprep.subr.bf16.mxu0 %v5458
        %7186 = vmatpush1.bf16.msra.mxu0 %v5457
        %7187 = vmatprep.subr.bf16.mxu0 %v5454
        %7188 = vmatpush1.bf16.msra.mxu0 %v5453
        %7189 = vmatprep.subr.bf16.mxu0 %v5450
        %7190 = vmatpush1.bf16.msra.mxu0 %v5449
        %7191 = vmatprep.subr.bf16.mxu0 %v5446
        %7192 = vmatpush1.bf16.msra.mxu0 %v5445
        %7193 = vmatprep.subr.bf16.mxu0 %v5506
        %7194 = vmatpush2.bf16.msra.mxu0 %v5505
        %7195 = vmatprep.subr.bf16.mxu0 %v5502
        %7196 = vmatpush2.bf16.msra.mxu0 %v5501
        %7197 = vmatprep.subr.bf16.mxu0 %v5498
        %7198 = vmatpush2.bf16.msra.mxu0 %v5497
        %7199 = vmatprep.subr.bf16.mxu0 %v5494
        %7200 = vmatpush2.bf16.msra.mxu0 %v5493
        %7201 = vmatprep.subr.bf16.mxu0 %v5490
        %7202 = vmatpush2.bf16.msra.mxu0 %v5489
        %7203 = vmatprep.subr.bf16.mxu0 %v5486
        %7204 = vmatpush2.bf16.msra.mxu0 %v5485
        %7205 = vmatprep.subr.bf16.mxu0 %v5482
        %7206 = vmatpush2.bf16.msra.mxu0 %v5481
        %7207 = vmatprep.subr.bf16.mxu0 %v5478
        %7208 = vmatpush2.bf16.msra.mxu0 %v5477
        %7209 = vmatprep.mubr.bf16.mxu0 %v2570
        %7210 = vmatmul.mubr.bf16.gmra.mxu0 %v2569
        %v7211 = vpop.f32.mrf.mxu0
        %v7212 = vadd.f32 %v7171, %v7211
        %v7213 = vpop.f32.mrf.mxu0
        %v7214 = vadd.f32 %v7173, %v7213
        %v7215 = vpop.f32.mrf.mxu0
        %v7216 = vpop.f32.mrf.mxu0
        %7217 = vdwg.mxu0
        %7218 = vmatprep.subr.bf16.mxu0 %v5538
        %7219 = vmatpush1.bf16.msra.mxu0 %v5537
        %7220 = vmatprep.subr.bf16.mxu0 %v5534
        %7221 = vmatpush1.bf16.msra.mxu0 %v5533
        %7222 = vmatprep.subr.bf16.mxu0 %v5530
        %7223 = vmatpush1.bf16.msra.mxu0 %v5529
        %7224 = vmatprep.subr.bf16.mxu0 %v5526
        %7225 = vmatpush1.bf16.msra.mxu0 %v5525
        %7226 = vmatprep.subr.bf16.mxu0 %v5522
        %7227 = vmatpush1.bf16.msra.mxu0 %v5521
        %7228 = vmatprep.subr.bf16.mxu0 %v5518
        %7229 = vmatpush1.bf16.msra.mxu0 %v5517
        %7230 = vmatprep.subr.bf16.mxu0 %v5514
        %7231 = vmatpush1.bf16.msra.mxu0 %v5513
        %7232 = vmatprep.subr.bf16.mxu0 %v5510
        %7233 = vmatpush1.bf16.msra.mxu0 %v5509
        %7234 = vmatprep.subr.bf16.mxu0 0
        %7235 = vmatpush2.bf16.msra.mxu0 0
        %7236 = vmatprep.subr.bf16.mxu0 0
        %7237 = vmatpush2.bf16.msra.mxu0 0
        %7238 = vmatprep.subr.bf16.mxu0 0
        %7239 = vmatpush2.bf16.msra.mxu0 0
        %7240 = vmatprep.subr.bf16.mxu0 0
        %7241 = vmatpush2.bf16.msra.mxu0 0
        %7242 = vmatprep.subr.bf16.mxu0 0
        %7243 = vmatpush2.bf16.msra.mxu0 0
        %7244 = vmatprep.subr.bf16.mxu0 0
        %7245 = vmatpush2.bf16.msra.mxu0 0
        %7246 = vmatprep.subr.bf16.mxu0 0
        %7247 = vmatpush2.bf16.msra.mxu0 0
        %7248 = vmatprep.subr.bf16.mxu0 0
        %7249 = vmatpush2.bf16.msra.mxu0 0
        %7250 = vmatprep.mubr.bf16.mxu0 0
        %7251 = vmatmul.mubr.bf16.gmra.mxu0 %v2571
        %v7252 = vpop.f32.mrf.mxu0
        %v7253 = vadd.f32 %v7212, %v7252
        %v7254 = vpop.f32.mrf.mxu0
        %v7255 = vadd.f32 %v7214, %v7254
        %v7256 = vpop.f32.mrf.mxu0
        %v7257 = vpop.f32.mrf.mxu0
        %7258 = vdwg.mxu0
        %v7259 = vadd.f32 %v1762, %v6761
        %v7260 = vadd.f32 %v1763, %v6763
        %v7261 = vadd.f32 %v1764, %v7253
        %v7262 = vadd.f32 %v1765, %v7255
        %7263 = vst [vmem:[#allocation2] sm:$0xff] %v7259
        %7264 = vst [vmem:[#allocation2 + $0x8] sm:$0xff] %v7260
        %7265 = vst [vmem:[#allocation2 + $0x10] sm:$0xff] %v7261
        %7266 = vst [vmem:[#allocation2 + $0x18] sm:$0xff] %v7262
        %p7267 = scmp.eq.s32.totalorder %s21, 3
        // Predicated region
        $region60: #{forward.7} parent=50 // pred_check
          %p7268 = pneg %p7267
        $region61: #{forward.7} parent=50 // pred_check_branch
          %7270 = sbr.rel (%p7268) target = $region63
        $region62: #{forward.7} parent=50 // pred_region
          %v7271 = vld [vmem:[#allocation2] sm:$0xff]
          %v7272 = vld [vmem:[#allocation2 + $0x8] sm:$0xff]
          %v7273 = vld [vmem:[#allocation2 + $0x10] sm:$0xff]
          %v7274 = vld [vmem:[#allocation2 + $0x18] sm:$0xff]
          %v7275 = vld [vmem:[%s1741] sm:$0xf]
          %v7277 = vlaneseq
          %v7278 = vshrl.u32 %v7277, 7
          %v7279 = vsub.s32 0, %v7278
          %v7280 = vrot.slane %v7275, %v7279
          %v7281 = vlaneseq
          %v7282 = vshrl.u32 %v7281, 7
          %v7283 = vsub.s32 1, %v7282
          %v7284 = vrot.slane %v7275, %v7283
          %v7285 = vlaneseq
          %v7286 = vshrl.u32 %v7285, 7
          %v7287 = vsub.s32 2, %v7286
          %v7288 = vrot.slane %v7275, %v7287
          %v7289 = vlaneseq
          %v7290 = vshrl.u32 %v7289, 7
          %v7291 = vsub.s32 3, %v7290
          %v7292 = vrot.slane %v7275, %v7291
          %v7297 = vadd.f32 %v7271, %v7280
          %v7298 = vadd.f32 %v7272, %v7284
          %v7299 = vadd.f32 %v7273, %v7288
          %v7300 = vadd.f32 %v7274, %v7292
          %v7301 = vmax.f32 %v7297, 0.0
          %v7302 = vmax.f32 %v7298, 0.0
          %v7303 = vmax.f32 %v7299, 0.0
          %v7304 = vmax.f32 %v7300, 0.0
          %7305 = vst [vmem:[%s1751] sm:$0xff] %v7301
          %7306 = vst [vmem:[%s1751 + $0x8] sm:$0xff] %v7302
          %7307 = vst [vmem:[%s1751 + $0x10] sm:$0xff] %v7303
          %7308 = vst [vmem:[%s1751 + $0x18] sm:$0xff] %v7304
        $region63: #{forward.7} parent=50 // pred_fallthru
          _
        %s7309 = smul.u32 4, %s20
        %p7310 = scmp.lt.s32.totalorder %s19, 0
        %s7311 = scalar_select %p7310, %s19, 0
        %p7312 = scmp.lt.s32.totalorder %s7309, 7
        %s7313 = scalar_select %p7312, %s7309, 7
        %s7314 = smul.addr %s7311, 8
        %s7315 = sadd.s32 %s7313, %s7314
        %s7316 = smul.addr %s7315, 8
        %s7317 = scalar_lea.vmem %s3, %s7316
        // Predicated region
        $region64: #{forward.7} parent=50 // pred_check
          %p7318 = pneg %p135
        $region65: #{forward.7} parent=50 // pred_check_branch
          %7320 = sbr.rel (%p7318) target = $region67
        $region66: #{forward.7} parent=50 // pred_region
          %s7321 = smul.u32 4, %s20
        $region67: #{forward.7} parent=50 // pred_fallthru
          _
      $region51: #{forward.7} parent=5 // pred_fallthru
        _
      %p7322 = scmp.le.s32.totalorder 2, %s9
      // Predicated region
      $region68: #{forward.7} parent=5 // pred_check
        %p7323 = pneg %p7322
      $region69: #{forward.7} parent=5 // pred_check_branch
        %7325 = sbr.rel (%p7323) target = $region71
      $region70: #{forward.7} parent=5 // pred_region
        %s7326 = ssub.s32 %s9, 2
        // Predicated region
        $region72: #{forward.7} parent=70 // pred_check
          %p7327 = pneg %p141
        $region73: #{forward.7} parent=70 // pred_check_branch
          %7329 = sbr.rel (%p7327) target = $region75
        $region74: #{forward.7} parent=70 // pred_region
          %s7330 = smul.u32 4, %s23
          %p7331 = scmp.lt.s32.totalorder %s22, 0
          %s7332 = scalar_select %p7331, %s22, 0
          %p7333 = scmp.lt.s32.totalorder %s7330, 7
          %s7334 = scalar_select %p7333, %s7330, 7
          %s7335 = smul.addr %s7332, 8
          %s7336 = sadd.s32 %s7334, %s7335
          %s7337 = smul.addr %s7336, 8
          %s7338 = scalar_lea.vmem %s3, %s7337
        $region75: #{forward.7} parent=70 // pred_fallthru
          _
      $region71: #{forward.7} parent=5 // pred_fallthru
        _
    $region6: #{forward.7} parent=1 // loop_footer
      %s13 = sadd.s32 1, %s9
    $region7: #{forward.7} parent=1 // loop_footer_branch
      %8 = sbr.rel target = $region3
    $region8: #{forward.7} parent=1 // loop_exit
      _

</llo_original>
